<compile_context>
chip_gen: v6e
topology: v6e:2x2x1
jax: 0.10.0
libtpu: 0.0.40
codegen_flags: <defaults>
</compile_context>

<pallas_src>
import functools

import jax
import jax.numpy as jnp
from jax import lax
from jax.experimental import pallas as pl
from jax.experimental.pallas import tpu as pltpu

BN_EPS = 1e-3
MAX_FULL_K = 2048          # single full-K block up to this contraction depth
LANE = 128


def _round_up(x, m):
    return ((x + m - 1) // m) * m


@functools.lru_cache(maxsize=None)
def _vmem_limit_bytes():
    """Per-generation VMEM limit: 3/4 of physical, capped at 100 MiB."""
    cap = 64 * 1024 * 1024
    try:
        info = pltpu.get_tpu_info()
        cap = int(getattr(info, "vmem_capacity_bytes", cap))
    except Exception:
        pass
    return min((cap * 3) // 4, 100 * 1024 * 1024)


# ----------------------------- Pallas kernels -------------------------------

def _matmul_bias_relu_kernel(x_ref, w_ref, b_ref, o_ref):
    """Single full-K block: o = relu(x @ w + b), cast to o.dtype on store.

    x: (TP, K) bf16, w: (K, TC) bf16 (BN scale pre-folded), b: (1, TC) f32,
    o: (TP, TC) out_dtype.
    """
    acc = jnp.dot(x_ref[...], w_ref[...], preferred_element_type=jnp.float32)
    o_ref[...] = jnp.maximum(acc + b_ref[...], 0.0).astype(o_ref.dtype)


def _matmul_bias_relu_acc_kernel(x_ref, w_ref, b_ref, o_ref, acc_ref):
    """Multi-K fallback (K > MAX_FULL_K): K streamed over grid axis 2 into a VMEM
    f32 accumulator.  Correct only because the K axis is the LAST ('arbitrary')
    grid axis, so every (i, j) output tile sees a contiguous k sweep."""
    k = pl.program_id(2)

    @pl.when(k == 0)
    def _init():
        acc_ref[...] = jnp.zeros_like(acc_ref)

    acc_ref[...] += jnp.dot(x_ref[...], w_ref[...],
                            preferred_element_type=jnp.float32)

    @pl.when(k == pl.num_programs(2) - 1)
    def _finalize():
        o_ref[...] = jnp.maximum(acc_ref[...] + b_ref[...], 0.0).astype(o_ref.dtype)


def _maxpool_kernel(taps_ref, o_ref):
    """taps: (T, TM, 128) window taps -> o: (TM, 128) elementwise max over T."""
    o_ref[...] = jnp.max(taps_ref[...], axis=0)


# ------------------------------- JAX glue ------------------------------------

def _window_slices(x_nhwc, kh, kw, stride, padding):
    """Return the kh*kw strided window views, each (N, Ho, Wo, C)."""
    N, H, W, C = x_nhwc.shape
    if padding == "same":
        # The module only uses 'same' with stride 1 and odd kernel dims.
        assert stride == 1 and kh % 2 == 1 and kw % 2 == 1
        ph, pw = kh // 2, kw // 2
        x_nhwc = jnp.pad(x_nhwc, ((0, 0), (ph, ph), (pw, pw), (0, 0)))
    Hp, Wp = x_nhwc.shape[1], x_nhwc.shape[2]
    Ho = (Hp - kh) // stride + 1
    Wo = (Wp - kw) // stride + 1
    slices = []
    for ky in range(kh):
        for kx in range(kw):
            sl = x_nhwc[:, ky:ky + stride * (Ho - 1) + 1:stride,
                           kx:kx + stride * (Wo - 1) + 1:stride, :]
            slices.append(sl)
    return slices, (N, Ho, Wo)


def _pick_tc(Cout):
    """TC=256 fills the 256-wide MXU (v6e/v7x) when it adds no extra Cout padding;
    otherwise stay at 128 (also right for v5e's 128-wide MXU)."""
    c128 = _round_up(Cout, 128)
    c256 = _round_up(Cout, 256)
    if c256 == c128:
        return 256, c256
    return 128, c128


def _conv_tiles(P, Cout):
    """Pick lane/sublane-friendly tiles and padded sizes."""
    TC, C_pad = _pick_tc(Cout)
    num_j = C_pad // TC
    # bf16 rows pack in sublane pairs -> keep TP a multiple of 16.
    TP = 512 if P >= 512 else _round_up(P, 16)
    P_pad = _round_up(P, TP)
    num_i = P_pad // TP
    # Megacore friendliness (v7x shards the "parallel" grid axes over 2 TensorCores):
    # if the parallel program count would be odd, split the P axis once more.
    # Harmless on single-core chips (one extra, smaller grid step).
    if num_i == 1 and num_j % 2 == 1 and P >= 32:
        TP = _round_up((P + 1) // 2, 16)
        P_pad = _round_up(P, TP)
    return TP, TC, P_pad, C_pad


def conv_bn_relu_fused(x_nhwc, param_list, *, stride=1, padding="same",
                       out_dtype=jnp.float32):
    """One or more ConvBlocks (Conv2d bias=False -> BN(eval) -> ReLU) sharing the same
    input and kernel geometry, fused along Cout into a single Pallas matmul.
    Returns a list of per-branch outputs (N, Ho, Wo, Cout_i)."""
    w0 = param_list[0]["w"]                          # (Cout, Cin, kh, kw) PyTorch layout
    Cout0, Cin, kh, kw = w0.shape
    slices, (N, Ho, Wo) = _window_slices(x_nhwc, kh, kw, stride, padding)
    T = kh * kw
    P = N * Ho * Wo
    K = T * Cin

    # im2col cols matrix (P, K); K ordered (tap, cin) to match the HWIO weight reshape.
    cols = jnp.concatenate(slices, axis=-1).reshape(P, K)

    # Fold BatchNorm (inference): relu((x@W)*scale + shift) == relu(x@(W*scale) + shift)
    # NOTE: the BN scale is folded into the weights *before* the bf16 round.
    w_mats, shifts, couts = [], [], []
    for p in param_list:
        w = p["w"]
        assert w.shape[1:] == (Cin, kh, kw)
        inv_std = 1.0 / jnp.sqrt(p["var"] + BN_EPS)
        scale = p["gamma"] * inv_std                          # (Cout_i,)
        shift = p["beta"] - p["mean"] * scale                 # (Cout_i,)
        w_mats.append(jnp.transpose(w, (2, 3, 1, 0)).reshape(K, w.shape[0])
                      * scale[None, :])
        shifts.append(shift)
        couts.append(w.shape[0])
    w_mat = jnp.concatenate(w_mats, axis=1)                   # (K, Cout_total)
    shift = jnp.concatenate(shifts, axis=0)                   # (Cout_total,)
    Cout = sum(couts)

    TP, TC, P_pad, C_pad = _conv_tiles(P, Cout)

    # K tiling: one full-K block whenever it fits comfortably (all layers here);
    # otherwise stream K through the accumulator kernel.
    if K <= MAX_FULL_K:
        K_pad = _round_up(K, 8)
        TK = K_pad
        num_k = 1
    else:
        TK = 512
        K_pad = _round_up(K, TK)
        num_k = K_pad // TK

    x_mat = jnp.pad(cols.astype(jnp.bfloat16), ((0, P_pad - P), (0, K_pad - K)))
    w_pad = jnp.pad(w_mat.astype(jnp.bfloat16), ((0, K_pad - K), (0, C_pad - Cout)))
    b_pad = jnp.pad(shift.astype(jnp.float32).reshape(1, Cout),
                    ((0, 0), (0, C_pad - Cout)))

    vmem = _vmem_limit_bytes()

    if num_k == 1:
        out = pl.pallas_call(
            _matmul_bias_relu_kernel,
            out_shape=jax.ShapeDtypeStruct((P_pad, C_pad), out_dtype),
            grid_spec=pltpu.PrefetchScalarGridSpec(
                num_scalar_prefetch=0,
                grid=(P_pad // TP, C_pad // TC),
                in_specs=[
                    pl.BlockSpec((TP, TK), lambda i, j: (i, 0)),
                    pl.BlockSpec((TK, TC), lambda i, j: (0, j)),
                    pl.BlockSpec((1, TC), lambda i, j: (0, j)),
                ],
                out_specs=pl.BlockSpec((TP, TC), lambda i, j: (i, j)),
            ),
            compiler_params=pltpu.CompilerParams(
                dimension_semantics=("parallel", "parallel"),
                vmem_limit_bytes=vmem,
            ),
        )(x_mat, w_pad, b_pad)
    else:
        # K axis MUST stay the last ("arbitrary") grid axis (see kernel docstring).
        out = pl.pallas_call(
            _matmul_bias_relu_acc_kernel,
            out_shape=jax.ShapeDtypeStruct((P_pad, C_pad), out_dtype),
            grid_spec=pltpu.PrefetchScalarGridSpec(
                num_scalar_prefetch=0,
                grid=(P_pad // TP, C_pad // TC, num_k),
                in_specs=[
                    pl.BlockSpec((TP, TK), lambda i, j, k: (i, k)),
                    pl.BlockSpec((TK, TC), lambda i, j, k: (k, j)),
                    pl.BlockSpec((1, TC), lambda i, j, k: (0, j)),
                ],
                out_specs=pl.BlockSpec((TP, TC), lambda i, j, k: (i, j)),
                scratch_shapes=[pltpu.VMEM((TP, TC), jnp.float32)],
            ),
            compiler_params=pltpu.CompilerParams(
                dimension_semantics=("parallel", "parallel", "arbitrary"),
                vmem_limit_bytes=vmem,
            ),
        )(x_mat, w_pad, b_pad)

    # Padded P rows hold relu(bias) and padded Cout cols hold 0; both are sliced off
    # here -- nothing else may consume the padded buffer directly.
    out = out[:P, :Cout].reshape(N, Ho, Wo, Cout)
    outs, off = [], 0
    for c in couts:
        outs.append(out[..., off:off + c])
        off += c
    return outs


def conv_bn_relu(x_nhwc, p, **kw):
    return conv_bn_relu_fused(x_nhwc, [p], **kw)[0]


def maxpool_3x3_s2(x_nhwc):
    """3x3/stride-2 max pool.  Taps are flattened to 128-wide lane-dense rows so the
    kernel's stores are unmasked regardless of the channel count."""
    slices, (N, Ho, Wo) = _window_slices(x_nhwc, 3, 3, 2, "valid")
    C = x_nhwc.shape[-1]
    P = N * Ho * Wo
    E = P * C
    T = len(slices)

    # TODO(synk): this stack writes the pooled input T=9 times to HBM; an in-kernel
    #             shifted-view / halo-BlockSpec variant would avoid the replication.
    taps = jnp.stack([s.reshape(E) for s in slices], axis=0)          # (T, E)
    M = _round_up(E, 8 * LANE) // LANE                                # rows of 128 lanes
    taps = jnp.pad(taps, ((0, 0), (0, M * LANE - E))).reshape(T, M, LANE)

    TM = min(512, M)                                                  # M is a multiple of 8
    M_pad = _round_up(M, TM)
    if M_pad != M:
        taps = jnp.pad(taps, ((0, 0), (0, M_pad - M), (0, 0)))

    out = pl.pallas_call(
        _maxpool_kernel,
        out_shape=jax.ShapeDtypeStruct((M_pad, LANE), x_nhwc.dtype),
        grid_spec=pltpu.PrefetchScalarGridSpec(
            num_scalar_prefetch=0,
            grid=(M_pad // TM,),
            in_specs=[pl.BlockSpec((T, TM, LANE), lambda i: (0, i, 0))],
            out_specs=pl.BlockSpec((TM, LANE), lambda i: (i, 0)),
        ),
        compiler_params=pltpu.CompilerParams(
            dimension_semantics=("parallel",),
            vmem_limit_bytes=_vmem_limit_bytes(),
        ),
    )(taps)
    return out.reshape(-1)[:E].reshape(N, Ho, Wo, C)


def inception_block_d(x_nchw, params):
    x = jnp.transpose(x_nchw, (0, 2, 3, 1))     # NCHW -> NHWC (kept NHWC internally)
    # The two 1x1 ConvBlocks share the same input -> one fused matmul (Cout = 384).
    b3, b7 = conv_bn_relu_fused(
        x, [params["branch3x3_1"], params["branch7x7x3_1"]], out_dtype=jnp.bfloat16)
    b3 = conv_bn_relu(b3, params["branch3x3_2"], stride=2, padding="valid",
                      out_dtype=jnp.float32)
    b7 = conv_bn_relu(b7, params["branch7x7x3_2"], out_dtype=jnp.bfloat16)
    b7 = conv_bn_relu(b7, params["branch7x7x3_3"], out_dtype=jnp.bfloat16)
    b7 = conv_bn_relu(b7, params["branch7x7x3_4"], stride=2, padding="valid",
                      out_dtype=jnp.float32)
    bp = maxpool_3x3_s2(x)
    out = jnp.concatenate([b3, b7, bp], axis=-1)
    return jnp.transpose(out, (0, 3, 1, 2))     # back to NCHW


# ------------------------- pure-JAX reference --------------------------------

def _conv_bn_relu_ref(x, p, *, stride=1, padding="same"):
    w = jnp.transpose(p["w"], (2, 3, 1, 0))     # HWIO
    kh, kw = w.shape[0], w.shape[1]
    pad = ((kh // 2, kh // 2), (kw // 2, kw // 2)) if padding == "same" else ((0, 0), (0, 0))
    y = lax.conv_general_dilated(x, w, (stride, stride), pad,
                                 dimension_numbers=("NHWC", "HWIO", "NHWC"),
                                 precision=lax.Precision.HIGHEST)
    scale = p["gamma"] / jnp.sqrt(p["var"] + BN_EPS)
    bias = p["beta"] - p["mean"] * scale
    return jnp.maximum(y * scale + bias, 0.0)


def inception_block_d_ref(x_nchw, params):
    x = jnp.transpose(x_nchw, (0, 2, 3, 1))
    b3 = _conv_bn_relu_ref(x, params["branch3x3_1"])
    b3 = _conv_bn_relu_ref(b3, params["branch3x3_2"], stride=2, padding="valid")
    b7 = _conv_bn_relu_ref(x, params["branch7x7x3_1"])
    b7 = _conv_bn_relu_ref(b7, params["branch7x7x3_2"])
    b7 = _conv_bn_relu_ref(b7, params["branch7x7x3_3"])
    b7 = _conv_bn_relu_ref(b7, params["branch7x7x3_4"], stride=2, padding="valid")
    bp = lax.reduce_window(x, -jnp.inf, lax.max, (1, 3, 3, 1), (1, 2, 2, 1), "VALID")
    out = jnp.concatenate([b3, b7, bp], axis=-1)
    return jnp.transpose(out, (0, 3, 1, 2))


# ------------------------------ params init ----------------------------------

def init_conv_block(key, cin, cout, kh, kw):
    k1, k2, k3, k4, k5 = jax.random.split(key, 5)
    return dict(
        w=jax.random.normal(k1, (cout, cin, kh, kw), jnp.float32) / jnp.sqrt(cin * kh * kw),
        gamma=1.0 + 0.1 * jax.random.normal(k2, (cout,), jnp.float32),
        beta=0.1 * jax.random.normal(k3, (cout,), jnp.float32),
        mean=0.1 * jax.random.normal(k4, (cout,), jnp.float32),
        var=0.5 + jax.random.uniform(k5, (cout,), jnp.float32),
    )


if __name__ == "__main__":
    key = jax.random.PRNGKey(0)
    keys = jax.random.split(key, 7)
    in_channels = 4

    params = {
        "branch3x3_1":   init_conv_block(keys[0], in_channels, 192, 1, 1),
        "branch3x3_2":   init_conv_block(keys[1], 192, 320, 3, 3),
        "branch7x7x3_1": init_conv_block(keys[2], in_channels, 192, 1, 1),
        "branch7x7x3_2": init_conv_block(keys[3], 192, 192, 1, 7),
        "branch7x7x3_3": init_conv_block(keys[4], 192, 192, 7, 1),
        "branch7x7x3_4": init_conv_block(keys[5], 192, 192, 3, 3),
    }

    x = jax.random.normal(keys[6], (2, in_channels, 16, 16), jnp.float32)  # NCHW

    out = jax.jit(inception_block_d)(x, params)
    out = jax.block_until_ready(out)

    # shape check: channels = 320 + 192 + in_channels, spatial 16 -> 7 (stride 2, valid)
    assert out.shape == (2, 320 + 192 + in_channels, 7, 7), out.shape

    # Kernel uses bf16-in / f32-acc MXU matmuls and bf16 intermediate activations;
    # reference is full f32, so tolerance is looser (errors compound over 4 conv layers).
    ref = inception_block_d_ref(x, params)
    max_err = float(jnp.max(jnp.abs(out - ref)))
    assert max_err < 5e-2, f"max abs err {max_err}"

    print("KERNEL_OK")
</pallas_src>

<mosaic_0001>
module attributes {stable_mosaic.version = 11 : i64} {
  func.func @_matmul_bias_relu_kernel(%arg0: i32, %arg1: i32, %arg2: memref<256x8xbf16, #tpu.memory_space<vmem>>, %arg3: memref<8x128xbf16, #tpu.memory_space<vmem>>, %arg4: memref<1x128xf32, #tpu.memory_space<vmem>>, %arg5: memref<256x128xbf16, #tpu.memory_space<vmem>>) attributes {dimension_semantics = [#tpu.dimension_semantics<parallel>, #tpu.dimension_semantics<parallel>], iteration_bounds = array<i64: 2, 3>, scalar_prefetch = 0 : i64, scratch_operands = 0 : i64, tpu.core_type = #tpu.core_type<tc>, window_params = [{transform_indices = @transform_0, window_bounds = array<i64: 256, 8>}, {transform_indices = @transform_1, window_bounds = array<i64: 8, 128>}, {transform_indices = @transform_2, window_bounds = array<i64: 1, 128>}, {transform_indices = @transform_3, window_bounds = array<i64: 256, 128>}]} {
    %c0 = arith.constant 0 : index
    %c0_0 = arith.constant 0 : index
    %0 = vector.load %arg2[%c0, %c0_0] : memref<256x8xbf16, #tpu.memory_space<vmem>>, vector<256x8xbf16>
    %c0_1 = arith.constant 0 : index
    %c0_2 = arith.constant 0 : index
    %1 = vector.load %arg3[%c0_1, %c0_2] : memref<8x128xbf16, #tpu.memory_space<vmem>>, vector<8x128xbf16>
    %cst = arith.constant dense<0.000000e+00> : vector<256x128xf32>
    %2 = tpu.matmul %0, %1, %cst {dimension_numbers = #tpu.dot_dimension_numbers<[1], [0], [0], [1], [0, 0, 1, 1], [], []>} : vector<256x8xbf16>, vector<8x128xbf16>, vector<256x128xf32> -> vector<256x128xf32>
    %c0_3 = arith.constant 0 : index
    %c0_4 = arith.constant 0 : index
    %3 = vector.load %arg4[%c0_3, %c0_4] : memref<1x128xf32, #tpu.memory_space<vmem>>, vector<1x128xf32>
    %4 = vector.broadcast %3 : vector<1x128xf32> to vector<256x128xf32>
    %5 = arith.addf %2, %4 : vector<256x128xf32>
    %cst_5 = arith.constant 0.000000e+00 : f32
    %6 = vector.broadcast %cst_5 : f32 to vector<256x128xf32>
    %7 = arith.maximumf %5, %6 : vector<256x128xf32>
    %8 = arith.truncf %7 : vector<256x128xf32> to vector<256x128xbf16>
    %c0_6 = arith.constant 0 : index
    %c0_7 = arith.constant 0 : index
    %9 = vector.load %arg5[%c0_6, %c0_7] : memref<256x128xbf16, #tpu.memory_space<vmem>>, vector<256x128xbf16>
    tpu.vector_store %arg5[%c0_6, %c0_7], %8 {strides = array<i32>} : memref<256x128xbf16, #tpu.memory_space<vmem>>, vector<256x128xbf16>,
    return
  }
  func.func @transform_0(%arg0: i32, %arg1: i32) -> (i32, i32) {
    %c0_i32 = arith.constant 0 : i32
    %c0_i32_0 = arith.constant 0 : i32
    return %arg0, %c0_i32 : i32, i32
  }
  func.func @transform_1(%arg0: i32, %arg1: i32) -> (i32, i32) {
    %c0_i32 = arith.constant 0 : i32
    %c0_i32_0 = arith.constant 0 : i32
    return %c0_i32, %arg1 : i32, i32
  }
  func.func @transform_2(%arg0: i32, %arg1: i32) -> (i32, i32) {
    %c0_i32 = arith.constant 0 : i32
    %c0_i32_0 = arith.constant 0 : i32
    return %c0_i32, %arg1 : i32, i32
  }
  func.func @transform_3(%arg0: i32, %arg1: i32) -> (i32, i32) {
    %c0_i32 = arith.constant 0 : i32
    return %arg0, %arg1 : i32, i32
  }
}

module attributes {stable_mosaic.version = 11 : i64} {
  func.func @_matmul_bias_relu_kernel(%arg0: i32, %arg1: i32, %arg2: memref<256x1344xbf16, #tpu.memory_space<vmem>>, %arg3: memref<1344x256xbf16, #tpu.memory_space<vmem>>, %arg4: memref<1x256xf32, #tpu.memory_space<vmem>>, %arg5: memref<256x256xbf16, #tpu.memory_space<vmem>>) attributes {dimension_semantics = [#tpu.dimension_semantics<parallel>, #tpu.dimension_semantics<parallel>], iteration_bounds = array<i64: 2, 1>, scalar_prefetch = 0 : i64, scratch_operands = 0 : i64, tpu.core_type = #tpu.core_type<tc>, window_params = [{transform_indices = @transform_0, window_bounds = array<i64: 256, 1344>}, {transform_indices = @transform_1, window_bounds = array<i64: 1344, 256>}, {transform_indices = @transform_2, window_bounds = array<i64: 1, 256>}, {transform_indices = @transform_3, window_bounds = array<i64: 256, 256>}]} {
    %c0 = arith.constant 0 : index
    %c0_0 = arith.constant 0 : index
    %0 = vector.load %arg2[%c0, %c0_0] : memref<256x1344xbf16, #tpu.memory_space<vmem>>, vector<256x1344xbf16>
    %c0_1 = arith.constant 0 : index
    %c0_2 = arith.constant 0 : index
    %1 = vector.load %arg3[%c0_1, %c0_2] : memref<1344x256xbf16, #tpu.memory_space<vmem>>, vector<1344x256xbf16>
    %cst = arith.constant dense<0.000000e+00> : vector<256x256xf32>
    %2 = tpu.matmul %0, %1, %cst {dimension_numbers = #tpu.dot_dimension_numbers<[1], [0], [0], [1], [0, 0, 1, 1], [], []>} : vector<256x1344xbf16>, vector<1344x256xbf16>, vector<256x256xf32> -> vector<256x256xf32>
    %c0_3 = arith.constant 0 : index
    %c0_4 = arith.constant 0 : index
    %3 = vector.load %arg4[%c0_3, %c0_4] : memref<1x256xf32, #tpu.memory_space<vmem>>, vector<1x256xf32>
    %4 = vector.broadcast %3 : vector<1x256xf32> to vector<256x256xf32>
    %5 = arith.addf %2, %4 : vector<256x256xf32>
    %cst_5 = arith.constant 0.000000e+00 : f32
    %6 = vector.broadcast %cst_5 : f32 to vector<256x256xf32>
    %7 = arith.maximumf %5, %6 : vector<256x256xf32>
    %8 = arith.truncf %7 : vector<256x256xf32> to vector<256x256xbf16>
    %c0_6 = arith.constant 0 : index
    %c0_7 = arith.constant 0 : index
    %9 = vector.load %arg5[%c0_6, %c0_7] : memref<256x256xbf16, #tpu.memory_space<vmem>>, vector<256x256xbf16>
    tpu.vector_store %arg5[%c0_6, %c0_7], %8 {strides = array<i32>} : memref<256x256xbf16, #tpu.memory_space<vmem>>, vector<256x256xbf16>,
    return
  }
  func.func @transform_0(%arg0: i32, %arg1: i32) -> (i32, i32) {
    %c0_i32 = arith.constant 0 : i32
    %c0_i32_0 = arith.constant 0 : i32
    return %arg0, %c0_i32 : i32, i32
  }
  func.func @transform_1(%arg0: i32, %arg1: i32) -> (i32, i32) {
    %c0_i32 = arith.constant 0 : i32
    %c0_i32_0 = arith.constant 0 : i32
    return %c0_i32, %arg1 : i32, i32
  }
  func.func @transform_2(%arg0: i32, %arg1: i32) -> (i32, i32) {
    %c0_i32 = arith.constant 0 : i32
    %c0_i32_0 = arith.constant 0 : i32
    return %c0_i32, %arg1 : i32, i32
  }
  func.func @transform_3(%arg0: i32, %arg1: i32) -> (i32, i32) {
    %c0_i32 = arith.constant 0 : i32
    return %arg0, %arg1 : i32, i32
  }
}

module attributes {stable_mosaic.version = 11 : i64} {
  func.func @_matmul_bias_relu_kernel(%arg0: i32, %arg1: i32, %arg2: memref<64x1728xbf16, #tpu.memory_space<vmem>>, %arg3: memref<1728x256xbf16, #tpu.memory_space<vmem>>, %arg4: memref<1x256xf32, #tpu.memory_space<vmem>>, %arg5: memref<64x256xf32, #tpu.memory_space<vmem>>) attributes {dimension_semantics = [#tpu.dimension_semantics<parallel>, #tpu.dimension_semantics<parallel>], iteration_bounds = array<i64: 2, 1>, scalar_prefetch = 0 : i64, scratch_operands = 0 : i64, tpu.core_type = #tpu.core_type<tc>, window_params = [{transform_indices = @transform_0, window_bounds = array<i64: 64, 1728>}, {transform_indices = @transform_1, window_bounds = array<i64: 1728, 256>}, {transform_indices = @transform_2, window_bounds = array<i64: 1, 256>}, {transform_indices = @transform_3, window_bounds = array<i64: 64, 256>}]} {
    %c0 = arith.constant 0 : index
    %c0_0 = arith.constant 0 : index
    %0 = vector.load %arg2[%c0, %c0_0] : memref<64x1728xbf16, #tpu.memory_space<vmem>>, vector<64x1728xbf16>
    %c0_1 = arith.constant 0 : index
    %c0_2 = arith.constant 0 : index
    %1 = vector.load %arg3[%c0_1, %c0_2] : memref<1728x256xbf16, #tpu.memory_space<vmem>>, vector<1728x256xbf16>
    %cst = arith.constant dense<0.000000e+00> : vector<64x256xf32>
    %2 = tpu.matmul %0, %1, %cst {dimension_numbers = #tpu.dot_dimension_numbers<[1], [0], [0], [1], [0, 0, 1, 1], [], []>} : vector<64x1728xbf16>, vector<1728x256xbf16>, vector<64x256xf32> -> vector<64x256xf32>
    %c0_3 = arith.constant 0 : index
    %c0_4 = arith.constant 0 : index
    %3 = vector.load %arg4[%c0_3, %c0_4] : memref<1x256xf32, #tpu.memory_space<vmem>>, vector<1x256xf32>
    %4 = vector.broadcast %3 : vector<1x256xf32> to vector<64x256xf32>
    %5 = arith.addf %2, %4 : vector<64x256xf32>
    %cst_5 = arith.constant 0.000000e+00 : f32
    %6 = vector.broadcast %cst_5 : f32 to vector<64x256xf32>
    %7 = arith.maximumf %5, %6 : vector<64x256xf32>
    %c0_6 = arith.constant 0 : index
    %c0_7 = arith.constant 0 : index
    %8 = vector.load %arg5[%c0_6, %c0_7] : memref<64x256xf32, #tpu.memory_space<vmem>>, vector<64x256xf32>
    tpu.vector_store %arg5[%c0_6, %c0_7], %7 {strides = array<i32>} : memref<64x256xf32, #tpu.memory_space<vmem>>, vector<64x256xf32>,
    return
  }
  func.func @transform_0(%arg0: i32, %arg1: i32) -> (i32, i32) {
    %c0_i32 = arith.constant 0 : i32
    %c0_i32_0 = arith.constant 0 : i32
    return %arg0, %c0_i32 : i32, i32
  }
  func.func @transform_1(%arg0: i32, %arg1: i32) -> (i32, i32) {
    %c0_i32 = arith.constant 0 : i32
    %c0_i32_0 = arith.constant 0 : i32
    return %c0_i32, %arg1 : i32, i32
  }
  func.func @transform_2(%arg0: i32, %arg1: i32) -> (i32, i32) {
    %c0_i32 = arith.constant 0 : i32
    %c0_i32_0 = arith.constant 0 : i32
    return %c0_i32, %arg1 : i32, i32
  }
  func.func @transform_3(%arg0: i32, %arg1: i32) -> (i32, i32) {
    %c0_i32 = arith.constant 0 : i32
    return %arg0, %arg1 : i32, i32
  }
}

module attributes {stable_mosaic.version = 11 : i64} {
  func.func @_matmul_bias_relu_kernel(%arg0: i32, %arg1: i32, %arg2: memref<64x1728xbf16, #tpu.memory_space<vmem>>, %arg3: memref<1728x128xbf16, #tpu.memory_space<vmem>>, %arg4: memref<1x128xf32, #tpu.memory_space<vmem>>, %arg5: memref<64x128xf32, #tpu.memory_space<vmem>>) attributes {dimension_semantics = [#tpu.dimension_semantics<parallel>, #tpu.dimension_semantics<parallel>], iteration_bounds = array<i64: 2, 3>, scalar_prefetch = 0 : i64, scratch_operands = 0 : i64, tpu.core_type = #tpu.core_type<tc>, window_params = [{transform_indices = @transform_0, window_bounds = array<i64: 64, 1728>}, {transform_indices = @transform_1, window_bounds = array<i64: 1728, 128>}, {transform_indices = @transform_2, window_bounds = array<i64: 1, 128>}, {transform_indices = @transform_3, window_bounds = array<i64: 64, 128>}]} {
    %c0 = arith.constant 0 : index
    %c0_0 = arith.constant 0 : index
    %0 = vector.load %arg2[%c0, %c0_0] : memref<64x1728xbf16, #tpu.memory_space<vmem>>, vector<64x1728xbf16>
    %c0_1 = arith.constant 0 : index
    %c0_2 = arith.constant 0 : index
    %1 = vector.load %arg3[%c0_1, %c0_2] : memref<1728x128xbf16, #tpu.memory_space<vmem>>, vector<1728x128xbf16>
    %cst = arith.constant dense<0.000000e+00> : vector<64x128xf32>
    %2 = tpu.matmul %0, %1, %cst {dimension_numbers = #tpu.dot_dimension_numbers<[1], [0], [0], [1], [0, 0, 1, 1], [], []>} : vector<64x1728xbf16>, vector<1728x128xbf16>, vector<64x128xf32> -> vector<64x128xf32>
    %c0_3 = arith.constant 0 : index
    %c0_4 = arith.constant 0 : index
    %3 = vector.load %arg4[%c0_3, %c0_4] : memref<1x128xf32, #tpu.memory_space<vmem>>, vector<1x128xf32>
    %4 = vector.broadcast %3 : vector<1x128xf32> to vector<64x128xf32>
    %5 = arith.addf %2, %4 : vector<64x128xf32>
    %cst_5 = arith.constant 0.000000e+00 : f32
    %6 = vector.broadcast %cst_5 : f32 to vector<64x128xf32>
    %7 = arith.maximumf %5, %6 : vector<64x128xf32>
    %c0_6 = arith.constant 0 : index
    %c0_7 = arith.constant 0 : index
    %8 = vector.load %arg5[%c0_6, %c0_7] : memref<64x128xf32, #tpu.memory_space<vmem>>, vector<64x128xf32>
    tpu.vector_store %arg5[%c0_6, %c0_7], %7 {strides = array<i32>} : memref<64x128xf32, #tpu.memory_space<vmem>>, vector<64x128xf32>,
    return
  }
  func.func @transform_0(%arg0: i32, %arg1: i32) -> (i32, i32) {
    %c0_i32 = arith.constant 0 : i32
    %c0_i32_0 = arith.constant 0 : i32
    return %arg0, %c0_i32 : i32, i32
  }
  func.func @transform_1(%arg0: i32, %arg1: i32) -> (i32, i32) {
    %c0_i32 = arith.constant 0 : i32
    %c0_i32_0 = arith.constant 0 : i32
    return %c0_i32, %arg1 : i32, i32
  }
  func.func @transform_2(%arg0: i32, %arg1: i32) -> (i32, i32) {
    %c0_i32 = arith.constant 0 : i32
    %c0_i32_0 = arith.constant 0 : i32
    return %c0_i32, %arg1 : i32, i32
  }
  func.func @transform_3(%arg0: i32, %arg1: i32) -> (i32, i32) {
    %c0_i32 = arith.constant 0 : i32
    return %arg0, %arg1 : i32, i32
  }
}

module attributes {stable_mosaic.version = 11 : i64} {
  func.func @_maxpool_kernel(%arg0: i32, %arg1: memref<9x8x128xf32, #tpu.memory_space<vmem>>, %arg2: memref<8x128xf32, #tpu.memory_space<vmem>>) attributes {dimension_semantics = [#tpu.dimension_semantics<parallel>], iteration_bounds = array<i64: 1>, scalar_prefetch = 0 : i64, scratch_operands = 0 : i64, tpu.core_type = #tpu.core_type<tc>, window_params = [{transform_indices = @transform_0, window_bounds = array<i64: 9, 8, 128>}, {transform_indices = @transform_1, window_bounds = array<i64: 8, 128>}]} {
    %c0 = arith.constant 0 : index
    %c0_0 = arith.constant 0 : index
    %c0_1 = arith.constant 0 : index
    %0 = vector.load %arg1[%c0, %c0_0, %c0_1] : memref<9x8x128xf32, #tpu.memory_space<vmem>>, vector<9x8x128xf32>
    %cst = arith.constant dense<0xFF800000> : vector<8x128xf32>
    %1 = vector.multi_reduction <maximumf>, %0, %cst [0] : vector<9x8x128xf32> to vector<8x128xf32>
    %c0_2 = arith.constant 0 : index
    %c0_3 = arith.constant 0 : index
    %2 = vector.load %arg2[%c0_2, %c0_3] : memref<8x128xf32, #tpu.memory_space<vmem>>, vector<8x128xf32>
    tpu.vector_store %arg2[%c0_2, %c0_3], %1 {strides = array<i32>} : memref<8x128xf32, #tpu.memory_space<vmem>>, vector<8x128xf32>,
    return
  }
  func.func @transform_0(%arg0: i32) -> (i32, i32, i32) {
    %c0_i32 = arith.constant 0 : i32
    %c0_i32_0 = arith.constant 0 : i32
    %c0_i32_1 = arith.constant 0 : i32
    return %c0_i32, %arg0, %c0_i32_0 : i32, i32, i32
  }
  func.func @transform_1(%arg0: i32) -> (i32, i32) {
    %c0_i32 = arith.constant 0 : i32
    %c0_i32_0 = arith.constant 0 : i32
    return %arg0, %c0_i32 : i32, i32
  }
}

</mosaic_0001>

<llo_original>
// kernel: inception_block_d.6
$region0: #{inception_block_d.6}
  #allocation0 [shape = 'u32[]', space=smem, size = 0x4, offset = 0x4, fixed_abs, tag = 'smem constant byte address 0x4 - core index']
  #allocation1 [shape = 'u32[144,128]{1,0:T(1,128)}', space=vmem, size = 0x12000, scoped, tag = 'internal scratch']
  %s0 = inlined_call_operand.vmem [shape: bf16[512,8], index: 0, kind: input, shape index: {}]
  %s1 = inlined_call_operand.vmem [shape: bf16[8,384], index: 1, kind: input, shape index: {}]
  %s2 = inlined_call_operand.vmem [shape: f32[1,384], index: 2, kind: input, shape index: {}]
  %s3 = inlined_call_operand.vmem [shape: bf16[512,384], index: 3, kind: output, shape index: {}]
  %s4 = sld [smem:[#allocation0]]
  $region82: #{inception_block_d.6} parent=0
    _
  %s6 = ssub.s32 1, %s4
  %s7 = scalar_select 0, %s6, %s4
  $region1: #{inception_block_d.6} parent=0
    #allocation2 [shape = 'u8[131072]{0}', space=vmem, size = 0x20000, scoped, tag = 'output window, operand 0']
    loop: start=0, step=1, limit=8
    $region2: #{inception_block_d.6} parent=1 // loop_pre_header
      _
    $region3: #{inception_block_d.6} parent=1 // loop_header
      %s9 = sphi 0, %s13
      %p10 = scmp.ge.s32.totalorder %s9, 8
      %s16 = sphi 0, %s28
      %s17 = sphi 0, %s24
      %s18 = sphi 0, %s16
      %s19 = sphi 0, %s17
      %s20 = sphi 0, %s18
      %s21 = sphi 0, %s19
      %s31 = sphi 0, %s33
      %s34 = sphi 0, %s31
      %s35 = sphi 0, %s34
      %s51 = sphi 0, %s35
      %s57 = sphi 0, %s59
      %s60 = sphi 0, %s57
      %s61 = sphi 0, %s60
      %s77 = sphi 0, %s61
      %s83 = sphi 0, %s85
      %s86 = sphi 0, %s83
      %s87 = sphi 0, %s86
      %s103 = sphi 0, %s87
      %s111 = sphi 0, %s113
      %s114 = sphi 0, %s111
      %s115 = sphi 0, %s114
      %s131 = sphi 0, %s115
    $region4: #{inception_block_d.6} parent=1 // loop_header_branch
      %12 = sbr.rel (%p10) target = $region8
    $region5: #{inception_block_d.6} parent=1 // loop_body
      %s14 = ssub.s32 %s9, 1
      %s15 = ssub.s32 %s9, 2
      %s22 = sadd.s32 1, %s17
      %p23 = scmp.ge.s32.totalorder %s22, 3
      %s24 = scalar_select %p23, 0, %s22
      %s25 = sadd.s32 1, %s16
      %s26 = scalar_select %p23, %s25, %s16
      %p27 = scmp.ge.s32.totalorder %s26, 2
      %s28 = scalar_select %p27, 0, %s26
      %s29 = ssub.s32 %s16, %s28
      %p30 = scmp.eq.s32.totalorder %s29, 0
      %s32 = sadd.s32 %s31, 1
      %s33 = scalar_select %p30, %s31, %s32
      %p36 = pneg %p30
      %p37 = scmp.eq.s32.totalorder %s9, 5
      %p38 = por %p36, %p37
      %p39 = scmp.ne.s32.totalorder %s31, %s34
      %p40 = scmp.eq.s32.totalorder %s9, 0
      %p41 = por %p39, %p40
      %p42 = scmp.ne.s32.totalorder %s31, %s34
      %p43 = scmp.eq.s32.totalorder %s14, 5
      %p44 = por %p42, %p43
      %p45 = scmp.ne.s32.totalorder %s34, %s35
      %p46 = scmp.eq.s32.totalorder %s14, 0
      %p47 = por %p45, %p46
      %p48 = scmp.ne.s32.totalorder %s34, %s35
      %p49 = scmp.eq.s32.totalorder %s15, 5
      %p50 = por %p48, %p49
      %p52 = scmp.ne.s32.totalorder %s35, %s51
      %p53 = scmp.eq.s32.totalorder %s15, 0
      %p54 = por %p52, %p53
      %s55 = ssub.s32 %s17, %s24
      %p56 = scmp.eq.s32.totalorder %s55, 0
      %s58 = sadd.s32 %s57, 1
      %s59 = scalar_select %p56, %s57, %s58
      %p62 = pneg %p56
      %p63 = scmp.eq.s32.totalorder %s9, 5
      %p64 = por %p62, %p63
      %p65 = scmp.ne.s32.totalorder %s57, %s60
      %p66 = scmp.eq.s32.totalorder %s9, 0
      %p67 = por %p65, %p66
      %p68 = scmp.ne.s32.totalorder %s57, %s60
      %p69 = scmp.eq.s32.totalorder %s14, 5
      %p70 = por %p68, %p69
      %p71 = scmp.ne.s32.totalorder %s60, %s61
      %p72 = scmp.eq.s32.totalorder %s14, 0
      %p73 = por %p71, %p72
      %p74 = scmp.ne.s32.totalorder %s60, %s61
      %p75 = scmp.eq.s32.totalorder %s15, 5
      %p76 = por %p74, %p75
      %p78 = scmp.ne.s32.totalorder %s61, %s77
      %p79 = scmp.eq.s32.totalorder %s15, 0
      %p80 = por %p78, %p79
      %s81 = ssub.s32 %s17, %s24
      %p82 = scmp.eq.s32.totalorder %s81, 0
      %s84 = sadd.s32 %s83, 1
      %s85 = scalar_select %p82, %s83, %s84
      %p88 = pneg %p82
      %p89 = scmp.eq.s32.totalorder %s9, 5
      %p90 = por %p88, %p89
      %p91 = scmp.ne.s32.totalorder %s83, %s86
      %p92 = scmp.eq.s32.totalorder %s9, 0
      %p93 = por %p91, %p92
      %p94 = scmp.ne.s32.totalorder %s83, %s86
      %p95 = scmp.eq.s32.totalorder %s14, 5
      %p96 = por %p94, %p95
      %p97 = scmp.ne.s32.totalorder %s86, %s87
      %p98 = scmp.eq.s32.totalorder %s14, 0
      %p99 = por %p97, %p98
      %p100 = scmp.ne.s32.totalorder %s86, %s87
      %p101 = scmp.eq.s32.totalorder %s15, 5
      %p102 = por %p100, %p101
      %p104 = scmp.ne.s32.totalorder %s87, %s103
      %p105 = scmp.eq.s32.totalorder %s15, 0
      %p106 = por %p104, %p105
      %s107 = ssub.s32 %s16, %s28
      %s108 = ssub.s32 %s17, %s24
      %s109 = sor.u32 %s107, %s108
      %p110 = scmp.eq.s32.totalorder %s109, 0
      %s112 = sadd.s32 %s111, 1
      %s113 = scalar_select %p110, %s111, %s112
      %p116 = pneg %p110
      %p117 = scmp.eq.s32.totalorder %s9, 5
      %p118 = por %p116, %p117
      %p119 = scmp.ne.s32.totalorder %s111, %s114
      %p120 = scmp.eq.s32.totalorder %s9, 0
      %p121 = por %p119, %p120
      %p122 = scmp.ne.s32.totalorder %s111, %s114
      %p123 = scmp.eq.s32.totalorder %s14, 5
      %p124 = por %p122, %p123
      %p125 = scmp.ne.s32.totalorder %s114, %s115
      %p126 = scmp.eq.s32.totalorder %s14, 0
      %p127 = por %p125, %p126
      %p128 = scmp.ne.s32.totalorder %s114, %s115
      %p129 = scmp.eq.s32.totalorder %s15, 5
      %p130 = por %p128, %p129
      %p132 = scmp.ne.s32.totalorder %s115, %s131
      %p133 = scmp.eq.s32.totalorder %s15, 0
      %p134 = por %p132, %p133
      %p135 = scmp.le.s32.totalorder 1, %s9
      %p136 = scmp.lt.s32.totalorder %s9, 7
      %p137 = pnand %p135, %p136
      %p138 = pneg %p137
      // Predicated region
      $region9: #{inception_block_d.6} parent=5 // pred_check
        _
      $region10: #{inception_block_d.6} parent=5 // pred_check_branch
        %140 = sbr.rel (%p137) target = $region12
      $region11: #{inception_block_d.6} parent=5 // pred_region
        %s141 = ssub.s32 %s9, 1
      $region12: #{inception_block_d.6} parent=5 // pred_fallthru
        _
      %p142 = scmp.lt.s32.totalorder %s9, 6
      // Predicated region
      $region13: #{inception_block_d.6} parent=5 // pred_check
        %p143 = pneg %p142
      $region14: #{inception_block_d.6} parent=5 // pred_check_branch
        %145 = sbr.rel (%p143) target = $region16
      $region15: #{inception_block_d.6} parent=5 // pred_region
        // Predicated region
        $region17: #{inception_block_d.6} parent=15 // pred_check
          %p146 = pneg %p41
        $region18: #{inception_block_d.6} parent=15 // pred_check_branch
          %148 = sbr.rel (%p146) target = $region20
        $region19: #{inception_block_d.6} parent=15 // pred_region
          %s149 = smul.u32 32, %s16
          %p150 = scmp.lt.s32.totalorder %s149, 63
          %s151 = scalar_select %p150, %s149, 63
          %s152 = smul.addr %s151, 4
          %s153 = scalar_lea.vmem %s0, %s152
          %s154 = smul.u32 32, %s16
        $region20: #{inception_block_d.6} parent=15 // pred_fallthru
          _
        // Predicated region
        $region21: #{inception_block_d.6} parent=15 // pred_check
          %p155 = pneg %p67
        $region22: #{inception_block_d.6} parent=15 // pred_check_branch
          %157 = sbr.rel (%p155) target = $region24
        $region23: #{inception_block_d.6} parent=15 // pred_region
          %p158 = scmp.lt.s32.totalorder %s17, 2
          %s159 = scalar_select %p158, %s17, 2
          %s160 = smul.addr %s159, 4
          %s161 = scalar_lea.vmem %s1, %s160
        $region24: #{inception_block_d.6} parent=15 // pred_fallthru
          _
        // Predicated region
        $region25: #{inception_block_d.6} parent=15 // pred_check
          %p162 = pneg %p93
        $region26: #{inception_block_d.6} parent=15 // pred_check_branch
          %164 = sbr.rel (%p162) target = $region28
        $region27: #{inception_block_d.6} parent=15 // pred_region
          %p165 = scmp.lt.s32.totalorder %s17, 2
          %s166 = scalar_select %p165, %s17, 2
          %s167 = scalar_lea.vmem %s2, %s166
        $region28: #{inception_block_d.6} parent=15 // pred_fallthru
          _
      $region16: #{inception_block_d.6} parent=5 // pred_fallthru
        _
      %p168 = scmp.le.s32.totalorder 1, %s9
      %p169 = scmp.lt.s32.totalorder %s9, 7
      %p170 = pnand %p168, %p169
      %p171 = pneg %p170
      // Predicated region
      $region29: #{inception_block_d.6} parent=5 // pred_check
        _
      $region30: #{inception_block_d.6} parent=5 // pred_check_branch
        %173 = sbr.rel (%p170) target = $region32
      $region31: #{inception_block_d.6} parent=5 // pred_region
        %s174 = ssub.s32 %s9, 1
        %s175 = smul.u32 32, %s18
        %p176 = scmp.lt.s32.totalorder %s175, 63
        %s177 = scalar_select %p176, %s175, 63
        %s178 = smul.addr %s177, 4
        %s179 = scalar_lea.vmem %s0, %s178
        %p180 = pneg %p47
        %p181 = pneg %p44
        %p182 = scmp.lt.s32.totalorder %s19, 2
        %s183 = scalar_select %p182, %s19, 2
        %s184 = smul.addr %s183, 4
        %s185 = scalar_lea.vmem %s1, %s184
        %p186 = pneg %p73
        %p187 = pneg %p70
        %p188 = scmp.lt.s32.totalorder %s19, 2
        %s189 = scalar_select %p188, %s19, 2
        %s190 = scalar_lea.vmem %s2, %s189
        %p191 = pneg %p99
        %p192 = pneg %p96
        %p193 = pneg %p127
        %p194 = pneg %p124
        %s195 = sand.u32 %s114, 1
        %s196 = sand.u32 %s114, 1
        %s197 = smul.addr %s196, 128
        %s198 = scalar_lea.vmem [#allocation2], %s197
        %s199 = smul.u32 32, %s18
        %p200 = scmp.lt.s32.totalorder %s199, 63
        %s201 = scalar_select %p200, %s199, 63
        %s202 = smul.addr %s201, 4
        %s203 = scalar_lea.vmem %s0, %s202
        %s204 = smul.u32 32, %s18
        %p205 = scmp.lt.s32.totalorder %s19, 2
        %s206 = scalar_select %p205, %s19, 2
        %s207 = smul.addr %s206, 4
        %s208 = scalar_lea.vmem %s1, %s207
        %p209 = scmp.lt.s32.totalorder %s19, 2
        %s210 = scalar_select %p209, %s19, 2
        %s211 = scalar_lea.vmem %s2, %s210
        %s212 = smul.u32 32, %s18
        %v214 = vld [vmem:[%s203] sm:$0xf]
        %v215 = vld [vmem:[%s203 + $0x4] sm:$0xf]
        %v216 = vld [vmem:[%s203 + $0x8] sm:$0xf]
        %v217 = vld [vmem:[%s203 + $0xc] sm:$0xf]
        %v218 = vld [vmem:[%s203 + $0x10] sm:$0xf]
        %v219 = vld [vmem:[%s203 + $0x14] sm:$0xf]
        %v220 = vld [vmem:[%s203 + $0x18] sm:$0xf]
        %v221 = vld [vmem:[%s203 + $0x1c] sm:$0xf]
        %v222 = vld [vmem:[%s203 + $0x20] sm:$0xf]
        %v223 = vld [vmem:[%s203 + $0x24] sm:$0xf]
        %v224 = vld [vmem:[%s203 + $0x28] sm:$0xf]
        %v225 = vld [vmem:[%s203 + $0x2c] sm:$0xf]
        %v226 = vld [vmem:[%s203 + $0x30] sm:$0xf]
        %v227 = vld [vmem:[%s203 + $0x34] sm:$0xf]
        %v228 = vld [vmem:[%s203 + $0x38] sm:$0xf]
        %v229 = vld [vmem:[%s203 + $0x3c] sm:$0xf]
        %v230 = vld [vmem:[%s203 + $0x40] sm:$0xf]
        %v231 = vld [vmem:[%s203 + $0x44] sm:$0xf]
        %v232 = vld [vmem:[%s203 + $0x48] sm:$0xf]
        %v233 = vld [vmem:[%s203 + $0x4c] sm:$0xf]
        %v234 = vld [vmem:[%s203 + $0x50] sm:$0xf]
        %v235 = vld [vmem:[%s203 + $0x54] sm:$0xf]
        %v236 = vld [vmem:[%s203 + $0x58] sm:$0xf]
        %v237 = vld [vmem:[%s203 + $0x5c] sm:$0xf]
        %v238 = vld [vmem:[%s203 + $0x60] sm:$0xf]
        %v239 = vld [vmem:[%s203 + $0x64] sm:$0xf]
        %v240 = vld [vmem:[%s203 + $0x68] sm:$0xf]
        %v241 = vld [vmem:[%s203 + $0x6c] sm:$0xf]
        %v242 = vld [vmem:[%s203 + $0x70] sm:$0xf]
        %v243 = vld [vmem:[%s203 + $0x74] sm:$0xf]
        %v244 = vld [vmem:[%s203 + $0x78] sm:$0xf]
        %v245 = vld [vmem:[%s203 + $0x7c] sm:$0xf]
        %v246 = vld [vmem:[%s208] sm:$0xf]
        %v247 = vld [vmem:[%s211] sm:$0x1]
        %v249 = vlaneseq
        %v250 = vshrl.u32 %v249, 7
        %v251 = vsub.s32 0, %v250
        %v252 = vrot.slane %v247, %v251
        %v286 = vunpack.c.l.b16 %v214
        %v287 = vunpack.c.l.b16 %v215
        %v288 = vunpack.c.l.b16 %v216
        %v289 = vunpack.c.l.b16 %v217
        %v290 = vunpack.c.l.b16 %v218
        %v291 = vunpack.c.l.b16 %v219
        %v292 = vunpack.c.l.b16 %v220
        %v293 = vunpack.c.l.b16 %v221
        %v294 = vunpack.c.l.b16 %v222
        %v295 = vunpack.c.l.b16 %v223
        %v296 = vunpack.c.l.b16 %v224
        %v297 = vunpack.c.l.b16 %v225
        %v298 = vunpack.c.l.b16 %v226
        %v299 = vunpack.c.l.b16 %v227
        %v300 = vunpack.c.l.b16 %v228
        %v301 = vunpack.c.l.b16 %v229
        %v302 = vunpack.c.l.b16 %v230
        %v303 = vunpack.c.l.b16 %v231
        %v304 = vunpack.c.l.b16 %v232
        %v305 = vunpack.c.l.b16 %v233
        %v306 = vunpack.c.l.b16 %v234
        %v307 = vunpack.c.l.b16 %v235
        %v308 = vunpack.c.l.b16 %v236
        %v309 = vunpack.c.l.b16 %v237
        %v310 = vunpack.c.l.b16 %v238
        %v311 = vunpack.c.l.b16 %v239
        %v312 = vunpack.c.l.b16 %v240
        %v313 = vunpack.c.l.b16 %v241
        %v314 = vunpack.c.l.b16 %v242
        %v315 = vunpack.c.l.b16 %v243
        %v316 = vunpack.c.l.b16 %v244
        %v317 = vunpack.c.l.b16 %v245
        %v318 = vpack.c.b16 %v287, %v286
        %v319 = vpack.c.b16 %v289, %v288
        %v320 = vpack.c.b16 %v291, %v290
        %v321 = vpack.c.b16 %v293, %v292
        %v322 = vpack.c.b16 %v295, %v294
        %v323 = vpack.c.b16 %v297, %v296
        %v324 = vpack.c.b16 %v299, %v298
        %v325 = vpack.c.b16 %v301, %v300
        %v326 = vpack.c.b16 %v303, %v302
        %v327 = vpack.c.b16 %v305, %v304
        %v328 = vpack.c.b16 %v307, %v306
        %v329 = vpack.c.b16 %v309, %v308
        %v330 = vpack.c.b16 %v311, %v310
        %v331 = vpack.c.b16 %v313, %v312
        %v332 = vpack.c.b16 %v315, %v314
        %v333 = vpack.c.b16 %v317, %v316
        %vm334 = vcmask 64512
        %v336 = vsel %vm334, %v318, 0
        %v339 = vsel %vm334, %v319, 0
        %v342 = vsel %vm334, %v320, 0
        %v345 = vsel %vm334, %v321, 0
        %v348 = vsel %vm334, %v322, 0
        %v351 = vsel %vm334, %v323, 0
        %v354 = vsel %vm334, %v324, 0
        %v357 = vsel %vm334, %v325, 0
        %v360 = vsel %vm334, %v326, 0
        %v363 = vsel %vm334, %v327, 0
        %v366 = vsel %vm334, %v328, 0
        %v369 = vsel %vm334, %v329, 0
        %v372 = vsel %vm334, %v330, 0
        %v375 = vsel %vm334, %v331, 0
        %v378 = vsel %vm334, %v332, 0
        %v381 = vsel %vm334, %v333, 0
        %vm383 = vcmask 1043456
        %v385 = vsel %vm383, %v246, 0
        %387 = vmatprep.subr.bf16.mxu0 0
        %388 = vmatpush1.bf16.msra.mxu0 0
        %389 = vmatprep.subr.bf16.mxu0 0
        %390 = vmatpush1.bf16.msra.mxu0 0
        %391 = vmatprep.subr.bf16.mxu0 0
        %392 = vmatpush1.bf16.msra.mxu0 0
        %393 = vmatprep.subr.bf16.mxu0 0
        %394 = vmatpush1.bf16.msra.mxu0 0
        %395 = vmatprep.subr.bf16.mxu0 0
        %396 = vmatpush1.bf16.msra.mxu0 0
        %397 = vmatprep.subr.bf16.mxu0 0
        %398 = vmatpush1.bf16.msra.mxu0 0
        %399 = vmatprep.subr.bf16.mxu0 0
        %400 = vmatpush1.bf16.msra.mxu0 0
        %401 = vmatprep.subr.bf16.mxu0 0
        %402 = vmatpush1.bf16.msra.mxu0 %v385
        %403 = vmatprep.subr.bf16.mxu0 0
        %404 = vmatpush2.bf16.msra.mxu0 0
        %405 = vmatprep.subr.bf16.mxu0 0
        %406 = vmatpush2.bf16.msra.mxu0 0
        %407 = vmatprep.subr.bf16.mxu0 0
        %408 = vmatpush2.bf16.msra.mxu0 0
        %409 = vmatprep.subr.bf16.mxu0 0
        %410 = vmatpush2.bf16.msra.mxu0 0
        %411 = vmatprep.subr.bf16.mxu0 0
        %412 = vmatpush2.bf16.msra.mxu0 0
        %413 = vmatprep.subr.bf16.mxu0 0
        %414 = vmatpush2.bf16.msra.mxu0 0
        %415 = vmatprep.subr.bf16.mxu0 0
        %416 = vmatpush2.bf16.msra.mxu0 0
        %417 = vmatprep.subr.bf16.mxu0 0
        %418 = vmatpush2.bf16.msra.mxu0 0
        %419 = vmatprep.mubr.bf16.mxu0 0
        %420 = vmatmul.mubr.bf16.gmra.mxu0 %v336
        %v421 = vpop.f32.mrf.mxu0
        %v422 = vadd.f32 %v252, %v421
        %v423 = vpop.f32.mrf.mxu0
        %v424 = vpop.f32.mrf.mxu0
        %v425 = vadd.f32 %v252, %v424
        %v426 = vpop.f32.mrf.mxu0
        %427 = vmatprep.mubr.bf16.mxu0 0
        %428 = vmatmul.mubr.bf16.gmra.mxu0 %v339
        %v429 = vpop.f32.mrf.mxu0
        %v430 = vadd.f32 %v252, %v429
        %v431 = vpop.f32.mrf.mxu0
        %v432 = vpop.f32.mrf.mxu0
        %v433 = vadd.f32 %v252, %v432
        %v434 = vpop.f32.mrf.mxu0
        %435 = vmatprep.mubr.bf16.mxu0 0
        %436 = vmatmul.mubr.bf16.gmra.mxu0 %v342
        %v437 = vpop.f32.mrf.mxu0
        %v438 = vadd.f32 %v252, %v437
        %v439 = vpop.f32.mrf.mxu0
        %v440 = vpop.f32.mrf.mxu0
        %v441 = vadd.f32 %v252, %v440
        %v442 = vpop.f32.mrf.mxu0
        %443 = vmatprep.mubr.bf16.mxu0 0
        %444 = vmatmul.mubr.bf16.gmra.mxu0 %v345
        %v445 = vpop.f32.mrf.mxu0
        %v446 = vadd.f32 %v252, %v445
        %v447 = vpop.f32.mrf.mxu0
        %v448 = vpop.f32.mrf.mxu0
        %v449 = vadd.f32 %v252, %v448
        %v450 = vpop.f32.mrf.mxu0
        %451 = vmatprep.mubr.bf16.mxu0 0
        %452 = vmatmul.mubr.bf16.gmra.mxu0 %v348
        %v453 = vpop.f32.mrf.mxu0
        %v454 = vadd.f32 %v252, %v453
        %v455 = vpop.f32.mrf.mxu0
        %v456 = vpop.f32.mrf.mxu0
        %v457 = vadd.f32 %v252, %v456
        %v458 = vpop.f32.mrf.mxu0
        %459 = vmatprep.mubr.bf16.mxu0 0
        %460 = vmatmul.mubr.bf16.gmra.mxu0 %v351
        %v461 = vpop.f32.mrf.mxu0
        %v462 = vadd.f32 %v252, %v461
        %v463 = vpop.f32.mrf.mxu0
        %v464 = vpop.f32.mrf.mxu0
        %v465 = vadd.f32 %v252, %v464
        %v466 = vpop.f32.mrf.mxu0
        %467 = vmatprep.mubr.bf16.mxu0 0
        %468 = vmatmul.mubr.bf16.gmra.mxu0 %v354
        %v469 = vpop.f32.mrf.mxu0
        %v470 = vadd.f32 %v252, %v469
        %v471 = vpop.f32.mrf.mxu0
        %v472 = vpop.f32.mrf.mxu0
        %v473 = vadd.f32 %v252, %v472
        %v474 = vpop.f32.mrf.mxu0
        %475 = vmatprep.mubr.bf16.mxu0 0
        %476 = vmatmul.mubr.bf16.gmra.mxu0 %v357
        %v477 = vpop.f32.mrf.mxu0
        %v478 = vadd.f32 %v252, %v477
        %v479 = vpop.f32.mrf.mxu0
        %v480 = vpop.f32.mrf.mxu0
        %v481 = vadd.f32 %v252, %v480
        %v482 = vpop.f32.mrf.mxu0
        %483 = vmatprep.mubr.bf16.mxu0 0
        %484 = vmatmul.mubr.bf16.gmra.mxu0 %v360
        %v485 = vpop.f32.mrf.mxu0
        %v486 = vadd.f32 %v252, %v485
        %v487 = vpop.f32.mrf.mxu0
        %v488 = vpop.f32.mrf.mxu0
        %v489 = vadd.f32 %v252, %v488
        %v490 = vpop.f32.mrf.mxu0
        %491 = vmatprep.mubr.bf16.mxu0 0
        %492 = vmatmul.mubr.bf16.gmra.mxu0 %v363
        %v493 = vpop.f32.mrf.mxu0
        %v494 = vadd.f32 %v252, %v493
        %v495 = vpop.f32.mrf.mxu0
        %v496 = vpop.f32.mrf.mxu0
        %v497 = vadd.f32 %v252, %v496
        %v498 = vpop.f32.mrf.mxu0
        %499 = vmatprep.mubr.bf16.mxu0 0
        %500 = vmatmul.mubr.bf16.gmra.mxu0 %v366
        %v501 = vpop.f32.mrf.mxu0
        %v502 = vadd.f32 %v252, %v501
        %v503 = vpop.f32.mrf.mxu0
        %v504 = vpop.f32.mrf.mxu0
        %v505 = vadd.f32 %v252, %v504
        %v506 = vpop.f32.mrf.mxu0
        %507 = vmatprep.mubr.bf16.mxu0 0
        %508 = vmatmul.mubr.bf16.gmra.mxu0 %v369
        %v509 = vpop.f32.mrf.mxu0
        %v510 = vadd.f32 %v252, %v509
        %v511 = vpop.f32.mrf.mxu0
        %v512 = vpop.f32.mrf.mxu0
        %v513 = vadd.f32 %v252, %v512
        %v514 = vpop.f32.mrf.mxu0
        %515 = vmatprep.mubr.bf16.mxu0 0
        %516 = vmatmul.mubr.bf16.gmra.mxu0 %v372
        %v517 = vpop.f32.mrf.mxu0
        %v518 = vadd.f32 %v252, %v517
        %v519 = vpop.f32.mrf.mxu0
        %v520 = vpop.f32.mrf.mxu0
        %v521 = vadd.f32 %v252, %v520
        %v522 = vpop.f32.mrf.mxu0
        %523 = vmatprep.mubr.bf16.mxu0 0
        %524 = vmatmul.mubr.bf16.gmra.mxu0 %v375
        %v525 = vpop.f32.mrf.mxu0
        %v526 = vadd.f32 %v252, %v525
        %v527 = vpop.f32.mrf.mxu0
        %v528 = vpop.f32.mrf.mxu0
        %v529 = vadd.f32 %v252, %v528
        %v530 = vpop.f32.mrf.mxu0
        %531 = vmatprep.mubr.bf16.mxu0 0
        %532 = vmatmul.mubr.bf16.gmra.mxu0 %v378
        %v533 = vpop.f32.mrf.mxu0
        %v534 = vadd.f32 %v252, %v533
        %v535 = vpop.f32.mrf.mxu0
        %v536 = vpop.f32.mrf.mxu0
        %v537 = vadd.f32 %v252, %v536
        %v538 = vpop.f32.mrf.mxu0
        %539 = vmatprep.mubr.bf16.mxu0 0
        %540 = vmatmul.mubr.bf16.gmra.mxu0 %v381
        %v541 = vpop.f32.mrf.mxu0
        %v542 = vadd.f32 %v252, %v541
        %v543 = vpop.f32.mrf.mxu0
        %v544 = vpop.f32.mrf.mxu0
        %v545 = vadd.f32 %v252, %v544
        %v546 = vpop.f32.mrf.mxu0
        %547 = vdwg.mxu0
        %v548 = vmax.f32 %v422, 0.0
        %v549 = vmax.f32 %v425, 0.0
        %v550 = vmax.f32 %v430, 0.0
        %v551 = vmax.f32 %v433, 0.0
        %v552 = vmax.f32 %v438, 0.0
        %v553 = vmax.f32 %v441, 0.0
        %v554 = vmax.f32 %v446, 0.0
        %v555 = vmax.f32 %v449, 0.0
        %v556 = vmax.f32 %v454, 0.0
        %v557 = vmax.f32 %v457, 0.0
        %v558 = vmax.f32 %v462, 0.0
        %v559 = vmax.f32 %v465, 0.0
        %v560 = vmax.f32 %v470, 0.0
        %v561 = vmax.f32 %v473, 0.0
        %v562 = vmax.f32 %v478, 0.0
        %v563 = vmax.f32 %v481, 0.0
        %v564 = vmax.f32 %v486, 0.0
        %v565 = vmax.f32 %v489, 0.0
        %v566 = vmax.f32 %v494, 0.0
        %v567 = vmax.f32 %v497, 0.0
        %v568 = vmax.f32 %v502, 0.0
        %v569 = vmax.f32 %v505, 0.0
        %v570 = vmax.f32 %v510, 0.0
        %v571 = vmax.f32 %v513, 0.0
        %v572 = vmax.f32 %v518, 0.0
        %v573 = vmax.f32 %v521, 0.0
        %v574 = vmax.f32 %v526, 0.0
        %v575 = vmax.f32 %v529, 0.0
        %v576 = vmax.f32 %v534, 0.0
        %v577 = vmax.f32 %v537, 0.0
        %v578 = vmax.f32 %v542, 0.0
        %v579 = vmax.f32 %v545, 0.0
        %v580 = vpack.c.bf16 %v549, %v548
        %v581 = vpack.c.bf16 %v551, %v550
        %v582 = vpack.c.bf16 %v553, %v552
        %v583 = vpack.c.bf16 %v555, %v554
        %v584 = vpack.c.bf16 %v557, %v556
        %v585 = vpack.c.bf16 %v559, %v558
        %v586 = vpack.c.bf16 %v561, %v560
        %v587 = vpack.c.bf16 %v563, %v562
        %v588 = vpack.c.bf16 %v565, %v564
        %v589 = vpack.c.bf16 %v567, %v566
        %v590 = vpack.c.bf16 %v569, %v568
        %v591 = vpack.c.bf16 %v571, %v570
        %v592 = vpack.c.bf16 %v573, %v572
        %v593 = vpack.c.bf16 %v575, %v574
        %v594 = vpack.c.bf16 %v577, %v576
        %v595 = vpack.c.bf16 %v579, %v578
        %v612 = vunpack.c.l.b16 %v580
        %v613 = vunpack.c.h.b16 %v580
        %v614 = vunpack.c.l.b16 %v581
        %v615 = vunpack.c.h.b16 %v581
        %v616 = vunpack.c.l.b16 %v582
        %v617 = vunpack.c.h.b16 %v582
        %v618 = vunpack.c.l.b16 %v583
        %v619 = vunpack.c.h.b16 %v583
        %v620 = vunpack.c.l.b16 %v584
        %v621 = vunpack.c.h.b16 %v584
        %v622 = vunpack.c.l.b16 %v585
        %v623 = vunpack.c.h.b16 %v585
        %v624 = vunpack.c.l.b16 %v586
        %v625 = vunpack.c.h.b16 %v586
        %v626 = vunpack.c.l.b16 %v587
        %v627 = vunpack.c.h.b16 %v587
        %v628 = vunpack.c.l.b16 %v588
        %v629 = vunpack.c.h.b16 %v588
        %v630 = vunpack.c.l.b16 %v589
        %v631 = vunpack.c.h.b16 %v589
        %v632 = vunpack.c.l.b16 %v590
        %v633 = vunpack.c.h.b16 %v590
        %v634 = vunpack.c.l.b16 %v591
        %v635 = vunpack.c.h.b16 %v591
        %v636 = vunpack.c.l.b16 %v592
        %v637 = vunpack.c.h.b16 %v592
        %v638 = vunpack.c.l.b16 %v593
        %v639 = vunpack.c.h.b16 %v593
        %v640 = vunpack.c.l.b16 %v594
        %v641 = vunpack.c.h.b16 %v594
        %v642 = vunpack.c.l.b16 %v595
        %v643 = vunpack.c.h.b16 %v595
        %v644 = vpack.c.b16 %v612, %v612
        %v645 = vpack.c.b16 %v613, %v613
        %v646 = vpack.c.b16 %v614, %v614
        %v647 = vpack.c.b16 %v615, %v615
        %v648 = vpack.c.b16 %v616, %v616
        %v649 = vpack.c.b16 %v617, %v617
        %v650 = vpack.c.b16 %v618, %v618
        %v651 = vpack.c.b16 %v619, %v619
        %v652 = vpack.c.b16 %v620, %v620
        %v653 = vpack.c.b16 %v621, %v621
        %v654 = vpack.c.b16 %v622, %v622
        %v655 = vpack.c.b16 %v623, %v623
        %v656 = vpack.c.b16 %v624, %v624
        %v657 = vpack.c.b16 %v625, %v625
        %v658 = vpack.c.b16 %v626, %v626
        %v659 = vpack.c.b16 %v627, %v627
        %v660 = vpack.c.b16 %v628, %v628
        %v661 = vpack.c.b16 %v629, %v629
        %v662 = vpack.c.b16 %v630, %v630
        %v663 = vpack.c.b16 %v631, %v631
        %v664 = vpack.c.b16 %v632, %v632
        %v665 = vpack.c.b16 %v633, %v633
        %v666 = vpack.c.b16 %v634, %v634
        %v667 = vpack.c.b16 %v635, %v635
        %v668 = vpack.c.b16 %v636, %v636
        %v669 = vpack.c.b16 %v637, %v637
        %v670 = vpack.c.b16 %v638, %v638
        %v671 = vpack.c.b16 %v639, %v639
        %v672 = vpack.c.b16 %v640, %v640
        %v673 = vpack.c.b16 %v641, %v641
        %v674 = vpack.c.b16 %v642, %v642
        %v675 = vpack.c.b16 %v643, %v643
        %708 = vst [vmem:[%s198] sm:$0xf] %v644
        %709 = vst [vmem:[%s198 + $0x4] sm:$0xf] %v645
        %710 = vst [vmem:[%s198 + $0x8] sm:$0xf] %v646
        %711 = vst [vmem:[%s198 + $0xc] sm:$0xf] %v647
        %712 = vst [vmem:[%s198 + $0x10] sm:$0xf] %v648
        %713 = vst [vmem:[%s198 + $0x14] sm:$0xf] %v649
        %714 = vst [vmem:[%s198 + $0x18] sm:$0xf] %v650
        %715 = vst [vmem:[%s198 + $0x1c] sm:$0xf] %v651
        %716 = vst [vmem:[%s198 + $0x20] sm:$0xf] %v652
        %717 = vst [vmem:[%s198 + $0x24] sm:$0xf] %v653
        %718 = vst [vmem:[%s198 + $0x28] sm:$0xf] %v654
        %719 = vst [vmem:[%s198 + $0x2c] sm:$0xf] %v655
        %720 = vst [vmem:[%s198 + $0x30] sm:$0xf] %v656
        %721 = vst [vmem:[%s198 + $0x34] sm:$0xf] %v657
        %722 = vst [vmem:[%s198 + $0x38] sm:$0xf] %v658
        %723 = vst [vmem:[%s198 + $0x3c] sm:$0xf] %v659
        %724 = vst [vmem:[%s198 + $0x40] sm:$0xf] %v660
        %725 = vst [vmem:[%s198 + $0x44] sm:$0xf] %v661
        %726 = vst [vmem:[%s198 + $0x48] sm:$0xf] %v662
        %727 = vst [vmem:[%s198 + $0x4c] sm:$0xf] %v663
        %728 = vst [vmem:[%s198 + $0x50] sm:$0xf] %v664
        %729 = vst [vmem:[%s198 + $0x54] sm:$0xf] %v665
        %730 = vst [vmem:[%s198 + $0x58] sm:$0xf] %v666
        %731 = vst [vmem:[%s198 + $0x5c] sm:$0xf] %v667
        %732 = vst [vmem:[%s198 + $0x60] sm:$0xf] %v668
        %733 = vst [vmem:[%s198 + $0x64] sm:$0xf] %v669
        %734 = vst [vmem:[%s198 + $0x68] sm:$0xf] %v670
        %735 = vst [vmem:[%s198 + $0x6c] sm:$0xf] %v671
        %736 = vst [vmem:[%s198 + $0x70] sm:$0xf] %v672
        %737 = vst [vmem:[%s198 + $0x74] sm:$0xf] %v673
        %738 = vst [vmem:[%s198 + $0x78] sm:$0xf] %v674
        %739 = vst [vmem:[%s198 + $0x7c] sm:$0xf] %v675
        %s740 = sand.u32 %s114, 1
        %s741 = sand.u32 %s114, 1
        %s742 = smul.addr %s741, 128
        %s743 = scalar_lea.vmem [#allocation2], %s742
        // Predicated region
        $region33: #{inception_block_d.6} parent=31 // pred_check
          %p744 = pneg %p124
        $region34: #{inception_block_d.6} parent=31 // pred_check_branch
          %746 = sbr.rel (%p744) target = $region36
        $region35: #{inception_block_d.6} parent=31 // pred_region
          %s747 = smul.u32 32, %s18
          %s748 = smul.addr %s747, 3
          %s749 = sadd.s32 %s19, %s748
          %s750 = smul.addr %s749, 4
          %s751 = scalar_lea.vmem %s3, %s750
          // Predicated region
          $region37: #{inception_block_d.6} parent=35 // pred_check
            _
          $region38: #{inception_block_d.6} parent=35 // pred_check_branch
            %753 = sbr.rel (0) target = $region40
          $region39: #{inception_block_d.6} parent=35 // pred_region
            // Predicated region
            $region41: #{inception_block_d.6} parent=39 // pred_check
              _
            $region42: #{inception_block_d.6} parent=39 // pred_check_branch
              %755 = sbr.rel target = $region44
            $region43: #{inception_block_d.6} parent=39 // pred_region
              // Predicated region
              $region56: #{inception_block_d.6} parent=43 // pred_check
                _
              $region57: #{inception_block_d.6} parent=43 // pred_check_branch
                %833 = sbr.rel (0) target = $region59
              $region58: #{inception_block_d.6} parent=43 // pred_region
                loop: start=0, step=1, limit=1
                $region60: #{inception_block_d.6} parent=58 // loop_pre_header
                  _
                $region61: #{inception_block_d.6} parent=58 // loop_header
                  %s835 = sphi 0, %s839
                  %p836 = scmp.ge.s32.totalorder %s835, 1
                  %s840 = sphi %s743, %s743
                  %s841 = sphi %s751, %s751
                $region62: #{inception_block_d.6} parent=58 // loop_header_branch
                  %838 = sbr.rel (%p836) target = $region66
                $region63: #{inception_block_d.6} parent=58 // loop_body
                  _
                $region64: #{inception_block_d.6} parent=58 // loop_footer
                  %s839 = sadd.s32 1, %s835
                $region65: #{inception_block_d.6} parent=58 // loop_footer_branch
                  %834 = sbr.rel target = $region61
                $region66: #{inception_block_d.6} parent=58 // loop_exit
                  _
                %s843 = ssub.s32 16, 1
                loop: start=0, step=1, limit=1
                $region67: #{inception_block_d.6} parent=58 // loop_pre_header
                  _
                $region68: #{inception_block_d.6} parent=58 // loop_header
                  %s845 = sphi 0, %s849
                  %p846 = scmp.ge.s32.totalorder %s845, 1
                  %s850 = sphi %s743, %s743
                  %s851 = sphi %s751, %s751
                $region69: #{inception_block_d.6} parent=58 // loop_header_branch
                  %848 = sbr.rel (%p846) target = $region73
                $region70: #{inception_block_d.6} parent=58 // loop_body
                  %v852 = vld [vmem:[%s850] sm:%s843]
                  %853 = vst [vmem:[%s851] sm:%s843] %v852
                  %v854 = vld [vmem:[%s850 + $0x4] sm:%s843]
                  %855 = vst [vmem:[%s851 + $0xc] sm:%s843] %v854
                  %v856 = vld [vmem:[%s850 + $0x8] sm:%s843]
                  %857 = vst [vmem:[%s851 + $0x18] sm:%s843] %v856
                  %v858 = vld [vmem:[%s850 + $0xc] sm:%s843]
                  %859 = vst [vmem:[%s851 + $0x24] sm:%s843] %v858
                  %v860 = vld [vmem:[%s850 + $0x10] sm:%s843]
                  %861 = vst [vmem:[%s851 + $0x30] sm:%s843] %v860
                  %v862 = vld [vmem:[%s850 + $0x14] sm:%s843]
                  %863 = vst [vmem:[%s851 + $0x3c] sm:%s843] %v862
                  %v864 = vld [vmem:[%s850 + $0x18] sm:%s843]
                  %865 = vst [vmem:[%s851 + $0x48] sm:%s843] %v864
                  %v866 = vld [vmem:[%s850 + $0x1c] sm:%s843]
                  %867 = vst [vmem:[%s851 + $0x54] sm:%s843] %v866
                  %v868 = vld [vmem:[%s850 + $0x20] sm:%s843]
                  %869 = vst [vmem:[%s851 + $0x60] sm:%s843] %v868
                  %v870 = vld [vmem:[%s850 + $0x24] sm:%s843]
                  %871 = vst [vmem:[%s851 + $0x6c] sm:%s843] %v870
                  %v872 = vld [vmem:[%s850 + $0x28] sm:%s843]
                  %873 = vst [vmem:[%s851 + $0x78] sm:%s843] %v872
                  %v874 = vld [vmem:[%s850 + $0x2c] sm:%s843]
                  %875 = vst [vmem:[%s851 + $0x84] sm:%s843] %v874
                  %v876 = vld [vmem:[%s850 + $0x30] sm:%s843]
                  %877 = vst [vmem:[%s851 + $0x90] sm:%s843] %v876
                  %v878 = vld [vmem:[%s850 + $0x34] sm:%s843]
                  %879 = vst [vmem:[%s851 + $0x9c] sm:%s843] %v878
                  %v880 = vld [vmem:[%s850 + $0x38] sm:%s843]
                  %881 = vst [vmem:[%s851 + $0xa8] sm:%s843] %v880
                  %v882 = vld [vmem:[%s850 + $0x3c] sm:%s843]
                  %883 = vst [vmem:[%s851 + $0xb4] sm:%s843] %v882
                  %v884 = vld [vmem:[%s850 + $0x40] sm:%s843]
                  %885 = vst [vmem:[%s851 + $0xc0] sm:%s843] %v884
                  %v886 = vld [vmem:[%s850 + $0x44] sm:%s843]
                  %887 = vst [vmem:[%s851 + $0xcc] sm:%s843] %v886
                  %v888 = vld [vmem:[%s850 + $0x48] sm:%s843]
                  %889 = vst [vmem:[%s851 + $0xd8] sm:%s843] %v888
                  %v890 = vld [vmem:[%s850 + $0x4c] sm:%s843]
                  %891 = vst [vmem:[%s851 + $0xe4] sm:%s843] %v890
                  %v892 = vld [vmem:[%s850 + $0x50] sm:%s843]
                  %893 = vst [vmem:[%s851 + $0xf0] sm:%s843] %v892
                  %v894 = vld [vmem:[%s850 + $0x54] sm:%s843]
                  %895 = vst [vmem:[%s851 + $0xfc] sm:%s843] %v894
                  %v896 = vld [vmem:[%s850 + $0x58] sm:%s843]
                  %897 = vst [vmem:[%s851 + $0x108] sm:%s843] %v896
                  %v898 = vld [vmem:[%s850 + $0x5c] sm:%s843]
                  %899 = vst [vmem:[%s851 + $0x114] sm:%s843] %v898
                  %v900 = vld [vmem:[%s850 + $0x60] sm:%s843]
                  %901 = vst [vmem:[%s851 + $0x120] sm:%s843] %v900
                  %v902 = vld [vmem:[%s850 + $0x64] sm:%s843]
                  %903 = vst [vmem:[%s851 + $0x12c] sm:%s843] %v902
                  %v904 = vld [vmem:[%s850 + $0x68] sm:%s843]
                  %905 = vst [vmem:[%s851 + $0x138] sm:%s843] %v904
                  %v906 = vld [vmem:[%s850 + $0x6c] sm:%s843]
                  %907 = vst [vmem:[%s851 + $0x144] sm:%s843] %v906
                  %v908 = vld [vmem:[%s850 + $0x70] sm:%s843]
                  %909 = vst [vmem:[%s851 + $0x150] sm:%s843] %v908
                  %v910 = vld [vmem:[%s850 + $0x74] sm:%s843]
                  %911 = vst [vmem:[%s851 + $0x15c] sm:%s843] %v910
                  %v912 = vld [vmem:[%s850 + $0x78] sm:%s843]
                  %913 = vst [vmem:[%s851 + $0x168] sm:%s843] %v912
                  %v914 = vld [vmem:[%s850 + $0x7c] sm:%s843]
                  %915 = vst [vmem:[%s851 + $0x174] sm:%s843] %v914
                $region71: #{inception_block_d.6} parent=58 // loop_footer
                  %s849 = sadd.s32 1, %s845
                $region72: #{inception_block_d.6} parent=58 // loop_footer_branch
                  %844 = sbr.rel target = $region68
                $region73: #{inception_block_d.6} parent=58 // loop_exit
                  _
              $region59: #{inception_block_d.6} parent=43 // pred_fallthru
                _
            $region44: #{inception_block_d.6} parent=39 // pred_fallthru
              _
            // Predicated region
            $region45: #{inception_block_d.6} parent=39 // pred_check
              _
            $region46: #{inception_block_d.6} parent=39 // pred_check_branch
              %757 = sbr.rel (0) target = $region48
            $region47: #{inception_block_d.6} parent=39 // pred_region
              %s759 = ssub.s32 16, 1
              loop: start=0, step=1, limit=1
              $region49: #{inception_block_d.6} parent=47 // loop_pre_header
                _
              $region50: #{inception_block_d.6} parent=47 // loop_header
                %s761 = sphi 0, %s765
                %p762 = scmp.ge.s32.totalorder %s761, 1
                %s766 = sphi %s743, %s743
                %s767 = sphi %s751, %s751
              $region51: #{inception_block_d.6} parent=47 // loop_header_branch
                %764 = sbr.rel (%p762) target = $region55
              $region52: #{inception_block_d.6} parent=47 // loop_body
                %v768 = vld [vmem:[%s766] sm:%s759]
                %769 = vst [vmem:[%s767] sm:%s759] %v768
                %v770 = vld [vmem:[%s766 + $0x4] sm:%s759]
                %771 = vst [vmem:[%s767 + $0xc] sm:%s759] %v770
                %v772 = vld [vmem:[%s766 + $0x8] sm:%s759]
                %773 = vst [vmem:[%s767 + $0x18] sm:%s759] %v772
                %v774 = vld [vmem:[%s766 + $0xc] sm:%s759]
                %775 = vst [vmem:[%s767 + $0x24] sm:%s759] %v774
                %v776 = vld [vmem:[%s766 + $0x10] sm:%s759]
                %777 = vst [vmem:[%s767 + $0x30] sm:%s759] %v776
                %v778 = vld [vmem:[%s766 + $0x14] sm:%s759]
                %779 = vst [vmem:[%s767 + $0x3c] sm:%s759] %v778
                %v780 = vld [vmem:[%s766 + $0x18] sm:%s759]
                %781 = vst [vmem:[%s767 + $0x48] sm:%s759] %v780
                %v782 = vld [vmem:[%s766 + $0x1c] sm:%s759]
                %783 = vst [vmem:[%s767 + $0x54] sm:%s759] %v782
                %v784 = vld [vmem:[%s766 + $0x20] sm:%s759]
                %785 = vst [vmem:[%s767 + $0x60] sm:%s759] %v784
                %v786 = vld [vmem:[%s766 + $0x24] sm:%s759]
                %787 = vst [vmem:[%s767 + $0x6c] sm:%s759] %v786
                %v788 = vld [vmem:[%s766 + $0x28] sm:%s759]
                %789 = vst [vmem:[%s767 + $0x78] sm:%s759] %v788
                %v790 = vld [vmem:[%s766 + $0x2c] sm:%s759]
                %791 = vst [vmem:[%s767 + $0x84] sm:%s759] %v790
                %v792 = vld [vmem:[%s766 + $0x30] sm:%s759]
                %793 = vst [vmem:[%s767 + $0x90] sm:%s759] %v792
                %v794 = vld [vmem:[%s766 + $0x34] sm:%s759]
                %795 = vst [vmem:[%s767 + $0x9c] sm:%s759] %v794
                %v796 = vld [vmem:[%s766 + $0x38] sm:%s759]
                %797 = vst [vmem:[%s767 + $0xa8] sm:%s759] %v796
                %v798 = vld [vmem:[%s766 + $0x3c] sm:%s759]
                %799 = vst [vmem:[%s767 + $0xb4] sm:%s759] %v798
                %v800 = vld [vmem:[%s766 + $0x40] sm:%s759]
                %801 = vst [vmem:[%s767 + $0xc0] sm:%s759] %v800
                %v802 = vld [vmem:[%s766 + $0x44] sm:%s759]
                %803 = vst [vmem:[%s767 + $0xcc] sm:%s759] %v802
                %v804 = vld [vmem:[%s766 + $0x48] sm:%s759]
                %805 = vst [vmem:[%s767 + $0xd8] sm:%s759] %v804
                %v806 = vld [vmem:[%s766 + $0x4c] sm:%s759]
                %807 = vst [vmem:[%s767 + $0xe4] sm:%s759] %v806
                %v808 = vld [vmem:[%s766 + $0x50] sm:%s759]
                %809 = vst [vmem:[%s767 + $0xf0] sm:%s759] %v808
                %v810 = vld [vmem:[%s766 + $0x54] sm:%s759]
                %811 = vst [vmem:[%s767 + $0xfc] sm:%s759] %v810
                %v812 = vld [vmem:[%s766 + $0x58] sm:%s759]
                %813 = vst [vmem:[%s767 + $0x108] sm:%s759] %v812
                %v814 = vld [vmem:[%s766 + $0x5c] sm:%s759]
                %815 = vst [vmem:[%s767 + $0x114] sm:%s759] %v814
                %v816 = vld [vmem:[%s766 + $0x60] sm:%s759]
                %817 = vst [vmem:[%s767 + $0x120] sm:%s759] %v816
                %v818 = vld [vmem:[%s766 + $0x64] sm:%s759]
                %819 = vst [vmem:[%s767 + $0x12c] sm:%s759] %v818
                %v820 = vld [vmem:[%s766 + $0x68] sm:%s759]
                %821 = vst [vmem:[%s767 + $0x138] sm:%s759] %v820
                %v822 = vld [vmem:[%s766 + $0x6c] sm:%s759]
                %823 = vst [vmem:[%s767 + $0x144] sm:%s759] %v822
                %v824 = vld [vmem:[%s766 + $0x70] sm:%s759]
                %825 = vst [vmem:[%s767 + $0x150] sm:%s759] %v824
                %v826 = vld [vmem:[%s766 + $0x74] sm:%s759]
                %827 = vst [vmem:[%s767 + $0x15c] sm:%s759] %v826
                %v828 = vld [vmem:[%s766 + $0x78] sm:%s759]
                %829 = vst [vmem:[%s767 + $0x168] sm:%s759] %v828
                %v830 = vld [vmem:[%s766 + $0x7c] sm:%s759]
                %831 = vst [vmem:[%s767 + $0x174] sm:%s759] %v830
              $region53: #{inception_block_d.6} parent=47 // loop_footer
                %s765 = sadd.s32 1, %s761
              $region54: #{inception_block_d.6} parent=47 // loop_footer_branch
                %760 = sbr.rel target = $region50
              $region55: #{inception_block_d.6} parent=47 // loop_exit
                _
            $region48: #{inception_block_d.6} parent=39 // pred_fallthru
              _
          $region40: #{inception_block_d.6} parent=35 // pred_fallthru
            _
          %916 = vnop
        $region36: #{inception_block_d.6} parent=31 // pred_fallthru
          _
      $region32: #{inception_block_d.6} parent=5 // pred_fallthru
        _
      %p917 = scmp.le.s32.totalorder 2, %s9
      // Predicated region
      $region74: #{inception_block_d.6} parent=5 // pred_check
        %p918 = pneg %p917
      $region75: #{inception_block_d.6} parent=5 // pred_check_branch
        %920 = sbr.rel (%p918) target = $region77
      $region76: #{inception_block_d.6} parent=5 // pred_region
        %s921 = ssub.s32 %s9, 2
        // Predicated region
        $region78: #{inception_block_d.6} parent=76 // pred_check
          %p922 = pneg %p130
        $region79: #{inception_block_d.6} parent=76 // pred_check_branch
          %924 = sbr.rel (%p922) target = $region81
        $region80: #{inception_block_d.6} parent=76 // pred_region
          %s925 = sand.u32 %s115, 1
          %s926 = sand.u32 %s115, 1
          %s927 = smul.addr %s926, 128
          %s928 = scalar_lea.vmem [#allocation2], %s927
        $region81: #{inception_block_d.6} parent=76 // pred_fallthru
          _
      $region77: #{inception_block_d.6} parent=5 // pred_fallthru
        _
    $region6: #{inception_block_d.6} parent=1 // loop_footer
      %s13 = sadd.s32 1, %s9
    $region7: #{inception_block_d.6} parent=1 // loop_footer_branch
      %8 = sbr.rel target = $region3
    $region8: #{inception_block_d.6} parent=1 // loop_exit
      _

// kernel: inception_block_d.8
$region0: #{inception_block_d.8}
  #allocation0 [shape = 'u32[]', space=smem, size = 0x4, offset = 0x4, fixed_abs, tag = 'smem constant byte address 0x4 - core index']
  #allocation1 [shape = 'u32[144,128]{1,0:T(1,128)}', space=vmem, size = 0x12000, scoped, tag = 'internal scratch']
  %s0 = inlined_call_operand.vmem [shape: bf16[512,1344], index: 0, kind: input, shape index: {}]
  %s1 = inlined_call_operand.vmem [shape: bf16[1344,256], index: 1, kind: input, shape index: {}]
  %s2 = inlined_call_operand.vmem [shape: f32[1,256], index: 2, kind: input, shape index: {}]
  %s3 = inlined_call_operand.vmem [shape: bf16[512,256], index: 3, kind: output, shape index: {}]
  %s4 = sld [smem:[#allocation0]]
  $region45: #{inception_block_d.8} parent=0
    _
  %s6 = ssub.s32 1, %s4
  %s7 = scalar_select 0, %s6, %s4
  loop: start=0, step=1, limit=4
  $region2: #{inception_block_d.8} parent=0 // loop_pre_header
    _
  $region3: #{inception_block_d.8} parent=0 // loop_header
    %s9 = sphi 0, %s13
    %p10 = scmp.ge.s32.totalorder %s9, 4
    %s16 = sphi 0, %s28
    %s17 = sphi 0, %s24
    %s18 = sphi 0, %s16
    %s19 = sphi 0, %s17
    %s20 = sphi 0, %s18
    %s21 = sphi 0, %s19
    %s31 = sphi 0, %s33
    %s34 = sphi 0, %s31
    %s35 = sphi 0, %s34
    %s51 = sphi 0, %s35
    %s57 = sphi 0, %s59
    %s60 = sphi 0, %s57
    %s61 = sphi 0, %s60
    %s77 = sphi 0, %s61
    %s83 = sphi 0, %s85
    %s86 = sphi 0, %s83
    %s87 = sphi 0, %s86
    %s103 = sphi 0, %s87
    %s111 = sphi 0, %s113
    %s114 = sphi 0, %s111
    %s115 = sphi 0, %s114
    %s131 = sphi 0, %s115
  $region4: #{inception_block_d.8} parent=0 // loop_header_branch
    %12 = sbr.rel (%p10) target = $region8
  $region5: #{inception_block_d.8} parent=0 // loop_body
    %s14 = ssub.s32 %s9, 1
    %s15 = ssub.s32 %s9, 2
    %s22 = sadd.s32 1, %s17
    %p23 = scmp.ge.s32.totalorder %s22, 1
    %s24 = scalar_select %p23, 0, %s22
    %s25 = sadd.s32 1, %s16
    %s26 = scalar_select %p23, %s25, %s16
    %p27 = scmp.ge.s32.totalorder %s26, 2
    %s28 = scalar_select %p27, 0, %s26
    %s29 = ssub.s32 %s16, %s28
    %p30 = scmp.eq.s32.totalorder %s29, 0
    %s32 = sadd.s32 %s31, 1
    %s33 = scalar_select %p30, %s31, %s32
    %p36 = pneg %p30
    %p37 = scmp.eq.s32.totalorder %s9, 1
    %p38 = por %p36, %p37
    %p39 = scmp.ne.s32.totalorder %s31, %s34
    %p40 = scmp.eq.s32.totalorder %s9, 0
    %p41 = por %p39, %p40
    %p42 = scmp.ne.s32.totalorder %s31, %s34
    %p43 = scmp.eq.s32.totalorder %s14, 1
    %p44 = por %p42, %p43
    %p45 = scmp.ne.s32.totalorder %s34, %s35
    %p46 = scmp.eq.s32.totalorder %s14, 0
    %p47 = por %p45, %p46
    %p48 = scmp.ne.s32.totalorder %s34, %s35
    %p49 = scmp.eq.s32.totalorder %s15, 1
    %p50 = por %p48, %p49
    %p52 = scmp.ne.s32.totalorder %s35, %s51
    %p53 = scmp.eq.s32.totalorder %s15, 0
    %p54 = por %p52, %p53
    %s55 = ssub.s32 %s17, %s24
    %p56 = scmp.eq.s32.totalorder %s55, 0
    %s58 = sadd.s32 %s57, 1
    %s59 = scalar_select %p56, %s57, %s58
    %p62 = pneg %p56
    %p63 = scmp.eq.s32.totalorder %s9, 1
    %p64 = por %p62, %p63
    %p65 = scmp.ne.s32.totalorder %s57, %s60
    %p66 = scmp.eq.s32.totalorder %s9, 0
    %p67 = por %p65, %p66
    %p68 = scmp.ne.s32.totalorder %s57, %s60
    %p69 = scmp.eq.s32.totalorder %s14, 1
    %p70 = por %p68, %p69
    %p71 = scmp.ne.s32.totalorder %s60, %s61
    %p72 = scmp.eq.s32.totalorder %s14, 0
    %p73 = por %p71, %p72
    %p74 = scmp.ne.s32.totalorder %s60, %s61
    %p75 = scmp.eq.s32.totalorder %s15, 1
    %p76 = por %p74, %p75
    %p78 = scmp.ne.s32.totalorder %s61, %s77
    %p79 = scmp.eq.s32.totalorder %s15, 0
    %p80 = por %p78, %p79
    %s81 = ssub.s32 %s17, %s24
    %p82 = scmp.eq.s32.totalorder %s81, 0
    %s84 = sadd.s32 %s83, 1
    %s85 = scalar_select %p82, %s83, %s84
    %p88 = pneg %p82
    %p89 = scmp.eq.s32.totalorder %s9, 1
    %p90 = por %p88, %p89
    %p91 = scmp.ne.s32.totalorder %s83, %s86
    %p92 = scmp.eq.s32.totalorder %s9, 0
    %p93 = por %p91, %p92
    %p94 = scmp.ne.s32.totalorder %s83, %s86
    %p95 = scmp.eq.s32.totalorder %s14, 1
    %p96 = por %p94, %p95
    %p97 = scmp.ne.s32.totalorder %s86, %s87
    %p98 = scmp.eq.s32.totalorder %s14, 0
    %p99 = por %p97, %p98
    %p100 = scmp.ne.s32.totalorder %s86, %s87
    %p101 = scmp.eq.s32.totalorder %s15, 1
    %p102 = por %p100, %p101
    %p104 = scmp.ne.s32.totalorder %s87, %s103
    %p105 = scmp.eq.s32.totalorder %s15, 0
    %p106 = por %p104, %p105
    %s107 = ssub.s32 %s16, %s28
    %s108 = ssub.s32 %s17, %s24
    %s109 = sor.u32 %s107, %s108
    %p110 = scmp.eq.s32.totalorder %s109, 0
    %s112 = sadd.s32 %s111, 1
    %s113 = scalar_select %p110, %s111, %s112
    %p116 = pneg %p110
    %p117 = scmp.eq.s32.totalorder %s9, 1
    %p118 = por %p116, %p117
    %p119 = scmp.ne.s32.totalorder %s111, %s114
    %p120 = scmp.eq.s32.totalorder %s9, 0
    %p121 = por %p119, %p120
    %p122 = scmp.ne.s32.totalorder %s111, %s114
    %p123 = scmp.eq.s32.totalorder %s14, 1
    %p124 = por %p122, %p123
    %p125 = scmp.ne.s32.totalorder %s114, %s115
    %p126 = scmp.eq.s32.totalorder %s14, 0
    %p127 = por %p125, %p126
    %p128 = scmp.ne.s32.totalorder %s114, %s115
    %p129 = scmp.eq.s32.totalorder %s15, 1
    %p130 = por %p128, %p129
    %p132 = scmp.ne.s32.totalorder %s115, %s131
    %p133 = scmp.eq.s32.totalorder %s15, 0
    %p134 = por %p132, %p133
    %p135 = scmp.le.s32.totalorder 1, %s9
    %p136 = scmp.lt.s32.totalorder %s9, 3
    %p137 = pnand %p135, %p136
    %p138 = pneg %p137
    // Predicated region
    $region9: #{inception_block_d.8} parent=5 // pred_check
      _
    $region10: #{inception_block_d.8} parent=5 // pred_check_branch
      %140 = sbr.rel (%p137) target = $region12
    $region11: #{inception_block_d.8} parent=5 // pred_region
      %s141 = ssub.s32 %s9, 1
      // Predicated region
      $region13: #{inception_block_d.8} parent=11 // pred_check
        %p142 = pneg %p73
      $region14: #{inception_block_d.8} parent=11 // pred_check_branch
        %144 = sbr.rel (%p142) target = $region16
      $region15: #{inception_block_d.8} parent=11 // pred_region
        %s145 = smul.u32 2, %s19
        %p146 = scmp.lt.s32.totalorder %s145, 1
        %s147 = scalar_select %p146, %s145, 1
        %s148 = smul.addr %s147, 4
        %s149 = scalar_lea.vmem %s1, %s148
        %s150 = smul.u32 2, %s19
      $region16: #{inception_block_d.8} parent=11 // pred_fallthru
        _
      // Predicated region
      $region17: #{inception_block_d.8} parent=11 // pred_check
        %p151 = pneg %p99
      $region18: #{inception_block_d.8} parent=11 // pred_check_branch
        %153 = sbr.rel (%p151) target = $region20
      $region19: #{inception_block_d.8} parent=11 // pred_region
        %s154 = smul.u32 2, %s19
        %p155 = scmp.lt.s32.totalorder %s154, 1
        %s156 = scalar_select %p155, %s154, 1
        %s157 = scalar_lea.vmem %s2, %s156
        %s158 = smul.u32 2, %s19
      $region20: #{inception_block_d.8} parent=11 // pred_fallthru
        _
    $region12: #{inception_block_d.8} parent=5 // pred_fallthru
      _
    %p159 = scmp.lt.s32.totalorder %s9, 2
    // Predicated region
    $region21: #{inception_block_d.8} parent=5 // pred_check
      %p160 = pneg %p159
    $region22: #{inception_block_d.8} parent=5 // pred_check_branch
      %162 = sbr.rel (%p160) target = $region24
    $region23: #{inception_block_d.8} parent=5 // pred_region
      // Predicated region
      $region25: #{inception_block_d.8} parent=23 // pred_check
        %p163 = pneg %p41
      $region26: #{inception_block_d.8} parent=23 // pred_check_branch
        %165 = sbr.rel (%p163) target = $region28
      $region27: #{inception_block_d.8} parent=23 // pred_region
        %s166 = smul.u32 32, %s16
        %p167 = scmp.lt.s32.totalorder %s166, 63
        %s168 = scalar_select %p167, %s166, 63
        %s169 = smul.addr %s168, 11
        %s170 = smul.addr %s169, 4
        %s171 = scalar_lea.vmem %s0, %s170
        %s172 = smul.u32 32, %s16
      $region28: #{inception_block_d.8} parent=23 // pred_fallthru
        _
    $region24: #{inception_block_d.8} parent=5 // pred_fallthru
      _
    %p173 = scmp.le.s32.totalorder 1, %s9
    %p174 = scmp.lt.s32.totalorder %s9, 3
    %p175 = pnand %p173, %p174
    %p176 = pneg %p175
    // Predicated region
    $region29: #{inception_block_d.8} parent=5 // pred_check
      _
    $region30: #{inception_block_d.8} parent=5 // pred_check_branch
      %178 = sbr.rel (%p175) target = $region32
    $region31: #{inception_block_d.8} parent=5 // pred_region
      %s179 = ssub.s32 %s9, 1
      %s180 = smul.u32 32, %s18
      %p181 = scmp.lt.s32.totalorder %s180, 63
      %s182 = scalar_select %p181, %s180, 63
      %s183 = smul.addr %s182, 11
      %s184 = smul.addr %s183, 4
      %s185 = scalar_lea.vmem %s0, %s184
      %p186 = pneg %p47
      %p187 = pneg %p44
      %s188 = smul.u32 2, %s19
      %p189 = scmp.lt.s32.totalorder %s188, 1
      %s190 = scalar_select %p189, %s188, 1
      %s191 = smul.addr %s190, 4
      %s192 = scalar_lea.vmem %s1, %s191
      %p193 = pneg %p73
      %p194 = pneg %p70
      %s195 = smul.u32 2, %s19
      %p196 = scmp.lt.s32.totalorder %s195, 1
      %s197 = scalar_select %p196, %s195, 1
      %s198 = scalar_lea.vmem %s2, %s197
      %p199 = pneg %p99
      %p200 = pneg %p96
      %p201 = pneg %p127
      %p202 = pneg %p124
      %s203 = smul.u32 32, %s18
      %s204 = smul.u32 2, %s19
      %p205 = scmp.lt.s32.totalorder %s203, 63
      %s206 = scalar_select %p205, %s203, 63
      %p207 = scmp.lt.s32.totalorder %s204, 1
      %s208 = scalar_select %p207, %s204, 1
      %s209 = smul.addr %s206, 2
      %s210 = sadd.s32 %s208, %s209
      %s211 = smul.addr %s210, 4
      %s212 = scalar_lea.vmem %s3, %s211
      %s213 = smul.u32 32, %s18
      %p214 = scmp.lt.s32.totalorder %s213, 63
      %s215 = scalar_select %p214, %s213, 63
      %s216 = smul.addr %s215, 11
      %s217 = smul.addr %s216, 4
      %s218 = scalar_lea.vmem %s0, %s217
      %s219 = smul.u32 32, %s18
      %s220 = smul.u32 2, %s19
      %p221 = scmp.lt.s32.totalorder %s220, 1
      %s222 = scalar_select %p221, %s220, 1
      %s223 = smul.addr %s222, 4
      %s224 = scalar_lea.vmem %s1, %s223
      %s225 = smul.u32 2, %s19
      %s226 = smul.u32 2, %s19
      %p227 = scmp.lt.s32.totalorder %s226, 1
      %s228 = scalar_select %p227, %s226, 1
      %s229 = scalar_lea.vmem %s2, %s228
      %s230 = smul.u32 2, %s19
      %s231 = smul.u32 32, %s18
      %s232 = smul.u32 2, %s19
      %p233 = scmp.lt.s32.totalorder %s231, 63
      %s234 = scalar_select %p233, %s231, 63
      %p235 = scmp.lt.s32.totalorder %s232, 1
      %s236 = scalar_select %p235, %s232, 1
      %s237 = smul.addr %s234, 2
      %s238 = sadd.s32 %s236, %s237
      %s239 = smul.addr %s238, 4
      %s240 = scalar_lea.vmem %s3, %s239
      %s241 = smul.u32 32, %s18
      %s242 = smul.u32 2, %s19
      %v244 = vld [vmem:[%s218] sm:$0xff]
      %v245 = vld [vmem:[%s218 + $0x8] sm:$0xff]
      %v246 = vld [vmem:[%s218 + $0x10] sm:$0xff]
      %v247 = vld [vmem:[%s218 + $0x18] sm:$0xff]
      %v248 = vld [vmem:[%s218 + $0x20] sm:$0xff]
      %v249 = vld [vmem:[%s218 + $0x28] sm:$0xf]
      %v250 = vld [vmem:[%s218 + $0x2c] sm:$0xff]
      %v251 = vld [vmem:[%s218 + $0x34] sm:$0xff]
      %v252 = vld [vmem:[%s218 + $0x3c] sm:$0xff]
      %v253 = vld [vmem:[%s218 + $0x44] sm:$0xff]
      %v254 = vld [vmem:[%s218 + $0x4c] sm:$0xff]
      %v255 = vld [vmem:[%s218 + $0x54] sm:$0xf]
      %v256 = vld [vmem:[%s218 + $0x58] sm:$0xff]
      %v257 = vld [vmem:[%s218 + $0x60] sm:$0xff]
      %v258 = vld [vmem:[%s218 + $0x68] sm:$0xff]
      %v259 = vld [vmem:[%s218 + $0x70] sm:$0xff]
      %v260 = vld [vmem:[%s218 + $0x78] sm:$0xff]
      %v261 = vld [vmem:[%s218 + $0x80] sm:$0xf]
      %v262 = vld [vmem:[%s218 + $0x84] sm:$0xff]
      %v263 = vld [vmem:[%s218 + $0x8c] sm:$0xff]
      %v264 = vld [vmem:[%s218 + $0x94] sm:$0xff]
      %v265 = vld [vmem:[%s218 + $0x9c] sm:$0xff]
      %v266 = vld [vmem:[%s218 + $0xa4] sm:$0xff]
      %v267 = vld [vmem:[%s218 + $0xac] sm:$0xf]
      %v268 = vld [vmem:[%s218 + $0xb0] sm:$0xff]
      %v269 = vld [vmem:[%s218 + $0xb8] sm:$0xff]
      %v270 = vld [vmem:[%s218 + $0xc0] sm:$0xff]
      %v271 = vld [vmem:[%s218 + $0xc8] sm:$0xff]
      %v272 = vld [vmem:[%s218 + $0xd0] sm:$0xff]
      %v273 = vld [vmem:[%s218 + $0xd8] sm:$0xf]
      %v274 = vld [vmem:[%s218 + $0xdc] sm:$0xff]
      %v275 = vld [vmem:[%s218 + $0xe4] sm:$0xff]
      %v276 = vld [vmem:[%s218 + $0xec] sm:$0xff]
      %v277 = vld [vmem:[%s218 + $0xf4] sm:$0xff]
      %v278 = vld [vmem:[%s218 + $0xfc] sm:$0xff]
      %v279 = vld [vmem:[%s218 + $0x104] sm:$0xf]
      %v280 = vld [vmem:[%s218 + $0x108] sm:$0xff]
      %v281 = vld [vmem:[%s218 + $0x110] sm:$0xff]
      %v282 = vld [vmem:[%s218 + $0x118] sm:$0xff]
      %v283 = vld [vmem:[%s218 + $0x120] sm:$0xff]
      %v284 = vld [vmem:[%s218 + $0x128] sm:$0xff]
      %v285 = vld [vmem:[%s218 + $0x130] sm:$0xf]
      %v286 = vld [vmem:[%s218 + $0x134] sm:$0xff]
      %v287 = vld [vmem:[%s218 + $0x13c] sm:$0xff]
      %v288 = vld [vmem:[%s218 + $0x144] sm:$0xff]
      %v289 = vld [vmem:[%s218 + $0x14c] sm:$0xff]
      %v290 = vld [vmem:[%s218 + $0x154] sm:$0xff]
      %v291 = vld [vmem:[%s218 + $0x15c] sm:$0xf]
      %v292 = vld [vmem:[%s218 + $0x160] sm:$0xff]
      %v293 = vld [vmem:[%s218 + $0x168] sm:$0xff]
      %v294 = vld [vmem:[%s218 + $0x170] sm:$0xff]
      %v295 = vld [vmem:[%s218 + $0x178] sm:$0xff]
      %v296 = vld [vmem:[%s218 + $0x180] sm:$0xff]
      %v297 = vld [vmem:[%s218 + $0x188] sm:$0xf]
      %v298 = vld [vmem:[%s218 + $0x18c] sm:$0xff]
      %v299 = vld [vmem:[%s218 + $0x194] sm:$0xff]
      %v300 = vld [vmem:[%s218 + $0x19c] sm:$0xff]
      %v301 = vld [vmem:[%s218 + $0x1a4] sm:$0xff]
      %v302 = vld [vmem:[%s218 + $0x1ac] sm:$0xff]
      %v303 = vld [vmem:[%s218 + $0x1b4] sm:$0xf]
      %v304 = vld [vmem:[%s218 + $0x1b8] sm:$0xff]
      %v305 = vld [vmem:[%s218 + $0x1c0] sm:$0xff]
      %v306 = vld [vmem:[%s218 + $0x1c8] sm:$0xff]
      %v307 = vld [vmem:[%s218 + $0x1d0] sm:$0xff]
      %v308 = vld [vmem:[%s218 + $0x1d8] sm:$0xff]
      %v309 = vld [vmem:[%s218 + $0x1e0] sm:$0xf]
      %v310 = vld [vmem:[%s218 + $0x1e4] sm:$0xff]
      %v311 = vld [vmem:[%s218 + $0x1ec] sm:$0xff]
      %v312 = vld [vmem:[%s218 + $0x1f4] sm:$0xff]
      %v313 = vld [vmem:[%s218 + $0x1fc] sm:$0xff]
      %v314 = vld [vmem:[%s218 + $0x204] sm:$0xff]
      %v315 = vld [vmem:[%s218 + $0x20c] sm:$0xf]
      %v316 = vld [vmem:[%s218 + $0x210] sm:$0xff]
      %v317 = vld [vmem:[%s218 + $0x218] sm:$0xff]
      %v318 = vld [vmem:[%s218 + $0x220] sm:$0xff]
      %v319 = vld [vmem:[%s218 + $0x228] sm:$0xff]
      %v320 = vld [vmem:[%s218 + $0x230] sm:$0xff]
      %v321 = vld [vmem:[%s218 + $0x238] sm:$0xf]
      %v322 = vld [vmem:[%s218 + $0x23c] sm:$0xff]
      %v323 = vld [vmem:[%s218 + $0x244] sm:$0xff]
      %v324 = vld [vmem:[%s218 + $0x24c] sm:$0xff]
      %v325 = vld [vmem:[%s218 + $0x254] sm:$0xff]
      %v326 = vld [vmem:[%s218 + $0x25c] sm:$0xff]
      %v327 = vld [vmem:[%s218 + $0x264] sm:$0xf]
      %v328 = vld [vmem:[%s218 + $0x268] sm:$0xff]
      %v329 = vld [vmem:[%s218 + $0x270] sm:$0xff]
      %v330 = vld [vmem:[%s218 + $0x278] sm:$0xff]
      %v331 = vld [vmem:[%s218 + $0x280] sm:$0xff]
      %v332 = vld [vmem:[%s218 + $0x288] sm:$0xff]
      %v333 = vld [vmem:[%s218 + $0x290] sm:$0xf]
      %v334 = vld [vmem:[%s218 + $0x294] sm:$0xff]
      %v335 = vld [vmem:[%s218 + $0x29c] sm:$0xff]
      %v336 = vld [vmem:[%s218 + $0x2a4] sm:$0xff]
      %v337 = vld [vmem:[%s218 + $0x2ac] sm:$0xff]
      %v338 = vld [vmem:[%s218 + $0x2b4] sm:$0xff]
      %v339 = vld [vmem:[%s218 + $0x2bc] sm:$0xf]
      %v340 = vld [vmem:[%s218 + $0x2c0] sm:$0xff]
      %v341 = vld [vmem:[%s218 + $0x2c8] sm:$0xff]
      %v342 = vld [vmem:[%s218 + $0x2d0] sm:$0xff]
      %v343 = vld [vmem:[%s218 + $0x2d8] sm:$0xff]
      %v344 = vld [vmem:[%s218 + $0x2e0] sm:$0xff]
      %v345 = vld [vmem:[%s218 + $0x2e8] sm:$0xf]
      %v346 = vld [vmem:[%s218 + $0x2ec] sm:$0xff]
      %v347 = vld [vmem:[%s218 + $0x2f4] sm:$0xff]
      %v348 = vld [vmem:[%s218 + $0x2fc] sm:$0xff]
      %v349 = vld [vmem:[%s218 + $0x304] sm:$0xff]
      %v350 = vld [vmem:[%s218 + $0x30c] sm:$0xff]
      %v351 = vld [vmem:[%s218 + $0x314] sm:$0xf]
      %v352 = vld [vmem:[%s218 + $0x318] sm:$0xff]
      %v353 = vld [vmem:[%s218 + $0x320] sm:$0xff]
      %v354 = vld [vmem:[%s218 + $0x328] sm:$0xff]
      %v355 = vld [vmem:[%s218 + $0x330] sm:$0xff]
      %v356 = vld [vmem:[%s218 + $0x338] sm:$0xff]
      %v357 = vld [vmem:[%s218 + $0x340] sm:$0xf]
      %v358 = vld [vmem:[%s218 + $0x344] sm:$0xff]
      %v359 = vld [vmem:[%s218 + $0x34c] sm:$0xff]
      %v360 = vld [vmem:[%s218 + $0x354] sm:$0xff]
      %v361 = vld [vmem:[%s218 + $0x35c] sm:$0xff]
      %v362 = vld [vmem:[%s218 + $0x364] sm:$0xff]
      %v363 = vld [vmem:[%s218 + $0x36c] sm:$0xf]
      %v364 = vld [vmem:[%s218 + $0x370] sm:$0xff]
      %v365 = vld [vmem:[%s218 + $0x378] sm:$0xff]
      %v366 = vld [vmem:[%s218 + $0x380] sm:$0xff]
      %v367 = vld [vmem:[%s218 + $0x388] sm:$0xff]
      %v368 = vld [vmem:[%s218 + $0x390] sm:$0xff]
      %v369 = vld [vmem:[%s218 + $0x398] sm:$0xf]
      %v370 = vld [vmem:[%s218 + $0x39c] sm:$0xff]
      %v371 = vld [vmem:[%s218 + $0x3a4] sm:$0xff]
      %v372 = vld [vmem:[%s218 + $0x3ac] sm:$0xff]
      %v373 = vld [vmem:[%s218 + $0x3b4] sm:$0xff]
      %v374 = vld [vmem:[%s218 + $0x3bc] sm:$0xff]
      %v375 = vld [vmem:[%s218 + $0x3c4] sm:$0xf]
      %v376 = vld [vmem:[%s218 + $0x3c8] sm:$0xff]
      %v377 = vld [vmem:[%s218 + $0x3d0] sm:$0xff]
      %v378 = vld [vmem:[%s218 + $0x3d8] sm:$0xff]
      %v379 = vld [vmem:[%s218 + $0x3e0] sm:$0xff]
      %v380 = vld [vmem:[%s218 + $0x3e8] sm:$0xff]
      %v381 = vld [vmem:[%s218 + $0x3f0] sm:$0xf]
      %v382 = vld [vmem:[%s218 + $0x3f4] sm:$0xff]
      %v383 = vld [vmem:[%s218 + $0x3fc] sm:$0xff]
      %v384 = vld [vmem:[%s218 + $0x404] sm:$0xff]
      %v385 = vld [vmem:[%s218 + $0x40c] sm:$0xff]
      %v386 = vld [vmem:[%s218 + $0x414] sm:$0xff]
      %v387 = vld [vmem:[%s218 + $0x41c] sm:$0xf]
      %v388 = vld [vmem:[%s218 + $0x420] sm:$0xff]
      %v389 = vld [vmem:[%s218 + $0x428] sm:$0xff]
      %v390 = vld [vmem:[%s218 + $0x430] sm:$0xff]
      %v391 = vld [vmem:[%s218 + $0x438] sm:$0xff]
      %v392 = vld [vmem:[%s218 + $0x440] sm:$0xff]
      %v393 = vld [vmem:[%s218 + $0x448] sm:$0xf]
      %v394 = vld [vmem:[%s218 + $0x44c] sm:$0xff]
      %v395 = vld [vmem:[%s218 + $0x454] sm:$0xff]
      %v396 = vld [vmem:[%s218 + $0x45c] sm:$0xff]
      %v397 = vld [vmem:[%s218 + $0x464] sm:$0xff]
      %v398 = vld [vmem:[%s218 + $0x46c] sm:$0xff]
      %v399 = vld [vmem:[%s218 + $0x474] sm:$0xf]
      %v400 = vld [vmem:[%s218 + $0x478] sm:$0xff]
      %v401 = vld [vmem:[%s218 + $0x480] sm:$0xff]
      %v402 = vld [vmem:[%s218 + $0x488] sm:$0xff]
      %v403 = vld [vmem:[%s218 + $0x490] sm:$0xff]
      %v404 = vld [vmem:[%s218 + $0x498] sm:$0xff]
      %v405 = vld [vmem:[%s218 + $0x4a0] sm:$0xf]
      %v406 = vld [vmem:[%s218 + $0x4a4] sm:$0xff]
      %v407 = vld [vmem:[%s218 + $0x4ac] sm:$0xff]
      %v408 = vld [vmem:[%s218 + $0x4b4] sm:$0xff]
      %v409 = vld [vmem:[%s218 + $0x4bc] sm:$0xff]
      %v410 = vld [vmem:[%s218 + $0x4c4] sm:$0xff]
      %v411 = vld [vmem:[%s218 + $0x4cc] sm:$0xf]
      %v412 = vld [vmem:[%s218 + $0x4d0] sm:$0xff]
      %v413 = vld [vmem:[%s218 + $0x4d8] sm:$0xff]
      %v414 = vld [vmem:[%s218 + $0x4e0] sm:$0xff]
      %v415 = vld [vmem:[%s218 + $0x4e8] sm:$0xff]
      %v416 = vld [vmem:[%s218 + $0x4f0] sm:$0xff]
      %v417 = vld [vmem:[%s218 + $0x4f8] sm:$0xf]
      %v418 = vld [vmem:[%s218 + $0x4fc] sm:$0xff]
      %v419 = vld [vmem:[%s218 + $0x504] sm:$0xff]
      %v420 = vld [vmem:[%s218 + $0x50c] sm:$0xff]
      %v421 = vld [vmem:[%s218 + $0x514] sm:$0xff]
      %v422 = vld [vmem:[%s218 + $0x51c] sm:$0xff]
      %v423 = vld [vmem:[%s218 + $0x524] sm:$0xf]
      %v424 = vld [vmem:[%s218 + $0x528] sm:$0xff]
      %v425 = vld [vmem:[%s218 + $0x530] sm:$0xff]
      %v426 = vld [vmem:[%s218 + $0x538] sm:$0xff]
      %v427 = vld [vmem:[%s218 + $0x540] sm:$0xff]
      %v428 = vld [vmem:[%s218 + $0x548] sm:$0xff]
      %v429 = vld [vmem:[%s218 + $0x550] sm:$0xf]
      %v430 = vld [vmem:[%s218 + $0x554] sm:$0xff]
      %v431 = vld [vmem:[%s218 + $0x55c] sm:$0xff]
      %v432 = vld [vmem:[%s218 + $0x564] sm:$0xff]
      %v433 = vld [vmem:[%s218 + $0x56c] sm:$0xff]
      %v434 = vld [vmem:[%s218 + $0x574] sm:$0xff]
      %v435 = vld [vmem:[%s218 + $0x57c] sm:$0xf]
      %v436 = vld [vmem:[%s224] sm:$0xff]
      %v437 = vld [vmem:[%s224 + $0x8] sm:$0xff]
      %v438 = vld [vmem:[%s224 + $0x10] sm:$0xff]
      %v439 = vld [vmem:[%s224 + $0x18] sm:$0xff]
      %v440 = vld [vmem:[%s224 + $0x20] sm:$0xff]
      %v441 = vld [vmem:[%s224 + $0x28] sm:$0xff]
      %v442 = vld [vmem:[%s224 + $0x30] sm:$0xff]
      %v443 = vld [vmem:[%s224 + $0x38] sm:$0xff]
      %v444 = vld [vmem:[%s224 + $0x40] sm:$0xff]
      %v445 = vld [vmem:[%s224 + $0x48] sm:$0xff]
      %v446 = vld [vmem:[%s224 + $0x50] sm:$0xff]
      %v447 = vld [vmem:[%s224 + $0x58] sm:$0xff]
      %v448 = vld [vmem:[%s224 + $0x60] sm:$0xff]
      %v449 = vld [vmem:[%s224 + $0x68] sm:$0xff]
      %v450 = vld [vmem:[%s224 + $0x70] sm:$0xff]
      %v451 = vld [vmem:[%s224 + $0x78] sm:$0xff]
      %v452 = vld [vmem:[%s224 + $0x80] sm:$0xff]
      %v453 = vld [vmem:[%s224 + $0x88] sm:$0xff]
      %v454 = vld [vmem:[%s224 + $0x90] sm:$0xff]
      %v455 = vld [vmem:[%s224 + $0x98] sm:$0xff]
      %v456 = vld [vmem:[%s224 + $0xa0] sm:$0xff]
      %v457 = vld [vmem:[%s224 + $0xa8] sm:$0xff]
      %v458 = vld [vmem:[%s224 + $0xb0] sm:$0xff]
      %v459 = vld [vmem:[%s224 + $0xb8] sm:$0xff]
      %v460 = vld [vmem:[%s224 + $0xc0] sm:$0xff]
      %v461 = vld [vmem:[%s224 + $0xc8] sm:$0xff]
      %v462 = vld [vmem:[%s224 + $0xd0] sm:$0xff]
      %v463 = vld [vmem:[%s224 + $0xd8] sm:$0xff]
      %v464 = vld [vmem:[%s224 + $0xe0] sm:$0xff]
      %v465 = vld [vmem:[%s224 + $0xe8] sm:$0xff]
      %v466 = vld [vmem:[%s224 + $0xf0] sm:$0xff]
      %v467 = vld [vmem:[%s224 + $0xf8] sm:$0xff]
      %v468 = vld [vmem:[%s224 + $0x100] sm:$0xff]
      %v469 = vld [vmem:[%s224 + $0x108] sm:$0xff]
      %v470 = vld [vmem:[%s224 + $0x110] sm:$0xff]
      %v471 = vld [vmem:[%s224 + $0x118] sm:$0xff]
      %v472 = vld [vmem:[%s224 + $0x120] sm:$0xff]
      %v473 = vld [vmem:[%s224 + $0x128] sm:$0xff]
      %v474 = vld [vmem:[%s224 + $0x130] sm:$0xff]
      %v475 = vld [vmem:[%s224 + $0x138] sm:$0xff]
      %v476 = vld [vmem:[%s224 + $0x140] sm:$0xff]
      %v477 = vld [vmem:[%s224 + $0x148] sm:$0xff]
      %v478 = vld [vmem:[%s224 + $0x150] sm:$0xff]
      %v479 = vld [vmem:[%s224 + $0x158] sm:$0xff]
      %v480 = vld [vmem:[%s224 + $0x160] sm:$0xff]
      %v481 = vld [vmem:[%s224 + $0x168] sm:$0xff]
      %v482 = vld [vmem:[%s224 + $0x170] sm:$0xff]
      %v483 = vld [vmem:[%s224 + $0x178] sm:$0xff]
      %v484 = vld [vmem:[%s224 + $0x180] sm:$0xff]
      %v485 = vld [vmem:[%s224 + $0x188] sm:$0xff]
      %v486 = vld [vmem:[%s224 + $0x190] sm:$0xff]
      %v487 = vld [vmem:[%s224 + $0x198] sm:$0xff]
      %v488 = vld [vmem:[%s224 + $0x1a0] sm:$0xff]
      %v489 = vld [vmem:[%s224 + $0x1a8] sm:$0xff]
      %v490 = vld [vmem:[%s224 + $0x1b0] sm:$0xff]
      %v491 = vld [vmem:[%s224 + $0x1b8] sm:$0xff]
      %v492 = vld [vmem:[%s224 + $0x1c0] sm:$0xff]
      %v493 = vld [vmem:[%s224 + $0x1c8] sm:$0xff]
      %v494 = vld [vmem:[%s224 + $0x1d0] sm:$0xff]
      %v495 = vld [vmem:[%s224 + $0x1d8] sm:$0xff]
      %v496 = vld [vmem:[%s224 + $0x1e0] sm:$0xff]
      %v497 = vld [vmem:[%s224 + $0x1e8] sm:$0xff]
      %v498 = vld [vmem:[%s224 + $0x1f0] sm:$0xff]
      %v499 = vld [vmem:[%s224 + $0x1f8] sm:$0xff]
      %v500 = vld [vmem:[%s224 + $0x200] sm:$0xff]
      %v501 = vld [vmem:[%s224 + $0x208] sm:$0xff]
      %v502 = vld [vmem:[%s224 + $0x210] sm:$0xff]
      %v503 = vld [vmem:[%s224 + $0x218] sm:$0xff]
      %v504 = vld [vmem:[%s224 + $0x220] sm:$0xff]
      %v505 = vld [vmem:[%s224 + $0x228] sm:$0xff]
      %v506 = vld [vmem:[%s224 + $0x230] sm:$0xff]
      %v507 = vld [vmem:[%s224 + $0x238] sm:$0xff]
      %v508 = vld [vmem:[%s224 + $0x240] sm:$0xff]
      %v509 = vld [vmem:[%s224 + $0x248] sm:$0xff]
      %v510 = vld [vmem:[%s224 + $0x250] sm:$0xff]
      %v511 = vld [vmem:[%s224 + $0x258] sm:$0xff]
      %v512 = vld [vmem:[%s224 + $0x260] sm:$0xff]
      %v513 = vld [vmem:[%s224 + $0x268] sm:$0xff]
      %v514 = vld [vmem:[%s224 + $0x270] sm:$0xff]
      %v515 = vld [vmem:[%s224 + $0x278] sm:$0xff]
      %v516 = vld [vmem:[%s224 + $0x280] sm:$0xff]
      %v517 = vld [vmem:[%s224 + $0x288] sm:$0xff]
      %v518 = vld [vmem:[%s224 + $0x290] sm:$0xff]
      %v519 = vld [vmem:[%s224 + $0x298] sm:$0xff]
      %v520 = vld [vmem:[%s224 + $0x2a0] sm:$0xff]
      %v521 = vld [vmem:[%s224 + $0x2a8] sm:$0xff]
      %v522 = vld [vmem:[%s224 + $0x2b0] sm:$0xff]
      %v523 = vld [vmem:[%s224 + $0x2b8] sm:$0xff]
      %v524 = vld [vmem:[%s224 + $0x2c0] sm:$0xff]
      %v525 = vld [vmem:[%s224 + $0x2c8] sm:$0xff]
      %v526 = vld [vmem:[%s224 + $0x2d0] sm:$0xff]
      %v527 = vld [vmem:[%s224 + $0x2d8] sm:$0xff]
      %v528 = vld [vmem:[%s224 + $0x2e0] sm:$0xff]
      %v529 = vld [vmem:[%s224 + $0x2e8] sm:$0xff]
      %v530 = vld [vmem:[%s224 + $0x2f0] sm:$0xff]
      %v531 = vld [vmem:[%s224 + $0x2f8] sm:$0xff]
      %v532 = vld [vmem:[%s224 + $0x300] sm:$0xff]
      %v533 = vld [vmem:[%s224 + $0x308] sm:$0xff]
      %v534 = vld [vmem:[%s224 + $0x310] sm:$0xff]
      %v535 = vld [vmem:[%s224 + $0x318] sm:$0xff]
      %v536 = vld [vmem:[%s224 + $0x320] sm:$0xff]
      %v537 = vld [vmem:[%s224 + $0x328] sm:$0xff]
      %v538 = vld [vmem:[%s224 + $0x330] sm:$0xff]
      %v539 = vld [vmem:[%s224 + $0x338] sm:$0xff]
      %v540 = vld [vmem:[%s224 + $0x340] sm:$0xff]
      %v541 = vld [vmem:[%s224 + $0x348] sm:$0xff]
      %v542 = vld [vmem:[%s224 + $0x350] sm:$0xff]
      %v543 = vld [vmem:[%s224 + $0x358] sm:$0xff]
      %v544 = vld [vmem:[%s224 + $0x360] sm:$0xff]
      %v545 = vld [vmem:[%s224 + $0x368] sm:$0xff]
      %v546 = vld [vmem:[%s224 + $0x370] sm:$0xff]
      %v547 = vld [vmem:[%s224 + $0x378] sm:$0xff]
      %v548 = vld [vmem:[%s224 + $0x380] sm:$0xff]
      %v549 = vld [vmem:[%s224 + $0x388] sm:$0xff]
      %v550 = vld [vmem:[%s224 + $0x390] sm:$0xff]
      %v551 = vld [vmem:[%s224 + $0x398] sm:$0xff]
      %v552 = vld [vmem:[%s224 + $0x3a0] sm:$0xff]
      %v553 = vld [vmem:[%s224 + $0x3a8] sm:$0xff]
      %v554 = vld [vmem:[%s224 + $0x3b0] sm:$0xff]
      %v555 = vld [vmem:[%s224 + $0x3b8] sm:$0xff]
      %v556 = vld [vmem:[%s224 + $0x3c0] sm:$0xff]
      %v557 = vld [vmem:[%s224 + $0x3c8] sm:$0xff]
      %v558 = vld [vmem:[%s224 + $0x3d0] sm:$0xff]
      %v559 = vld [vmem:[%s224 + $0x3d8] sm:$0xff]
      %v560 = vld [vmem:[%s224 + $0x3e0] sm:$0xff]
      %v561 = vld [vmem:[%s224 + $0x3e8] sm:$0xff]
      %v562 = vld [vmem:[%s224 + $0x3f0] sm:$0xff]
      %v563 = vld [vmem:[%s224 + $0x3f8] sm:$0xff]
      %v564 = vld [vmem:[%s224 + $0x400] sm:$0xff]
      %v565 = vld [vmem:[%s224 + $0x408] sm:$0xff]
      %v566 = vld [vmem:[%s224 + $0x410] sm:$0xff]
      %v567 = vld [vmem:[%s224 + $0x418] sm:$0xff]
      %v568 = vld [vmem:[%s224 + $0x420] sm:$0xff]
      %v569 = vld [vmem:[%s224 + $0x428] sm:$0xff]
      %v570 = vld [vmem:[%s224 + $0x430] sm:$0xff]
      %v571 = vld [vmem:[%s224 + $0x438] sm:$0xff]
      %v572 = vld [vmem:[%s224 + $0x440] sm:$0xff]
      %v573 = vld [vmem:[%s224 + $0x448] sm:$0xff]
      %v574 = vld [vmem:[%s224 + $0x450] sm:$0xff]
      %v575 = vld [vmem:[%s224 + $0x458] sm:$0xff]
      %v576 = vld [vmem:[%s224 + $0x460] sm:$0xff]
      %v577 = vld [vmem:[%s224 + $0x468] sm:$0xff]
      %v578 = vld [vmem:[%s224 + $0x470] sm:$0xff]
      %v579 = vld [vmem:[%s224 + $0x478] sm:$0xff]
      %v580 = vld [vmem:[%s224 + $0x480] sm:$0xff]
      %v581 = vld [vmem:[%s224 + $0x488] sm:$0xff]
      %v582 = vld [vmem:[%s224 + $0x490] sm:$0xff]
      %v583 = vld [vmem:[%s224 + $0x498] sm:$0xff]
      %v584 = vld [vmem:[%s224 + $0x4a0] sm:$0xff]
      %v585 = vld [vmem:[%s224 + $0x4a8] sm:$0xff]
      %v586 = vld [vmem:[%s224 + $0x4b0] sm:$0xff]
      %v587 = vld [vmem:[%s224 + $0x4b8] sm:$0xff]
      %v588 = vld [vmem:[%s224 + $0x4c0] sm:$0xff]
      %v589 = vld [vmem:[%s224 + $0x4c8] sm:$0xff]
      %v590 = vld [vmem:[%s224 + $0x4d0] sm:$0xff]
      %v591 = vld [vmem:[%s224 + $0x4d8] sm:$0xff]
      %v592 = vld [vmem:[%s224 + $0x4e0] sm:$0xff]
      %v593 = vld [vmem:[%s224 + $0x4e8] sm:$0xff]
      %v594 = vld [vmem:[%s224 + $0x4f0] sm:$0xff]
      %v595 = vld [vmem:[%s224 + $0x4f8] sm:$0xff]
      %v596 = vld [vmem:[%s224 + $0x500] sm:$0xff]
      %v597 = vld [vmem:[%s224 + $0x508] sm:$0xff]
      %v598 = vld [vmem:[%s224 + $0x510] sm:$0xff]
      %v599 = vld [vmem:[%s224 + $0x518] sm:$0xff]
      %v600 = vld [vmem:[%s224 + $0x520] sm:$0xff]
      %v601 = vld [vmem:[%s224 + $0x528] sm:$0xff]
      %v602 = vld [vmem:[%s224 + $0x530] sm:$0xff]
      %v603 = vld [vmem:[%s224 + $0x538] sm:$0xff]
      %v604 = vld [vmem:[%s229] sm:$0x3]
      %v606 = vlaneseq
      %v607 = vshrl.u32 %v606, 7
      %v608 = vsub.s32 0, %v607
      %v609 = vrot.slane %v604, %v608
      %v610 = vlaneseq
      %v611 = vshrl.u32 %v610, 7
      %v612 = vsub.s32 1, %v611
      %v613 = vrot.slane %v604, %v612
      %v808 = vunpack.c.l.b16 %v244
      %v809 = vunpack.c.h.b16 %v244
      %v810 = vunpack.c.l.b16 %v245
      %v811 = vunpack.c.h.b16 %v245
      %v812 = vunpack.c.l.b16 %v246
      %v813 = vunpack.c.h.b16 %v246
      %v814 = vunpack.c.l.b16 %v247
      %v815 = vunpack.c.h.b16 %v247
      %v816 = vunpack.c.l.b16 %v248
      %v817 = vunpack.c.h.b16 %v248
      %v818 = vunpack.c.l.b16 %v249
      %v819 = vunpack.c.l.b16 %v250
      %v820 = vunpack.c.h.b16 %v250
      %v821 = vunpack.c.l.b16 %v251
      %v822 = vunpack.c.h.b16 %v251
      %v823 = vunpack.c.l.b16 %v252
      %v824 = vunpack.c.h.b16 %v252
      %v825 = vunpack.c.l.b16 %v253
      %v826 = vunpack.c.h.b16 %v253
      %v827 = vunpack.c.l.b16 %v254
      %v828 = vunpack.c.h.b16 %v254
      %v829 = vunpack.c.l.b16 %v255
      %v830 = vunpack.c.l.b16 %v256
      %v831 = vunpack.c.h.b16 %v256
      %v832 = vunpack.c.l.b16 %v257
      %v833 = vunpack.c.h.b16 %v257
      %v834 = vunpack.c.l.b16 %v258
      %v835 = vunpack.c.h.b16 %v258
      %v836 = vunpack.c.l.b16 %v259
      %v837 = vunpack.c.h.b16 %v259
      %v838 = vunpack.c.l.b16 %v260
      %v839 = vunpack.c.h.b16 %v260
      %v840 = vunpack.c.l.b16 %v261
      %v841 = vunpack.c.l.b16 %v262
      %v842 = vunpack.c.h.b16 %v262
      %v843 = vunpack.c.l.b16 %v263
      %v844 = vunpack.c.h.b16 %v263
      %v845 = vunpack.c.l.b16 %v264
      %v846 = vunpack.c.h.b16 %v264
      %v847 = vunpack.c.l.b16 %v265
      %v848 = vunpack.c.h.b16 %v265
      %v849 = vunpack.c.l.b16 %v266
      %v850 = vunpack.c.h.b16 %v266
      %v851 = vunpack.c.l.b16 %v267
      %v852 = vunpack.c.l.b16 %v268
      %v853 = vunpack.c.h.b16 %v268
      %v854 = vunpack.c.l.b16 %v269
      %v855 = vunpack.c.h.b16 %v269
      %v856 = vunpack.c.l.b16 %v270
      %v857 = vunpack.c.h.b16 %v270
      %v858 = vunpack.c.l.b16 %v271
      %v859 = vunpack.c.h.b16 %v271
      %v860 = vunpack.c.l.b16 %v272
      %v861 = vunpack.c.h.b16 %v272
      %v862 = vunpack.c.l.b16 %v273
      %v863 = vunpack.c.l.b16 %v274
      %v864 = vunpack.c.h.b16 %v274
      %v865 = vunpack.c.l.b16 %v275
      %v866 = vunpack.c.h.b16 %v275
      %v867 = vunpack.c.l.b16 %v276
      %v868 = vunpack.c.h.b16 %v276
      %v869 = vunpack.c.l.b16 %v277
      %v870 = vunpack.c.h.b16 %v277
      %v871 = vunpack.c.l.b16 %v278
      %v872 = vunpack.c.h.b16 %v278
      %v873 = vunpack.c.l.b16 %v279
      %v874 = vunpack.c.l.b16 %v280
      %v875 = vunpack.c.h.b16 %v280
      %v876 = vunpack.c.l.b16 %v281
      %v877 = vunpack.c.h.b16 %v281
      %v878 = vunpack.c.l.b16 %v282
      %v879 = vunpack.c.h.b16 %v282
      %v880 = vunpack.c.l.b16 %v283
      %v881 = vunpack.c.h.b16 %v283
      %v882 = vunpack.c.l.b16 %v284
      %v883 = vunpack.c.h.b16 %v284
      %v884 = vunpack.c.l.b16 %v285
      %v885 = vunpack.c.l.b16 %v286
      %v886 = vunpack.c.h.b16 %v286
      %v887 = vunpack.c.l.b16 %v287
      %v888 = vunpack.c.h.b16 %v287
      %v889 = vunpack.c.l.b16 %v288
      %v890 = vunpack.c.h.b16 %v288
      %v891 = vunpack.c.l.b16 %v289
      %v892 = vunpack.c.h.b16 %v289
      %v893 = vunpack.c.l.b16 %v290
      %v894 = vunpack.c.h.b16 %v290
      %v895 = vunpack.c.l.b16 %v291
      %v896 = vunpack.c.l.b16 %v292
      %v897 = vunpack.c.h.b16 %v292
      %v898 = vunpack.c.l.b16 %v293
      %v899 = vunpack.c.h.b16 %v293
      %v900 = vunpack.c.l.b16 %v294
      %v901 = vunpack.c.h.b16 %v294
      %v902 = vunpack.c.l.b16 %v295
      %v903 = vunpack.c.h.b16 %v295
      %v904 = vunpack.c.l.b16 %v296
      %v905 = vunpack.c.h.b16 %v296
      %v906 = vunpack.c.l.b16 %v297
      %v907 = vunpack.c.l.b16 %v298
      %v908 = vunpack.c.h.b16 %v298
      %v909 = vunpack.c.l.b16 %v299
      %v910 = vunpack.c.h.b16 %v299
      %v911 = vunpack.c.l.b16 %v300
      %v912 = vunpack.c.h.b16 %v300
      %v913 = vunpack.c.l.b16 %v301
      %v914 = vunpack.c.h.b16 %v301
      %v915 = vunpack.c.l.b16 %v302
      %v916 = vunpack.c.h.b16 %v302
      %v917 = vunpack.c.l.b16 %v303
      %v918 = vunpack.c.l.b16 %v304
      %v919 = vunpack.c.h.b16 %v304
      %v920 = vunpack.c.l.b16 %v305
      %v921 = vunpack.c.h.b16 %v305
      %v922 = vunpack.c.l.b16 %v306
      %v923 = vunpack.c.h.b16 %v306
      %v924 = vunpack.c.l.b16 %v307
      %v925 = vunpack.c.h.b16 %v307
      %v926 = vunpack.c.l.b16 %v308
      %v927 = vunpack.c.h.b16 %v308
      %v928 = vunpack.c.l.b16 %v309
      %v929 = vunpack.c.l.b16 %v310
      %v930 = vunpack.c.h.b16 %v310
      %v931 = vunpack.c.l.b16 %v311
      %v932 = vunpack.c.h.b16 %v311
      %v933 = vunpack.c.l.b16 %v312
      %v934 = vunpack.c.h.b16 %v312
      %v935 = vunpack.c.l.b16 %v313
      %v936 = vunpack.c.h.b16 %v313
      %v937 = vunpack.c.l.b16 %v314
      %v938 = vunpack.c.h.b16 %v314
      %v939 = vunpack.c.l.b16 %v315
      %v940 = vunpack.c.l.b16 %v316
      %v941 = vunpack.c.h.b16 %v316
      %v942 = vunpack.c.l.b16 %v317
      %v943 = vunpack.c.h.b16 %v317
      %v944 = vunpack.c.l.b16 %v318
      %v945 = vunpack.c.h.b16 %v318
      %v946 = vunpack.c.l.b16 %v319
      %v947 = vunpack.c.h.b16 %v319
      %v948 = vunpack.c.l.b16 %v320
      %v949 = vunpack.c.h.b16 %v320
      %v950 = vunpack.c.l.b16 %v321
      %v951 = vunpack.c.l.b16 %v322
      %v952 = vunpack.c.h.b16 %v322
      %v953 = vunpack.c.l.b16 %v323
      %v954 = vunpack.c.h.b16 %v323
      %v955 = vunpack.c.l.b16 %v324
      %v956 = vunpack.c.h.b16 %v324
      %v957 = vunpack.c.l.b16 %v325
      %v958 = vunpack.c.h.b16 %v325
      %v959 = vunpack.c.l.b16 %v326
      %v960 = vunpack.c.h.b16 %v326
      %v961 = vunpack.c.l.b16 %v327
      %v962 = vunpack.c.l.b16 %v328
      %v963 = vunpack.c.h.b16 %v328
      %v964 = vunpack.c.l.b16 %v329
      %v965 = vunpack.c.h.b16 %v329
      %v966 = vunpack.c.l.b16 %v330
      %v967 = vunpack.c.h.b16 %v330
      %v968 = vunpack.c.l.b16 %v331
      %v969 = vunpack.c.h.b16 %v331
      %v970 = vunpack.c.l.b16 %v332
      %v971 = vunpack.c.h.b16 %v332
      %v972 = vunpack.c.l.b16 %v333
      %v973 = vunpack.c.l.b16 %v334
      %v974 = vunpack.c.h.b16 %v334
      %v975 = vunpack.c.l.b16 %v335
      %v976 = vunpack.c.h.b16 %v335
      %v977 = vunpack.c.l.b16 %v336
      %v978 = vunpack.c.h.b16 %v336
      %v979 = vunpack.c.l.b16 %v337
      %v980 = vunpack.c.h.b16 %v337
      %v981 = vunpack.c.l.b16 %v338
      %v982 = vunpack.c.h.b16 %v338
      %v983 = vunpack.c.l.b16 %v339
      %v984 = vunpack.c.l.b16 %v340
      %v985 = vunpack.c.h.b16 %v340
      %v986 = vunpack.c.l.b16 %v341
      %v987 = vunpack.c.h.b16 %v341
      %v988 = vunpack.c.l.b16 %v342
      %v989 = vunpack.c.h.b16 %v342
      %v990 = vunpack.c.l.b16 %v343
      %v991 = vunpack.c.h.b16 %v343
      %v992 = vunpack.c.l.b16 %v344
      %v993 = vunpack.c.h.b16 %v344
      %v994 = vunpack.c.l.b16 %v345
      %v995 = vunpack.c.l.b16 %v346
      %v996 = vunpack.c.h.b16 %v346
      %v997 = vunpack.c.l.b16 %v347
      %v998 = vunpack.c.h.b16 %v347
      %v999 = vunpack.c.l.b16 %v348
      %v1000 = vunpack.c.h.b16 %v348
      %v1001 = vunpack.c.l.b16 %v349
      %v1002 = vunpack.c.h.b16 %v349
      %v1003 = vunpack.c.l.b16 %v350
      %v1004 = vunpack.c.h.b16 %v350
      %v1005 = vunpack.c.l.b16 %v351
      %v1006 = vunpack.c.l.b16 %v352
      %v1007 = vunpack.c.h.b16 %v352
      %v1008 = vunpack.c.l.b16 %v353
      %v1009 = vunpack.c.h.b16 %v353
      %v1010 = vunpack.c.l.b16 %v354
      %v1011 = vunpack.c.h.b16 %v354
      %v1012 = vunpack.c.l.b16 %v355
      %v1013 = vunpack.c.h.b16 %v355
      %v1014 = vunpack.c.l.b16 %v356
      %v1015 = vunpack.c.h.b16 %v356
      %v1016 = vunpack.c.l.b16 %v357
      %v1017 = vunpack.c.l.b16 %v358
      %v1018 = vunpack.c.h.b16 %v358
      %v1019 = vunpack.c.l.b16 %v359
      %v1020 = vunpack.c.h.b16 %v359
      %v1021 = vunpack.c.l.b16 %v360
      %v1022 = vunpack.c.h.b16 %v360
      %v1023 = vunpack.c.l.b16 %v361
      %v1024 = vunpack.c.h.b16 %v361
      %v1025 = vunpack.c.l.b16 %v362
      %v1026 = vunpack.c.h.b16 %v362
      %v1027 = vunpack.c.l.b16 %v363
      %v1028 = vunpack.c.l.b16 %v364
      %v1029 = vunpack.c.h.b16 %v364
      %v1030 = vunpack.c.l.b16 %v365
      %v1031 = vunpack.c.h.b16 %v365
      %v1032 = vunpack.c.l.b16 %v366
      %v1033 = vunpack.c.h.b16 %v366
      %v1034 = vunpack.c.l.b16 %v367
      %v1035 = vunpack.c.h.b16 %v367
      %v1036 = vunpack.c.l.b16 %v368
      %v1037 = vunpack.c.h.b16 %v368
      %v1038 = vunpack.c.l.b16 %v369
      %v1039 = vunpack.c.l.b16 %v370
      %v1040 = vunpack.c.h.b16 %v370
      %v1041 = vunpack.c.l.b16 %v371
      %v1042 = vunpack.c.h.b16 %v371
      %v1043 = vunpack.c.l.b16 %v372
      %v1044 = vunpack.c.h.b16 %v372
      %v1045 = vunpack.c.l.b16 %v373
      %v1046 = vunpack.c.h.b16 %v373
      %v1047 = vunpack.c.l.b16 %v374
      %v1048 = vunpack.c.h.b16 %v374
      %v1049 = vunpack.c.l.b16 %v375
      %v1050 = vunpack.c.l.b16 %v376
      %v1051 = vunpack.c.h.b16 %v376
      %v1052 = vunpack.c.l.b16 %v377
      %v1053 = vunpack.c.h.b16 %v377
      %v1054 = vunpack.c.l.b16 %v378
      %v1055 = vunpack.c.h.b16 %v378
      %v1056 = vunpack.c.l.b16 %v379
      %v1057 = vunpack.c.h.b16 %v379
      %v1058 = vunpack.c.l.b16 %v380
      %v1059 = vunpack.c.h.b16 %v380
      %v1060 = vunpack.c.l.b16 %v381
      %v1061 = vunpack.c.l.b16 %v382
      %v1062 = vunpack.c.h.b16 %v382
      %v1063 = vunpack.c.l.b16 %v383
      %v1064 = vunpack.c.h.b16 %v383
      %v1065 = vunpack.c.l.b16 %v384
      %v1066 = vunpack.c.h.b16 %v384
      %v1067 = vunpack.c.l.b16 %v385
      %v1068 = vunpack.c.h.b16 %v385
      %v1069 = vunpack.c.l.b16 %v386
      %v1070 = vunpack.c.h.b16 %v386
      %v1071 = vunpack.c.l.b16 %v387
      %v1072 = vunpack.c.l.b16 %v388
      %v1073 = vunpack.c.h.b16 %v388
      %v1074 = vunpack.c.l.b16 %v389
      %v1075 = vunpack.c.h.b16 %v389
      %v1076 = vunpack.c.l.b16 %v390
      %v1077 = vunpack.c.h.b16 %v390
      %v1078 = vunpack.c.l.b16 %v391
      %v1079 = vunpack.c.h.b16 %v391
      %v1080 = vunpack.c.l.b16 %v392
      %v1081 = vunpack.c.h.b16 %v392
      %v1082 = vunpack.c.l.b16 %v393
      %v1083 = vunpack.c.l.b16 %v394
      %v1084 = vunpack.c.h.b16 %v394
      %v1085 = vunpack.c.l.b16 %v395
      %v1086 = vunpack.c.h.b16 %v395
      %v1087 = vunpack.c.l.b16 %v396
      %v1088 = vunpack.c.h.b16 %v396
      %v1089 = vunpack.c.l.b16 %v397
      %v1090 = vunpack.c.h.b16 %v397
      %v1091 = vunpack.c.l.b16 %v398
      %v1092 = vunpack.c.h.b16 %v398
      %v1093 = vunpack.c.l.b16 %v399
      %v1094 = vunpack.c.l.b16 %v400
      %v1095 = vunpack.c.h.b16 %v400
      %v1096 = vunpack.c.l.b16 %v401
      %v1097 = vunpack.c.h.b16 %v401
      %v1098 = vunpack.c.l.b16 %v402
      %v1099 = vunpack.c.h.b16 %v402
      %v1100 = vunpack.c.l.b16 %v403
      %v1101 = vunpack.c.h.b16 %v403
      %v1102 = vunpack.c.l.b16 %v404
      %v1103 = vunpack.c.h.b16 %v404
      %v1104 = vunpack.c.l.b16 %v405
      %v1105 = vunpack.c.l.b16 %v406
      %v1106 = vunpack.c.h.b16 %v406
      %v1107 = vunpack.c.l.b16 %v407
      %v1108 = vunpack.c.h.b16 %v407
      %v1109 = vunpack.c.l.b16 %v408
      %v1110 = vunpack.c.h.b16 %v408
      %v1111 = vunpack.c.l.b16 %v409
      %v1112 = vunpack.c.h.b16 %v409
      %v1113 = vunpack.c.l.b16 %v410
      %v1114 = vunpack.c.h.b16 %v410
      %v1115 = vunpack.c.l.b16 %v411
      %v1116 = vunpack.c.l.b16 %v412
      %v1117 = vunpack.c.h.b16 %v412
      %v1118 = vunpack.c.l.b16 %v413
      %v1119 = vunpack.c.h.b16 %v413
      %v1120 = vunpack.c.l.b16 %v414
      %v1121 = vunpack.c.h.b16 %v414
      %v1122 = vunpack.c.l.b16 %v415
      %v1123 = vunpack.c.h.b16 %v415
      %v1124 = vunpack.c.l.b16 %v416
      %v1125 = vunpack.c.h.b16 %v416
      %v1126 = vunpack.c.l.b16 %v417
      %v1127 = vunpack.c.l.b16 %v418
      %v1128 = vunpack.c.h.b16 %v418
      %v1129 = vunpack.c.l.b16 %v419
      %v1130 = vunpack.c.h.b16 %v419
      %v1131 = vunpack.c.l.b16 %v420
      %v1132 = vunpack.c.h.b16 %v420
      %v1133 = vunpack.c.l.b16 %v421
      %v1134 = vunpack.c.h.b16 %v421
      %v1135 = vunpack.c.l.b16 %v422
      %v1136 = vunpack.c.h.b16 %v422
      %v1137 = vunpack.c.l.b16 %v423
      %v1138 = vunpack.c.l.b16 %v424
      %v1139 = vunpack.c.h.b16 %v424
      %v1140 = vunpack.c.l.b16 %v425
      %v1141 = vunpack.c.h.b16 %v425
      %v1142 = vunpack.c.l.b16 %v426
      %v1143 = vunpack.c.h.b16 %v426
      %v1144 = vunpack.c.l.b16 %v427
      %v1145 = vunpack.c.h.b16 %v427
      %v1146 = vunpack.c.l.b16 %v428
      %v1147 = vunpack.c.h.b16 %v428
      %v1148 = vunpack.c.l.b16 %v429
      %v1149 = vunpack.c.l.b16 %v430
      %v1150 = vunpack.c.h.b16 %v430
      %v1151 = vunpack.c.l.b16 %v431
      %v1152 = vunpack.c.h.b16 %v431
      %v1153 = vunpack.c.l.b16 %v432
      %v1154 = vunpack.c.h.b16 %v432
      %v1155 = vunpack.c.l.b16 %v433
      %v1156 = vunpack.c.h.b16 %v433
      %v1157 = vunpack.c.l.b16 %v434
      %v1158 = vunpack.c.h.b16 %v434
      %v1159 = vunpack.c.l.b16 %v435
      %v1160 = vpack.c.b16 %v819, %v808
      %v1161 = vpack.c.b16 %v820, %v809
      %v1162 = vpack.c.b16 %v821, %v810
      %v1163 = vpack.c.b16 %v822, %v811
      %v1164 = vpack.c.b16 %v823, %v812
      %v1165 = vpack.c.b16 %v824, %v813
      %v1166 = vpack.c.b16 %v825, %v814
      %v1167 = vpack.c.b16 %v826, %v815
      %v1168 = vpack.c.b16 %v827, %v816
      %v1169 = vpack.c.b16 %v828, %v817
      %v1170 = vpack.c.b16 %v829, %v818
      %v1171 = vpack.c.b16 %v841, %v830
      %v1172 = vpack.c.b16 %v842, %v831
      %v1173 = vpack.c.b16 %v843, %v832
      %v1174 = vpack.c.b16 %v844, %v833
      %v1175 = vpack.c.b16 %v845, %v834
      %v1176 = vpack.c.b16 %v846, %v835
      %v1177 = vpack.c.b16 %v847, %v836
      %v1178 = vpack.c.b16 %v848, %v837
      %v1179 = vpack.c.b16 %v849, %v838
      %v1180 = vpack.c.b16 %v850, %v839
      %v1181 = vpack.c.b16 %v851, %v840
      %v1182 = vpack.c.b16 %v863, %v852
      %v1183 = vpack.c.b16 %v864, %v853
      %v1184 = vpack.c.b16 %v865, %v854
      %v1185 = vpack.c.b16 %v866, %v855
      %v1186 = vpack.c.b16 %v867, %v856
      %v1187 = vpack.c.b16 %v868, %v857
      %v1188 = vpack.c.b16 %v869, %v858
      %v1189 = vpack.c.b16 %v870, %v859
      %v1190 = vpack.c.b16 %v871, %v860
      %v1191 = vpack.c.b16 %v872, %v861
      %v1192 = vpack.c.b16 %v873, %v862
      %v1193 = vpack.c.b16 %v885, %v874
      %v1194 = vpack.c.b16 %v886, %v875
      %v1195 = vpack.c.b16 %v887, %v876
      %v1196 = vpack.c.b16 %v888, %v877
      %v1197 = vpack.c.b16 %v889, %v878
      %v1198 = vpack.c.b16 %v890, %v879
      %v1199 = vpack.c.b16 %v891, %v880
      %v1200 = vpack.c.b16 %v892, %v881
      %v1201 = vpack.c.b16 %v893, %v882
      %v1202 = vpack.c.b16 %v894, %v883
      %v1203 = vpack.c.b16 %v895, %v884
      %v1204 = vpack.c.b16 %v907, %v896
      %v1205 = vpack.c.b16 %v908, %v897
      %v1206 = vpack.c.b16 %v909, %v898
      %v1207 = vpack.c.b16 %v910, %v899
      %v1208 = vpack.c.b16 %v911, %v900
      %v1209 = vpack.c.b16 %v912, %v901
      %v1210 = vpack.c.b16 %v913, %v902
      %v1211 = vpack.c.b16 %v914, %v903
      %v1212 = vpack.c.b16 %v915, %v904
      %v1213 = vpack.c.b16 %v916, %v905
      %v1214 = vpack.c.b16 %v917, %v906
      %v1215 = vpack.c.b16 %v929, %v918
      %v1216 = vpack.c.b16 %v930, %v919
      %v1217 = vpack.c.b16 %v931, %v920
      %v1218 = vpack.c.b16 %v932, %v921
      %v1219 = vpack.c.b16 %v933, %v922
      %v1220 = vpack.c.b16 %v934, %v923
      %v1221 = vpack.c.b16 %v935, %v924
      %v1222 = vpack.c.b16 %v936, %v925
      %v1223 = vpack.c.b16 %v937, %v926
      %v1224 = vpack.c.b16 %v938, %v927
      %v1225 = vpack.c.b16 %v939, %v928
      %v1226 = vpack.c.b16 %v951, %v940
      %v1227 = vpack.c.b16 %v952, %v941
      %v1228 = vpack.c.b16 %v953, %v942
      %v1229 = vpack.c.b16 %v954, %v943
      %v1230 = vpack.c.b16 %v955, %v944
      %v1231 = vpack.c.b16 %v956, %v945
      %v1232 = vpack.c.b16 %v957, %v946
      %v1233 = vpack.c.b16 %v958, %v947
      %v1234 = vpack.c.b16 %v959, %v948
      %v1235 = vpack.c.b16 %v960, %v949
      %v1236 = vpack.c.b16 %v961, %v950
      %v1237 = vpack.c.b16 %v973, %v962
      %v1238 = vpack.c.b16 %v974, %v963
      %v1239 = vpack.c.b16 %v975, %v964
      %v1240 = vpack.c.b16 %v976, %v965
      %v1241 = vpack.c.b16 %v977, %v966
      %v1242 = vpack.c.b16 %v978, %v967
      %v1243 = vpack.c.b16 %v979, %v968
      %v1244 = vpack.c.b16 %v980, %v969
      %v1245 = vpack.c.b16 %v981, %v970
      %v1246 = vpack.c.b16 %v982, %v971
      %v1247 = vpack.c.b16 %v983, %v972
      %v1248 = vpack.c.b16 %v995, %v984
      %v1249 = vpack.c.b16 %v996, %v985
      %v1250 = vpack.c.b16 %v997, %v986
      %v1251 = vpack.c.b16 %v998, %v987
      %v1252 = vpack.c.b16 %v999, %v988
      %v1253 = vpack.c.b16 %v1000, %v989
      %v1254 = vpack.c.b16 %v1001, %v990
      %v1255 = vpack.c.b16 %v1002, %v991
      %v1256 = vpack.c.b16 %v1003, %v992
      %v1257 = vpack.c.b16 %v1004, %v993
      %v1258 = vpack.c.b16 %v1005, %v994
      %v1259 = vpack.c.b16 %v1017, %v1006
      %v1260 = vpack.c.b16 %v1018, %v1007
      %v1261 = vpack.c.b16 %v1019, %v1008
      %v1262 = vpack.c.b16 %v1020, %v1009
      %v1263 = vpack.c.b16 %v1021, %v1010
      %v1264 = vpack.c.b16 %v1022, %v1011
      %v1265 = vpack.c.b16 %v1023, %v1012
      %v1266 = vpack.c.b16 %v1024, %v1013
      %v1267 = vpack.c.b16 %v1025, %v1014
      %v1268 = vpack.c.b16 %v1026, %v1015
      %v1269 = vpack.c.b16 %v1027, %v1016
      %v1270 = vpack.c.b16 %v1039, %v1028
      %v1271 = vpack.c.b16 %v1040, %v1029
      %v1272 = vpack.c.b16 %v1041, %v1030
      %v1273 = vpack.c.b16 %v1042, %v1031
      %v1274 = vpack.c.b16 %v1043, %v1032
      %v1275 = vpack.c.b16 %v1044, %v1033
      %v1276 = vpack.c.b16 %v1045, %v1034
      %v1277 = vpack.c.b16 %v1046, %v1035
      %v1278 = vpack.c.b16 %v1047, %v1036
      %v1279 = vpack.c.b16 %v1048, %v1037
      %v1280 = vpack.c.b16 %v1049, %v1038
      %v1281 = vpack.c.b16 %v1061, %v1050
      %v1282 = vpack.c.b16 %v1062, %v1051
      %v1283 = vpack.c.b16 %v1063, %v1052
      %v1284 = vpack.c.b16 %v1064, %v1053
      %v1285 = vpack.c.b16 %v1065, %v1054
      %v1286 = vpack.c.b16 %v1066, %v1055
      %v1287 = vpack.c.b16 %v1067, %v1056
      %v1288 = vpack.c.b16 %v1068, %v1057
      %v1289 = vpack.c.b16 %v1069, %v1058
      %v1290 = vpack.c.b16 %v1070, %v1059
      %v1291 = vpack.c.b16 %v1071, %v1060
      %v1292 = vpack.c.b16 %v1083, %v1072
      %v1293 = vpack.c.b16 %v1084, %v1073
      %v1294 = vpack.c.b16 %v1085, %v1074
      %v1295 = vpack.c.b16 %v1086, %v1075
      %v1296 = vpack.c.b16 %v1087, %v1076
      %v1297 = vpack.c.b16 %v1088, %v1077
      %v1298 = vpack.c.b16 %v1089, %v1078
      %v1299 = vpack.c.b16 %v1090, %v1079
      %v1300 = vpack.c.b16 %v1091, %v1080
      %v1301 = vpack.c.b16 %v1092, %v1081
      %v1302 = vpack.c.b16 %v1093, %v1082
      %v1303 = vpack.c.b16 %v1105, %v1094
      %v1304 = vpack.c.b16 %v1106, %v1095
      %v1305 = vpack.c.b16 %v1107, %v1096
      %v1306 = vpack.c.b16 %v1108, %v1097
      %v1307 = vpack.c.b16 %v1109, %v1098
      %v1308 = vpack.c.b16 %v1110, %v1099
      %v1309 = vpack.c.b16 %v1111, %v1100
      %v1310 = vpack.c.b16 %v1112, %v1101
      %v1311 = vpack.c.b16 %v1113, %v1102
      %v1312 = vpack.c.b16 %v1114, %v1103
      %v1313 = vpack.c.b16 %v1115, %v1104
      %v1314 = vpack.c.b16 %v1127, %v1116
      %v1315 = vpack.c.b16 %v1128, %v1117
      %v1316 = vpack.c.b16 %v1129, %v1118
      %v1317 = vpack.c.b16 %v1130, %v1119
      %v1318 = vpack.c.b16 %v1131, %v1120
      %v1319 = vpack.c.b16 %v1132, %v1121
      %v1320 = vpack.c.b16 %v1133, %v1122
      %v1321 = vpack.c.b16 %v1134, %v1123
      %v1322 = vpack.c.b16 %v1135, %v1124
      %v1323 = vpack.c.b16 %v1136, %v1125
      %v1324 = vpack.c.b16 %v1137, %v1126
      %v1325 = vpack.c.b16 %v1149, %v1138
      %v1326 = vpack.c.b16 %v1150, %v1139
      %v1327 = vpack.c.b16 %v1151, %v1140
      %v1328 = vpack.c.b16 %v1152, %v1141
      %v1329 = vpack.c.b16 %v1153, %v1142
      %v1330 = vpack.c.b16 %v1154, %v1143
      %v1331 = vpack.c.b16 %v1155, %v1144
      %v1332 = vpack.c.b16 %v1156, %v1145
      %v1333 = vpack.c.b16 %v1157, %v1146
      %v1334 = vpack.c.b16 %v1158, %v1147
      %v1335 = vpack.c.b16 %v1159, %v1148
      %v1664 = vunpack.c.l.b16 %v436
      %v1665 = vunpack.c.h.b16 %v436
      %v1666 = vunpack.c.l.b16 %v437
      %v1667 = vunpack.c.h.b16 %v437
      %v1668 = vunpack.c.l.b16 %v438
      %v1669 = vunpack.c.h.b16 %v438
      %v1670 = vunpack.c.l.b16 %v439
      %v1671 = vunpack.c.h.b16 %v439
      %v1672 = vunpack.c.l.b16 %v440
      %v1673 = vunpack.c.h.b16 %v440
      %v1674 = vunpack.c.l.b16 %v441
      %v1675 = vunpack.c.h.b16 %v441
      %v1676 = vunpack.c.l.b16 %v442
      %v1677 = vunpack.c.h.b16 %v442
      %v1678 = vunpack.c.l.b16 %v443
      %v1679 = vunpack.c.h.b16 %v443
      %v1680 = vunpack.c.l.b16 %v444
      %v1681 = vunpack.c.h.b16 %v444
      %v1682 = vunpack.c.l.b16 %v445
      %v1683 = vunpack.c.h.b16 %v445
      %v1684 = vunpack.c.l.b16 %v446
      %v1685 = vunpack.c.h.b16 %v446
      %v1686 = vunpack.c.l.b16 %v447
      %v1687 = vunpack.c.h.b16 %v447
      %v1688 = vunpack.c.l.b16 %v448
      %v1689 = vunpack.c.h.b16 %v448
      %v1690 = vunpack.c.l.b16 %v449
      %v1691 = vunpack.c.h.b16 %v449
      %v1692 = vunpack.c.l.b16 %v450
      %v1693 = vunpack.c.h.b16 %v450
      %v1694 = vunpack.c.l.b16 %v451
      %v1695 = vunpack.c.h.b16 %v451
      %v1696 = vunpack.c.l.b16 %v452
      %v1697 = vunpack.c.h.b16 %v452
      %v1698 = vunpack.c.l.b16 %v453
      %v1699 = vunpack.c.h.b16 %v453
      %v1700 = vunpack.c.l.b16 %v454
      %v1701 = vunpack.c.h.b16 %v454
      %v1702 = vunpack.c.l.b16 %v455
      %v1703 = vunpack.c.h.b16 %v455
      %v1704 = vunpack.c.l.b16 %v456
      %v1705 = vunpack.c.h.b16 %v456
      %v1706 = vunpack.c.l.b16 %v457
      %v1707 = vunpack.c.h.b16 %v457
      %v1708 = vunpack.c.l.b16 %v458
      %v1709 = vunpack.c.h.b16 %v458
      %v1710 = vunpack.c.l.b16 %v459
      %v1711 = vunpack.c.h.b16 %v459
      %v1712 = vunpack.c.l.b16 %v460
      %v1713 = vunpack.c.h.b16 %v460
      %v1714 = vunpack.c.l.b16 %v461
      %v1715 = vunpack.c.h.b16 %v461
      %v1716 = vunpack.c.l.b16 %v462
      %v1717 = vunpack.c.h.b16 %v462
      %v1718 = vunpack.c.l.b16 %v463
      %v1719 = vunpack.c.h.b16 %v463
      %v1720 = vunpack.c.l.b16 %v464
      %v1721 = vunpack.c.h.b16 %v464
      %v1722 = vunpack.c.l.b16 %v465
      %v1723 = vunpack.c.h.b16 %v465
      %v1724 = vunpack.c.l.b16 %v466
      %v1725 = vunpack.c.h.b16 %v466
      %v1726 = vunpack.c.l.b16 %v467
      %v1727 = vunpack.c.h.b16 %v467
      %v1728 = vunpack.c.l.b16 %v468
      %v1729 = vunpack.c.h.b16 %v468
      %v1730 = vunpack.c.l.b16 %v469
      %v1731 = vunpack.c.h.b16 %v469
      %v1732 = vunpack.c.l.b16 %v470
      %v1733 = vunpack.c.h.b16 %v470
      %v1734 = vunpack.c.l.b16 %v471
      %v1735 = vunpack.c.h.b16 %v471
      %v1736 = vunpack.c.l.b16 %v472
      %v1737 = vunpack.c.h.b16 %v472
      %v1738 = vunpack.c.l.b16 %v473
      %v1739 = vunpack.c.h.b16 %v473
      %v1740 = vunpack.c.l.b16 %v474
      %v1741 = vunpack.c.h.b16 %v474
      %v1742 = vunpack.c.l.b16 %v475
      %v1743 = vunpack.c.h.b16 %v475
      %v1744 = vunpack.c.l.b16 %v476
      %v1745 = vunpack.c.h.b16 %v476
      %v1746 = vunpack.c.l.b16 %v477
      %v1747 = vunpack.c.h.b16 %v477
      %v1748 = vunpack.c.l.b16 %v478
      %v1749 = vunpack.c.h.b16 %v478
      %v1750 = vunpack.c.l.b16 %v479
      %v1751 = vunpack.c.h.b16 %v479
      %v1752 = vunpack.c.l.b16 %v480
      %v1753 = vunpack.c.h.b16 %v480
      %v1754 = vunpack.c.l.b16 %v481
      %v1755 = vunpack.c.h.b16 %v481
      %v1756 = vunpack.c.l.b16 %v482
      %v1757 = vunpack.c.h.b16 %v482
      %v1758 = vunpack.c.l.b16 %v483
      %v1759 = vunpack.c.h.b16 %v483
      %v1760 = vunpack.c.l.b16 %v484
      %v1761 = vunpack.c.h.b16 %v484
      %v1762 = vunpack.c.l.b16 %v485
      %v1763 = vunpack.c.h.b16 %v485
      %v1764 = vunpack.c.l.b16 %v486
      %v1765 = vunpack.c.h.b16 %v486
      %v1766 = vunpack.c.l.b16 %v487
      %v1767 = vunpack.c.h.b16 %v487
      %v1768 = vunpack.c.l.b16 %v488
      %v1769 = vunpack.c.h.b16 %v488
      %v1770 = vunpack.c.l.b16 %v489
      %v1771 = vunpack.c.h.b16 %v489
      %v1772 = vunpack.c.l.b16 %v490
      %v1773 = vunpack.c.h.b16 %v490
      %v1774 = vunpack.c.l.b16 %v491
      %v1775 = vunpack.c.h.b16 %v491
      %v1776 = vunpack.c.l.b16 %v492
      %v1777 = vunpack.c.h.b16 %v492
      %v1778 = vunpack.c.l.b16 %v493
      %v1779 = vunpack.c.h.b16 %v493
      %v1780 = vunpack.c.l.b16 %v494
      %v1781 = vunpack.c.h.b16 %v494
      %v1782 = vunpack.c.l.b16 %v495
      %v1783 = vunpack.c.h.b16 %v495
      %v1784 = vunpack.c.l.b16 %v496
      %v1785 = vunpack.c.h.b16 %v496
      %v1786 = vunpack.c.l.b16 %v497
      %v1787 = vunpack.c.h.b16 %v497
      %v1788 = vunpack.c.l.b16 %v498
      %v1789 = vunpack.c.h.b16 %v498
      %v1790 = vunpack.c.l.b16 %v499
      %v1791 = vunpack.c.h.b16 %v499
      %v1792 = vunpack.c.l.b16 %v500
      %v1793 = vunpack.c.h.b16 %v500
      %v1794 = vunpack.c.l.b16 %v501
      %v1795 = vunpack.c.h.b16 %v501
      %v1796 = vunpack.c.l.b16 %v502
      %v1797 = vunpack.c.h.b16 %v502
      %v1798 = vunpack.c.l.b16 %v503
      %v1799 = vunpack.c.h.b16 %v503
      %v1800 = vunpack.c.l.b16 %v504
      %v1801 = vunpack.c.h.b16 %v504
      %v1802 = vunpack.c.l.b16 %v505
      %v1803 = vunpack.c.h.b16 %v505
      %v1804 = vunpack.c.l.b16 %v506
      %v1805 = vunpack.c.h.b16 %v506
      %v1806 = vunpack.c.l.b16 %v507
      %v1807 = vunpack.c.h.b16 %v507
      %v1808 = vunpack.c.l.b16 %v508
      %v1809 = vunpack.c.h.b16 %v508
      %v1810 = vunpack.c.l.b16 %v509
      %v1811 = vunpack.c.h.b16 %v509
      %v1812 = vunpack.c.l.b16 %v510
      %v1813 = vunpack.c.h.b16 %v510
      %v1814 = vunpack.c.l.b16 %v511
      %v1815 = vunpack.c.h.b16 %v511
      %v1816 = vunpack.c.l.b16 %v512
      %v1817 = vunpack.c.h.b16 %v512
      %v1818 = vunpack.c.l.b16 %v513
      %v1819 = vunpack.c.h.b16 %v513
      %v1820 = vunpack.c.l.b16 %v514
      %v1821 = vunpack.c.h.b16 %v514
      %v1822 = vunpack.c.l.b16 %v515
      %v1823 = vunpack.c.h.b16 %v515
      %v1824 = vunpack.c.l.b16 %v516
      %v1825 = vunpack.c.h.b16 %v516
      %v1826 = vunpack.c.l.b16 %v517
      %v1827 = vunpack.c.h.b16 %v517
      %v1828 = vunpack.c.l.b16 %v518
      %v1829 = vunpack.c.h.b16 %v518
      %v1830 = vunpack.c.l.b16 %v519
      %v1831 = vunpack.c.h.b16 %v519
      %v1832 = vunpack.c.l.b16 %v520
      %v1833 = vunpack.c.h.b16 %v520
      %v1834 = vunpack.c.l.b16 %v521
      %v1835 = vunpack.c.h.b16 %v521
      %v1836 = vunpack.c.l.b16 %v522
      %v1837 = vunpack.c.h.b16 %v522
      %v1838 = vunpack.c.l.b16 %v523
      %v1839 = vunpack.c.h.b16 %v523
      %v1840 = vunpack.c.l.b16 %v524
      %v1841 = vunpack.c.h.b16 %v524
      %v1842 = vunpack.c.l.b16 %v525
      %v1843 = vunpack.c.h.b16 %v525
      %v1844 = vunpack.c.l.b16 %v526
      %v1845 = vunpack.c.h.b16 %v526
      %v1846 = vunpack.c.l.b16 %v527
      %v1847 = vunpack.c.h.b16 %v527
      %v1848 = vunpack.c.l.b16 %v528
      %v1849 = vunpack.c.h.b16 %v528
      %v1850 = vunpack.c.l.b16 %v529
      %v1851 = vunpack.c.h.b16 %v529
      %v1852 = vunpack.c.l.b16 %v530
      %v1853 = vunpack.c.h.b16 %v530
      %v1854 = vunpack.c.l.b16 %v531
      %v1855 = vunpack.c.h.b16 %v531
      %v1856 = vunpack.c.l.b16 %v532
      %v1857 = vunpack.c.h.b16 %v532
      %v1858 = vunpack.c.l.b16 %v533
      %v1859 = vunpack.c.h.b16 %v533
      %v1860 = vunpack.c.l.b16 %v534
      %v1861 = vunpack.c.h.b16 %v534
      %v1862 = vunpack.c.l.b16 %v535
      %v1863 = vunpack.c.h.b16 %v535
      %v1864 = vunpack.c.l.b16 %v536
      %v1865 = vunpack.c.h.b16 %v536
      %v1866 = vunpack.c.l.b16 %v537
      %v1867 = vunpack.c.h.b16 %v537
      %v1868 = vunpack.c.l.b16 %v538
      %v1869 = vunpack.c.h.b16 %v538
      %v1870 = vunpack.c.l.b16 %v539
      %v1871 = vunpack.c.h.b16 %v539
      %v1872 = vunpack.c.l.b16 %v540
      %v1873 = vunpack.c.h.b16 %v540
      %v1874 = vunpack.c.l.b16 %v541
      %v1875 = vunpack.c.h.b16 %v541
      %v1876 = vunpack.c.l.b16 %v542
      %v1877 = vunpack.c.h.b16 %v542
      %v1878 = vunpack.c.l.b16 %v543
      %v1879 = vunpack.c.h.b16 %v543
      %v1880 = vunpack.c.l.b16 %v544
      %v1881 = vunpack.c.h.b16 %v544
      %v1882 = vunpack.c.l.b16 %v545
      %v1883 = vunpack.c.h.b16 %v545
      %v1884 = vunpack.c.l.b16 %v546
      %v1885 = vunpack.c.h.b16 %v546
      %v1886 = vunpack.c.l.b16 %v547
      %v1887 = vunpack.c.h.b16 %v547
      %v1888 = vunpack.c.l.b16 %v548
      %v1889 = vunpack.c.h.b16 %v548
      %v1890 = vunpack.c.l.b16 %v549
      %v1891 = vunpack.c.h.b16 %v549
      %v1892 = vunpack.c.l.b16 %v550
      %v1893 = vunpack.c.h.b16 %v550
      %v1894 = vunpack.c.l.b16 %v551
      %v1895 = vunpack.c.h.b16 %v551
      %v1896 = vunpack.c.l.b16 %v552
      %v1897 = vunpack.c.h.b16 %v552
      %v1898 = vunpack.c.l.b16 %v553
      %v1899 = vunpack.c.h.b16 %v553
      %v1900 = vunpack.c.l.b16 %v554
      %v1901 = vunpack.c.h.b16 %v554
      %v1902 = vunpack.c.l.b16 %v555
      %v1903 = vunpack.c.h.b16 %v555
      %v1904 = vunpack.c.l.b16 %v556
      %v1905 = vunpack.c.h.b16 %v556
      %v1906 = vunpack.c.l.b16 %v557
      %v1907 = vunpack.c.h.b16 %v557
      %v1908 = vunpack.c.l.b16 %v558
      %v1909 = vunpack.c.h.b16 %v558
      %v1910 = vunpack.c.l.b16 %v559
      %v1911 = vunpack.c.h.b16 %v559
      %v1912 = vunpack.c.l.b16 %v560
      %v1913 = vunpack.c.h.b16 %v560
      %v1914 = vunpack.c.l.b16 %v561
      %v1915 = vunpack.c.h.b16 %v561
      %v1916 = vunpack.c.l.b16 %v562
      %v1917 = vunpack.c.h.b16 %v562
      %v1918 = vunpack.c.l.b16 %v563
      %v1919 = vunpack.c.h.b16 %v563
      %v1920 = vunpack.c.l.b16 %v564
      %v1921 = vunpack.c.h.b16 %v564
      %v1922 = vunpack.c.l.b16 %v565
      %v1923 = vunpack.c.h.b16 %v565
      %v1924 = vunpack.c.l.b16 %v566
      %v1925 = vunpack.c.h.b16 %v566
      %v1926 = vunpack.c.l.b16 %v567
      %v1927 = vunpack.c.h.b16 %v567
      %v1928 = vunpack.c.l.b16 %v568
      %v1929 = vunpack.c.h.b16 %v568
      %v1930 = vunpack.c.l.b16 %v569
      %v1931 = vunpack.c.h.b16 %v569
      %v1932 = vunpack.c.l.b16 %v570
      %v1933 = vunpack.c.h.b16 %v570
      %v1934 = vunpack.c.l.b16 %v571
      %v1935 = vunpack.c.h.b16 %v571
      %v1936 = vunpack.c.l.b16 %v572
      %v1937 = vunpack.c.h.b16 %v572
      %v1938 = vunpack.c.l.b16 %v573
      %v1939 = vunpack.c.h.b16 %v573
      %v1940 = vunpack.c.l.b16 %v574
      %v1941 = vunpack.c.h.b16 %v574
      %v1942 = vunpack.c.l.b16 %v575
      %v1943 = vunpack.c.h.b16 %v575
      %v1944 = vunpack.c.l.b16 %v576
      %v1945 = vunpack.c.h.b16 %v576
      %v1946 = vunpack.c.l.b16 %v577
      %v1947 = vunpack.c.h.b16 %v577
      %v1948 = vunpack.c.l.b16 %v578
      %v1949 = vunpack.c.h.b16 %v578
      %v1950 = vunpack.c.l.b16 %v579
      %v1951 = vunpack.c.h.b16 %v579
      %v1952 = vunpack.c.l.b16 %v580
      %v1953 = vunpack.c.h.b16 %v580
      %v1954 = vunpack.c.l.b16 %v581
      %v1955 = vunpack.c.h.b16 %v581
      %v1956 = vunpack.c.l.b16 %v582
      %v1957 = vunpack.c.h.b16 %v582
      %v1958 = vunpack.c.l.b16 %v583
      %v1959 = vunpack.c.h.b16 %v583
      %v1960 = vunpack.c.l.b16 %v584
      %v1961 = vunpack.c.h.b16 %v584
      %v1962 = vunpack.c.l.b16 %v585
      %v1963 = vunpack.c.h.b16 %v585
      %v1964 = vunpack.c.l.b16 %v586
      %v1965 = vunpack.c.h.b16 %v586
      %v1966 = vunpack.c.l.b16 %v587
      %v1967 = vunpack.c.h.b16 %v587
      %v1968 = vunpack.c.l.b16 %v588
      %v1969 = vunpack.c.h.b16 %v588
      %v1970 = vunpack.c.l.b16 %v589
      %v1971 = vunpack.c.h.b16 %v589
      %v1972 = vunpack.c.l.b16 %v590
      %v1973 = vunpack.c.h.b16 %v590
      %v1974 = vunpack.c.l.b16 %v591
      %v1975 = vunpack.c.h.b16 %v591
      %v1976 = vunpack.c.l.b16 %v592
      %v1977 = vunpack.c.h.b16 %v592
      %v1978 = vunpack.c.l.b16 %v593
      %v1979 = vunpack.c.h.b16 %v593
      %v1980 = vunpack.c.l.b16 %v594
      %v1981 = vunpack.c.h.b16 %v594
      %v1982 = vunpack.c.l.b16 %v595
      %v1983 = vunpack.c.h.b16 %v595
      %v1984 = vunpack.c.l.b16 %v596
      %v1985 = vunpack.c.h.b16 %v596
      %v1986 = vunpack.c.l.b16 %v597
      %v1987 = vunpack.c.h.b16 %v597
      %v1988 = vunpack.c.l.b16 %v598
      %v1989 = vunpack.c.h.b16 %v598
      %v1990 = vunpack.c.l.b16 %v599
      %v1991 = vunpack.c.h.b16 %v599
      %v1992 = vunpack.c.l.b16 %v600
      %v1993 = vunpack.c.h.b16 %v600
      %v1994 = vunpack.c.l.b16 %v601
      %v1995 = vunpack.c.h.b16 %v601
      %v1996 = vunpack.c.l.b16 %v602
      %v1997 = vunpack.c.h.b16 %v602
      %v1998 = vunpack.c.l.b16 %v603
      %v1999 = vunpack.c.h.b16 %v603
      %v2000 = vpack.c.b16 %v1666, %v1664
      %v2001 = vpack.c.b16 %v1667, %v1665
      %v2002 = vpack.c.b16 %v1670, %v1668
      %v2003 = vpack.c.b16 %v1671, %v1669
      %v2004 = vpack.c.b16 %v1674, %v1672
      %v2005 = vpack.c.b16 %v1675, %v1673
      %v2006 = vpack.c.b16 %v1678, %v1676
      %v2007 = vpack.c.b16 %v1679, %v1677
      %v2008 = vpack.c.b16 %v1682, %v1680
      %v2009 = vpack.c.b16 %v1683, %v1681
      %v2010 = vpack.c.b16 %v1686, %v1684
      %v2011 = vpack.c.b16 %v1687, %v1685
      %v2012 = vpack.c.b16 %v1690, %v1688
      %v2013 = vpack.c.b16 %v1691, %v1689
      %v2014 = vpack.c.b16 %v1694, %v1692
      %v2015 = vpack.c.b16 %v1695, %v1693
      %v2016 = vpack.c.b16 %v1698, %v1696
      %v2017 = vpack.c.b16 %v1699, %v1697
      %v2018 = vpack.c.b16 %v1702, %v1700
      %v2019 = vpack.c.b16 %v1703, %v1701
      %v2020 = vpack.c.b16 %v1706, %v1704
      %v2021 = vpack.c.b16 %v1707, %v1705
      %v2022 = vpack.c.b16 %v1710, %v1708
      %v2023 = vpack.c.b16 %v1711, %v1709
      %v2024 = vpack.c.b16 %v1714, %v1712
      %v2025 = vpack.c.b16 %v1715, %v1713
      %v2026 = vpack.c.b16 %v1718, %v1716
      %v2027 = vpack.c.b16 %v1719, %v1717
      %v2028 = vpack.c.b16 %v1722, %v1720
      %v2029 = vpack.c.b16 %v1723, %v1721
      %v2030 = vpack.c.b16 %v1726, %v1724
      %v2031 = vpack.c.b16 %v1727, %v1725
      %v2032 = vpack.c.b16 %v1730, %v1728
      %v2033 = vpack.c.b16 %v1731, %v1729
      %v2034 = vpack.c.b16 %v1734, %v1732
      %v2035 = vpack.c.b16 %v1735, %v1733
      %v2036 = vpack.c.b16 %v1738, %v1736
      %v2037 = vpack.c.b16 %v1739, %v1737
      %v2038 = vpack.c.b16 %v1742, %v1740
      %v2039 = vpack.c.b16 %v1743, %v1741
      %v2040 = vpack.c.b16 %v1746, %v1744
      %v2041 = vpack.c.b16 %v1747, %v1745
      %v2042 = vpack.c.b16 %v1750, %v1748
      %v2043 = vpack.c.b16 %v1751, %v1749
      %v2044 = vpack.c.b16 %v1754, %v1752
      %v2045 = vpack.c.b16 %v1755, %v1753
      %v2046 = vpack.c.b16 %v1758, %v1756
      %v2047 = vpack.c.b16 %v1759, %v1757
      %v2048 = vpack.c.b16 %v1762, %v1760
      %v2049 = vpack.c.b16 %v1763, %v1761
      %v2050 = vpack.c.b16 %v1766, %v1764
      %v2051 = vpack.c.b16 %v1767, %v1765
      %v2052 = vpack.c.b16 %v1770, %v1768
      %v2053 = vpack.c.b16 %v1771, %v1769
      %v2054 = vpack.c.b16 %v1774, %v1772
      %v2055 = vpack.c.b16 %v1775, %v1773
      %v2056 = vpack.c.b16 %v1778, %v1776
      %v2057 = vpack.c.b16 %v1779, %v1777
      %v2058 = vpack.c.b16 %v1782, %v1780
      %v2059 = vpack.c.b16 %v1783, %v1781
      %v2060 = vpack.c.b16 %v1786, %v1784
      %v2061 = vpack.c.b16 %v1787, %v1785
      %v2062 = vpack.c.b16 %v1790, %v1788
      %v2063 = vpack.c.b16 %v1791, %v1789
      %v2064 = vpack.c.b16 %v1794, %v1792
      %v2065 = vpack.c.b16 %v1795, %v1793
      %v2066 = vpack.c.b16 %v1798, %v1796
      %v2067 = vpack.c.b16 %v1799, %v1797
      %v2068 = vpack.c.b16 %v1802, %v1800
      %v2069 = vpack.c.b16 %v1803, %v1801
      %v2070 = vpack.c.b16 %v1806, %v1804
      %v2071 = vpack.c.b16 %v1807, %v1805
      %v2072 = vpack.c.b16 %v1810, %v1808
      %v2073 = vpack.c.b16 %v1811, %v1809
      %v2074 = vpack.c.b16 %v1814, %v1812
      %v2075 = vpack.c.b16 %v1815, %v1813
      %v2076 = vpack.c.b16 %v1818, %v1816
      %v2077 = vpack.c.b16 %v1819, %v1817
      %v2078 = vpack.c.b16 %v1822, %v1820
      %v2079 = vpack.c.b16 %v1823, %v1821
      %v2080 = vpack.c.b16 %v1826, %v1824
      %v2081 = vpack.c.b16 %v1827, %v1825
      %v2082 = vpack.c.b16 %v1830, %v1828
      %v2083 = vpack.c.b16 %v1831, %v1829
      %v2084 = vpack.c.b16 %v1834, %v1832
      %v2085 = vpack.c.b16 %v1835, %v1833
      %v2086 = vpack.c.b16 %v1838, %v1836
      %v2087 = vpack.c.b16 %v1839, %v1837
      %v2088 = vpack.c.b16 %v1842, %v1840
      %v2089 = vpack.c.b16 %v1843, %v1841
      %v2090 = vpack.c.b16 %v1846, %v1844
      %v2091 = vpack.c.b16 %v1847, %v1845
      %v2092 = vpack.c.b16 %v1850, %v1848
      %v2093 = vpack.c.b16 %v1851, %v1849
      %v2094 = vpack.c.b16 %v1854, %v1852
      %v2095 = vpack.c.b16 %v1855, %v1853
      %v2096 = vpack.c.b16 %v1858, %v1856
      %v2097 = vpack.c.b16 %v1859, %v1857
      %v2098 = vpack.c.b16 %v1862, %v1860
      %v2099 = vpack.c.b16 %v1863, %v1861
      %v2100 = vpack.c.b16 %v1866, %v1864
      %v2101 = vpack.c.b16 %v1867, %v1865
      %v2102 = vpack.c.b16 %v1870, %v1868
      %v2103 = vpack.c.b16 %v1871, %v1869
      %v2104 = vpack.c.b16 %v1874, %v1872
      %v2105 = vpack.c.b16 %v1875, %v1873
      %v2106 = vpack.c.b16 %v1878, %v1876
      %v2107 = vpack.c.b16 %v1879, %v1877
      %v2108 = vpack.c.b16 %v1882, %v1880
      %v2109 = vpack.c.b16 %v1883, %v1881
      %v2110 = vpack.c.b16 %v1886, %v1884
      %v2111 = vpack.c.b16 %v1887, %v1885
      %v2112 = vpack.c.b16 %v1890, %v1888
      %v2113 = vpack.c.b16 %v1891, %v1889
      %v2114 = vpack.c.b16 %v1894, %v1892
      %v2115 = vpack.c.b16 %v1895, %v1893
      %v2116 = vpack.c.b16 %v1898, %v1896
      %v2117 = vpack.c.b16 %v1899, %v1897
      %v2118 = vpack.c.b16 %v1902, %v1900
      %v2119 = vpack.c.b16 %v1903, %v1901
      %v2120 = vpack.c.b16 %v1906, %v1904
      %v2121 = vpack.c.b16 %v1907, %v1905
      %v2122 = vpack.c.b16 %v1910, %v1908
      %v2123 = vpack.c.b16 %v1911, %v1909
      %v2124 = vpack.c.b16 %v1914, %v1912
      %v2125 = vpack.c.b16 %v1915, %v1913
      %v2126 = vpack.c.b16 %v1918, %v1916
      %v2127 = vpack.c.b16 %v1919, %v1917
      %v2128 = vpack.c.b16 %v1922, %v1920
      %v2129 = vpack.c.b16 %v1923, %v1921
      %v2130 = vpack.c.b16 %v1926, %v1924
      %v2131 = vpack.c.b16 %v1927, %v1925
      %v2132 = vpack.c.b16 %v1930, %v1928
      %v2133 = vpack.c.b16 %v1931, %v1929
      %v2134 = vpack.c.b16 %v1934, %v1932
      %v2135 = vpack.c.b16 %v1935, %v1933
      %v2136 = vpack.c.b16 %v1938, %v1936
      %v2137 = vpack.c.b16 %v1939, %v1937
      %v2138 = vpack.c.b16 %v1942, %v1940
      %v2139 = vpack.c.b16 %v1943, %v1941
      %v2140 = vpack.c.b16 %v1946, %v1944
      %v2141 = vpack.c.b16 %v1947, %v1945
      %v2142 = vpack.c.b16 %v1950, %v1948
      %v2143 = vpack.c.b16 %v1951, %v1949
      %v2144 = vpack.c.b16 %v1954, %v1952
      %v2145 = vpack.c.b16 %v1955, %v1953
      %v2146 = vpack.c.b16 %v1958, %v1956
      %v2147 = vpack.c.b16 %v1959, %v1957
      %v2148 = vpack.c.b16 %v1962, %v1960
      %v2149 = vpack.c.b16 %v1963, %v1961
      %v2150 = vpack.c.b16 %v1966, %v1964
      %v2151 = vpack.c.b16 %v1967, %v1965
      %v2152 = vpack.c.b16 %v1970, %v1968
      %v2153 = vpack.c.b16 %v1971, %v1969
      %v2154 = vpack.c.b16 %v1974, %v1972
      %v2155 = vpack.c.b16 %v1975, %v1973
      %v2156 = vpack.c.b16 %v1978, %v1976
      %v2157 = vpack.c.b16 %v1979, %v1977
      %v2158 = vpack.c.b16 %v1982, %v1980
      %v2159 = vpack.c.b16 %v1983, %v1981
      %v2160 = vpack.c.b16 %v1986, %v1984
      %v2161 = vpack.c.b16 %v1987, %v1985
      %v2162 = vpack.c.b16 %v1990, %v1988
      %v2163 = vpack.c.b16 %v1991, %v1989
      %v2164 = vpack.c.b16 %v1994, %v1992
      %v2165 = vpack.c.b16 %v1995, %v1993
      %v2166 = vpack.c.b16 %v1998, %v1996
      %v2167 = vpack.c.b16 %v1999, %v1997
      %vm2336 = vcmask 523264
      %v2338 = vsel %vm2336, %v1170, 0
      %v2341 = vsel %vm2336, %v1181, 0
      %v2344 = vsel %vm2336, %v1192, 0
      %v2347 = vsel %vm2336, %v1203, 0
      %v2350 = vsel %vm2336, %v1214, 0
      %v2353 = vsel %vm2336, %v1225, 0
      %v2356 = vsel %vm2336, %v1236, 0
      %v2359 = vsel %vm2336, %v1247, 0
      %v2362 = vsel %vm2336, %v1258, 0
      %v2365 = vsel %vm2336, %v1269, 0
      %v2368 = vsel %vm2336, %v1280, 0
      %v2371 = vsel %vm2336, %v1291, 0
      %v2374 = vsel %vm2336, %v1302, 0
      %v2377 = vsel %vm2336, %v1313, 0
      %v2380 = vsel %vm2336, %v1324, 0
      %v2383 = vsel %vm2336, %v1335, 0
      %2385 = vmatprep.subr.bf16.mxu0 %v2015
      %2386 = vmatpush1.bf16.msra.mxu0 %v2014
      %2387 = vmatprep.subr.bf16.mxu0 %v2013
      %2388 = vmatpush1.bf16.msra.mxu0 %v2012
      %2389 = vmatprep.subr.bf16.mxu0 %v2011
      %2390 = vmatpush1.bf16.msra.mxu0 %v2010
      %2391 = vmatprep.subr.bf16.mxu0 %v2009
      %2392 = vmatpush1.bf16.msra.mxu0 %v2008
      %2393 = vmatprep.subr.bf16.mxu0 %v2007
      %2394 = vmatpush1.bf16.msra.mxu0 %v2006
      %2395 = vmatprep.subr.bf16.mxu0 %v2005
      %2396 = vmatpush1.bf16.msra.mxu0 %v2004
      %2397 = vmatprep.subr.bf16.mxu0 %v2003
      %2398 = vmatpush1.bf16.msra.mxu0 %v2002
      %2399 = vmatprep.subr.bf16.mxu0 %v2001
      %2400 = vmatpush1.bf16.msra.mxu0 %v2000
      %2401 = vmatprep.subr.bf16.mxu0 %v2031
      %2402 = vmatpush2.bf16.msra.mxu0 %v2030
      %2403 = vmatprep.subr.bf16.mxu0 %v2029
      %2404 = vmatpush2.bf16.msra.mxu0 %v2028
      %2405 = vmatprep.subr.bf16.mxu0 %v2027
      %2406 = vmatpush2.bf16.msra.mxu0 %v2026
      %2407 = vmatprep.subr.bf16.mxu0 %v2025
      %2408 = vmatpush2.bf16.msra.mxu0 %v2024
      %2409 = vmatprep.subr.bf16.mxu0 %v2023
      %2410 = vmatpush2.bf16.msra.mxu0 %v2022
      %2411 = vmatprep.subr.bf16.mxu0 %v2021
      %2412 = vmatpush2.bf16.msra.mxu0 %v2020
      %2413 = vmatprep.subr.bf16.mxu0 %v2019
      %2414 = vmatpush2.bf16.msra.mxu0 %v2018
      %2415 = vmatprep.subr.bf16.mxu0 %v2017
      %2416 = vmatpush2.bf16.msra.mxu0 %v2016
      %2417 = vmatprep.mubr.bf16.mxu0 %v1161
      %2418 = vmatmul.mubr.bf16.gmra.mxu0 %v1160
      %v2419 = vpop.f32.mrf.mxu0
      %v2420 = vadd.f32 %v609, %v2419
      %v2421 = vpop.f32.mrf.mxu0
      %v2422 = vadd.f32 %v613, %v2421
      %v2423 = vpop.f32.mrf.mxu0
      %v2424 = vadd.f32 %v609, %v2423
      %v2425 = vpop.f32.mrf.mxu0
      %v2426 = vadd.f32 %v613, %v2425
      %2427 = vmatprep.mubr.bf16.mxu0 %v1172
      %2428 = vmatmul.mubr.bf16.gmra.mxu0 %v1171
      %v2429 = vpop.f32.mrf.mxu0
      %v2430 = vadd.f32 %v609, %v2429
      %v2431 = vpop.f32.mrf.mxu0
      %v2432 = vadd.f32 %v613, %v2431
      %v2433 = vpop.f32.mrf.mxu0
      %v2434 = vadd.f32 %v609, %v2433
      %v2435 = vpop.f32.mrf.mxu0
      %v2436 = vadd.f32 %v613, %v2435
      %2437 = vmatprep.mubr.bf16.mxu0 %v1183
      %2438 = vmatmul.mubr.bf16.gmra.mxu0 %v1182
      %v2439 = vpop.f32.mrf.mxu0
      %v2440 = vadd.f32 %v609, %v2439
      %v2441 = vpop.f32.mrf.mxu0
      %v2442 = vadd.f32 %v613, %v2441
      %v2443 = vpop.f32.mrf.mxu0
      %v2444 = vadd.f32 %v609, %v2443
      %v2445 = vpop.f32.mrf.mxu0
      %v2446 = vadd.f32 %v613, %v2445
      %2447 = vmatprep.mubr.bf16.mxu0 %v1194
      %2448 = vmatmul.mubr.bf16.gmra.mxu0 %v1193
      %v2449 = vpop.f32.mrf.mxu0
      %v2450 = vadd.f32 %v609, %v2449
      %v2451 = vpop.f32.mrf.mxu0
      %v2452 = vadd.f32 %v613, %v2451
      %v2453 = vpop.f32.mrf.mxu0
      %v2454 = vadd.f32 %v609, %v2453
      %v2455 = vpop.f32.mrf.mxu0
      %v2456 = vadd.f32 %v613, %v2455
      %2457 = vmatprep.mubr.bf16.mxu0 %v1205
      %2458 = vmatmul.mubr.bf16.gmra.mxu0 %v1204
      %v2459 = vpop.f32.mrf.mxu0
      %v2460 = vadd.f32 %v609, %v2459
      %v2461 = vpop.f32.mrf.mxu0
      %v2462 = vadd.f32 %v613, %v2461
      %v2463 = vpop.f32.mrf.mxu0
      %v2464 = vadd.f32 %v609, %v2463
      %v2465 = vpop.f32.mrf.mxu0
      %v2466 = vadd.f32 %v613, %v2465
      %2467 = vmatprep.mubr.bf16.mxu0 %v1216
      %2468 = vmatmul.mubr.bf16.gmra.mxu0 %v1215
      %v2469 = vpop.f32.mrf.mxu0
      %v2470 = vadd.f32 %v609, %v2469
      %v2471 = vpop.f32.mrf.mxu0
      %v2472 = vadd.f32 %v613, %v2471
      %v2473 = vpop.f32.mrf.mxu0
      %v2474 = vadd.f32 %v609, %v2473
      %v2475 = vpop.f32.mrf.mxu0
      %v2476 = vadd.f32 %v613, %v2475
      %2477 = vmatprep.mubr.bf16.mxu0 %v1227
      %2478 = vmatmul.mubr.bf16.gmra.mxu0 %v1226
      %v2479 = vpop.f32.mrf.mxu0
      %v2480 = vadd.f32 %v609, %v2479
      %v2481 = vpop.f32.mrf.mxu0
      %v2482 = vadd.f32 %v613, %v2481
      %v2483 = vpop.f32.mrf.mxu0
      %v2484 = vadd.f32 %v609, %v2483
      %v2485 = vpop.f32.mrf.mxu0
      %v2486 = vadd.f32 %v613, %v2485
      %2487 = vmatprep.mubr.bf16.mxu0 %v1238
      %2488 = vmatmul.mubr.bf16.gmra.mxu0 %v1237
      %v2489 = vpop.f32.mrf.mxu0
      %v2490 = vadd.f32 %v609, %v2489
      %v2491 = vpop.f32.mrf.mxu0
      %v2492 = vadd.f32 %v613, %v2491
      %v2493 = vpop.f32.mrf.mxu0
      %v2494 = vadd.f32 %v609, %v2493
      %v2495 = vpop.f32.mrf.mxu0
      %v2496 = vadd.f32 %v613, %v2495
      %2497 = vmatprep.mubr.bf16.mxu0 %v1249
      %2498 = vmatmul.mubr.bf16.gmra.mxu0 %v1248
      %v2499 = vpop.f32.mrf.mxu0
      %v2500 = vadd.f32 %v609, %v2499
      %v2501 = vpop.f32.mrf.mxu0
      %v2502 = vadd.f32 %v613, %v2501
      %v2503 = vpop.f32.mrf.mxu0
      %v2504 = vadd.f32 %v609, %v2503
      %v2505 = vpop.f32.mrf.mxu0
      %v2506 = vadd.f32 %v613, %v2505
      %2507 = vmatprep.mubr.bf16.mxu0 %v1260
      %2508 = vmatmul.mubr.bf16.gmra.mxu0 %v1259
      %v2509 = vpop.f32.mrf.mxu0
      %v2510 = vadd.f32 %v609, %v2509
      %v2511 = vpop.f32.mrf.mxu0
      %v2512 = vadd.f32 %v613, %v2511
      %v2513 = vpop.f32.mrf.mxu0
      %v2514 = vadd.f32 %v609, %v2513
      %v2515 = vpop.f32.mrf.mxu0
      %v2516 = vadd.f32 %v613, %v2515
      %2517 = vmatprep.mubr.bf16.mxu0 %v1271
      %2518 = vmatmul.mubr.bf16.gmra.mxu0 %v1270
      %v2519 = vpop.f32.mrf.mxu0
      %v2520 = vadd.f32 %v609, %v2519
      %v2521 = vpop.f32.mrf.mxu0
      %v2522 = vadd.f32 %v613, %v2521
      %v2523 = vpop.f32.mrf.mxu0
      %v2524 = vadd.f32 %v609, %v2523
      %v2525 = vpop.f32.mrf.mxu0
      %v2526 = vadd.f32 %v613, %v2525
      %2527 = vmatprep.mubr.bf16.mxu0 %v1282
      %2528 = vmatmul.mubr.bf16.gmra.mxu0 %v1281
      %v2529 = vpop.f32.mrf.mxu0
      %v2530 = vadd.f32 %v609, %v2529
      %v2531 = vpop.f32.mrf.mxu0
      %v2532 = vadd.f32 %v613, %v2531
      %v2533 = vpop.f32.mrf.mxu0
      %v2534 = vadd.f32 %v609, %v2533
      %v2535 = vpop.f32.mrf.mxu0
      %v2536 = vadd.f32 %v613, %v2535
      %2537 = vmatprep.mubr.bf16.mxu0 %v1293
      %2538 = vmatmul.mubr.bf16.gmra.mxu0 %v1292
      %v2539 = vpop.f32.mrf.mxu0
      %v2540 = vadd.f32 %v609, %v2539
      %v2541 = vpop.f32.mrf.mxu0
      %v2542 = vadd.f32 %v613, %v2541
      %v2543 = vpop.f32.mrf.mxu0
      %v2544 = vadd.f32 %v609, %v2543
      %v2545 = vpop.f32.mrf.mxu0
      %v2546 = vadd.f32 %v613, %v2545
      %2547 = vmatprep.mubr.bf16.mxu0 %v1304
      %2548 = vmatmul.mubr.bf16.gmra.mxu0 %v1303
      %v2549 = vpop.f32.mrf.mxu0
      %v2550 = vadd.f32 %v609, %v2549
      %v2551 = vpop.f32.mrf.mxu0
      %v2552 = vadd.f32 %v613, %v2551
      %v2553 = vpop.f32.mrf.mxu0
      %v2554 = vadd.f32 %v609, %v2553
      %v2555 = vpop.f32.mrf.mxu0
      %v2556 = vadd.f32 %v613, %v2555
      %2557 = vmatprep.mubr.bf16.mxu0 %v1315
      %2558 = vmatmul.mubr.bf16.gmra.mxu0 %v1314
      %v2559 = vpop.f32.mrf.mxu0
      %v2560 = vadd.f32 %v609, %v2559
      %v2561 = vpop.f32.mrf.mxu0
      %v2562 = vadd.f32 %v613, %v2561
      %v2563 = vpop.f32.mrf.mxu0
      %v2564 = vadd.f32 %v609, %v2563
      %v2565 = vpop.f32.mrf.mxu0
      %v2566 = vadd.f32 %v613, %v2565
      %2567 = vmatprep.mubr.bf16.mxu0 %v1326
      %2568 = vmatmul.mubr.bf16.gmra.mxu0 %v1325
      %v2569 = vpop.f32.mrf.mxu0
      %v2570 = vadd.f32 %v609, %v2569
      %v2571 = vpop.f32.mrf.mxu0
      %v2572 = vadd.f32 %v613, %v2571
      %v2573 = vpop.f32.mrf.mxu0
      %v2574 = vadd.f32 %v609, %v2573
      %v2575 = vpop.f32.mrf.mxu0
      %v2576 = vadd.f32 %v613, %v2575
      %2577 = vdwg.mxu0
      %2578 = vmatprep.subr.bf16.mxu0 %v2047
      %2579 = vmatpush1.bf16.msra.mxu0 %v2046
      %2580 = vmatprep.subr.bf16.mxu0 %v2045
      %2581 = vmatpush1.bf16.msra.mxu0 %v2044
      %2582 = vmatprep.subr.bf16.mxu0 %v2043
      %2583 = vmatpush1.bf16.msra.mxu0 %v2042
      %2584 = vmatprep.subr.bf16.mxu0 %v2041
      %2585 = vmatpush1.bf16.msra.mxu0 %v2040
      %2586 = vmatprep.subr.bf16.mxu0 %v2039
      %2587 = vmatpush1.bf16.msra.mxu0 %v2038
      %2588 = vmatprep.subr.bf16.mxu0 %v2037
      %2589 = vmatpush1.bf16.msra.mxu0 %v2036
      %2590 = vmatprep.subr.bf16.mxu0 %v2035
      %2591 = vmatpush1.bf16.msra.mxu0 %v2034
      %2592 = vmatprep.subr.bf16.mxu0 %v2033
      %2593 = vmatpush1.bf16.msra.mxu0 %v2032
      %2594 = vmatprep.subr.bf16.mxu0 %v2063
      %2595 = vmatpush2.bf16.msra.mxu0 %v2062
      %2596 = vmatprep.subr.bf16.mxu0 %v2061
      %2597 = vmatpush2.bf16.msra.mxu0 %v2060
      %2598 = vmatprep.subr.bf16.mxu0 %v2059
      %2599 = vmatpush2.bf16.msra.mxu0 %v2058
      %2600 = vmatprep.subr.bf16.mxu0 %v2057
      %2601 = vmatpush2.bf16.msra.mxu0 %v2056
      %2602 = vmatprep.subr.bf16.mxu0 %v2055
      %2603 = vmatpush2.bf16.msra.mxu0 %v2054
      %2604 = vmatprep.subr.bf16.mxu0 %v2053
      %2605 = vmatpush2.bf16.msra.mxu0 %v2052
      %2606 = vmatprep.subr.bf16.mxu0 %v2051
      %2607 = vmatpush2.bf16.msra.mxu0 %v2050
      %2608 = vmatprep.subr.bf16.mxu0 %v2049
      %2609 = vmatpush2.bf16.msra.mxu0 %v2048
      %2610 = vmatprep.mubr.bf16.mxu0 %v1163
      %2611 = vmatmul.mubr.bf16.gmra.mxu0 %v1162
      %v2612 = vpop.f32.mrf.mxu0
      %v2613 = vadd.f32 %v2420, %v2612
      %v2614 = vpop.f32.mrf.mxu0
      %v2615 = vadd.f32 %v2422, %v2614
      %v2616 = vpop.f32.mrf.mxu0
      %v2617 = vadd.f32 %v2424, %v2616
      %v2618 = vpop.f32.mrf.mxu0
      %v2619 = vadd.f32 %v2426, %v2618
      %2620 = vmatprep.mubr.bf16.mxu0 %v1174
      %2621 = vmatmul.mubr.bf16.gmra.mxu0 %v1173
      %v2622 = vpop.f32.mrf.mxu0
      %v2623 = vadd.f32 %v2430, %v2622
      %v2624 = vpop.f32.mrf.mxu0
      %v2625 = vadd.f32 %v2432, %v2624
      %v2626 = vpop.f32.mrf.mxu0
      %v2627 = vadd.f32 %v2434, %v2626
      %v2628 = vpop.f32.mrf.mxu0
      %v2629 = vadd.f32 %v2436, %v2628
      %2630 = vmatprep.mubr.bf16.mxu0 %v1185
      %2631 = vmatmul.mubr.bf16.gmra.mxu0 %v1184
      %v2632 = vpop.f32.mrf.mxu0
      %v2633 = vadd.f32 %v2440, %v2632
      %v2634 = vpop.f32.mrf.mxu0
      %v2635 = vadd.f32 %v2442, %v2634
      %v2636 = vpop.f32.mrf.mxu0
      %v2637 = vadd.f32 %v2444, %v2636
      %v2638 = vpop.f32.mrf.mxu0
      %v2639 = vadd.f32 %v2446, %v2638
      %2640 = vmatprep.mubr.bf16.mxu0 %v1196
      %2641 = vmatmul.mubr.bf16.gmra.mxu0 %v1195
      %v2642 = vpop.f32.mrf.mxu0
      %v2643 = vadd.f32 %v2450, %v2642
      %v2644 = vpop.f32.mrf.mxu0
      %v2645 = vadd.f32 %v2452, %v2644
      %v2646 = vpop.f32.mrf.mxu0
      %v2647 = vadd.f32 %v2454, %v2646
      %v2648 = vpop.f32.mrf.mxu0
      %v2649 = vadd.f32 %v2456, %v2648
      %2650 = vmatprep.mubr.bf16.mxu0 %v1207
      %2651 = vmatmul.mubr.bf16.gmra.mxu0 %v1206
      %v2652 = vpop.f32.mrf.mxu0
      %v2653 = vadd.f32 %v2460, %v2652
      %v2654 = vpop.f32.mrf.mxu0
      %v2655 = vadd.f32 %v2462, %v2654
      %v2656 = vpop.f32.mrf.mxu0
      %v2657 = vadd.f32 %v2464, %v2656
      %v2658 = vpop.f32.mrf.mxu0
      %v2659 = vadd.f32 %v2466, %v2658
      %2660 = vmatprep.mubr.bf16.mxu0 %v1218
      %2661 = vmatmul.mubr.bf16.gmra.mxu0 %v1217
      %v2662 = vpop.f32.mrf.mxu0
      %v2663 = vadd.f32 %v2470, %v2662
      %v2664 = vpop.f32.mrf.mxu0
      %v2665 = vadd.f32 %v2472, %v2664
      %v2666 = vpop.f32.mrf.mxu0
      %v2667 = vadd.f32 %v2474, %v2666
      %v2668 = vpop.f32.mrf.mxu0
      %v2669 = vadd.f32 %v2476, %v2668
      %2670 = vmatprep.mubr.bf16.mxu0 %v1229
      %2671 = vmatmul.mubr.bf16.gmra.mxu0 %v1228
      %v2672 = vpop.f32.mrf.mxu0
      %v2673 = vadd.f32 %v2480, %v2672
      %v2674 = vpop.f32.mrf.mxu0
      %v2675 = vadd.f32 %v2482, %v2674
      %v2676 = vpop.f32.mrf.mxu0
      %v2677 = vadd.f32 %v2484, %v2676
      %v2678 = vpop.f32.mrf.mxu0
      %v2679 = vadd.f32 %v2486, %v2678
      %2680 = vmatprep.mubr.bf16.mxu0 %v1240
      %2681 = vmatmul.mubr.bf16.gmra.mxu0 %v1239
      %v2682 = vpop.f32.mrf.mxu0
      %v2683 = vadd.f32 %v2490, %v2682
      %v2684 = vpop.f32.mrf.mxu0
      %v2685 = vadd.f32 %v2492, %v2684
      %v2686 = vpop.f32.mrf.mxu0
      %v2687 = vadd.f32 %v2494, %v2686
      %v2688 = vpop.f32.mrf.mxu0
      %v2689 = vadd.f32 %v2496, %v2688
      %2690 = vmatprep.mubr.bf16.mxu0 %v1251
      %2691 = vmatmul.mubr.bf16.gmra.mxu0 %v1250
      %v2692 = vpop.f32.mrf.mxu0
      %v2693 = vadd.f32 %v2500, %v2692
      %v2694 = vpop.f32.mrf.mxu0
      %v2695 = vadd.f32 %v2502, %v2694
      %v2696 = vpop.f32.mrf.mxu0
      %v2697 = vadd.f32 %v2504, %v2696
      %v2698 = vpop.f32.mrf.mxu0
      %v2699 = vadd.f32 %v2506, %v2698
      %2700 = vmatprep.mubr.bf16.mxu0 %v1262
      %2701 = vmatmul.mubr.bf16.gmra.mxu0 %v1261
      %v2702 = vpop.f32.mrf.mxu0
      %v2703 = vadd.f32 %v2510, %v2702
      %v2704 = vpop.f32.mrf.mxu0
      %v2705 = vadd.f32 %v2512, %v2704
      %v2706 = vpop.f32.mrf.mxu0
      %v2707 = vadd.f32 %v2514, %v2706
      %v2708 = vpop.f32.mrf.mxu0
      %v2709 = vadd.f32 %v2516, %v2708
      %2710 = vmatprep.mubr.bf16.mxu0 %v1273
      %2711 = vmatmul.mubr.bf16.gmra.mxu0 %v1272
      %v2712 = vpop.f32.mrf.mxu0
      %v2713 = vadd.f32 %v2520, %v2712
      %v2714 = vpop.f32.mrf.mxu0
      %v2715 = vadd.f32 %v2522, %v2714
      %v2716 = vpop.f32.mrf.mxu0
      %v2717 = vadd.f32 %v2524, %v2716
      %v2718 = vpop.f32.mrf.mxu0
      %v2719 = vadd.f32 %v2526, %v2718
      %2720 = vmatprep.mubr.bf16.mxu0 %v1284
      %2721 = vmatmul.mubr.bf16.gmra.mxu0 %v1283
      %v2722 = vpop.f32.mrf.mxu0
      %v2723 = vadd.f32 %v2530, %v2722
      %v2724 = vpop.f32.mrf.mxu0
      %v2725 = vadd.f32 %v2532, %v2724
      %v2726 = vpop.f32.mrf.mxu0
      %v2727 = vadd.f32 %v2534, %v2726
      %v2728 = vpop.f32.mrf.mxu0
      %v2729 = vadd.f32 %v2536, %v2728
      %2730 = vmatprep.mubr.bf16.mxu0 %v1295
      %2731 = vmatmul.mubr.bf16.gmra.mxu0 %v1294
      %v2732 = vpop.f32.mrf.mxu0
      %v2733 = vadd.f32 %v2540, %v2732
      %v2734 = vpop.f32.mrf.mxu0
      %v2735 = vadd.f32 %v2542, %v2734
      %v2736 = vpop.f32.mrf.mxu0
      %v2737 = vadd.f32 %v2544, %v2736
      %v2738 = vpop.f32.mrf.mxu0
      %v2739 = vadd.f32 %v2546, %v2738
      %2740 = vmatprep.mubr.bf16.mxu0 %v1306
      %2741 = vmatmul.mubr.bf16.gmra.mxu0 %v1305
      %v2742 = vpop.f32.mrf.mxu0
      %v2743 = vadd.f32 %v2550, %v2742
      %v2744 = vpop.f32.mrf.mxu0
      %v2745 = vadd.f32 %v2552, %v2744
      %v2746 = vpop.f32.mrf.mxu0
      %v2747 = vadd.f32 %v2554, %v2746
      %v2748 = vpop.f32.mrf.mxu0
      %v2749 = vadd.f32 %v2556, %v2748
      %2750 = vmatprep.mubr.bf16.mxu0 %v1317
      %2751 = vmatmul.mubr.bf16.gmra.mxu0 %v1316
      %v2752 = vpop.f32.mrf.mxu0
      %v2753 = vadd.f32 %v2560, %v2752
      %v2754 = vpop.f32.mrf.mxu0
      %v2755 = vadd.f32 %v2562, %v2754
      %v2756 = vpop.f32.mrf.mxu0
      %v2757 = vadd.f32 %v2564, %v2756
      %v2758 = vpop.f32.mrf.mxu0
      %v2759 = vadd.f32 %v2566, %v2758
      %2760 = vmatprep.mubr.bf16.mxu0 %v1328
      %2761 = vmatmul.mubr.bf16.gmra.mxu0 %v1327
      %v2762 = vpop.f32.mrf.mxu0
      %v2763 = vadd.f32 %v2570, %v2762
      %v2764 = vpop.f32.mrf.mxu0
      %v2765 = vadd.f32 %v2572, %v2764
      %v2766 = vpop.f32.mrf.mxu0
      %v2767 = vadd.f32 %v2574, %v2766
      %v2768 = vpop.f32.mrf.mxu0
      %v2769 = vadd.f32 %v2576, %v2768
      %2770 = vdwg.mxu0
      %2771 = vmatprep.subr.bf16.mxu0 %v2079
      %2772 = vmatpush1.bf16.msra.mxu0 %v2078
      %2773 = vmatprep.subr.bf16.mxu0 %v2077
      %2774 = vmatpush1.bf16.msra.mxu0 %v2076
      %2775 = vmatprep.subr.bf16.mxu0 %v2075
      %2776 = vmatpush1.bf16.msra.mxu0 %v2074
      %2777 = vmatprep.subr.bf16.mxu0 %v2073
      %2778 = vmatpush1.bf16.msra.mxu0 %v2072
      %2779 = vmatprep.subr.bf16.mxu0 %v2071
      %2780 = vmatpush1.bf16.msra.mxu0 %v2070
      %2781 = vmatprep.subr.bf16.mxu0 %v2069
      %2782 = vmatpush1.bf16.msra.mxu0 %v2068
      %2783 = vmatprep.subr.bf16.mxu0 %v2067
      %2784 = vmatpush1.bf16.msra.mxu0 %v2066
      %2785 = vmatprep.subr.bf16.mxu0 %v2065
      %2786 = vmatpush1.bf16.msra.mxu0 %v2064
      %2787 = vmatprep.subr.bf16.mxu0 %v2095
      %2788 = vmatpush2.bf16.msra.mxu0 %v2094
      %2789 = vmatprep.subr.bf16.mxu0 %v2093
      %2790 = vmatpush2.bf16.msra.mxu0 %v2092
      %2791 = vmatprep.subr.bf16.mxu0 %v2091
      %2792 = vmatpush2.bf16.msra.mxu0 %v2090
      %2793 = vmatprep.subr.bf16.mxu0 %v2089
      %2794 = vmatpush2.bf16.msra.mxu0 %v2088
      %2795 = vmatprep.subr.bf16.mxu0 %v2087
      %2796 = vmatpush2.bf16.msra.mxu0 %v2086
      %2797 = vmatprep.subr.bf16.mxu0 %v2085
      %2798 = vmatpush2.bf16.msra.mxu0 %v2084
      %2799 = vmatprep.subr.bf16.mxu0 %v2083
      %2800 = vmatpush2.bf16.msra.mxu0 %v2082
      %2801 = vmatprep.subr.bf16.mxu0 %v2081
      %2802 = vmatpush2.bf16.msra.mxu0 %v2080
      %2803 = vmatprep.mubr.bf16.mxu0 %v1165
      %2804 = vmatmul.mubr.bf16.gmra.mxu0 %v1164
      %v2805 = vpop.f32.mrf.mxu0
      %v2806 = vadd.f32 %v2613, %v2805
      %v2807 = vpop.f32.mrf.mxu0
      %v2808 = vadd.f32 %v2615, %v2807
      %v2809 = vpop.f32.mrf.mxu0
      %v2810 = vadd.f32 %v2617, %v2809
      %v2811 = vpop.f32.mrf.mxu0
      %v2812 = vadd.f32 %v2619, %v2811
      %2813 = vmatprep.mubr.bf16.mxu0 %v1176
      %2814 = vmatmul.mubr.bf16.gmra.mxu0 %v1175
      %v2815 = vpop.f32.mrf.mxu0
      %v2816 = vadd.f32 %v2623, %v2815
      %v2817 = vpop.f32.mrf.mxu0
      %v2818 = vadd.f32 %v2625, %v2817
      %v2819 = vpop.f32.mrf.mxu0
      %v2820 = vadd.f32 %v2627, %v2819
      %v2821 = vpop.f32.mrf.mxu0
      %v2822 = vadd.f32 %v2629, %v2821
      %2823 = vmatprep.mubr.bf16.mxu0 %v1187
      %2824 = vmatmul.mubr.bf16.gmra.mxu0 %v1186
      %v2825 = vpop.f32.mrf.mxu0
      %v2826 = vadd.f32 %v2633, %v2825
      %v2827 = vpop.f32.mrf.mxu0
      %v2828 = vadd.f32 %v2635, %v2827
      %v2829 = vpop.f32.mrf.mxu0
      %v2830 = vadd.f32 %v2637, %v2829
      %v2831 = vpop.f32.mrf.mxu0
      %v2832 = vadd.f32 %v2639, %v2831
      %2833 = vmatprep.mubr.bf16.mxu0 %v1198
      %2834 = vmatmul.mubr.bf16.gmra.mxu0 %v1197
      %v2835 = vpop.f32.mrf.mxu0
      %v2836 = vadd.f32 %v2643, %v2835
      %v2837 = vpop.f32.mrf.mxu0
      %v2838 = vadd.f32 %v2645, %v2837
      %v2839 = vpop.f32.mrf.mxu0
      %v2840 = vadd.f32 %v2647, %v2839
      %v2841 = vpop.f32.mrf.mxu0
      %v2842 = vadd.f32 %v2649, %v2841
      %2843 = vmatprep.mubr.bf16.mxu0 %v1209
      %2844 = vmatmul.mubr.bf16.gmra.mxu0 %v1208
      %v2845 = vpop.f32.mrf.mxu0
      %v2846 = vadd.f32 %v2653, %v2845
      %v2847 = vpop.f32.mrf.mxu0
      %v2848 = vadd.f32 %v2655, %v2847
      %v2849 = vpop.f32.mrf.mxu0
      %v2850 = vadd.f32 %v2657, %v2849
      %v2851 = vpop.f32.mrf.mxu0
      %v2852 = vadd.f32 %v2659, %v2851
      %2853 = vmatprep.mubr.bf16.mxu0 %v1220
      %2854 = vmatmul.mubr.bf16.gmra.mxu0 %v1219
      %v2855 = vpop.f32.mrf.mxu0
      %v2856 = vadd.f32 %v2663, %v2855
      %v2857 = vpop.f32.mrf.mxu0
      %v2858 = vadd.f32 %v2665, %v2857
      %v2859 = vpop.f32.mrf.mxu0
      %v2860 = vadd.f32 %v2667, %v2859
      %v2861 = vpop.f32.mrf.mxu0
      %v2862 = vadd.f32 %v2669, %v2861
      %2863 = vmatprep.mubr.bf16.mxu0 %v1231
      %2864 = vmatmul.mubr.bf16.gmra.mxu0 %v1230
      %v2865 = vpop.f32.mrf.mxu0
      %v2866 = vadd.f32 %v2673, %v2865
      %v2867 = vpop.f32.mrf.mxu0
      %v2868 = vadd.f32 %v2675, %v2867
      %v2869 = vpop.f32.mrf.mxu0
      %v2870 = vadd.f32 %v2677, %v2869
      %v2871 = vpop.f32.mrf.mxu0
      %v2872 = vadd.f32 %v2679, %v2871
      %2873 = vmatprep.mubr.bf16.mxu0 %v1242
      %2874 = vmatmul.mubr.bf16.gmra.mxu0 %v1241
      %v2875 = vpop.f32.mrf.mxu0
      %v2876 = vadd.f32 %v2683, %v2875
      %v2877 = vpop.f32.mrf.mxu0
      %v2878 = vadd.f32 %v2685, %v2877
      %v2879 = vpop.f32.mrf.mxu0
      %v2880 = vadd.f32 %v2687, %v2879
      %v2881 = vpop.f32.mrf.mxu0
      %v2882 = vadd.f32 %v2689, %v2881
      %2883 = vmatprep.mubr.bf16.mxu0 %v1253
      %2884 = vmatmul.mubr.bf16.gmra.mxu0 %v1252
      %v2885 = vpop.f32.mrf.mxu0
      %v2886 = vadd.f32 %v2693, %v2885
      %v2887 = vpop.f32.mrf.mxu0
      %v2888 = vadd.f32 %v2695, %v2887
      %v2889 = vpop.f32.mrf.mxu0
      %v2890 = vadd.f32 %v2697, %v2889
      %v2891 = vpop.f32.mrf.mxu0
      %v2892 = vadd.f32 %v2699, %v2891
      %2893 = vmatprep.mubr.bf16.mxu0 %v1264
      %2894 = vmatmul.mubr.bf16.gmra.mxu0 %v1263
      %v2895 = vpop.f32.mrf.mxu0
      %v2896 = vadd.f32 %v2703, %v2895
      %v2897 = vpop.f32.mrf.mxu0
      %v2898 = vadd.f32 %v2705, %v2897
      %v2899 = vpop.f32.mrf.mxu0
      %v2900 = vadd.f32 %v2707, %v2899
      %v2901 = vpop.f32.mrf.mxu0
      %v2902 = vadd.f32 %v2709, %v2901
      %2903 = vmatprep.mubr.bf16.mxu0 %v1275
      %2904 = vmatmul.mubr.bf16.gmra.mxu0 %v1274
      %v2905 = vpop.f32.mrf.mxu0
      %v2906 = vadd.f32 %v2713, %v2905
      %v2907 = vpop.f32.mrf.mxu0
      %v2908 = vadd.f32 %v2715, %v2907
      %v2909 = vpop.f32.mrf.mxu0
      %v2910 = vadd.f32 %v2717, %v2909
      %v2911 = vpop.f32.mrf.mxu0
      %v2912 = vadd.f32 %v2719, %v2911
      %2913 = vmatprep.mubr.bf16.mxu0 %v1286
      %2914 = vmatmul.mubr.bf16.gmra.mxu0 %v1285
      %v2915 = vpop.f32.mrf.mxu0
      %v2916 = vadd.f32 %v2723, %v2915
      %v2917 = vpop.f32.mrf.mxu0
      %v2918 = vadd.f32 %v2725, %v2917
      %v2919 = vpop.f32.mrf.mxu0
      %v2920 = vadd.f32 %v2727, %v2919
      %v2921 = vpop.f32.mrf.mxu0
      %v2922 = vadd.f32 %v2729, %v2921
      %2923 = vmatprep.mubr.bf16.mxu0 %v1297
      %2924 = vmatmul.mubr.bf16.gmra.mxu0 %v1296
      %v2925 = vpop.f32.mrf.mxu0
      %v2926 = vadd.f32 %v2733, %v2925
      %v2927 = vpop.f32.mrf.mxu0
      %v2928 = vadd.f32 %v2735, %v2927
      %v2929 = vpop.f32.mrf.mxu0
      %v2930 = vadd.f32 %v2737, %v2929
      %v2931 = vpop.f32.mrf.mxu0
      %v2932 = vadd.f32 %v2739, %v2931
      %2933 = vmatprep.mubr.bf16.mxu0 %v1308
      %2934 = vmatmul.mubr.bf16.gmra.mxu0 %v1307
      %v2935 = vpop.f32.mrf.mxu0
      %v2936 = vadd.f32 %v2743, %v2935
      %v2937 = vpop.f32.mrf.mxu0
      %v2938 = vadd.f32 %v2745, %v2937
      %v2939 = vpop.f32.mrf.mxu0
      %v2940 = vadd.f32 %v2747, %v2939
      %v2941 = vpop.f32.mrf.mxu0
      %v2942 = vadd.f32 %v2749, %v2941
      %2943 = vmatprep.mubr.bf16.mxu0 %v1319
      %2944 = vmatmul.mubr.bf16.gmra.mxu0 %v1318
      %v2945 = vpop.f32.mrf.mxu0
      %v2946 = vadd.f32 %v2753, %v2945
      %v2947 = vpop.f32.mrf.mxu0
      %v2948 = vadd.f32 %v2755, %v2947
      %v2949 = vpop.f32.mrf.mxu0
      %v2950 = vadd.f32 %v2757, %v2949
      %v2951 = vpop.f32.mrf.mxu0
      %v2952 = vadd.f32 %v2759, %v2951
      %2953 = vmatprep.mubr.bf16.mxu0 %v1330
      %2954 = vmatmul.mubr.bf16.gmra.mxu0 %v1329
      %v2955 = vpop.f32.mrf.mxu0
      %v2956 = vadd.f32 %v2763, %v2955
      %v2957 = vpop.f32.mrf.mxu0
      %v2958 = vadd.f32 %v2765, %v2957
      %v2959 = vpop.f32.mrf.mxu0
      %v2960 = vadd.f32 %v2767, %v2959
      %v2961 = vpop.f32.mrf.mxu0
      %v2962 = vadd.f32 %v2769, %v2961
      %2963 = vdwg.mxu0
      %2964 = vmatprep.subr.bf16.mxu0 %v2111
      %2965 = vmatpush1.bf16.msra.mxu0 %v2110
      %2966 = vmatprep.subr.bf16.mxu0 %v2109
      %2967 = vmatpush1.bf16.msra.mxu0 %v2108
      %2968 = vmatprep.subr.bf16.mxu0 %v2107
      %2969 = vmatpush1.bf16.msra.mxu0 %v2106
      %2970 = vmatprep.subr.bf16.mxu0 %v2105
      %2971 = vmatpush1.bf16.msra.mxu0 %v2104
      %2972 = vmatprep.subr.bf16.mxu0 %v2103
      %2973 = vmatpush1.bf16.msra.mxu0 %v2102
      %2974 = vmatprep.subr.bf16.mxu0 %v2101
      %2975 = vmatpush1.bf16.msra.mxu0 %v2100
      %2976 = vmatprep.subr.bf16.mxu0 %v2099
      %2977 = vmatpush1.bf16.msra.mxu0 %v2098
      %2978 = vmatprep.subr.bf16.mxu0 %v2097
      %2979 = vmatpush1.bf16.msra.mxu0 %v2096
      %2980 = vmatprep.subr.bf16.mxu0 %v2127
      %2981 = vmatpush2.bf16.msra.mxu0 %v2126
      %2982 = vmatprep.subr.bf16.mxu0 %v2125
      %2983 = vmatpush2.bf16.msra.mxu0 %v2124
      %2984 = vmatprep.subr.bf16.mxu0 %v2123
      %2985 = vmatpush2.bf16.msra.mxu0 %v2122
      %2986 = vmatprep.subr.bf16.mxu0 %v2121
      %2987 = vmatpush2.bf16.msra.mxu0 %v2120
      %2988 = vmatprep.subr.bf16.mxu0 %v2119
      %2989 = vmatpush2.bf16.msra.mxu0 %v2118
      %2990 = vmatprep.subr.bf16.mxu0 %v2117
      %2991 = vmatpush2.bf16.msra.mxu0 %v2116
      %2992 = vmatprep.subr.bf16.mxu0 %v2115
      %2993 = vmatpush2.bf16.msra.mxu0 %v2114
      %2994 = vmatprep.subr.bf16.mxu0 %v2113
      %2995 = vmatpush2.bf16.msra.mxu0 %v2112
      %2996 = vmatprep.mubr.bf16.mxu0 %v1167
      %2997 = vmatmul.mubr.bf16.gmra.mxu0 %v1166
      %v2998 = vpop.f32.mrf.mxu0
      %v2999 = vadd.f32 %v2806, %v2998
      %v3000 = vpop.f32.mrf.mxu0
      %v3001 = vadd.f32 %v2808, %v3000
      %v3002 = vpop.f32.mrf.mxu0
      %v3003 = vadd.f32 %v2810, %v3002
      %v3004 = vpop.f32.mrf.mxu0
      %v3005 = vadd.f32 %v2812, %v3004
      %3006 = vmatprep.mubr.bf16.mxu0 %v1178
      %3007 = vmatmul.mubr.bf16.gmra.mxu0 %v1177
      %v3008 = vpop.f32.mrf.mxu0
      %v3009 = vadd.f32 %v2816, %v3008
      %v3010 = vpop.f32.mrf.mxu0
      %v3011 = vadd.f32 %v2818, %v3010
      %v3012 = vpop.f32.mrf.mxu0
      %v3013 = vadd.f32 %v2820, %v3012
      %v3014 = vpop.f32.mrf.mxu0
      %v3015 = vadd.f32 %v2822, %v3014
      %3016 = vmatprep.mubr.bf16.mxu0 %v1189
      %3017 = vmatmul.mubr.bf16.gmra.mxu0 %v1188
      %v3018 = vpop.f32.mrf.mxu0
      %v3019 = vadd.f32 %v2826, %v3018
      %v3020 = vpop.f32.mrf.mxu0
      %v3021 = vadd.f32 %v2828, %v3020
      %v3022 = vpop.f32.mrf.mxu0
      %v3023 = vadd.f32 %v2830, %v3022
      %v3024 = vpop.f32.mrf.mxu0
      %v3025 = vadd.f32 %v2832, %v3024
      %3026 = vmatprep.mubr.bf16.mxu0 %v1200
      %3027 = vmatmul.mubr.bf16.gmra.mxu0 %v1199
      %v3028 = vpop.f32.mrf.mxu0
      %v3029 = vadd.f32 %v2836, %v3028
      %v3030 = vpop.f32.mrf.mxu0
      %v3031 = vadd.f32 %v2838, %v3030
      %v3032 = vpop.f32.mrf.mxu0
      %v3033 = vadd.f32 %v2840, %v3032
      %v3034 = vpop.f32.mrf.mxu0
      %v3035 = vadd.f32 %v2842, %v3034
      %3036 = vmatprep.mubr.bf16.mxu0 %v1211
      %3037 = vmatmul.mubr.bf16.gmra.mxu0 %v1210
      %v3038 = vpop.f32.mrf.mxu0
      %v3039 = vadd.f32 %v2846, %v3038
      %v3040 = vpop.f32.mrf.mxu0
      %v3041 = vadd.f32 %v2848, %v3040
      %v3042 = vpop.f32.mrf.mxu0
      %v3043 = vadd.f32 %v2850, %v3042
      %v3044 = vpop.f32.mrf.mxu0
      %v3045 = vadd.f32 %v2852, %v3044
      %3046 = vmatprep.mubr.bf16.mxu0 %v1222
      %3047 = vmatmul.mubr.bf16.gmra.mxu0 %v1221
      %v3048 = vpop.f32.mrf.mxu0
      %v3049 = vadd.f32 %v2856, %v3048
      %v3050 = vpop.f32.mrf.mxu0
      %v3051 = vadd.f32 %v2858, %v3050
      %v3052 = vpop.f32.mrf.mxu0
      %v3053 = vadd.f32 %v2860, %v3052
      %v3054 = vpop.f32.mrf.mxu0
      %v3055 = vadd.f32 %v2862, %v3054
      %3056 = vmatprep.mubr.bf16.mxu0 %v1233
      %3057 = vmatmul.mubr.bf16.gmra.mxu0 %v1232
      %v3058 = vpop.f32.mrf.mxu0
      %v3059 = vadd.f32 %v2866, %v3058
      %v3060 = vpop.f32.mrf.mxu0
      %v3061 = vadd.f32 %v2868, %v3060
      %v3062 = vpop.f32.mrf.mxu0
      %v3063 = vadd.f32 %v2870, %v3062
      %v3064 = vpop.f32.mrf.mxu0
      %v3065 = vadd.f32 %v2872, %v3064
      %3066 = vmatprep.mubr.bf16.mxu0 %v1244
      %3067 = vmatmul.mubr.bf16.gmra.mxu0 %v1243
      %v3068 = vpop.f32.mrf.mxu0
      %v3069 = vadd.f32 %v2876, %v3068
      %v3070 = vpop.f32.mrf.mxu0
      %v3071 = vadd.f32 %v2878, %v3070
      %v3072 = vpop.f32.mrf.mxu0
      %v3073 = vadd.f32 %v2880, %v3072
      %v3074 = vpop.f32.mrf.mxu0
      %v3075 = vadd.f32 %v2882, %v3074
      %3076 = vmatprep.mubr.bf16.mxu0 %v1255
      %3077 = vmatmul.mubr.bf16.gmra.mxu0 %v1254
      %v3078 = vpop.f32.mrf.mxu0
      %v3079 = vadd.f32 %v2886, %v3078
      %v3080 = vpop.f32.mrf.mxu0
      %v3081 = vadd.f32 %v2888, %v3080
      %v3082 = vpop.f32.mrf.mxu0
      %v3083 = vadd.f32 %v2890, %v3082
      %v3084 = vpop.f32.mrf.mxu0
      %v3085 = vadd.f32 %v2892, %v3084
      %3086 = vmatprep.mubr.bf16.mxu0 %v1266
      %3087 = vmatmul.mubr.bf16.gmra.mxu0 %v1265
      %v3088 = vpop.f32.mrf.mxu0
      %v3089 = vadd.f32 %v2896, %v3088
      %v3090 = vpop.f32.mrf.mxu0
      %v3091 = vadd.f32 %v2898, %v3090
      %v3092 = vpop.f32.mrf.mxu0
      %v3093 = vadd.f32 %v2900, %v3092
      %v3094 = vpop.f32.mrf.mxu0
      %v3095 = vadd.f32 %v2902, %v3094
      %3096 = vmatprep.mubr.bf16.mxu0 %v1277
      %3097 = vmatmul.mubr.bf16.gmra.mxu0 %v1276
      %v3098 = vpop.f32.mrf.mxu0
      %v3099 = vadd.f32 %v2906, %v3098
      %v3100 = vpop.f32.mrf.mxu0
      %v3101 = vadd.f32 %v2908, %v3100
      %v3102 = vpop.f32.mrf.mxu0
      %v3103 = vadd.f32 %v2910, %v3102
      %v3104 = vpop.f32.mrf.mxu0
      %v3105 = vadd.f32 %v2912, %v3104
      %3106 = vmatprep.mubr.bf16.mxu0 %v1288
      %3107 = vmatmul.mubr.bf16.gmra.mxu0 %v1287
      %v3108 = vpop.f32.mrf.mxu0
      %v3109 = vadd.f32 %v2916, %v3108
      %v3110 = vpop.f32.mrf.mxu0
      %v3111 = vadd.f32 %v2918, %v3110
      %v3112 = vpop.f32.mrf.mxu0
      %v3113 = vadd.f32 %v2920, %v3112
      %v3114 = vpop.f32.mrf.mxu0
      %v3115 = vadd.f32 %v2922, %v3114
      %3116 = vmatprep.mubr.bf16.mxu0 %v1299
      %3117 = vmatmul.mubr.bf16.gmra.mxu0 %v1298
      %v3118 = vpop.f32.mrf.mxu0
      %v3119 = vadd.f32 %v2926, %v3118
      %v3120 = vpop.f32.mrf.mxu0
      %v3121 = vadd.f32 %v2928, %v3120
      %v3122 = vpop.f32.mrf.mxu0
      %v3123 = vadd.f32 %v2930, %v3122
      %v3124 = vpop.f32.mrf.mxu0
      %v3125 = vadd.f32 %v2932, %v3124
      %3126 = vmatprep.mubr.bf16.mxu0 %v1310
      %3127 = vmatmul.mubr.bf16.gmra.mxu0 %v1309
      %v3128 = vpop.f32.mrf.mxu0
      %v3129 = vadd.f32 %v2936, %v3128
      %v3130 = vpop.f32.mrf.mxu0
      %v3131 = vadd.f32 %v2938, %v3130
      %v3132 = vpop.f32.mrf.mxu0
      %v3133 = vadd.f32 %v2940, %v3132
      %v3134 = vpop.f32.mrf.mxu0
      %v3135 = vadd.f32 %v2942, %v3134
      %3136 = vmatprep.mubr.bf16.mxu0 %v1321
      %3137 = vmatmul.mubr.bf16.gmra.mxu0 %v1320
      %v3138 = vpop.f32.mrf.mxu0
      %v3139 = vadd.f32 %v2946, %v3138
      %v3140 = vpop.f32.mrf.mxu0
      %v3141 = vadd.f32 %v2948, %v3140
      %v3142 = vpop.f32.mrf.mxu0
      %v3143 = vadd.f32 %v2950, %v3142
      %v3144 = vpop.f32.mrf.mxu0
      %v3145 = vadd.f32 %v2952, %v3144
      %3146 = vmatprep.mubr.bf16.mxu0 %v1332
      %3147 = vmatmul.mubr.bf16.gmra.mxu0 %v1331
      %v3148 = vpop.f32.mrf.mxu0
      %v3149 = vadd.f32 %v2956, %v3148
      %v3150 = vpop.f32.mrf.mxu0
      %v3151 = vadd.f32 %v2958, %v3150
      %v3152 = vpop.f32.mrf.mxu0
      %v3153 = vadd.f32 %v2960, %v3152
      %v3154 = vpop.f32.mrf.mxu0
      %v3155 = vadd.f32 %v2962, %v3154
      %3156 = vdwg.mxu0
      %3157 = vmatprep.subr.bf16.mxu0 %v2143
      %3158 = vmatpush1.bf16.msra.mxu0 %v2142
      %3159 = vmatprep.subr.bf16.mxu0 %v2141
      %3160 = vmatpush1.bf16.msra.mxu0 %v2140
      %3161 = vmatprep.subr.bf16.mxu0 %v2139
      %3162 = vmatpush1.bf16.msra.mxu0 %v2138
      %3163 = vmatprep.subr.bf16.mxu0 %v2137
      %3164 = vmatpush1.bf16.msra.mxu0 %v2136
      %3165 = vmatprep.subr.bf16.mxu0 %v2135
      %3166 = vmatpush1.bf16.msra.mxu0 %v2134
      %3167 = vmatprep.subr.bf16.mxu0 %v2133
      %3168 = vmatpush1.bf16.msra.mxu0 %v2132
      %3169 = vmatprep.subr.bf16.mxu0 %v2131
      %3170 = vmatpush1.bf16.msra.mxu0 %v2130
      %3171 = vmatprep.subr.bf16.mxu0 %v2129
      %3172 = vmatpush1.bf16.msra.mxu0 %v2128
      %3173 = vmatprep.subr.bf16.mxu0 %v2159
      %3174 = vmatpush2.bf16.msra.mxu0 %v2158
      %3175 = vmatprep.subr.bf16.mxu0 %v2157
      %3176 = vmatpush2.bf16.msra.mxu0 %v2156
      %3177 = vmatprep.subr.bf16.mxu0 %v2155
      %3178 = vmatpush2.bf16.msra.mxu0 %v2154
      %3179 = vmatprep.subr.bf16.mxu0 %v2153
      %3180 = vmatpush2.bf16.msra.mxu0 %v2152
      %3181 = vmatprep.subr.bf16.mxu0 %v2151
      %3182 = vmatpush2.bf16.msra.mxu0 %v2150
      %3183 = vmatprep.subr.bf16.mxu0 %v2149
      %3184 = vmatpush2.bf16.msra.mxu0 %v2148
      %3185 = vmatprep.subr.bf16.mxu0 %v2147
      %3186 = vmatpush2.bf16.msra.mxu0 %v2146
      %3187 = vmatprep.subr.bf16.mxu0 %v2145
      %3188 = vmatpush2.bf16.msra.mxu0 %v2144
      %3189 = vmatprep.mubr.bf16.mxu0 %v1169
      %3190 = vmatmul.mubr.bf16.gmra.mxu0 %v1168
      %v3191 = vpop.f32.mrf.mxu0
      %v3192 = vadd.f32 %v2999, %v3191
      %v3193 = vpop.f32.mrf.mxu0
      %v3194 = vadd.f32 %v3001, %v3193
      %v3195 = vpop.f32.mrf.mxu0
      %v3196 = vadd.f32 %v3003, %v3195
      %v3197 = vpop.f32.mrf.mxu0
      %v3198 = vadd.f32 %v3005, %v3197
      %3199 = vmatprep.mubr.bf16.mxu0 %v1180
      %3200 = vmatmul.mubr.bf16.gmra.mxu0 %v1179
      %v3201 = vpop.f32.mrf.mxu0
      %v3202 = vadd.f32 %v3009, %v3201
      %v3203 = vpop.f32.mrf.mxu0
      %v3204 = vadd.f32 %v3011, %v3203
      %v3205 = vpop.f32.mrf.mxu0
      %v3206 = vadd.f32 %v3013, %v3205
      %v3207 = vpop.f32.mrf.mxu0
      %v3208 = vadd.f32 %v3015, %v3207
      %3209 = vmatprep.mubr.bf16.mxu0 %v1191
      %3210 = vmatmul.mubr.bf16.gmra.mxu0 %v1190
      %v3211 = vpop.f32.mrf.mxu0
      %v3212 = vadd.f32 %v3019, %v3211
      %v3213 = vpop.f32.mrf.mxu0
      %v3214 = vadd.f32 %v3021, %v3213
      %v3215 = vpop.f32.mrf.mxu0
      %v3216 = vadd.f32 %v3023, %v3215
      %v3217 = vpop.f32.mrf.mxu0
      %v3218 = vadd.f32 %v3025, %v3217
      %3219 = vmatprep.mubr.bf16.mxu0 %v1202
      %3220 = vmatmul.mubr.bf16.gmra.mxu0 %v1201
      %v3221 = vpop.f32.mrf.mxu0
      %v3222 = vadd.f32 %v3029, %v3221
      %v3223 = vpop.f32.mrf.mxu0
      %v3224 = vadd.f32 %v3031, %v3223
      %v3225 = vpop.f32.mrf.mxu0
      %v3226 = vadd.f32 %v3033, %v3225
      %v3227 = vpop.f32.mrf.mxu0
      %v3228 = vadd.f32 %v3035, %v3227
      %3229 = vmatprep.mubr.bf16.mxu0 %v1213
      %3230 = vmatmul.mubr.bf16.gmra.mxu0 %v1212
      %v3231 = vpop.f32.mrf.mxu0
      %v3232 = vadd.f32 %v3039, %v3231
      %v3233 = vpop.f32.mrf.mxu0
      %v3234 = vadd.f32 %v3041, %v3233
      %v3235 = vpop.f32.mrf.mxu0
      %v3236 = vadd.f32 %v3043, %v3235
      %v3237 = vpop.f32.mrf.mxu0
      %v3238 = vadd.f32 %v3045, %v3237
      %3239 = vmatprep.mubr.bf16.mxu0 %v1224
      %3240 = vmatmul.mubr.bf16.gmra.mxu0 %v1223
      %v3241 = vpop.f32.mrf.mxu0
      %v3242 = vadd.f32 %v3049, %v3241
      %v3243 = vpop.f32.mrf.mxu0
      %v3244 = vadd.f32 %v3051, %v3243
      %v3245 = vpop.f32.mrf.mxu0
      %v3246 = vadd.f32 %v3053, %v3245
      %v3247 = vpop.f32.mrf.mxu0
      %v3248 = vadd.f32 %v3055, %v3247
      %3249 = vmatprep.mubr.bf16.mxu0 %v1235
      %3250 = vmatmul.mubr.bf16.gmra.mxu0 %v1234
      %v3251 = vpop.f32.mrf.mxu0
      %v3252 = vadd.f32 %v3059, %v3251
      %v3253 = vpop.f32.mrf.mxu0
      %v3254 = vadd.f32 %v3061, %v3253
      %v3255 = vpop.f32.mrf.mxu0
      %v3256 = vadd.f32 %v3063, %v3255
      %v3257 = vpop.f32.mrf.mxu0
      %v3258 = vadd.f32 %v3065, %v3257
      %3259 = vmatprep.mubr.bf16.mxu0 %v1246
      %3260 = vmatmul.mubr.bf16.gmra.mxu0 %v1245
      %v3261 = vpop.f32.mrf.mxu0
      %v3262 = vadd.f32 %v3069, %v3261
      %v3263 = vpop.f32.mrf.mxu0
      %v3264 = vadd.f32 %v3071, %v3263
      %v3265 = vpop.f32.mrf.mxu0
      %v3266 = vadd.f32 %v3073, %v3265
      %v3267 = vpop.f32.mrf.mxu0
      %v3268 = vadd.f32 %v3075, %v3267
      %3269 = vmatprep.mubr.bf16.mxu0 %v1257
      %3270 = vmatmul.mubr.bf16.gmra.mxu0 %v1256
      %v3271 = vpop.f32.mrf.mxu0
      %v3272 = vadd.f32 %v3079, %v3271
      %v3273 = vpop.f32.mrf.mxu0
      %v3274 = vadd.f32 %v3081, %v3273
      %v3275 = vpop.f32.mrf.mxu0
      %v3276 = vadd.f32 %v3083, %v3275
      %v3277 = vpop.f32.mrf.mxu0
      %v3278 = vadd.f32 %v3085, %v3277
      %3279 = vmatprep.mubr.bf16.mxu0 %v1268
      %3280 = vmatmul.mubr.bf16.gmra.mxu0 %v1267
      %v3281 = vpop.f32.mrf.mxu0
      %v3282 = vadd.f32 %v3089, %v3281
      %v3283 = vpop.f32.mrf.mxu0
      %v3284 = vadd.f32 %v3091, %v3283
      %v3285 = vpop.f32.mrf.mxu0
      %v3286 = vadd.f32 %v3093, %v3285
      %v3287 = vpop.f32.mrf.mxu0
      %v3288 = vadd.f32 %v3095, %v3287
      %3289 = vmatprep.mubr.bf16.mxu0 %v1279
      %3290 = vmatmul.mubr.bf16.gmra.mxu0 %v1278
      %v3291 = vpop.f32.mrf.mxu0
      %v3292 = vadd.f32 %v3099, %v3291
      %v3293 = vpop.f32.mrf.mxu0
      %v3294 = vadd.f32 %v3101, %v3293
      %v3295 = vpop.f32.mrf.mxu0
      %v3296 = vadd.f32 %v3103, %v3295
      %v3297 = vpop.f32.mrf.mxu0
      %v3298 = vadd.f32 %v3105, %v3297
      %3299 = vmatprep.mubr.bf16.mxu0 %v1290
      %3300 = vmatmul.mubr.bf16.gmra.mxu0 %v1289
      %v3301 = vpop.f32.mrf.mxu0
      %v3302 = vadd.f32 %v3109, %v3301
      %v3303 = vpop.f32.mrf.mxu0
      %v3304 = vadd.f32 %v3111, %v3303
      %v3305 = vpop.f32.mrf.mxu0
      %v3306 = vadd.f32 %v3113, %v3305
      %v3307 = vpop.f32.mrf.mxu0
      %v3308 = vadd.f32 %v3115, %v3307
      %3309 = vmatprep.mubr.bf16.mxu0 %v1301
      %3310 = vmatmul.mubr.bf16.gmra.mxu0 %v1300
      %v3311 = vpop.f32.mrf.mxu0
      %v3312 = vadd.f32 %v3119, %v3311
      %v3313 = vpop.f32.mrf.mxu0
      %v3314 = vadd.f32 %v3121, %v3313
      %v3315 = vpop.f32.mrf.mxu0
      %v3316 = vadd.f32 %v3123, %v3315
      %v3317 = vpop.f32.mrf.mxu0
      %v3318 = vadd.f32 %v3125, %v3317
      %3319 = vmatprep.mubr.bf16.mxu0 %v1312
      %3320 = vmatmul.mubr.bf16.gmra.mxu0 %v1311
      %v3321 = vpop.f32.mrf.mxu0
      %v3322 = vadd.f32 %v3129, %v3321
      %v3323 = vpop.f32.mrf.mxu0
      %v3324 = vadd.f32 %v3131, %v3323
      %v3325 = vpop.f32.mrf.mxu0
      %v3326 = vadd.f32 %v3133, %v3325
      %v3327 = vpop.f32.mrf.mxu0
      %v3328 = vadd.f32 %v3135, %v3327
      %3329 = vmatprep.mubr.bf16.mxu0 %v1323
      %3330 = vmatmul.mubr.bf16.gmra.mxu0 %v1322
      %v3331 = vpop.f32.mrf.mxu0
      %v3332 = vadd.f32 %v3139, %v3331
      %v3333 = vpop.f32.mrf.mxu0
      %v3334 = vadd.f32 %v3141, %v3333
      %v3335 = vpop.f32.mrf.mxu0
      %v3336 = vadd.f32 %v3143, %v3335
      %v3337 = vpop.f32.mrf.mxu0
      %v3338 = vadd.f32 %v3145, %v3337
      %3339 = vmatprep.mubr.bf16.mxu0 %v1334
      %3340 = vmatmul.mubr.bf16.gmra.mxu0 %v1333
      %v3341 = vpop.f32.mrf.mxu0
      %v3342 = vadd.f32 %v3149, %v3341
      %v3343 = vpop.f32.mrf.mxu0
      %v3344 = vadd.f32 %v3151, %v3343
      %v3345 = vpop.f32.mrf.mxu0
      %v3346 = vadd.f32 %v3153, %v3345
      %v3347 = vpop.f32.mrf.mxu0
      %v3348 = vadd.f32 %v3155, %v3347
      %3349 = vdwg.mxu0
      %3350 = vmatprep.subr.bf16.mxu0 0
      %3351 = vmatpush1.bf16.msra.mxu0 0
      %3352 = vmatprep.subr.bf16.mxu0 0
      %3353 = vmatpush1.bf16.msra.mxu0 0
      %3354 = vmatprep.subr.bf16.mxu0 0
      %3355 = vmatpush1.bf16.msra.mxu0 0
      %3356 = vmatprep.subr.bf16.mxu0 0
      %3357 = vmatpush1.bf16.msra.mxu0 0
      %3358 = vmatprep.subr.bf16.mxu0 %v2167
      %3359 = vmatpush1.bf16.msra.mxu0 %v2166
      %3360 = vmatprep.subr.bf16.mxu0 %v2165
      %3361 = vmatpush1.bf16.msra.mxu0 %v2164
      %3362 = vmatprep.subr.bf16.mxu0 %v2163
      %3363 = vmatpush1.bf16.msra.mxu0 %v2162
      %3364 = vmatprep.subr.bf16.mxu0 %v2161
      %3365 = vmatpush1.bf16.msra.mxu0 %v2160
      %3366 = vmatprep.subr.bf16.mxu0 0
      %3367 = vmatpush2.bf16.msra.mxu0 0
      %3368 = vmatprep.subr.bf16.mxu0 0
      %3369 = vmatpush2.bf16.msra.mxu0 0
      %3370 = vmatprep.subr.bf16.mxu0 0
      %3371 = vmatpush2.bf16.msra.mxu0 0
      %3372 = vmatprep.subr.bf16.mxu0 0
      %3373 = vmatpush2.bf16.msra.mxu0 0
      %3374 = vmatprep.subr.bf16.mxu0 0
      %3375 = vmatpush2.bf16.msra.mxu0 0
      %3376 = vmatprep.subr.bf16.mxu0 0
      %3377 = vmatpush2.bf16.msra.mxu0 0
      %3378 = vmatprep.subr.bf16.mxu0 0
      %3379 = vmatpush2.bf16.msra.mxu0 0
      %3380 = vmatprep.subr.bf16.mxu0 0
      %3381 = vmatpush2.bf16.msra.mxu0 0
      %3382 = vmatprep.mubr.bf16.mxu0 0
      %3383 = vmatmul.mubr.bf16.gmra.mxu0 %v2338
      %v3384 = vpop.f32.mrf.mxu0
      %v3385 = vadd.f32 %v3192, %v3384
      %v3386 = vpop.f32.mrf.mxu0
      %v3387 = vadd.f32 %v3194, %v3386
      %v3388 = vpop.f32.mrf.mxu0
      %v3389 = vadd.f32 %v3196, %v3388
      %v3390 = vpop.f32.mrf.mxu0
      %v3391 = vadd.f32 %v3198, %v3390
      %3392 = vmatprep.mubr.bf16.mxu0 0
      %3393 = vmatmul.mubr.bf16.gmra.mxu0 %v2341
      %v3394 = vpop.f32.mrf.mxu0
      %v3395 = vadd.f32 %v3202, %v3394
      %v3396 = vpop.f32.mrf.mxu0
      %v3397 = vadd.f32 %v3204, %v3396
      %v3398 = vpop.f32.mrf.mxu0
      %v3399 = vadd.f32 %v3206, %v3398
      %v3400 = vpop.f32.mrf.mxu0
      %v3401 = vadd.f32 %v3208, %v3400
      %3402 = vmatprep.mubr.bf16.mxu0 0
      %3403 = vmatmul.mubr.bf16.gmra.mxu0 %v2344
      %v3404 = vpop.f32.mrf.mxu0
      %v3405 = vadd.f32 %v3212, %v3404
      %v3406 = vpop.f32.mrf.mxu0
      %v3407 = vadd.f32 %v3214, %v3406
      %v3408 = vpop.f32.mrf.mxu0
      %v3409 = vadd.f32 %v3216, %v3408
      %v3410 = vpop.f32.mrf.mxu0
      %v3411 = vadd.f32 %v3218, %v3410
      %3412 = vmatprep.mubr.bf16.mxu0 0
      %3413 = vmatmul.mubr.bf16.gmra.mxu0 %v2347
      %v3414 = vpop.f32.mrf.mxu0
      %v3415 = vadd.f32 %v3222, %v3414
      %v3416 = vpop.f32.mrf.mxu0
      %v3417 = vadd.f32 %v3224, %v3416
      %v3418 = vpop.f32.mrf.mxu0
      %v3419 = vadd.f32 %v3226, %v3418
      %v3420 = vpop.f32.mrf.mxu0
      %v3421 = vadd.f32 %v3228, %v3420
      %3422 = vmatprep.mubr.bf16.mxu0 0
      %3423 = vmatmul.mubr.bf16.gmra.mxu0 %v2350
      %v3424 = vpop.f32.mrf.mxu0
      %v3425 = vadd.f32 %v3232, %v3424
      %v3426 = vpop.f32.mrf.mxu0
      %v3427 = vadd.f32 %v3234, %v3426
      %v3428 = vpop.f32.mrf.mxu0
      %v3429 = vadd.f32 %v3236, %v3428
      %v3430 = vpop.f32.mrf.mxu0
      %v3431 = vadd.f32 %v3238, %v3430
      %3432 = vmatprep.mubr.bf16.mxu0 0
      %3433 = vmatmul.mubr.bf16.gmra.mxu0 %v2353
      %v3434 = vpop.f32.mrf.mxu0
      %v3435 = vadd.f32 %v3242, %v3434
      %v3436 = vpop.f32.mrf.mxu0
      %v3437 = vadd.f32 %v3244, %v3436
      %v3438 = vpop.f32.mrf.mxu0
      %v3439 = vadd.f32 %v3246, %v3438
      %v3440 = vpop.f32.mrf.mxu0
      %v3441 = vadd.f32 %v3248, %v3440
      %3442 = vmatprep.mubr.bf16.mxu0 0
      %3443 = vmatmul.mubr.bf16.gmra.mxu0 %v2356
      %v3444 = vpop.f32.mrf.mxu0
      %v3445 = vadd.f32 %v3252, %v3444
      %v3446 = vpop.f32.mrf.mxu0
      %v3447 = vadd.f32 %v3254, %v3446
      %v3448 = vpop.f32.mrf.mxu0
      %v3449 = vadd.f32 %v3256, %v3448
      %v3450 = vpop.f32.mrf.mxu0
      %v3451 = vadd.f32 %v3258, %v3450
      %3452 = vmatprep.mubr.bf16.mxu0 0
      %3453 = vmatmul.mubr.bf16.gmra.mxu0 %v2359
      %v3454 = vpop.f32.mrf.mxu0
      %v3455 = vadd.f32 %v3262, %v3454
      %v3456 = vpop.f32.mrf.mxu0
      %v3457 = vadd.f32 %v3264, %v3456
      %v3458 = vpop.f32.mrf.mxu0
      %v3459 = vadd.f32 %v3266, %v3458
      %v3460 = vpop.f32.mrf.mxu0
      %v3461 = vadd.f32 %v3268, %v3460
      %3462 = vmatprep.mubr.bf16.mxu0 0
      %3463 = vmatmul.mubr.bf16.gmra.mxu0 %v2362
      %v3464 = vpop.f32.mrf.mxu0
      %v3465 = vadd.f32 %v3272, %v3464
      %v3466 = vpop.f32.mrf.mxu0
      %v3467 = vadd.f32 %v3274, %v3466
      %v3468 = vpop.f32.mrf.mxu0
      %v3469 = vadd.f32 %v3276, %v3468
      %v3470 = vpop.f32.mrf.mxu0
      %v3471 = vadd.f32 %v3278, %v3470
      %3472 = vmatprep.mubr.bf16.mxu0 0
      %3473 = vmatmul.mubr.bf16.gmra.mxu0 %v2365
      %v3474 = vpop.f32.mrf.mxu0
      %v3475 = vadd.f32 %v3282, %v3474
      %v3476 = vpop.f32.mrf.mxu0
      %v3477 = vadd.f32 %v3284, %v3476
      %v3478 = vpop.f32.mrf.mxu0
      %v3479 = vadd.f32 %v3286, %v3478
      %v3480 = vpop.f32.mrf.mxu0
      %v3481 = vadd.f32 %v3288, %v3480
      %3482 = vmatprep.mubr.bf16.mxu0 0
      %3483 = vmatmul.mubr.bf16.gmra.mxu0 %v2368
      %v3484 = vpop.f32.mrf.mxu0
      %v3485 = vadd.f32 %v3292, %v3484
      %v3486 = vpop.f32.mrf.mxu0
      %v3487 = vadd.f32 %v3294, %v3486
      %v3488 = vpop.f32.mrf.mxu0
      %v3489 = vadd.f32 %v3296, %v3488
      %v3490 = vpop.f32.mrf.mxu0
      %v3491 = vadd.f32 %v3298, %v3490
      %3492 = vmatprep.mubr.bf16.mxu0 0
      %3493 = vmatmul.mubr.bf16.gmra.mxu0 %v2371
      %v3494 = vpop.f32.mrf.mxu0
      %v3495 = vadd.f32 %v3302, %v3494
      %v3496 = vpop.f32.mrf.mxu0
      %v3497 = vadd.f32 %v3304, %v3496
      %v3498 = vpop.f32.mrf.mxu0
      %v3499 = vadd.f32 %v3306, %v3498
      %v3500 = vpop.f32.mrf.mxu0
      %v3501 = vadd.f32 %v3308, %v3500
      %3502 = vmatprep.mubr.bf16.mxu0 0
      %3503 = vmatmul.mubr.bf16.gmra.mxu0 %v2374
      %v3504 = vpop.f32.mrf.mxu0
      %v3505 = vadd.f32 %v3312, %v3504
      %v3506 = vpop.f32.mrf.mxu0
      %v3507 = vadd.f32 %v3314, %v3506
      %v3508 = vpop.f32.mrf.mxu0
      %v3509 = vadd.f32 %v3316, %v3508
      %v3510 = vpop.f32.mrf.mxu0
      %v3511 = vadd.f32 %v3318, %v3510
      %3512 = vmatprep.mubr.bf16.mxu0 0
      %3513 = vmatmul.mubr.bf16.gmra.mxu0 %v2377
      %v3514 = vpop.f32.mrf.mxu0
      %v3515 = vadd.f32 %v3322, %v3514
      %v3516 = vpop.f32.mrf.mxu0
      %v3517 = vadd.f32 %v3324, %v3516
      %v3518 = vpop.f32.mrf.mxu0
      %v3519 = vadd.f32 %v3326, %v3518
      %v3520 = vpop.f32.mrf.mxu0
      %v3521 = vadd.f32 %v3328, %v3520
      %3522 = vmatprep.mubr.bf16.mxu0 0
      %3523 = vmatmul.mubr.bf16.gmra.mxu0 %v2380
      %v3524 = vpop.f32.mrf.mxu0
      %v3525 = vadd.f32 %v3332, %v3524
      %v3526 = vpop.f32.mrf.mxu0
      %v3527 = vadd.f32 %v3334, %v3526
      %v3528 = vpop.f32.mrf.mxu0
      %v3529 = vadd.f32 %v3336, %v3528
      %v3530 = vpop.f32.mrf.mxu0
      %v3531 = vadd.f32 %v3338, %v3530
      %3532 = vmatprep.mubr.bf16.mxu0 0
      %3533 = vmatmul.mubr.bf16.gmra.mxu0 %v2383
      %v3534 = vpop.f32.mrf.mxu0
      %v3535 = vadd.f32 %v3342, %v3534
      %v3536 = vpop.f32.mrf.mxu0
      %v3537 = vadd.f32 %v3344, %v3536
      %v3538 = vpop.f32.mrf.mxu0
      %v3539 = vadd.f32 %v3346, %v3538
      %v3540 = vpop.f32.mrf.mxu0
      %v3541 = vadd.f32 %v3348, %v3540
      %3542 = vdwg.mxu0
      %v3543 = vmax.f32 %v3385, 0.0
      %v3544 = vmax.f32 %v3387, 0.0
      %v3545 = vmax.f32 %v3389, 0.0
      %v3546 = vmax.f32 %v3391, 0.0
      %v3547 = vmax.f32 %v3395, 0.0
      %v3548 = vmax.f32 %v3397, 0.0
      %v3549 = vmax.f32 %v3399, 0.0
      %v3550 = vmax.f32 %v3401, 0.0
      %v3551 = vmax.f32 %v3405, 0.0
      %v3552 = vmax.f32 %v3407, 0.0
      %v3553 = vmax.f32 %v3409, 0.0
      %v3554 = vmax.f32 %v3411, 0.0
      %v3555 = vmax.f32 %v3415, 0.0
      %v3556 = vmax.f32 %v3417, 0.0
      %v3557 = vmax.f32 %v3419, 0.0
      %v3558 = vmax.f32 %v3421, 0.0
      %v3559 = vmax.f32 %v3425, 0.0
      %v3560 = vmax.f32 %v3427, 0.0
      %v3561 = vmax.f32 %v3429, 0.0
      %v3562 = vmax.f32 %v3431, 0.0
      %v3563 = vmax.f32 %v3435, 0.0
      %v3564 = vmax.f32 %v3437, 0.0
      %v3565 = vmax.f32 %v3439, 0.0
      %v3566 = vmax.f32 %v3441, 0.0
      %v3567 = vmax.f32 %v3445, 0.0
      %v3568 = vmax.f32 %v3447, 0.0
      %v3569 = vmax.f32 %v3449, 0.0
      %v3570 = vmax.f32 %v3451, 0.0
      %v3571 = vmax.f32 %v3455, 0.0
      %v3572 = vmax.f32 %v3457, 0.0
      %v3573 = vmax.f32 %v3459, 0.0
      %v3574 = vmax.f32 %v3461, 0.0
      %v3575 = vmax.f32 %v3465, 0.0
      %v3576 = vmax.f32 %v3467, 0.0
      %v3577 = vmax.f32 %v3469, 0.0
      %v3578 = vmax.f32 %v3471, 0.0
      %v3579 = vmax.f32 %v3475, 0.0
      %v3580 = vmax.f32 %v3477, 0.0
      %v3581 = vmax.f32 %v3479, 0.0
      %v3582 = vmax.f32 %v3481, 0.0
      %v3583 = vmax.f32 %v3485, 0.0
      %v3584 = vmax.f32 %v3487, 0.0
      %v3585 = vmax.f32 %v3489, 0.0
      %v3586 = vmax.f32 %v3491, 0.0
      %v3587 = vmax.f32 %v3495, 0.0
      %v3588 = vmax.f32 %v3497, 0.0
      %v3589 = vmax.f32 %v3499, 0.0
      %v3590 = vmax.f32 %v3501, 0.0
      %v3591 = vmax.f32 %v3505, 0.0
      %v3592 = vmax.f32 %v3507, 0.0
      %v3593 = vmax.f32 %v3509, 0.0
      %v3594 = vmax.f32 %v3511, 0.0
      %v3595 = vmax.f32 %v3515, 0.0
      %v3596 = vmax.f32 %v3517, 0.0
      %v3597 = vmax.f32 %v3519, 0.0
      %v3598 = vmax.f32 %v3521, 0.0
      %v3599 = vmax.f32 %v3525, 0.0
      %v3600 = vmax.f32 %v3527, 0.0
      %v3601 = vmax.f32 %v3529, 0.0
      %v3602 = vmax.f32 %v3531, 0.0
      %v3603 = vmax.f32 %v3535, 0.0
      %v3604 = vmax.f32 %v3537, 0.0
      %v3605 = vmax.f32 %v3539, 0.0
      %v3606 = vmax.f32 %v3541, 0.0
      %v3607 = vpack.c.bf16 %v3545, %v3543
      %v3608 = vpack.c.bf16 %v3546, %v3544
      %v3609 = vpack.c.bf16 %v3549, %v3547
      %v3610 = vpack.c.bf16 %v3550, %v3548
      %v3611 = vpack.c.bf16 %v3553, %v3551
      %v3612 = vpack.c.bf16 %v3554, %v3552
      %v3613 = vpack.c.bf16 %v3557, %v3555
      %v3614 = vpack.c.bf16 %v3558, %v3556
      %v3615 = vpack.c.bf16 %v3561, %v3559
      %v3616 = vpack.c.bf16 %v3562, %v3560
      %v3617 = vpack.c.bf16 %v3565, %v3563
      %v3618 = vpack.c.bf16 %v3566, %v3564
      %v3619 = vpack.c.bf16 %v3569, %v3567
      %v3620 = vpack.c.bf16 %v3570, %v3568
      %v3621 = vpack.c.bf16 %v3573, %v3571
      %v3622 = vpack.c.bf16 %v3574, %v3572
      %v3623 = vpack.c.bf16 %v3577, %v3575
      %v3624 = vpack.c.bf16 %v3578, %v3576
      %v3625 = vpack.c.bf16 %v3581, %v3579
      %v3626 = vpack.c.bf16 %v3582, %v3580
      %v3627 = vpack.c.bf16 %v3585, %v3583
      %v3628 = vpack.c.bf16 %v3586, %v3584
      %v3629 = vpack.c.bf16 %v3589, %v3587
      %v3630 = vpack.c.bf16 %v3590, %v3588
      %v3631 = vpack.c.bf16 %v3593, %v3591
      %v3632 = vpack.c.bf16 %v3594, %v3592
      %v3633 = vpack.c.bf16 %v3597, %v3595
      %v3634 = vpack.c.bf16 %v3598, %v3596
      %v3635 = vpack.c.bf16 %v3601, %v3599
      %v3636 = vpack.c.bf16 %v3602, %v3600
      %v3637 = vpack.c.bf16 %v3605, %v3603
      %v3638 = vpack.c.bf16 %v3606, %v3604
      %v3671 = vunpack.c.l.b16 %v3607
      %v3672 = vunpack.c.l.b16 %v3608
      %v3673 = vunpack.c.h.b16 %v3607
      %v3674 = vunpack.c.h.b16 %v3608
      %v3675 = vunpack.c.l.b16 %v3609
      %v3676 = vunpack.c.l.b16 %v3610
      %v3677 = vunpack.c.h.b16 %v3609
      %v3678 = vunpack.c.h.b16 %v3610
      %v3679 = vunpack.c.l.b16 %v3611
      %v3680 = vunpack.c.l.b16 %v3612
      %v3681 = vunpack.c.h.b16 %v3611
      %v3682 = vunpack.c.h.b16 %v3612
      %v3683 = vunpack.c.l.b16 %v3613
      %v3684 = vunpack.c.l.b16 %v3614
      %v3685 = vunpack.c.h.b16 %v3613
      %v3686 = vunpack.c.h.b16 %v3614
      %v3687 = vunpack.c.l.b16 %v3615
      %v3688 = vunpack.c.l.b16 %v3616
      %v3689 = vunpack.c.h.b16 %v3615
      %v3690 = vunpack.c.h.b16 %v3616
      %v3691 = vunpack.c.l.b16 %v3617
      %v3692 = vunpack.c.l.b16 %v3618
      %v3693 = vunpack.c.h.b16 %v3617
      %v3694 = vunpack.c.h.b16 %v3618
      %v3695 = vunpack.c.l.b16 %v3619
      %v3696 = vunpack.c.l.b16 %v3620
      %v3697 = vunpack.c.h.b16 %v3619
      %v3698 = vunpack.c.h.b16 %v3620
      %v3699 = vunpack.c.l.b16 %v3621
      %v3700 = vunpack.c.l.b16 %v3622
      %v3701 = vunpack.c.h.b16 %v3621
      %v3702 = vunpack.c.h.b16 %v3622
      %v3703 = vunpack.c.l.b16 %v3623
      %v3704 = vunpack.c.l.b16 %v3624
      %v3705 = vunpack.c.h.b16 %v3623
      %v3706 = vunpack.c.h.b16 %v3624
      %v3707 = vunpack.c.l.b16 %v3625
      %v3708 = vunpack.c.l.b16 %v3626
      %v3709 = vunpack.c.h.b16 %v3625
      %v3710 = vunpack.c.h.b16 %v3626
      %v3711 = vunpack.c.l.b16 %v3627
      %v3712 = vunpack.c.l.b16 %v3628
      %v3713 = vunpack.c.h.b16 %v3627
      %v3714 = vunpack.c.h.b16 %v3628
      %v3715 = vunpack.c.l.b16 %v3629
      %v3716 = vunpack.c.l.b16 %v3630
      %v3717 = vunpack.c.h.b16 %v3629
      %v3718 = vunpack.c.h.b16 %v3630
      %v3719 = vunpack.c.l.b16 %v3631
      %v3720 = vunpack.c.l.b16 %v3632
      %v3721 = vunpack.c.h.b16 %v3631
      %v3722 = vunpack.c.h.b16 %v3632
      %v3723 = vunpack.c.l.b16 %v3633
      %v3724 = vunpack.c.l.b16 %v3634
      %v3725 = vunpack.c.h.b16 %v3633
      %v3726 = vunpack.c.h.b16 %v3634
      %v3727 = vunpack.c.l.b16 %v3635
      %v3728 = vunpack.c.l.b16 %v3636
      %v3729 = vunpack.c.h.b16 %v3635
      %v3730 = vunpack.c.h.b16 %v3636
      %v3731 = vunpack.c.l.b16 %v3637
      %v3732 = vunpack.c.l.b16 %v3638
      %v3733 = vunpack.c.h.b16 %v3637
      %v3734 = vunpack.c.h.b16 %v3638
      %v3735 = vpack.c.b16 %v3672, %v3671
      %v3736 = vpack.c.b16 %v3674, %v3673
      %v3737 = vpack.c.b16 %v3676, %v3675
      %v3738 = vpack.c.b16 %v3678, %v3677
      %v3739 = vpack.c.b16 %v3680, %v3679
      %v3740 = vpack.c.b16 %v3682, %v3681
      %v3741 = vpack.c.b16 %v3684, %v3683
      %v3742 = vpack.c.b16 %v3686, %v3685
      %v3743 = vpack.c.b16 %v3688, %v3687
      %v3744 = vpack.c.b16 %v3690, %v3689
      %v3745 = vpack.c.b16 %v3692, %v3691
      %v3746 = vpack.c.b16 %v3694, %v3693
      %v3747 = vpack.c.b16 %v3696, %v3695
      %v3748 = vpack.c.b16 %v3698, %v3697
      %v3749 = vpack.c.b16 %v3700, %v3699
      %v3750 = vpack.c.b16 %v3702, %v3701
      %v3751 = vpack.c.b16 %v3704, %v3703
      %v3752 = vpack.c.b16 %v3706, %v3705
      %v3753 = vpack.c.b16 %v3708, %v3707
      %v3754 = vpack.c.b16 %v3710, %v3709
      %v3755 = vpack.c.b16 %v3712, %v3711
      %v3756 = vpack.c.b16 %v3714, %v3713
      %v3757 = vpack.c.b16 %v3716, %v3715
      %v3758 = vpack.c.b16 %v3718, %v3717
      %v3759 = vpack.c.b16 %v3720, %v3719
      %v3760 = vpack.c.b16 %v3722, %v3721
      %v3761 = vpack.c.b16 %v3724, %v3723
      %v3762 = vpack.c.b16 %v3726, %v3725
      %v3763 = vpack.c.b16 %v3728, %v3727
      %v3764 = vpack.c.b16 %v3730, %v3729
      %v3765 = vpack.c.b16 %v3732, %v3731
      %v3766 = vpack.c.b16 %v3734, %v3733
      %3799 = vst [vmem:[%s240] sm:$0xff] %v3735
      %3800 = vst [vmem:[%s240 + $0x8] sm:$0xff] %v3736
      %3801 = vst [vmem:[%s240 + $0x10] sm:$0xff] %v3737
      %3802 = vst [vmem:[%s240 + $0x18] sm:$0xff] %v3738
      %3803 = vst [vmem:[%s240 + $0x20] sm:$0xff] %v3739
      %3804 = vst [vmem:[%s240 + $0x28] sm:$0xff] %v3740
      %3805 = vst [vmem:[%s240 + $0x30] sm:$0xff] %v3741
      %3806 = vst [vmem:[%s240 + $0x38] sm:$0xff] %v3742
      %3807 = vst [vmem:[%s240 + $0x40] sm:$0xff] %v3743
      %3808 = vst [vmem:[%s240 + $0x48] sm:$0xff] %v3744
      %3809 = vst [vmem:[%s240 + $0x50] sm:$0xff] %v3745
      %3810 = vst [vmem:[%s240 + $0x58] sm:$0xff] %v3746
      %3811 = vst [vmem:[%s240 + $0x60] sm:$0xff] %v3747
      %3812 = vst [vmem:[%s240 + $0x68] sm:$0xff] %v3748
      %3813 = vst [vmem:[%s240 + $0x70] sm:$0xff] %v3749
      %3814 = vst [vmem:[%s240 + $0x78] sm:$0xff] %v3750
      %3815 = vst [vmem:[%s240 + $0x80] sm:$0xff] %v3751
      %3816 = vst [vmem:[%s240 + $0x88] sm:$0xff] %v3752
      %3817 = vst [vmem:[%s240 + $0x90] sm:$0xff] %v3753
      %3818 = vst [vmem:[%s240 + $0x98] sm:$0xff] %v3754
      %3819 = vst [vmem:[%s240 + $0xa0] sm:$0xff] %v3755
      %3820 = vst [vmem:[%s240 + $0xa8] sm:$0xff] %v3756
      %3821 = vst [vmem:[%s240 + $0xb0] sm:$0xff] %v3757
      %3822 = vst [vmem:[%s240 + $0xb8] sm:$0xff] %v3758
      %3823 = vst [vmem:[%s240 + $0xc0] sm:$0xff] %v3759
      %3824 = vst [vmem:[%s240 + $0xc8] sm:$0xff] %v3760
      %3825 = vst [vmem:[%s240 + $0xd0] sm:$0xff] %v3761
      %3826 = vst [vmem:[%s240 + $0xd8] sm:$0xff] %v3762
      %3827 = vst [vmem:[%s240 + $0xe0] sm:$0xff] %v3763
      %3828 = vst [vmem:[%s240 + $0xe8] sm:$0xff] %v3764
      %3829 = vst [vmem:[%s240 + $0xf0] sm:$0xff] %v3765
      %3830 = vst [vmem:[%s240 + $0xf8] sm:$0xff] %v3766
      %s3831 = smul.u32 32, %s18
      %s3832 = smul.u32 2, %s19
      %p3833 = scmp.lt.s32.totalorder %s3831, 63
      %s3834 = scalar_select %p3833, %s3831, 63
      %p3835 = scmp.lt.s32.totalorder %s3832, 1
      %s3836 = scalar_select %p3835, %s3832, 1
      %s3837 = smul.addr %s3834, 2
      %s3838 = sadd.s32 %s3836, %s3837
      %s3839 = smul.addr %s3838, 4
      %s3840 = scalar_lea.vmem %s3, %s3839
      // Predicated region
      $region33: #{inception_block_d.8} parent=31 // pred_check
        %p3841 = pneg %p124
      $region34: #{inception_block_d.8} parent=31 // pred_check_branch
        %3843 = sbr.rel (%p3841) target = $region36
      $region35: #{inception_block_d.8} parent=31 // pred_region
        %s3844 = smul.u32 32, %s18
        %s3845 = smul.u32 2, %s19
      $region36: #{inception_block_d.8} parent=31 // pred_fallthru
        _
    $region32: #{inception_block_d.8} parent=5 // pred_fallthru
      _
    %p3846 = scmp.le.s32.totalorder 2, %s9
    // Predicated region
    $region37: #{inception_block_d.8} parent=5 // pred_check
      %p3847 = pneg %p3846
    $region38: #{inception_block_d.8} parent=5 // pred_check_branch
      %3849 = sbr.rel (%p3847) target = $region40
    $region39: #{inception_block_d.8} parent=5 // pred_region
      %s3850 = ssub.s32 %s9, 2
      // Predicated region
      $region41: #{inception_block_d.8} parent=39 // pred_check
        %p3851 = pneg %p130
      $region42: #{inception_block_d.8} parent=39 // pred_check_branch
        %3853 = sbr.rel (%p3851) target = $region44
      $region43: #{inception_block_d.8} parent=39 // pred_region
        %s3854 = smul.u32 32, %s20
        %s3855 = smul.u32 2, %s21
        %p3856 = scmp.lt.s32.totalorder %s3854, 63
        %s3857 = scalar_select %p3856, %s3854, 63
        %p3858 = scmp.lt.s32.totalorder %s3855, 1
        %s3859 = scalar_select %p3858, %s3855, 1
        %s3860 = smul.addr %s3857, 2
        %s3861 = sadd.s32 %s3859, %s3860
        %s3862 = smul.addr %s3861, 4
        %s3863 = scalar_lea.vmem %s3, %s3862
      $region44: #{inception_block_d.8} parent=39 // pred_fallthru
        _
    $region40: #{inception_block_d.8} parent=5 // pred_fallthru
      _
  $region6: #{inception_block_d.8} parent=0 // loop_footer
    %s13 = sadd.s32 1, %s9
  $region7: #{inception_block_d.8} parent=0 // loop_footer_branch
    %8 = sbr.rel target = $region3
  $region8: #{inception_block_d.8} parent=0 // loop_exit
    _

// kernel: inception_block_d.10
$region0: #{inception_block_d.10}
  #allocation0 [shape = 'u32[]', space=smem, size = 0x4, offset = 0x4, fixed_abs, tag = 'smem constant byte address 0x4 - core index']
  #allocation1 [shape = 'u32[144,128]{1,0:T(1,128)}', space=vmem, size = 0x12000, scoped, tag = 'internal scratch']
  %s0 = inlined_call_operand.vmem [shape: bf16[128,1728], index: 0, kind: input, shape index: {}]
  %s1 = inlined_call_operand.vmem [shape: bf16[1728,256], index: 1, kind: input, shape index: {}]
  %s2 = inlined_call_operand.vmem [shape: f32[1,256], index: 2, kind: input, shape index: {}]
  %s3 = inlined_call_operand.vmem [shape: f32[128,256], index: 3, kind: output, shape index: {}]
  %s4 = sld [smem:[#allocation0]]
  $region45: #{inception_block_d.10} parent=0
    _
  %s6 = ssub.s32 1, %s4
  %s7 = scalar_select 0, %s6, %s4
  loop: start=0, step=1, limit=4
  $region2: #{inception_block_d.10} parent=0 // loop_pre_header
    _
  $region3: #{inception_block_d.10} parent=0 // loop_header
    %s9 = sphi 0, %s13
    %p10 = scmp.ge.s32.totalorder %s9, 4
    %s16 = sphi 0, %s28
    %s17 = sphi 0, %s24
    %s18 = sphi 0, %s16
    %s19 = sphi 0, %s17
    %s20 = sphi 0, %s18
    %s21 = sphi 0, %s19
    %s31 = sphi 0, %s33
    %s34 = sphi 0, %s31
    %s35 = sphi 0, %s34
    %s51 = sphi 0, %s35
    %s57 = sphi 0, %s59
    %s60 = sphi 0, %s57
    %s61 = sphi 0, %s60
    %s77 = sphi 0, %s61
    %s83 = sphi 0, %s85
    %s86 = sphi 0, %s83
    %s87 = sphi 0, %s86
    %s103 = sphi 0, %s87
    %s111 = sphi 0, %s113
    %s114 = sphi 0, %s111
    %s115 = sphi 0, %s114
    %s131 = sphi 0, %s115
  $region4: #{inception_block_d.10} parent=0 // loop_header_branch
    %12 = sbr.rel (%p10) target = $region8
  $region5: #{inception_block_d.10} parent=0 // loop_body
    %s14 = ssub.s32 %s9, 1
    %s15 = ssub.s32 %s9, 2
    %s22 = sadd.s32 1, %s17
    %p23 = scmp.ge.s32.totalorder %s22, 1
    %s24 = scalar_select %p23, 0, %s22
    %s25 = sadd.s32 1, %s16
    %s26 = scalar_select %p23, %s25, %s16
    %p27 = scmp.ge.s32.totalorder %s26, 2
    %s28 = scalar_select %p27, 0, %s26
    %s29 = ssub.s32 %s16, %s28
    %p30 = scmp.eq.s32.totalorder %s29, 0
    %s32 = sadd.s32 %s31, 1
    %s33 = scalar_select %p30, %s31, %s32
    %p36 = pneg %p30
    %p37 = scmp.eq.s32.totalorder %s9, 1
    %p38 = por %p36, %p37
    %p39 = scmp.ne.s32.totalorder %s31, %s34
    %p40 = scmp.eq.s32.totalorder %s9, 0
    %p41 = por %p39, %p40
    %p42 = scmp.ne.s32.totalorder %s31, %s34
    %p43 = scmp.eq.s32.totalorder %s14, 1
    %p44 = por %p42, %p43
    %p45 = scmp.ne.s32.totalorder %s34, %s35
    %p46 = scmp.eq.s32.totalorder %s14, 0
    %p47 = por %p45, %p46
    %p48 = scmp.ne.s32.totalorder %s34, %s35
    %p49 = scmp.eq.s32.totalorder %s15, 1
    %p50 = por %p48, %p49
    %p52 = scmp.ne.s32.totalorder %s35, %s51
    %p53 = scmp.eq.s32.totalorder %s15, 0
    %p54 = por %p52, %p53
    %s55 = ssub.s32 %s17, %s24
    %p56 = scmp.eq.s32.totalorder %s55, 0
    %s58 = sadd.s32 %s57, 1
    %s59 = scalar_select %p56, %s57, %s58
    %p62 = pneg %p56
    %p63 = scmp.eq.s32.totalorder %s9, 1
    %p64 = por %p62, %p63
    %p65 = scmp.ne.s32.totalorder %s57, %s60
    %p66 = scmp.eq.s32.totalorder %s9, 0
    %p67 = por %p65, %p66
    %p68 = scmp.ne.s32.totalorder %s57, %s60
    %p69 = scmp.eq.s32.totalorder %s14, 1
    %p70 = por %p68, %p69
    %p71 = scmp.ne.s32.totalorder %s60, %s61
    %p72 = scmp.eq.s32.totalorder %s14, 0
    %p73 = por %p71, %p72
    %p74 = scmp.ne.s32.totalorder %s60, %s61
    %p75 = scmp.eq.s32.totalorder %s15, 1
    %p76 = por %p74, %p75
    %p78 = scmp.ne.s32.totalorder %s61, %s77
    %p79 = scmp.eq.s32.totalorder %s15, 0
    %p80 = por %p78, %p79
    %s81 = ssub.s32 %s17, %s24
    %p82 = scmp.eq.s32.totalorder %s81, 0
    %s84 = sadd.s32 %s83, 1
    %s85 = scalar_select %p82, %s83, %s84
    %p88 = pneg %p82
    %p89 = scmp.eq.s32.totalorder %s9, 1
    %p90 = por %p88, %p89
    %p91 = scmp.ne.s32.totalorder %s83, %s86
    %p92 = scmp.eq.s32.totalorder %s9, 0
    %p93 = por %p91, %p92
    %p94 = scmp.ne.s32.totalorder %s83, %s86
    %p95 = scmp.eq.s32.totalorder %s14, 1
    %p96 = por %p94, %p95
    %p97 = scmp.ne.s32.totalorder %s86, %s87
    %p98 = scmp.eq.s32.totalorder %s14, 0
    %p99 = por %p97, %p98
    %p100 = scmp.ne.s32.totalorder %s86, %s87
    %p101 = scmp.eq.s32.totalorder %s15, 1
    %p102 = por %p100, %p101
    %p104 = scmp.ne.s32.totalorder %s87, %s103
    %p105 = scmp.eq.s32.totalorder %s15, 0
    %p106 = por %p104, %p105
    %s107 = ssub.s32 %s16, %s28
    %s108 = ssub.s32 %s17, %s24
    %s109 = sor.u32 %s107, %s108
    %p110 = scmp.eq.s32.totalorder %s109, 0
    %s112 = sadd.s32 %s111, 1
    %s113 = scalar_select %p110, %s111, %s112
    %p116 = pneg %p110
    %p117 = scmp.eq.s32.totalorder %s9, 1
    %p118 = por %p116, %p117
    %p119 = scmp.ne.s32.totalorder %s111, %s114
    %p120 = scmp.eq.s32.totalorder %s9, 0
    %p121 = por %p119, %p120
    %p122 = scmp.ne.s32.totalorder %s111, %s114
    %p123 = scmp.eq.s32.totalorder %s14, 1
    %p124 = por %p122, %p123
    %p125 = scmp.ne.s32.totalorder %s114, %s115
    %p126 = scmp.eq.s32.totalorder %s14, 0
    %p127 = por %p125, %p126
    %p128 = scmp.ne.s32.totalorder %s114, %s115
    %p129 = scmp.eq.s32.totalorder %s15, 1
    %p130 = por %p128, %p129
    %p132 = scmp.ne.s32.totalorder %s115, %s131
    %p133 = scmp.eq.s32.totalorder %s15, 0
    %p134 = por %p132, %p133
    %p135 = scmp.le.s32.totalorder 1, %s9
    %p136 = scmp.lt.s32.totalorder %s9, 3
    %p137 = pnand %p135, %p136
    %p138 = pneg %p137
    // Predicated region
    $region9: #{inception_block_d.10} parent=5 // pred_check
      _
    $region10: #{inception_block_d.10} parent=5 // pred_check_branch
      %140 = sbr.rel (%p137) target = $region12
    $region11: #{inception_block_d.10} parent=5 // pred_region
      %s141 = ssub.s32 %s9, 1
      // Predicated region
      $region13: #{inception_block_d.10} parent=11 // pred_check
        %p142 = pneg %p73
      $region14: #{inception_block_d.10} parent=11 // pred_check_branch
        %144 = sbr.rel (%p142) target = $region16
      $region15: #{inception_block_d.10} parent=11 // pred_region
        %s145 = smul.u32 2, %s19
        %p146 = scmp.lt.s32.totalorder %s145, 1
        %s147 = scalar_select %p146, %s145, 1
        %s148 = smul.addr %s147, 4
        %s149 = scalar_lea.vmem %s1, %s148
        %s150 = smul.u32 2, %s19
      $region16: #{inception_block_d.10} parent=11 // pred_fallthru
        _
      // Predicated region
      $region17: #{inception_block_d.10} parent=11 // pred_check
        %p151 = pneg %p99
      $region18: #{inception_block_d.10} parent=11 // pred_check_branch
        %153 = sbr.rel (%p151) target = $region20
      $region19: #{inception_block_d.10} parent=11 // pred_region
        %s154 = smul.u32 2, %s19
        %p155 = scmp.lt.s32.totalorder %s154, 1
        %s156 = scalar_select %p155, %s154, 1
        %s157 = scalar_lea.vmem %s2, %s156
        %s158 = smul.u32 2, %s19
      $region20: #{inception_block_d.10} parent=11 // pred_fallthru
        _
    $region12: #{inception_block_d.10} parent=5 // pred_fallthru
      _
    %p159 = scmp.lt.s32.totalorder %s9, 2
    // Predicated region
    $region21: #{inception_block_d.10} parent=5 // pred_check
      %p160 = pneg %p159
    $region22: #{inception_block_d.10} parent=5 // pred_check_branch
      %162 = sbr.rel (%p160) target = $region24
    $region23: #{inception_block_d.10} parent=5 // pred_region
      // Predicated region
      $region25: #{inception_block_d.10} parent=23 // pred_check
        %p163 = pneg %p41
      $region26: #{inception_block_d.10} parent=23 // pred_check_branch
        %165 = sbr.rel (%p163) target = $region28
      $region27: #{inception_block_d.10} parent=23 // pred_region
        %s166 = smul.u32 8, %s16
        %p167 = scmp.lt.s32.totalorder %s166, 15
        %s168 = scalar_select %p167, %s166, 15
        %s169 = smul.addr %s168, 14
        %s170 = smul.addr %s169, 4
        %s171 = scalar_lea.vmem %s0, %s170
        %s172 = smul.u32 8, %s16
      $region28: #{inception_block_d.10} parent=23 // pred_fallthru
        _
    $region24: #{inception_block_d.10} parent=5 // pred_fallthru
      _
    %p173 = scmp.le.s32.totalorder 1, %s9
    %p174 = scmp.lt.s32.totalorder %s9, 3
    %p175 = pnand %p173, %p174
    %p176 = pneg %p175
    // Predicated region
    $region29: #{inception_block_d.10} parent=5 // pred_check
      _
    $region30: #{inception_block_d.10} parent=5 // pred_check_branch
      %178 = sbr.rel (%p175) target = $region32
    $region31: #{inception_block_d.10} parent=5 // pred_region
      %s179 = ssub.s32 %s9, 1
      %s180 = smul.u32 8, %s18
      %p181 = scmp.lt.s32.totalorder %s180, 15
      %s182 = scalar_select %p181, %s180, 15
      %s183 = smul.addr %s182, 14
      %s184 = smul.addr %s183, 4
      %s185 = scalar_lea.vmem %s0, %s184
      %p186 = pneg %p47
      %p187 = pneg %p44
      %s188 = smul.u32 2, %s19
      %p189 = scmp.lt.s32.totalorder %s188, 1
      %s190 = scalar_select %p189, %s188, 1
      %s191 = smul.addr %s190, 4
      %s192 = scalar_lea.vmem %s1, %s191
      %p193 = pneg %p73
      %p194 = pneg %p70
      %s195 = smul.u32 2, %s19
      %p196 = scmp.lt.s32.totalorder %s195, 1
      %s197 = scalar_select %p196, %s195, 1
      %s198 = scalar_lea.vmem %s2, %s197
      %p199 = pneg %p99
      %p200 = pneg %p96
      %p201 = pneg %p127
      %p202 = pneg %p124
      %s203 = smul.u32 8, %s18
      %s204 = smul.u32 2, %s19
      %p205 = scmp.lt.s32.totalorder %s203, 15
      %s206 = scalar_select %p205, %s203, 15
      %p207 = scmp.lt.s32.totalorder %s204, 1
      %s208 = scalar_select %p207, %s204, 1
      %s209 = smul.addr %s206, 2
      %s210 = sadd.s32 %s208, %s209
      %s211 = smul.addr %s210, 8
      %s212 = scalar_lea.vmem %s3, %s211
      %s213 = smul.u32 8, %s18
      %p214 = scmp.lt.s32.totalorder %s213, 15
      %s215 = scalar_select %p214, %s213, 15
      %s216 = smul.addr %s215, 14
      %s217 = smul.addr %s216, 4
      %s218 = scalar_lea.vmem %s0, %s217
      %s219 = smul.u32 8, %s18
      %s220 = smul.u32 2, %s19
      %p221 = scmp.lt.s32.totalorder %s220, 1
      %s222 = scalar_select %p221, %s220, 1
      %s223 = smul.addr %s222, 4
      %s224 = scalar_lea.vmem %s1, %s223
      %s225 = smul.u32 2, %s19
      %s226 = smul.u32 2, %s19
      %p227 = scmp.lt.s32.totalorder %s226, 1
      %s228 = scalar_select %p227, %s226, 1
      %s229 = scalar_lea.vmem %s2, %s228
      %s230 = smul.u32 2, %s19
      %s231 = smul.u32 8, %s18
      %s232 = smul.u32 2, %s19
      %p233 = scmp.lt.s32.totalorder %s231, 15
      %s234 = scalar_select %p233, %s231, 15
      %p235 = scmp.lt.s32.totalorder %s232, 1
      %s236 = scalar_select %p235, %s232, 1
      %s237 = smul.addr %s234, 2
      %s238 = sadd.s32 %s236, %s237
      %s239 = smul.addr %s238, 8
      %s240 = scalar_lea.vmem %s3, %s239
      %s241 = smul.u32 8, %s18
      %s242 = smul.u32 2, %s19
      %v244 = vld [vmem:[%s218] sm:$0xff]
      %v245 = vld [vmem:[%s218 + $0x8] sm:$0xff]
      %v246 = vld [vmem:[%s218 + $0x10] sm:$0xff]
      %v247 = vld [vmem:[%s218 + $0x18] sm:$0xff]
      %v248 = vld [vmem:[%s218 + $0x20] sm:$0xff]
      %v249 = vld [vmem:[%s218 + $0x28] sm:$0xff]
      %v250 = vld [vmem:[%s218 + $0x30] sm:$0xff]
      %v251 = vld [vmem:[%s218 + $0x38] sm:$0xff]
      %v252 = vld [vmem:[%s218 + $0x40] sm:$0xff]
      %v253 = vld [vmem:[%s218 + $0x48] sm:$0xff]
      %v254 = vld [vmem:[%s218 + $0x50] sm:$0xff]
      %v255 = vld [vmem:[%s218 + $0x58] sm:$0xff]
      %v256 = vld [vmem:[%s218 + $0x60] sm:$0xff]
      %v257 = vld [vmem:[%s218 + $0x68] sm:$0xff]
      %v258 = vld [vmem:[%s218 + $0x70] sm:$0xff]
      %v259 = vld [vmem:[%s218 + $0x78] sm:$0xff]
      %v260 = vld [vmem:[%s218 + $0x80] sm:$0xff]
      %v261 = vld [vmem:[%s218 + $0x88] sm:$0xff]
      %v262 = vld [vmem:[%s218 + $0x90] sm:$0xff]
      %v263 = vld [vmem:[%s218 + $0x98] sm:$0xff]
      %v264 = vld [vmem:[%s218 + $0xa0] sm:$0xff]
      %v265 = vld [vmem:[%s218 + $0xa8] sm:$0xff]
      %v266 = vld [vmem:[%s218 + $0xb0] sm:$0xff]
      %v267 = vld [vmem:[%s218 + $0xb8] sm:$0xff]
      %v268 = vld [vmem:[%s218 + $0xc0] sm:$0xff]
      %v269 = vld [vmem:[%s218 + $0xc8] sm:$0xff]
      %v270 = vld [vmem:[%s218 + $0xd0] sm:$0xff]
      %v271 = vld [vmem:[%s218 + $0xd8] sm:$0xff]
      %v272 = vld [vmem:[%s218 + $0xe0] sm:$0xff]
      %v273 = vld [vmem:[%s218 + $0xe8] sm:$0xff]
      %v274 = vld [vmem:[%s218 + $0xf0] sm:$0xff]
      %v275 = vld [vmem:[%s218 + $0xf8] sm:$0xff]
      %v276 = vld [vmem:[%s218 + $0x100] sm:$0xff]
      %v277 = vld [vmem:[%s218 + $0x108] sm:$0xff]
      %v278 = vld [vmem:[%s218 + $0x110] sm:$0xff]
      %v279 = vld [vmem:[%s218 + $0x118] sm:$0xff]
      %v280 = vld [vmem:[%s218 + $0x120] sm:$0xff]
      %v281 = vld [vmem:[%s218 + $0x128] sm:$0xff]
      %v282 = vld [vmem:[%s218 + $0x130] sm:$0xff]
      %v283 = vld [vmem:[%s218 + $0x138] sm:$0xff]
      %v284 = vld [vmem:[%s218 + $0x140] sm:$0xff]
      %v285 = vld [vmem:[%s218 + $0x148] sm:$0xff]
      %v286 = vld [vmem:[%s218 + $0x150] sm:$0xff]
      %v287 = vld [vmem:[%s218 + $0x158] sm:$0xff]
      %v288 = vld [vmem:[%s218 + $0x160] sm:$0xff]
      %v289 = vld [vmem:[%s218 + $0x168] sm:$0xff]
      %v290 = vld [vmem:[%s218 + $0x170] sm:$0xff]
      %v291 = vld [vmem:[%s218 + $0x178] sm:$0xff]
      %v292 = vld [vmem:[%s218 + $0x180] sm:$0xff]
      %v293 = vld [vmem:[%s218 + $0x188] sm:$0xff]
      %v294 = vld [vmem:[%s218 + $0x190] sm:$0xff]
      %v295 = vld [vmem:[%s218 + $0x198] sm:$0xff]
      %v296 = vld [vmem:[%s218 + $0x1a0] sm:$0xff]
      %v297 = vld [vmem:[%s218 + $0x1a8] sm:$0xff]
      %v298 = vld [vmem:[%s218 + $0x1b0] sm:$0xff]
      %v299 = vld [vmem:[%s218 + $0x1b8] sm:$0xff]
      %v300 = vld [vmem:[%s224] sm:$0xff]
      %v301 = vld [vmem:[%s224 + $0x8] sm:$0xff]
      %v302 = vld [vmem:[%s224 + $0x10] sm:$0xff]
      %v303 = vld [vmem:[%s224 + $0x18] sm:$0xff]
      %v304 = vld [vmem:[%s224 + $0x20] sm:$0xff]
      %v305 = vld [vmem:[%s224 + $0x28] sm:$0xff]
      %v306 = vld [vmem:[%s224 + $0x30] sm:$0xff]
      %v307 = vld [vmem:[%s224 + $0x38] sm:$0xff]
      %v308 = vld [vmem:[%s224 + $0x40] sm:$0xff]
      %v309 = vld [vmem:[%s224 + $0x48] sm:$0xff]
      %v310 = vld [vmem:[%s224 + $0x50] sm:$0xff]
      %v311 = vld [vmem:[%s224 + $0x58] sm:$0xff]
      %v312 = vld [vmem:[%s224 + $0x60] sm:$0xff]
      %v313 = vld [vmem:[%s224 + $0x68] sm:$0xff]
      %v314 = vld [vmem:[%s224 + $0x70] sm:$0xff]
      %v315 = vld [vmem:[%s224 + $0x78] sm:$0xff]
      %v316 = vld [vmem:[%s224 + $0x80] sm:$0xff]
      %v317 = vld [vmem:[%s224 + $0x88] sm:$0xff]
      %v318 = vld [vmem:[%s224 + $0x90] sm:$0xff]
      %v319 = vld [vmem:[%s224 + $0x98] sm:$0xff]
      %v320 = vld [vmem:[%s224 + $0xa0] sm:$0xff]
      %v321 = vld [vmem:[%s224 + $0xa8] sm:$0xff]
      %v322 = vld [vmem:[%s224 + $0xb0] sm:$0xff]
      %v323 = vld [vmem:[%s224 + $0xb8] sm:$0xff]
      %v324 = vld [vmem:[%s224 + $0xc0] sm:$0xff]
      %v325 = vld [vmem:[%s224 + $0xc8] sm:$0xff]
      %v326 = vld [vmem:[%s224 + $0xd0] sm:$0xff]
      %v327 = vld [vmem:[%s224 + $0xd8] sm:$0xff]
      %v328 = vld [vmem:[%s224 + $0xe0] sm:$0xff]
      %v329 = vld [vmem:[%s224 + $0xe8] sm:$0xff]
      %v330 = vld [vmem:[%s224 + $0xf0] sm:$0xff]
      %v331 = vld [vmem:[%s224 + $0xf8] sm:$0xff]
      %v332 = vld [vmem:[%s224 + $0x100] sm:$0xff]
      %v333 = vld [vmem:[%s224 + $0x108] sm:$0xff]
      %v334 = vld [vmem:[%s224 + $0x110] sm:$0xff]
      %v335 = vld [vmem:[%s224 + $0x118] sm:$0xff]
      %v336 = vld [vmem:[%s224 + $0x120] sm:$0xff]
      %v337 = vld [vmem:[%s224 + $0x128] sm:$0xff]
      %v338 = vld [vmem:[%s224 + $0x130] sm:$0xff]
      %v339 = vld [vmem:[%s224 + $0x138] sm:$0xff]
      %v340 = vld [vmem:[%s224 + $0x140] sm:$0xff]
      %v341 = vld [vmem:[%s224 + $0x148] sm:$0xff]
      %v342 = vld [vmem:[%s224 + $0x150] sm:$0xff]
      %v343 = vld [vmem:[%s224 + $0x158] sm:$0xff]
      %v344 = vld [vmem:[%s224 + $0x160] sm:$0xff]
      %v345 = vld [vmem:[%s224 + $0x168] sm:$0xff]
      %v346 = vld [vmem:[%s224 + $0x170] sm:$0xff]
      %v347 = vld [vmem:[%s224 + $0x178] sm:$0xff]
      %v348 = vld [vmem:[%s224 + $0x180] sm:$0xff]
      %v349 = vld [vmem:[%s224 + $0x188] sm:$0xff]
      %v350 = vld [vmem:[%s224 + $0x190] sm:$0xff]
      %v351 = vld [vmem:[%s224 + $0x198] sm:$0xff]
      %v352 = vld [vmem:[%s224 + $0x1a0] sm:$0xff]
      %v353 = vld [vmem:[%s224 + $0x1a8] sm:$0xff]
      %v354 = vld [vmem:[%s224 + $0x1b0] sm:$0xff]
      %v355 = vld [vmem:[%s224 + $0x1b8] sm:$0xff]
      %v356 = vld [vmem:[%s224 + $0x1c0] sm:$0xff]
      %v357 = vld [vmem:[%s224 + $0x1c8] sm:$0xff]
      %v358 = vld [vmem:[%s224 + $0x1d0] sm:$0xff]
      %v359 = vld [vmem:[%s224 + $0x1d8] sm:$0xff]
      %v360 = vld [vmem:[%s224 + $0x1e0] sm:$0xff]
      %v361 = vld [vmem:[%s224 + $0x1e8] sm:$0xff]
      %v362 = vld [vmem:[%s224 + $0x1f0] sm:$0xff]
      %v363 = vld [vmem:[%s224 + $0x1f8] sm:$0xff]
      %v364 = vld [vmem:[%s224 + $0x200] sm:$0xff]
      %v365 = vld [vmem:[%s224 + $0x208] sm:$0xff]
      %v366 = vld [vmem:[%s224 + $0x210] sm:$0xff]
      %v367 = vld [vmem:[%s224 + $0x218] sm:$0xff]
      %v368 = vld [vmem:[%s224 + $0x220] sm:$0xff]
      %v369 = vld [vmem:[%s224 + $0x228] sm:$0xff]
      %v370 = vld [vmem:[%s224 + $0x230] sm:$0xff]
      %v371 = vld [vmem:[%s224 + $0x238] sm:$0xff]
      %v372 = vld [vmem:[%s224 + $0x240] sm:$0xff]
      %v373 = vld [vmem:[%s224 + $0x248] sm:$0xff]
      %v374 = vld [vmem:[%s224 + $0x250] sm:$0xff]
      %v375 = vld [vmem:[%s224 + $0x258] sm:$0xff]
      %v376 = vld [vmem:[%s224 + $0x260] sm:$0xff]
      %v377 = vld [vmem:[%s224 + $0x268] sm:$0xff]
      %v378 = vld [vmem:[%s224 + $0x270] sm:$0xff]
      %v379 = vld [vmem:[%s224 + $0x278] sm:$0xff]
      %v380 = vld [vmem:[%s224 + $0x280] sm:$0xff]
      %v381 = vld [vmem:[%s224 + $0x288] sm:$0xff]
      %v382 = vld [vmem:[%s224 + $0x290] sm:$0xff]
      %v383 = vld [vmem:[%s224 + $0x298] sm:$0xff]
      %v384 = vld [vmem:[%s224 + $0x2a0] sm:$0xff]
      %v385 = vld [vmem:[%s224 + $0x2a8] sm:$0xff]
      %v386 = vld [vmem:[%s224 + $0x2b0] sm:$0xff]
      %v387 = vld [vmem:[%s224 + $0x2b8] sm:$0xff]
      %v388 = vld [vmem:[%s224 + $0x2c0] sm:$0xff]
      %v389 = vld [vmem:[%s224 + $0x2c8] sm:$0xff]
      %v390 = vld [vmem:[%s224 + $0x2d0] sm:$0xff]
      %v391 = vld [vmem:[%s224 + $0x2d8] sm:$0xff]
      %v392 = vld [vmem:[%s224 + $0x2e0] sm:$0xff]
      %v393 = vld [vmem:[%s224 + $0x2e8] sm:$0xff]
      %v394 = vld [vmem:[%s224 + $0x2f0] sm:$0xff]
      %v395 = vld [vmem:[%s224 + $0x2f8] sm:$0xff]
      %v396 = vld [vmem:[%s224 + $0x300] sm:$0xff]
      %v397 = vld [vmem:[%s224 + $0x308] sm:$0xff]
      %v398 = vld [vmem:[%s224 + $0x310] sm:$0xff]
      %v399 = vld [vmem:[%s224 + $0x318] sm:$0xff]
      %v400 = vld [vmem:[%s224 + $0x320] sm:$0xff]
      %v401 = vld [vmem:[%s224 + $0x328] sm:$0xff]
      %v402 = vld [vmem:[%s224 + $0x330] sm:$0xff]
      %v403 = vld [vmem:[%s224 + $0x338] sm:$0xff]
      %v404 = vld [vmem:[%s224 + $0x340] sm:$0xff]
      %v405 = vld [vmem:[%s224 + $0x348] sm:$0xff]
      %v406 = vld [vmem:[%s224 + $0x350] sm:$0xff]
      %v407 = vld [vmem:[%s224 + $0x358] sm:$0xff]
      %v408 = vld [vmem:[%s224 + $0x360] sm:$0xff]
      %v409 = vld [vmem:[%s224 + $0x368] sm:$0xff]
      %v410 = vld [vmem:[%s224 + $0x370] sm:$0xff]
      %v411 = vld [vmem:[%s224 + $0x378] sm:$0xff]
      %v412 = vld [vmem:[%s224 + $0x380] sm:$0xff]
      %v413 = vld [vmem:[%s224 + $0x388] sm:$0xff]
      %v414 = vld [vmem:[%s224 + $0x390] sm:$0xff]
      %v415 = vld [vmem:[%s224 + $0x398] sm:$0xff]
      %v416 = vld [vmem:[%s224 + $0x3a0] sm:$0xff]
      %v417 = vld [vmem:[%s224 + $0x3a8] sm:$0xff]
      %v418 = vld [vmem:[%s224 + $0x3b0] sm:$0xff]
      %v419 = vld [vmem:[%s224 + $0x3b8] sm:$0xff]
      %v420 = vld [vmem:[%s224 + $0x3c0] sm:$0xff]
      %v421 = vld [vmem:[%s224 + $0x3c8] sm:$0xff]
      %v422 = vld [vmem:[%s224 + $0x3d0] sm:$0xff]
      %v423 = vld [vmem:[%s224 + $0x3d8] sm:$0xff]
      %v424 = vld [vmem:[%s224 + $0x3e0] sm:$0xff]
      %v425 = vld [vmem:[%s224 + $0x3e8] sm:$0xff]
      %v426 = vld [vmem:[%s224 + $0x3f0] sm:$0xff]
      %v427 = vld [vmem:[%s224 + $0x3f8] sm:$0xff]
      %v428 = vld [vmem:[%s224 + $0x400] sm:$0xff]
      %v429 = vld [vmem:[%s224 + $0x408] sm:$0xff]
      %v430 = vld [vmem:[%s224 + $0x410] sm:$0xff]
      %v431 = vld [vmem:[%s224 + $0x418] sm:$0xff]
      %v432 = vld [vmem:[%s224 + $0x420] sm:$0xff]
      %v433 = vld [vmem:[%s224 + $0x428] sm:$0xff]
      %v434 = vld [vmem:[%s224 + $0x430] sm:$0xff]
      %v435 = vld [vmem:[%s224 + $0x438] sm:$0xff]
      %v436 = vld [vmem:[%s224 + $0x440] sm:$0xff]
      %v437 = vld [vmem:[%s224 + $0x448] sm:$0xff]
      %v438 = vld [vmem:[%s224 + $0x450] sm:$0xff]
      %v439 = vld [vmem:[%s224 + $0x458] sm:$0xff]
      %v440 = vld [vmem:[%s224 + $0x460] sm:$0xff]
      %v441 = vld [vmem:[%s224 + $0x468] sm:$0xff]
      %v442 = vld [vmem:[%s224 + $0x470] sm:$0xff]
      %v443 = vld [vmem:[%s224 + $0x478] sm:$0xff]
      %v444 = vld [vmem:[%s224 + $0x480] sm:$0xff]
      %v445 = vld [vmem:[%s224 + $0x488] sm:$0xff]
      %v446 = vld [vmem:[%s224 + $0x490] sm:$0xff]
      %v447 = vld [vmem:[%s224 + $0x498] sm:$0xff]
      %v448 = vld [vmem:[%s224 + $0x4a0] sm:$0xff]
      %v449 = vld [vmem:[%s224 + $0x4a8] sm:$0xff]
      %v450 = vld [vmem:[%s224 + $0x4b0] sm:$0xff]
      %v451 = vld [vmem:[%s224 + $0x4b8] sm:$0xff]
      %v452 = vld [vmem:[%s224 + $0x4c0] sm:$0xff]
      %v453 = vld [vmem:[%s224 + $0x4c8] sm:$0xff]
      %v454 = vld [vmem:[%s224 + $0x4d0] sm:$0xff]
      %v455 = vld [vmem:[%s224 + $0x4d8] sm:$0xff]
      %v456 = vld [vmem:[%s224 + $0x4e0] sm:$0xff]
      %v457 = vld [vmem:[%s224 + $0x4e8] sm:$0xff]
      %v458 = vld [vmem:[%s224 + $0x4f0] sm:$0xff]
      %v459 = vld [vmem:[%s224 + $0x4f8] sm:$0xff]
      %v460 = vld [vmem:[%s224 + $0x500] sm:$0xff]
      %v461 = vld [vmem:[%s224 + $0x508] sm:$0xff]
      %v462 = vld [vmem:[%s224 + $0x510] sm:$0xff]
      %v463 = vld [vmem:[%s224 + $0x518] sm:$0xff]
      %v464 = vld [vmem:[%s224 + $0x520] sm:$0xff]
      %v465 = vld [vmem:[%s224 + $0x528] sm:$0xff]
      %v466 = vld [vmem:[%s224 + $0x530] sm:$0xff]
      %v467 = vld [vmem:[%s224 + $0x538] sm:$0xff]
      %v468 = vld [vmem:[%s224 + $0x540] sm:$0xff]
      %v469 = vld [vmem:[%s224 + $0x548] sm:$0xff]
      %v470 = vld [vmem:[%s224 + $0x550] sm:$0xff]
      %v471 = vld [vmem:[%s224 + $0x558] sm:$0xff]
      %v472 = vld [vmem:[%s224 + $0x560] sm:$0xff]
      %v473 = vld [vmem:[%s224 + $0x568] sm:$0xff]
      %v474 = vld [vmem:[%s224 + $0x570] sm:$0xff]
      %v475 = vld [vmem:[%s224 + $0x578] sm:$0xff]
      %v476 = vld [vmem:[%s224 + $0x580] sm:$0xff]
      %v477 = vld [vmem:[%s224 + $0x588] sm:$0xff]
      %v478 = vld [vmem:[%s224 + $0x590] sm:$0xff]
      %v479 = vld [vmem:[%s224 + $0x598] sm:$0xff]
      %v480 = vld [vmem:[%s224 + $0x5a0] sm:$0xff]
      %v481 = vld [vmem:[%s224 + $0x5a8] sm:$0xff]
      %v482 = vld [vmem:[%s224 + $0x5b0] sm:$0xff]
      %v483 = vld [vmem:[%s224 + $0x5b8] sm:$0xff]
      %v484 = vld [vmem:[%s224 + $0x5c0] sm:$0xff]
      %v485 = vld [vmem:[%s224 + $0x5c8] sm:$0xff]
      %v486 = vld [vmem:[%s224 + $0x5d0] sm:$0xff]
      %v487 = vld [vmem:[%s224 + $0x5d8] sm:$0xff]
      %v488 = vld [vmem:[%s224 + $0x5e0] sm:$0xff]
      %v489 = vld [vmem:[%s224 + $0x5e8] sm:$0xff]
      %v490 = vld [vmem:[%s224 + $0x5f0] sm:$0xff]
      %v491 = vld [vmem:[%s224 + $0x5f8] sm:$0xff]
      %v492 = vld [vmem:[%s224 + $0x600] sm:$0xff]
      %v493 = vld [vmem:[%s224 + $0x608] sm:$0xff]
      %v494 = vld [vmem:[%s224 + $0x610] sm:$0xff]
      %v495 = vld [vmem:[%s224 + $0x618] sm:$0xff]
      %v496 = vld [vmem:[%s224 + $0x620] sm:$0xff]
      %v497 = vld [vmem:[%s224 + $0x628] sm:$0xff]
      %v498 = vld [vmem:[%s224 + $0x630] sm:$0xff]
      %v499 = vld [vmem:[%s224 + $0x638] sm:$0xff]
      %v500 = vld [vmem:[%s224 + $0x640] sm:$0xff]
      %v501 = vld [vmem:[%s224 + $0x648] sm:$0xff]
      %v502 = vld [vmem:[%s224 + $0x650] sm:$0xff]
      %v503 = vld [vmem:[%s224 + $0x658] sm:$0xff]
      %v504 = vld [vmem:[%s224 + $0x660] sm:$0xff]
      %v505 = vld [vmem:[%s224 + $0x668] sm:$0xff]
      %v506 = vld [vmem:[%s224 + $0x670] sm:$0xff]
      %v507 = vld [vmem:[%s224 + $0x678] sm:$0xff]
      %v508 = vld [vmem:[%s224 + $0x680] sm:$0xff]
      %v509 = vld [vmem:[%s224 + $0x688] sm:$0xff]
      %v510 = vld [vmem:[%s224 + $0x690] sm:$0xff]
      %v511 = vld [vmem:[%s224 + $0x698] sm:$0xff]
      %v512 = vld [vmem:[%s224 + $0x6a0] sm:$0xff]
      %v513 = vld [vmem:[%s224 + $0x6a8] sm:$0xff]
      %v514 = vld [vmem:[%s224 + $0x6b0] sm:$0xff]
      %v515 = vld [vmem:[%s224 + $0x6b8] sm:$0xff]
      %v516 = vld [vmem:[%s229] sm:$0x3]
      %v518 = vlaneseq
      %v519 = vshrl.u32 %v518, 7
      %v520 = vsub.s32 0, %v519
      %v521 = vrot.slane %v516, %v520
      %v522 = vlaneseq
      %v523 = vshrl.u32 %v522, 7
      %v524 = vsub.s32 1, %v523
      %v525 = vrot.slane %v516, %v524
      %v584 = vunpack.c.l.b16 %v244
      %v585 = vunpack.c.h.b16 %v244
      %v586 = vunpack.c.l.b16 %v245
      %v587 = vunpack.c.h.b16 %v245
      %v588 = vunpack.c.l.b16 %v246
      %v589 = vunpack.c.h.b16 %v246
      %v590 = vunpack.c.l.b16 %v247
      %v591 = vunpack.c.h.b16 %v247
      %v592 = vunpack.c.l.b16 %v248
      %v593 = vunpack.c.h.b16 %v248
      %v594 = vunpack.c.l.b16 %v249
      %v595 = vunpack.c.h.b16 %v249
      %v596 = vunpack.c.l.b16 %v250
      %v597 = vunpack.c.h.b16 %v250
      %v598 = vunpack.c.l.b16 %v251
      %v599 = vunpack.c.h.b16 %v251
      %v600 = vunpack.c.l.b16 %v252
      %v601 = vunpack.c.h.b16 %v252
      %v602 = vunpack.c.l.b16 %v253
      %v603 = vunpack.c.h.b16 %v253
      %v604 = vunpack.c.l.b16 %v254
      %v605 = vunpack.c.h.b16 %v254
      %v606 = vunpack.c.l.b16 %v255
      %v607 = vunpack.c.h.b16 %v255
      %v608 = vunpack.c.l.b16 %v256
      %v609 = vunpack.c.h.b16 %v256
      %v610 = vunpack.c.l.b16 %v257
      %v611 = vunpack.c.h.b16 %v257
      %v612 = vunpack.c.l.b16 %v258
      %v613 = vunpack.c.h.b16 %v258
      %v614 = vunpack.c.l.b16 %v259
      %v615 = vunpack.c.h.b16 %v259
      %v616 = vunpack.c.l.b16 %v260
      %v617 = vunpack.c.h.b16 %v260
      %v618 = vunpack.c.l.b16 %v261
      %v619 = vunpack.c.h.b16 %v261
      %v620 = vunpack.c.l.b16 %v262
      %v621 = vunpack.c.h.b16 %v262
      %v622 = vunpack.c.l.b16 %v263
      %v623 = vunpack.c.h.b16 %v263
      %v624 = vunpack.c.l.b16 %v264
      %v625 = vunpack.c.h.b16 %v264
      %v626 = vunpack.c.l.b16 %v265
      %v627 = vunpack.c.h.b16 %v265
      %v628 = vunpack.c.l.b16 %v266
      %v629 = vunpack.c.h.b16 %v266
      %v630 = vunpack.c.l.b16 %v267
      %v631 = vunpack.c.h.b16 %v267
      %v632 = vunpack.c.l.b16 %v268
      %v633 = vunpack.c.h.b16 %v268
      %v634 = vunpack.c.l.b16 %v269
      %v635 = vunpack.c.h.b16 %v269
      %v636 = vunpack.c.l.b16 %v270
      %v637 = vunpack.c.h.b16 %v270
      %v638 = vunpack.c.l.b16 %v271
      %v639 = vunpack.c.h.b16 %v271
      %v640 = vunpack.c.l.b16 %v272
      %v641 = vunpack.c.h.b16 %v272
      %v642 = vunpack.c.l.b16 %v273
      %v643 = vunpack.c.h.b16 %v273
      %v644 = vunpack.c.l.b16 %v274
      %v645 = vunpack.c.h.b16 %v274
      %v646 = vunpack.c.l.b16 %v275
      %v647 = vunpack.c.h.b16 %v275
      %v648 = vunpack.c.l.b16 %v276
      %v649 = vunpack.c.h.b16 %v276
      %v650 = vunpack.c.l.b16 %v277
      %v651 = vunpack.c.h.b16 %v277
      %v652 = vunpack.c.l.b16 %v278
      %v653 = vunpack.c.h.b16 %v278
      %v654 = vunpack.c.l.b16 %v279
      %v655 = vunpack.c.h.b16 %v279
      %v656 = vunpack.c.l.b16 %v280
      %v657 = vunpack.c.h.b16 %v280
      %v658 = vunpack.c.l.b16 %v281
      %v659 = vunpack.c.h.b16 %v281
      %v660 = vunpack.c.l.b16 %v282
      %v661 = vunpack.c.h.b16 %v282
      %v662 = vunpack.c.l.b16 %v283
      %v663 = vunpack.c.h.b16 %v283
      %v664 = vunpack.c.l.b16 %v284
      %v665 = vunpack.c.h.b16 %v284
      %v666 = vunpack.c.l.b16 %v285
      %v667 = vunpack.c.h.b16 %v285
      %v668 = vunpack.c.l.b16 %v286
      %v669 = vunpack.c.h.b16 %v286
      %v670 = vunpack.c.l.b16 %v287
      %v671 = vunpack.c.h.b16 %v287
      %v672 = vunpack.c.l.b16 %v288
      %v673 = vunpack.c.h.b16 %v288
      %v674 = vunpack.c.l.b16 %v289
      %v675 = vunpack.c.h.b16 %v289
      %v676 = vunpack.c.l.b16 %v290
      %v677 = vunpack.c.h.b16 %v290
      %v678 = vunpack.c.l.b16 %v291
      %v679 = vunpack.c.h.b16 %v291
      %v680 = vunpack.c.l.b16 %v292
      %v681 = vunpack.c.h.b16 %v292
      %v682 = vunpack.c.l.b16 %v293
      %v683 = vunpack.c.h.b16 %v293
      %v684 = vunpack.c.l.b16 %v294
      %v685 = vunpack.c.h.b16 %v294
      %v686 = vunpack.c.l.b16 %v295
      %v687 = vunpack.c.h.b16 %v295
      %v688 = vunpack.c.l.b16 %v296
      %v689 = vunpack.c.h.b16 %v296
      %v690 = vunpack.c.l.b16 %v297
      %v691 = vunpack.c.h.b16 %v297
      %v692 = vunpack.c.l.b16 %v298
      %v693 = vunpack.c.h.b16 %v298
      %v694 = vunpack.c.l.b16 %v299
      %v695 = vunpack.c.h.b16 %v299
      %v696 = vpack.c.b16 %v598, %v584
      %v697 = vpack.c.b16 %v599, %v585
      %v698 = vpack.c.b16 %v600, %v586
      %v699 = vpack.c.b16 %v601, %v587
      %v700 = vpack.c.b16 %v602, %v588
      %v701 = vpack.c.b16 %v603, %v589
      %v702 = vpack.c.b16 %v604, %v590
      %v703 = vpack.c.b16 %v605, %v591
      %v704 = vpack.c.b16 %v606, %v592
      %v705 = vpack.c.b16 %v607, %v593
      %v706 = vpack.c.b16 %v608, %v594
      %v707 = vpack.c.b16 %v609, %v595
      %v708 = vpack.c.b16 %v610, %v596
      %v709 = vpack.c.b16 %v611, %v597
      %v710 = vpack.c.b16 %v626, %v612
      %v711 = vpack.c.b16 %v627, %v613
      %v712 = vpack.c.b16 %v628, %v614
      %v713 = vpack.c.b16 %v629, %v615
      %v714 = vpack.c.b16 %v630, %v616
      %v715 = vpack.c.b16 %v631, %v617
      %v716 = vpack.c.b16 %v632, %v618
      %v717 = vpack.c.b16 %v633, %v619
      %v718 = vpack.c.b16 %v634, %v620
      %v719 = vpack.c.b16 %v635, %v621
      %v720 = vpack.c.b16 %v636, %v622
      %v721 = vpack.c.b16 %v637, %v623
      %v722 = vpack.c.b16 %v638, %v624
      %v723 = vpack.c.b16 %v639, %v625
      %v724 = vpack.c.b16 %v654, %v640
      %v725 = vpack.c.b16 %v655, %v641
      %v726 = vpack.c.b16 %v656, %v642
      %v727 = vpack.c.b16 %v657, %v643
      %v728 = vpack.c.b16 %v658, %v644
      %v729 = vpack.c.b16 %v659, %v645
      %v730 = vpack.c.b16 %v660, %v646
      %v731 = vpack.c.b16 %v661, %v647
      %v732 = vpack.c.b16 %v662, %v648
      %v733 = vpack.c.b16 %v663, %v649
      %v734 = vpack.c.b16 %v664, %v650
      %v735 = vpack.c.b16 %v665, %v651
      %v736 = vpack.c.b16 %v666, %v652
      %v737 = vpack.c.b16 %v667, %v653
      %v738 = vpack.c.b16 %v682, %v668
      %v739 = vpack.c.b16 %v683, %v669
      %v740 = vpack.c.b16 %v684, %v670
      %v741 = vpack.c.b16 %v685, %v671
      %v742 = vpack.c.b16 %v686, %v672
      %v743 = vpack.c.b16 %v687, %v673
      %v744 = vpack.c.b16 %v688, %v674
      %v745 = vpack.c.b16 %v689, %v675
      %v746 = vpack.c.b16 %v690, %v676
      %v747 = vpack.c.b16 %v691, %v677
      %v748 = vpack.c.b16 %v692, %v678
      %v749 = vpack.c.b16 %v693, %v679
      %v750 = vpack.c.b16 %v694, %v680
      %v751 = vpack.c.b16 %v695, %v681
      %v1020 = vunpack.c.l.b16 %v300
      %v1021 = vunpack.c.h.b16 %v300
      %v1022 = vunpack.c.l.b16 %v301
      %v1023 = vunpack.c.h.b16 %v301
      %v1024 = vunpack.c.l.b16 %v302
      %v1025 = vunpack.c.h.b16 %v302
      %v1026 = vunpack.c.l.b16 %v303
      %v1027 = vunpack.c.h.b16 %v303
      %v1028 = vunpack.c.l.b16 %v304
      %v1029 = vunpack.c.h.b16 %v304
      %v1030 = vunpack.c.l.b16 %v305
      %v1031 = vunpack.c.h.b16 %v305
      %v1032 = vunpack.c.l.b16 %v306
      %v1033 = vunpack.c.h.b16 %v306
      %v1034 = vunpack.c.l.b16 %v307
      %v1035 = vunpack.c.h.b16 %v307
      %v1036 = vunpack.c.l.b16 %v308
      %v1037 = vunpack.c.h.b16 %v308
      %v1038 = vunpack.c.l.b16 %v309
      %v1039 = vunpack.c.h.b16 %v309
      %v1040 = vunpack.c.l.b16 %v310
      %v1041 = vunpack.c.h.b16 %v310
      %v1042 = vunpack.c.l.b16 %v311
      %v1043 = vunpack.c.h.b16 %v311
      %v1044 = vunpack.c.l.b16 %v312
      %v1045 = vunpack.c.h.b16 %v312
      %v1046 = vunpack.c.l.b16 %v313
      %v1047 = vunpack.c.h.b16 %v313
      %v1048 = vunpack.c.l.b16 %v314
      %v1049 = vunpack.c.h.b16 %v314
      %v1050 = vunpack.c.l.b16 %v315
      %v1051 = vunpack.c.h.b16 %v315
      %v1052 = vunpack.c.l.b16 %v316
      %v1053 = vunpack.c.h.b16 %v316
      %v1054 = vunpack.c.l.b16 %v317
      %v1055 = vunpack.c.h.b16 %v317
      %v1056 = vunpack.c.l.b16 %v318
      %v1057 = vunpack.c.h.b16 %v318
      %v1058 = vunpack.c.l.b16 %v319
      %v1059 = vunpack.c.h.b16 %v319
      %v1060 = vunpack.c.l.b16 %v320
      %v1061 = vunpack.c.h.b16 %v320
      %v1062 = vunpack.c.l.b16 %v321
      %v1063 = vunpack.c.h.b16 %v321
      %v1064 = vunpack.c.l.b16 %v322
      %v1065 = vunpack.c.h.b16 %v322
      %v1066 = vunpack.c.l.b16 %v323
      %v1067 = vunpack.c.h.b16 %v323
      %v1068 = vunpack.c.l.b16 %v324
      %v1069 = vunpack.c.h.b16 %v324
      %v1070 = vunpack.c.l.b16 %v325
      %v1071 = vunpack.c.h.b16 %v325
      %v1072 = vunpack.c.l.b16 %v326
      %v1073 = vunpack.c.h.b16 %v326
      %v1074 = vunpack.c.l.b16 %v327
      %v1075 = vunpack.c.h.b16 %v327
      %v1076 = vunpack.c.l.b16 %v328
      %v1077 = vunpack.c.h.b16 %v328
      %v1078 = vunpack.c.l.b16 %v329
      %v1079 = vunpack.c.h.b16 %v329
      %v1080 = vunpack.c.l.b16 %v330
      %v1081 = vunpack.c.h.b16 %v330
      %v1082 = vunpack.c.l.b16 %v331
      %v1083 = vunpack.c.h.b16 %v331
      %v1084 = vunpack.c.l.b16 %v332
      %v1085 = vunpack.c.h.b16 %v332
      %v1086 = vunpack.c.l.b16 %v333
      %v1087 = vunpack.c.h.b16 %v333
      %v1088 = vunpack.c.l.b16 %v334
      %v1089 = vunpack.c.h.b16 %v334
      %v1090 = vunpack.c.l.b16 %v335
      %v1091 = vunpack.c.h.b16 %v335
      %v1092 = vunpack.c.l.b16 %v336
      %v1093 = vunpack.c.h.b16 %v336
      %v1094 = vunpack.c.l.b16 %v337
      %v1095 = vunpack.c.h.b16 %v337
      %v1096 = vunpack.c.l.b16 %v338
      %v1097 = vunpack.c.h.b16 %v338
      %v1098 = vunpack.c.l.b16 %v339
      %v1099 = vunpack.c.h.b16 %v339
      %v1100 = vunpack.c.l.b16 %v340
      %v1101 = vunpack.c.h.b16 %v340
      %v1102 = vunpack.c.l.b16 %v341
      %v1103 = vunpack.c.h.b16 %v341
      %v1104 = vunpack.c.l.b16 %v342
      %v1105 = vunpack.c.h.b16 %v342
      %v1106 = vunpack.c.l.b16 %v343
      %v1107 = vunpack.c.h.b16 %v343
      %v1108 = vunpack.c.l.b16 %v344
      %v1109 = vunpack.c.h.b16 %v344
      %v1110 = vunpack.c.l.b16 %v345
      %v1111 = vunpack.c.h.b16 %v345
      %v1112 = vunpack.c.l.b16 %v346
      %v1113 = vunpack.c.h.b16 %v346
      %v1114 = vunpack.c.l.b16 %v347
      %v1115 = vunpack.c.h.b16 %v347
      %v1116 = vunpack.c.l.b16 %v348
      %v1117 = vunpack.c.h.b16 %v348
      %v1118 = vunpack.c.l.b16 %v349
      %v1119 = vunpack.c.h.b16 %v349
      %v1120 = vunpack.c.l.b16 %v350
      %v1121 = vunpack.c.h.b16 %v350
      %v1122 = vunpack.c.l.b16 %v351
      %v1123 = vunpack.c.h.b16 %v351
      %v1124 = vunpack.c.l.b16 %v352
      %v1125 = vunpack.c.h.b16 %v352
      %v1126 = vunpack.c.l.b16 %v353
      %v1127 = vunpack.c.h.b16 %v353
      %v1128 = vunpack.c.l.b16 %v354
      %v1129 = vunpack.c.h.b16 %v354
      %v1130 = vunpack.c.l.b16 %v355
      %v1131 = vunpack.c.h.b16 %v355
      %v1132 = vunpack.c.l.b16 %v356
      %v1133 = vunpack.c.h.b16 %v356
      %v1134 = vunpack.c.l.b16 %v357
      %v1135 = vunpack.c.h.b16 %v357
      %v1136 = vunpack.c.l.b16 %v358
      %v1137 = vunpack.c.h.b16 %v358
      %v1138 = vunpack.c.l.b16 %v359
      %v1139 = vunpack.c.h.b16 %v359
      %v1140 = vunpack.c.l.b16 %v360
      %v1141 = vunpack.c.h.b16 %v360
      %v1142 = vunpack.c.l.b16 %v361
      %v1143 = vunpack.c.h.b16 %v361
      %v1144 = vunpack.c.l.b16 %v362
      %v1145 = vunpack.c.h.b16 %v362
      %v1146 = vunpack.c.l.b16 %v363
      %v1147 = vunpack.c.h.b16 %v363
      %v1148 = vunpack.c.l.b16 %v364
      %v1149 = vunpack.c.h.b16 %v364
      %v1150 = vunpack.c.l.b16 %v365
      %v1151 = vunpack.c.h.b16 %v365
      %v1152 = vunpack.c.l.b16 %v366
      %v1153 = vunpack.c.h.b16 %v366
      %v1154 = vunpack.c.l.b16 %v367
      %v1155 = vunpack.c.h.b16 %v367
      %v1156 = vunpack.c.l.b16 %v368
      %v1157 = vunpack.c.h.b16 %v368
      %v1158 = vunpack.c.l.b16 %v369
      %v1159 = vunpack.c.h.b16 %v369
      %v1160 = vunpack.c.l.b16 %v370
      %v1161 = vunpack.c.h.b16 %v370
      %v1162 = vunpack.c.l.b16 %v371
      %v1163 = vunpack.c.h.b16 %v371
      %v1164 = vunpack.c.l.b16 %v372
      %v1165 = vunpack.c.h.b16 %v372
      %v1166 = vunpack.c.l.b16 %v373
      %v1167 = vunpack.c.h.b16 %v373
      %v1168 = vunpack.c.l.b16 %v374
      %v1169 = vunpack.c.h.b16 %v374
      %v1170 = vunpack.c.l.b16 %v375
      %v1171 = vunpack.c.h.b16 %v375
      %v1172 = vunpack.c.l.b16 %v376
      %v1173 = vunpack.c.h.b16 %v376
      %v1174 = vunpack.c.l.b16 %v377
      %v1175 = vunpack.c.h.b16 %v377
      %v1176 = vunpack.c.l.b16 %v378
      %v1177 = vunpack.c.h.b16 %v378
      %v1178 = vunpack.c.l.b16 %v379
      %v1179 = vunpack.c.h.b16 %v379
      %v1180 = vunpack.c.l.b16 %v380
      %v1181 = vunpack.c.h.b16 %v380
      %v1182 = vunpack.c.l.b16 %v381
      %v1183 = vunpack.c.h.b16 %v381
      %v1184 = vunpack.c.l.b16 %v382
      %v1185 = vunpack.c.h.b16 %v382
      %v1186 = vunpack.c.l.b16 %v383
      %v1187 = vunpack.c.h.b16 %v383
      %v1188 = vunpack.c.l.b16 %v384
      %v1189 = vunpack.c.h.b16 %v384
      %v1190 = vunpack.c.l.b16 %v385
      %v1191 = vunpack.c.h.b16 %v385
      %v1192 = vunpack.c.l.b16 %v386
      %v1193 = vunpack.c.h.b16 %v386
      %v1194 = vunpack.c.l.b16 %v387
      %v1195 = vunpack.c.h.b16 %v387
      %v1196 = vunpack.c.l.b16 %v388
      %v1197 = vunpack.c.h.b16 %v388
      %v1198 = vunpack.c.l.b16 %v389
      %v1199 = vunpack.c.h.b16 %v389
      %v1200 = vunpack.c.l.b16 %v390
      %v1201 = vunpack.c.h.b16 %v390
      %v1202 = vunpack.c.l.b16 %v391
      %v1203 = vunpack.c.h.b16 %v391
      %v1204 = vunpack.c.l.b16 %v392
      %v1205 = vunpack.c.h.b16 %v392
      %v1206 = vunpack.c.l.b16 %v393
      %v1207 = vunpack.c.h.b16 %v393
      %v1208 = vunpack.c.l.b16 %v394
      %v1209 = vunpack.c.h.b16 %v394
      %v1210 = vunpack.c.l.b16 %v395
      %v1211 = vunpack.c.h.b16 %v395
      %v1212 = vunpack.c.l.b16 %v396
      %v1213 = vunpack.c.h.b16 %v396
      %v1214 = vunpack.c.l.b16 %v397
      %v1215 = vunpack.c.h.b16 %v397
      %v1216 = vunpack.c.l.b16 %v398
      %v1217 = vunpack.c.h.b16 %v398
      %v1218 = vunpack.c.l.b16 %v399
      %v1219 = vunpack.c.h.b16 %v399
      %v1220 = vunpack.c.l.b16 %v400
      %v1221 = vunpack.c.h.b16 %v400
      %v1222 = vunpack.c.l.b16 %v401
      %v1223 = vunpack.c.h.b16 %v401
      %v1224 = vunpack.c.l.b16 %v402
      %v1225 = vunpack.c.h.b16 %v402
      %v1226 = vunpack.c.l.b16 %v403
      %v1227 = vunpack.c.h.b16 %v403
      %v1228 = vunpack.c.l.b16 %v404
      %v1229 = vunpack.c.h.b16 %v404
      %v1230 = vunpack.c.l.b16 %v405
      %v1231 = vunpack.c.h.b16 %v405
      %v1232 = vunpack.c.l.b16 %v406
      %v1233 = vunpack.c.h.b16 %v406
      %v1234 = vunpack.c.l.b16 %v407
      %v1235 = vunpack.c.h.b16 %v407
      %v1236 = vunpack.c.l.b16 %v408
      %v1237 = vunpack.c.h.b16 %v408
      %v1238 = vunpack.c.l.b16 %v409
      %v1239 = vunpack.c.h.b16 %v409
      %v1240 = vunpack.c.l.b16 %v410
      %v1241 = vunpack.c.h.b16 %v410
      %v1242 = vunpack.c.l.b16 %v411
      %v1243 = vunpack.c.h.b16 %v411
      %v1244 = vunpack.c.l.b16 %v412
      %v1245 = vunpack.c.h.b16 %v412
      %v1246 = vunpack.c.l.b16 %v413
      %v1247 = vunpack.c.h.b16 %v413
      %v1248 = vunpack.c.l.b16 %v414
      %v1249 = vunpack.c.h.b16 %v414
      %v1250 = vunpack.c.l.b16 %v415
      %v1251 = vunpack.c.h.b16 %v415
      %v1252 = vunpack.c.l.b16 %v416
      %v1253 = vunpack.c.h.b16 %v416
      %v1254 = vunpack.c.l.b16 %v417
      %v1255 = vunpack.c.h.b16 %v417
      %v1256 = vunpack.c.l.b16 %v418
      %v1257 = vunpack.c.h.b16 %v418
      %v1258 = vunpack.c.l.b16 %v419
      %v1259 = vunpack.c.h.b16 %v419
      %v1260 = vunpack.c.l.b16 %v420
      %v1261 = vunpack.c.h.b16 %v420
      %v1262 = vunpack.c.l.b16 %v421
      %v1263 = vunpack.c.h.b16 %v421
      %v1264 = vunpack.c.l.b16 %v422
      %v1265 = vunpack.c.h.b16 %v422
      %v1266 = vunpack.c.l.b16 %v423
      %v1267 = vunpack.c.h.b16 %v423
      %v1268 = vunpack.c.l.b16 %v424
      %v1269 = vunpack.c.h.b16 %v424
      %v1270 = vunpack.c.l.b16 %v425
      %v1271 = vunpack.c.h.b16 %v425
      %v1272 = vunpack.c.l.b16 %v426
      %v1273 = vunpack.c.h.b16 %v426
      %v1274 = vunpack.c.l.b16 %v427
      %v1275 = vunpack.c.h.b16 %v427
      %v1276 = vunpack.c.l.b16 %v428
      %v1277 = vunpack.c.h.b16 %v428
      %v1278 = vunpack.c.l.b16 %v429
      %v1279 = vunpack.c.h.b16 %v429
      %v1280 = vunpack.c.l.b16 %v430
      %v1281 = vunpack.c.h.b16 %v430
      %v1282 = vunpack.c.l.b16 %v431
      %v1283 = vunpack.c.h.b16 %v431
      %v1284 = vunpack.c.l.b16 %v432
      %v1285 = vunpack.c.h.b16 %v432
      %v1286 = vunpack.c.l.b16 %v433
      %v1287 = vunpack.c.h.b16 %v433
      %v1288 = vunpack.c.l.b16 %v434
      %v1289 = vunpack.c.h.b16 %v434
      %v1290 = vunpack.c.l.b16 %v435
      %v1291 = vunpack.c.h.b16 %v435
      %v1292 = vunpack.c.l.b16 %v436
      %v1293 = vunpack.c.h.b16 %v436
      %v1294 = vunpack.c.l.b16 %v437
      %v1295 = vunpack.c.h.b16 %v437
      %v1296 = vunpack.c.l.b16 %v438
      %v1297 = vunpack.c.h.b16 %v438
      %v1298 = vunpack.c.l.b16 %v439
      %v1299 = vunpack.c.h.b16 %v439
      %v1300 = vunpack.c.l.b16 %v440
      %v1301 = vunpack.c.h.b16 %v440
      %v1302 = vunpack.c.l.b16 %v441
      %v1303 = vunpack.c.h.b16 %v441
      %v1304 = vunpack.c.l.b16 %v442
      %v1305 = vunpack.c.h.b16 %v442
      %v1306 = vunpack.c.l.b16 %v443
      %v1307 = vunpack.c.h.b16 %v443
      %v1308 = vunpack.c.l.b16 %v444
      %v1309 = vunpack.c.h.b16 %v444
      %v1310 = vunpack.c.l.b16 %v445
      %v1311 = vunpack.c.h.b16 %v445
      %v1312 = vunpack.c.l.b16 %v446
      %v1313 = vunpack.c.h.b16 %v446
      %v1314 = vunpack.c.l.b16 %v447
      %v1315 = vunpack.c.h.b16 %v447
      %v1316 = vunpack.c.l.b16 %v448
      %v1317 = vunpack.c.h.b16 %v448
      %v1318 = vunpack.c.l.b16 %v449
      %v1319 = vunpack.c.h.b16 %v449
      %v1320 = vunpack.c.l.b16 %v450
      %v1321 = vunpack.c.h.b16 %v450
      %v1322 = vunpack.c.l.b16 %v451
      %v1323 = vunpack.c.h.b16 %v451
      %v1324 = vunpack.c.l.b16 %v452
      %v1325 = vunpack.c.h.b16 %v452
      %v1326 = vunpack.c.l.b16 %v453
      %v1327 = vunpack.c.h.b16 %v453
      %v1328 = vunpack.c.l.b16 %v454
      %v1329 = vunpack.c.h.b16 %v454
      %v1330 = vunpack.c.l.b16 %v455
      %v1331 = vunpack.c.h.b16 %v455
      %v1332 = vunpack.c.l.b16 %v456
      %v1333 = vunpack.c.h.b16 %v456
      %v1334 = vunpack.c.l.b16 %v457
      %v1335 = vunpack.c.h.b16 %v457
      %v1336 = vunpack.c.l.b16 %v458
      %v1337 = vunpack.c.h.b16 %v458
      %v1338 = vunpack.c.l.b16 %v459
      %v1339 = vunpack.c.h.b16 %v459
      %v1340 = vunpack.c.l.b16 %v460
      %v1341 = vunpack.c.h.b16 %v460
      %v1342 = vunpack.c.l.b16 %v461
      %v1343 = vunpack.c.h.b16 %v461
      %v1344 = vunpack.c.l.b16 %v462
      %v1345 = vunpack.c.h.b16 %v462
      %v1346 = vunpack.c.l.b16 %v463
      %v1347 = vunpack.c.h.b16 %v463
      %v1348 = vunpack.c.l.b16 %v464
      %v1349 = vunpack.c.h.b16 %v464
      %v1350 = vunpack.c.l.b16 %v465
      %v1351 = vunpack.c.h.b16 %v465
      %v1352 = vunpack.c.l.b16 %v466
      %v1353 = vunpack.c.h.b16 %v466
      %v1354 = vunpack.c.l.b16 %v467
      %v1355 = vunpack.c.h.b16 %v467
      %v1356 = vunpack.c.l.b16 %v468
      %v1357 = vunpack.c.h.b16 %v468
      %v1358 = vunpack.c.l.b16 %v469
      %v1359 = vunpack.c.h.b16 %v469
      %v1360 = vunpack.c.l.b16 %v470
      %v1361 = vunpack.c.h.b16 %v470
      %v1362 = vunpack.c.l.b16 %v471
      %v1363 = vunpack.c.h.b16 %v471
      %v1364 = vunpack.c.l.b16 %v472
      %v1365 = vunpack.c.h.b16 %v472
      %v1366 = vunpack.c.l.b16 %v473
      %v1367 = vunpack.c.h.b16 %v473
      %v1368 = vunpack.c.l.b16 %v474
      %v1369 = vunpack.c.h.b16 %v474
      %v1370 = vunpack.c.l.b16 %v475
      %v1371 = vunpack.c.h.b16 %v475
      %v1372 = vunpack.c.l.b16 %v476
      %v1373 = vunpack.c.h.b16 %v476
      %v1374 = vunpack.c.l.b16 %v477
      %v1375 = vunpack.c.h.b16 %v477
      %v1376 = vunpack.c.l.b16 %v478
      %v1377 = vunpack.c.h.b16 %v478
      %v1378 = vunpack.c.l.b16 %v479
      %v1379 = vunpack.c.h.b16 %v479
      %v1380 = vunpack.c.l.b16 %v480
      %v1381 = vunpack.c.h.b16 %v480
      %v1382 = vunpack.c.l.b16 %v481
      %v1383 = vunpack.c.h.b16 %v481
      %v1384 = vunpack.c.l.b16 %v482
      %v1385 = vunpack.c.h.b16 %v482
      %v1386 = vunpack.c.l.b16 %v483
      %v1387 = vunpack.c.h.b16 %v483
      %v1388 = vunpack.c.l.b16 %v484
      %v1389 = vunpack.c.h.b16 %v484
      %v1390 = vunpack.c.l.b16 %v485
      %v1391 = vunpack.c.h.b16 %v485
      %v1392 = vunpack.c.l.b16 %v486
      %v1393 = vunpack.c.h.b16 %v486
      %v1394 = vunpack.c.l.b16 %v487
      %v1395 = vunpack.c.h.b16 %v487
      %v1396 = vunpack.c.l.b16 %v488
      %v1397 = vunpack.c.h.b16 %v488
      %v1398 = vunpack.c.l.b16 %v489
      %v1399 = vunpack.c.h.b16 %v489
      %v1400 = vunpack.c.l.b16 %v490
      %v1401 = vunpack.c.h.b16 %v490
      %v1402 = vunpack.c.l.b16 %v491
      %v1403 = vunpack.c.h.b16 %v491
      %v1404 = vunpack.c.l.b16 %v492
      %v1405 = vunpack.c.h.b16 %v492
      %v1406 = vunpack.c.l.b16 %v493
      %v1407 = vunpack.c.h.b16 %v493
      %v1408 = vunpack.c.l.b16 %v494
      %v1409 = vunpack.c.h.b16 %v494
      %v1410 = vunpack.c.l.b16 %v495
      %v1411 = vunpack.c.h.b16 %v495
      %v1412 = vunpack.c.l.b16 %v496
      %v1413 = vunpack.c.h.b16 %v496
      %v1414 = vunpack.c.l.b16 %v497
      %v1415 = vunpack.c.h.b16 %v497
      %v1416 = vunpack.c.l.b16 %v498
      %v1417 = vunpack.c.h.b16 %v498
      %v1418 = vunpack.c.l.b16 %v499
      %v1419 = vunpack.c.h.b16 %v499
      %v1420 = vunpack.c.l.b16 %v500
      %v1421 = vunpack.c.h.b16 %v500
      %v1422 = vunpack.c.l.b16 %v501
      %v1423 = vunpack.c.h.b16 %v501
      %v1424 = vunpack.c.l.b16 %v502
      %v1425 = vunpack.c.h.b16 %v502
      %v1426 = vunpack.c.l.b16 %v503
      %v1427 = vunpack.c.h.b16 %v503
      %v1428 = vunpack.c.l.b16 %v504
      %v1429 = vunpack.c.h.b16 %v504
      %v1430 = vunpack.c.l.b16 %v505
      %v1431 = vunpack.c.h.b16 %v505
      %v1432 = vunpack.c.l.b16 %v506
      %v1433 = vunpack.c.h.b16 %v506
      %v1434 = vunpack.c.l.b16 %v507
      %v1435 = vunpack.c.h.b16 %v507
      %v1436 = vunpack.c.l.b16 %v508
      %v1437 = vunpack.c.h.b16 %v508
      %v1438 = vunpack.c.l.b16 %v509
      %v1439 = vunpack.c.h.b16 %v509
      %v1440 = vunpack.c.l.b16 %v510
      %v1441 = vunpack.c.h.b16 %v510
      %v1442 = vunpack.c.l.b16 %v511
      %v1443 = vunpack.c.h.b16 %v511
      %v1444 = vunpack.c.l.b16 %v512
      %v1445 = vunpack.c.h.b16 %v512
      %v1446 = vunpack.c.l.b16 %v513
      %v1447 = vunpack.c.h.b16 %v513
      %v1448 = vunpack.c.l.b16 %v514
      %v1449 = vunpack.c.h.b16 %v514
      %v1450 = vunpack.c.l.b16 %v515
      %v1451 = vunpack.c.h.b16 %v515
      %v1452 = vpack.c.b16 %v1022, %v1020
      %v1453 = vpack.c.b16 %v1023, %v1021
      %v1454 = vpack.c.b16 %v1026, %v1024
      %v1455 = vpack.c.b16 %v1027, %v1025
      %v1456 = vpack.c.b16 %v1030, %v1028
      %v1457 = vpack.c.b16 %v1031, %v1029
      %v1458 = vpack.c.b16 %v1034, %v1032
      %v1459 = vpack.c.b16 %v1035, %v1033
      %v1460 = vpack.c.b16 %v1038, %v1036
      %v1461 = vpack.c.b16 %v1039, %v1037
      %v1462 = vpack.c.b16 %v1042, %v1040
      %v1463 = vpack.c.b16 %v1043, %v1041
      %v1464 = vpack.c.b16 %v1046, %v1044
      %v1465 = vpack.c.b16 %v1047, %v1045
      %v1466 = vpack.c.b16 %v1050, %v1048
      %v1467 = vpack.c.b16 %v1051, %v1049
      %v1468 = vpack.c.b16 %v1054, %v1052
      %v1469 = vpack.c.b16 %v1055, %v1053
      %v1470 = vpack.c.b16 %v1058, %v1056
      %v1471 = vpack.c.b16 %v1059, %v1057
      %v1472 = vpack.c.b16 %v1062, %v1060
      %v1473 = vpack.c.b16 %v1063, %v1061
      %v1474 = vpack.c.b16 %v1066, %v1064
      %v1475 = vpack.c.b16 %v1067, %v1065
      %v1476 = vpack.c.b16 %v1070, %v1068
      %v1477 = vpack.c.b16 %v1071, %v1069
      %v1478 = vpack.c.b16 %v1074, %v1072
      %v1479 = vpack.c.b16 %v1075, %v1073
      %v1480 = vpack.c.b16 %v1078, %v1076
      %v1481 = vpack.c.b16 %v1079, %v1077
      %v1482 = vpack.c.b16 %v1082, %v1080
      %v1483 = vpack.c.b16 %v1083, %v1081
      %v1484 = vpack.c.b16 %v1086, %v1084
      %v1485 = vpack.c.b16 %v1087, %v1085
      %v1486 = vpack.c.b16 %v1090, %v1088
      %v1487 = vpack.c.b16 %v1091, %v1089
      %v1488 = vpack.c.b16 %v1094, %v1092
      %v1489 = vpack.c.b16 %v1095, %v1093
      %v1490 = vpack.c.b16 %v1098, %v1096
      %v1491 = vpack.c.b16 %v1099, %v1097
      %v1492 = vpack.c.b16 %v1102, %v1100
      %v1493 = vpack.c.b16 %v1103, %v1101
      %v1494 = vpack.c.b16 %v1106, %v1104
      %v1495 = vpack.c.b16 %v1107, %v1105
      %v1496 = vpack.c.b16 %v1110, %v1108
      %v1497 = vpack.c.b16 %v1111, %v1109
      %v1498 = vpack.c.b16 %v1114, %v1112
      %v1499 = vpack.c.b16 %v1115, %v1113
      %v1500 = vpack.c.b16 %v1118, %v1116
      %v1501 = vpack.c.b16 %v1119, %v1117
      %v1502 = vpack.c.b16 %v1122, %v1120
      %v1503 = vpack.c.b16 %v1123, %v1121
      %v1504 = vpack.c.b16 %v1126, %v1124
      %v1505 = vpack.c.b16 %v1127, %v1125
      %v1506 = vpack.c.b16 %v1130, %v1128
      %v1507 = vpack.c.b16 %v1131, %v1129
      %v1508 = vpack.c.b16 %v1134, %v1132
      %v1509 = vpack.c.b16 %v1135, %v1133
      %v1510 = vpack.c.b16 %v1138, %v1136
      %v1511 = vpack.c.b16 %v1139, %v1137
      %v1512 = vpack.c.b16 %v1142, %v1140
      %v1513 = vpack.c.b16 %v1143, %v1141
      %v1514 = vpack.c.b16 %v1146, %v1144
      %v1515 = vpack.c.b16 %v1147, %v1145
      %v1516 = vpack.c.b16 %v1150, %v1148
      %v1517 = vpack.c.b16 %v1151, %v1149
      %v1518 = vpack.c.b16 %v1154, %v1152
      %v1519 = vpack.c.b16 %v1155, %v1153
      %v1520 = vpack.c.b16 %v1158, %v1156
      %v1521 = vpack.c.b16 %v1159, %v1157
      %v1522 = vpack.c.b16 %v1162, %v1160
      %v1523 = vpack.c.b16 %v1163, %v1161
      %v1524 = vpack.c.b16 %v1166, %v1164
      %v1525 = vpack.c.b16 %v1167, %v1165
      %v1526 = vpack.c.b16 %v1170, %v1168
      %v1527 = vpack.c.b16 %v1171, %v1169
      %v1528 = vpack.c.b16 %v1174, %v1172
      %v1529 = vpack.c.b16 %v1175, %v1173
      %v1530 = vpack.c.b16 %v1178, %v1176
      %v1531 = vpack.c.b16 %v1179, %v1177
      %v1532 = vpack.c.b16 %v1182, %v1180
      %v1533 = vpack.c.b16 %v1183, %v1181
      %v1534 = vpack.c.b16 %v1186, %v1184
      %v1535 = vpack.c.b16 %v1187, %v1185
      %v1536 = vpack.c.b16 %v1190, %v1188
      %v1537 = vpack.c.b16 %v1191, %v1189
      %v1538 = vpack.c.b16 %v1194, %v1192
      %v1539 = vpack.c.b16 %v1195, %v1193
      %v1540 = vpack.c.b16 %v1198, %v1196
      %v1541 = vpack.c.b16 %v1199, %v1197
      %v1542 = vpack.c.b16 %v1202, %v1200
      %v1543 = vpack.c.b16 %v1203, %v1201
      %v1544 = vpack.c.b16 %v1206, %v1204
      %v1545 = vpack.c.b16 %v1207, %v1205
      %v1546 = vpack.c.b16 %v1210, %v1208
      %v1547 = vpack.c.b16 %v1211, %v1209
      %v1548 = vpack.c.b16 %v1214, %v1212
      %v1549 = vpack.c.b16 %v1215, %v1213
      %v1550 = vpack.c.b16 %v1218, %v1216
      %v1551 = vpack.c.b16 %v1219, %v1217
      %v1552 = vpack.c.b16 %v1222, %v1220
      %v1553 = vpack.c.b16 %v1223, %v1221
      %v1554 = vpack.c.b16 %v1226, %v1224
      %v1555 = vpack.c.b16 %v1227, %v1225
      %v1556 = vpack.c.b16 %v1230, %v1228
      %v1557 = vpack.c.b16 %v1231, %v1229
      %v1558 = vpack.c.b16 %v1234, %v1232
      %v1559 = vpack.c.b16 %v1235, %v1233
      %v1560 = vpack.c.b16 %v1238, %v1236
      %v1561 = vpack.c.b16 %v1239, %v1237
      %v1562 = vpack.c.b16 %v1242, %v1240
      %v1563 = vpack.c.b16 %v1243, %v1241
      %v1564 = vpack.c.b16 %v1246, %v1244
      %v1565 = vpack.c.b16 %v1247, %v1245
      %v1566 = vpack.c.b16 %v1250, %v1248
      %v1567 = vpack.c.b16 %v1251, %v1249
      %v1568 = vpack.c.b16 %v1254, %v1252
      %v1569 = vpack.c.b16 %v1255, %v1253
      %v1570 = vpack.c.b16 %v1258, %v1256
      %v1571 = vpack.c.b16 %v1259, %v1257
      %v1572 = vpack.c.b16 %v1262, %v1260
      %v1573 = vpack.c.b16 %v1263, %v1261
      %v1574 = vpack.c.b16 %v1266, %v1264
      %v1575 = vpack.c.b16 %v1267, %v1265
      %v1576 = vpack.c.b16 %v1270, %v1268
      %v1577 = vpack.c.b16 %v1271, %v1269
      %v1578 = vpack.c.b16 %v1274, %v1272
      %v1579 = vpack.c.b16 %v1275, %v1273
      %v1580 = vpack.c.b16 %v1278, %v1276
      %v1581 = vpack.c.b16 %v1279, %v1277
      %v1582 = vpack.c.b16 %v1282, %v1280
      %v1583 = vpack.c.b16 %v1283, %v1281
      %v1584 = vpack.c.b16 %v1286, %v1284
      %v1585 = vpack.c.b16 %v1287, %v1285
      %v1586 = vpack.c.b16 %v1290, %v1288
      %v1587 = vpack.c.b16 %v1291, %v1289
      %v1588 = vpack.c.b16 %v1294, %v1292
      %v1589 = vpack.c.b16 %v1295, %v1293
      %v1590 = vpack.c.b16 %v1298, %v1296
      %v1591 = vpack.c.b16 %v1299, %v1297
      %v1592 = vpack.c.b16 %v1302, %v1300
      %v1593 = vpack.c.b16 %v1303, %v1301
      %v1594 = vpack.c.b16 %v1306, %v1304
      %v1595 = vpack.c.b16 %v1307, %v1305
      %v1596 = vpack.c.b16 %v1310, %v1308
      %v1597 = vpack.c.b16 %v1311, %v1309
      %v1598 = vpack.c.b16 %v1314, %v1312
      %v1599 = vpack.c.b16 %v1315, %v1313
      %v1600 = vpack.c.b16 %v1318, %v1316
      %v1601 = vpack.c.b16 %v1319, %v1317
      %v1602 = vpack.c.b16 %v1322, %v1320
      %v1603 = vpack.c.b16 %v1323, %v1321
      %v1604 = vpack.c.b16 %v1326, %v1324
      %v1605 = vpack.c.b16 %v1327, %v1325
      %v1606 = vpack.c.b16 %v1330, %v1328
      %v1607 = vpack.c.b16 %v1331, %v1329
      %v1608 = vpack.c.b16 %v1334, %v1332
      %v1609 = vpack.c.b16 %v1335, %v1333
      %v1610 = vpack.c.b16 %v1338, %v1336
      %v1611 = vpack.c.b16 %v1339, %v1337
      %v1612 = vpack.c.b16 %v1342, %v1340
      %v1613 = vpack.c.b16 %v1343, %v1341
      %v1614 = vpack.c.b16 %v1346, %v1344
      %v1615 = vpack.c.b16 %v1347, %v1345
      %v1616 = vpack.c.b16 %v1350, %v1348
      %v1617 = vpack.c.b16 %v1351, %v1349
      %v1618 = vpack.c.b16 %v1354, %v1352
      %v1619 = vpack.c.b16 %v1355, %v1353
      %v1620 = vpack.c.b16 %v1358, %v1356
      %v1621 = vpack.c.b16 %v1359, %v1357
      %v1622 = vpack.c.b16 %v1362, %v1360
      %v1623 = vpack.c.b16 %v1363, %v1361
      %v1624 = vpack.c.b16 %v1366, %v1364
      %v1625 = vpack.c.b16 %v1367, %v1365
      %v1626 = vpack.c.b16 %v1370, %v1368
      %v1627 = vpack.c.b16 %v1371, %v1369
      %v1628 = vpack.c.b16 %v1374, %v1372
      %v1629 = vpack.c.b16 %v1375, %v1373
      %v1630 = vpack.c.b16 %v1378, %v1376
      %v1631 = vpack.c.b16 %v1379, %v1377
      %v1632 = vpack.c.b16 %v1382, %v1380
      %v1633 = vpack.c.b16 %v1383, %v1381
      %v1634 = vpack.c.b16 %v1386, %v1384
      %v1635 = vpack.c.b16 %v1387, %v1385
      %v1636 = vpack.c.b16 %v1390, %v1388
      %v1637 = vpack.c.b16 %v1391, %v1389
      %v1638 = vpack.c.b16 %v1394, %v1392
      %v1639 = vpack.c.b16 %v1395, %v1393
      %v1640 = vpack.c.b16 %v1398, %v1396
      %v1641 = vpack.c.b16 %v1399, %v1397
      %v1642 = vpack.c.b16 %v1402, %v1400
      %v1643 = vpack.c.b16 %v1403, %v1401
      %v1644 = vpack.c.b16 %v1406, %v1404
      %v1645 = vpack.c.b16 %v1407, %v1405
      %v1646 = vpack.c.b16 %v1410, %v1408
      %v1647 = vpack.c.b16 %v1411, %v1409
      %v1648 = vpack.c.b16 %v1414, %v1412
      %v1649 = vpack.c.b16 %v1415, %v1413
      %v1650 = vpack.c.b16 %v1418, %v1416
      %v1651 = vpack.c.b16 %v1419, %v1417
      %v1652 = vpack.c.b16 %v1422, %v1420
      %v1653 = vpack.c.b16 %v1423, %v1421
      %v1654 = vpack.c.b16 %v1426, %v1424
      %v1655 = vpack.c.b16 %v1427, %v1425
      %v1656 = vpack.c.b16 %v1430, %v1428
      %v1657 = vpack.c.b16 %v1431, %v1429
      %v1658 = vpack.c.b16 %v1434, %v1432
      %v1659 = vpack.c.b16 %v1435, %v1433
      %v1660 = vpack.c.b16 %v1438, %v1436
      %v1661 = vpack.c.b16 %v1439, %v1437
      %v1662 = vpack.c.b16 %v1442, %v1440
      %v1663 = vpack.c.b16 %v1443, %v1441
      %v1664 = vpack.c.b16 %v1446, %v1444
      %v1665 = vpack.c.b16 %v1447, %v1445
      %v1666 = vpack.c.b16 %v1450, %v1448
      %v1667 = vpack.c.b16 %v1451, %v1449
      %vm1884 = vcmask 523264
      %v1886 = vsel %vm1884, %v709, 0
      %v1889 = vsel %vm1884, %v723, 0
      %v1892 = vsel %vm1884, %v737, 0
      %v1895 = vsel %vm1884, %v751, 0
      %1897 = vmatprep.subr.bf16.mxu0 %v1467
      %1898 = vmatpush1.bf16.msra.mxu0 %v1466
      %1899 = vmatprep.subr.bf16.mxu0 %v1465
      %1900 = vmatpush1.bf16.msra.mxu0 %v1464
      %1901 = vmatprep.subr.bf16.mxu0 %v1463
      %1902 = vmatpush1.bf16.msra.mxu0 %v1462
      %1903 = vmatprep.subr.bf16.mxu0 %v1461
      %1904 = vmatpush1.bf16.msra.mxu0 %v1460
      %1905 = vmatprep.subr.bf16.mxu0 %v1459
      %1906 = vmatpush1.bf16.msra.mxu0 %v1458
      %1907 = vmatprep.subr.bf16.mxu0 %v1457
      %1908 = vmatpush1.bf16.msra.mxu0 %v1456
      %1909 = vmatprep.subr.bf16.mxu0 %v1455
      %1910 = vmatpush1.bf16.msra.mxu0 %v1454
      %1911 = vmatprep.subr.bf16.mxu0 %v1453
      %1912 = vmatpush1.bf16.msra.mxu0 %v1452
      %1913 = vmatprep.subr.bf16.mxu0 %v1483
      %1914 = vmatpush2.bf16.msra.mxu0 %v1482
      %1915 = vmatprep.subr.bf16.mxu0 %v1481
      %1916 = vmatpush2.bf16.msra.mxu0 %v1480
      %1917 = vmatprep.subr.bf16.mxu0 %v1479
      %1918 = vmatpush2.bf16.msra.mxu0 %v1478
      %1919 = vmatprep.subr.bf16.mxu0 %v1477
      %1920 = vmatpush2.bf16.msra.mxu0 %v1476
      %1921 = vmatprep.subr.bf16.mxu0 %v1475
      %1922 = vmatpush2.bf16.msra.mxu0 %v1474
      %1923 = vmatprep.subr.bf16.mxu0 %v1473
      %1924 = vmatpush2.bf16.msra.mxu0 %v1472
      %1925 = vmatprep.subr.bf16.mxu0 %v1471
      %1926 = vmatpush2.bf16.msra.mxu0 %v1470
      %1927 = vmatprep.subr.bf16.mxu0 %v1469
      %1928 = vmatpush2.bf16.msra.mxu0 %v1468
      %1929 = vmatprep.mubr.bf16.mxu0 %v697
      %1930 = vmatmul.mubr.bf16.gmra.mxu0 %v696
      %v1931 = vpop.f32.mrf.mxu0
      %v1932 = vadd.f32 %v521, %v1931
      %v1933 = vpop.f32.mrf.mxu0
      %v1934 = vadd.f32 %v525, %v1933
      %v1935 = vpop.f32.mrf.mxu0
      %v1936 = vadd.f32 %v521, %v1935
      %v1937 = vpop.f32.mrf.mxu0
      %v1938 = vadd.f32 %v525, %v1937
      %1939 = vmatprep.mubr.bf16.mxu0 %v711
      %1940 = vmatmul.mubr.bf16.gmra.mxu0 %v710
      %v1941 = vpop.f32.mrf.mxu0
      %v1942 = vadd.f32 %v521, %v1941
      %v1943 = vpop.f32.mrf.mxu0
      %v1944 = vadd.f32 %v525, %v1943
      %v1945 = vpop.f32.mrf.mxu0
      %v1946 = vadd.f32 %v521, %v1945
      %v1947 = vpop.f32.mrf.mxu0
      %v1948 = vadd.f32 %v525, %v1947
      %1949 = vmatprep.mubr.bf16.mxu0 %v725
      %1950 = vmatmul.mubr.bf16.gmra.mxu0 %v724
      %v1951 = vpop.f32.mrf.mxu0
      %v1952 = vadd.f32 %v521, %v1951
      %v1953 = vpop.f32.mrf.mxu0
      %v1954 = vadd.f32 %v525, %v1953
      %v1955 = vpop.f32.mrf.mxu0
      %v1956 = vadd.f32 %v521, %v1955
      %v1957 = vpop.f32.mrf.mxu0
      %v1958 = vadd.f32 %v525, %v1957
      %1959 = vmatprep.mubr.bf16.mxu0 %v739
      %1960 = vmatmul.mubr.bf16.gmra.mxu0 %v738
      %v1961 = vpop.f32.mrf.mxu0
      %v1962 = vadd.f32 %v521, %v1961
      %v1963 = vpop.f32.mrf.mxu0
      %v1964 = vadd.f32 %v525, %v1963
      %v1965 = vpop.f32.mrf.mxu0
      %v1966 = vadd.f32 %v521, %v1965
      %v1967 = vpop.f32.mrf.mxu0
      %v1968 = vadd.f32 %v525, %v1967
      %1969 = vdwg.mxu0
      %1970 = vmatprep.subr.bf16.mxu0 %v1499
      %1971 = vmatpush1.bf16.msra.mxu0 %v1498
      %1972 = vmatprep.subr.bf16.mxu0 %v1497
      %1973 = vmatpush1.bf16.msra.mxu0 %v1496
      %1974 = vmatprep.subr.bf16.mxu0 %v1495
      %1975 = vmatpush1.bf16.msra.mxu0 %v1494
      %1976 = vmatprep.subr.bf16.mxu0 %v1493
      %1977 = vmatpush1.bf16.msra.mxu0 %v1492
      %1978 = vmatprep.subr.bf16.mxu0 %v1491
      %1979 = vmatpush1.bf16.msra.mxu0 %v1490
      %1980 = vmatprep.subr.bf16.mxu0 %v1489
      %1981 = vmatpush1.bf16.msra.mxu0 %v1488
      %1982 = vmatprep.subr.bf16.mxu0 %v1487
      %1983 = vmatpush1.bf16.msra.mxu0 %v1486
      %1984 = vmatprep.subr.bf16.mxu0 %v1485
      %1985 = vmatpush1.bf16.msra.mxu0 %v1484
      %1986 = vmatprep.subr.bf16.mxu0 %v1515
      %1987 = vmatpush2.bf16.msra.mxu0 %v1514
      %1988 = vmatprep.subr.bf16.mxu0 %v1513
      %1989 = vmatpush2.bf16.msra.mxu0 %v1512
      %1990 = vmatprep.subr.bf16.mxu0 %v1511
      %1991 = vmatpush2.bf16.msra.mxu0 %v1510
      %1992 = vmatprep.subr.bf16.mxu0 %v1509
      %1993 = vmatpush2.bf16.msra.mxu0 %v1508
      %1994 = vmatprep.subr.bf16.mxu0 %v1507
      %1995 = vmatpush2.bf16.msra.mxu0 %v1506
      %1996 = vmatprep.subr.bf16.mxu0 %v1505
      %1997 = vmatpush2.bf16.msra.mxu0 %v1504
      %1998 = vmatprep.subr.bf16.mxu0 %v1503
      %1999 = vmatpush2.bf16.msra.mxu0 %v1502
      %2000 = vmatprep.subr.bf16.mxu0 %v1501
      %2001 = vmatpush2.bf16.msra.mxu0 %v1500
      %2002 = vmatprep.mubr.bf16.mxu0 %v699
      %2003 = vmatmul.mubr.bf16.gmra.mxu0 %v698
      %v2004 = vpop.f32.mrf.mxu0
      %v2005 = vadd.f32 %v1932, %v2004
      %v2006 = vpop.f32.mrf.mxu0
      %v2007 = vadd.f32 %v1934, %v2006
      %v2008 = vpop.f32.mrf.mxu0
      %v2009 = vadd.f32 %v1936, %v2008
      %v2010 = vpop.f32.mrf.mxu0
      %v2011 = vadd.f32 %v1938, %v2010
      %2012 = vmatprep.mubr.bf16.mxu0 %v713
      %2013 = vmatmul.mubr.bf16.gmra.mxu0 %v712
      %v2014 = vpop.f32.mrf.mxu0
      %v2015 = vadd.f32 %v1942, %v2014
      %v2016 = vpop.f32.mrf.mxu0
      %v2017 = vadd.f32 %v1944, %v2016
      %v2018 = vpop.f32.mrf.mxu0
      %v2019 = vadd.f32 %v1946, %v2018
      %v2020 = vpop.f32.mrf.mxu0
      %v2021 = vadd.f32 %v1948, %v2020
      %2022 = vmatprep.mubr.bf16.mxu0 %v727
      %2023 = vmatmul.mubr.bf16.gmra.mxu0 %v726
      %v2024 = vpop.f32.mrf.mxu0
      %v2025 = vadd.f32 %v1952, %v2024
      %v2026 = vpop.f32.mrf.mxu0
      %v2027 = vadd.f32 %v1954, %v2026
      %v2028 = vpop.f32.mrf.mxu0
      %v2029 = vadd.f32 %v1956, %v2028
      %v2030 = vpop.f32.mrf.mxu0
      %v2031 = vadd.f32 %v1958, %v2030
      %2032 = vmatprep.mubr.bf16.mxu0 %v741
      %2033 = vmatmul.mubr.bf16.gmra.mxu0 %v740
      %v2034 = vpop.f32.mrf.mxu0
      %v2035 = vadd.f32 %v1962, %v2034
      %v2036 = vpop.f32.mrf.mxu0
      %v2037 = vadd.f32 %v1964, %v2036
      %v2038 = vpop.f32.mrf.mxu0
      %v2039 = vadd.f32 %v1966, %v2038
      %v2040 = vpop.f32.mrf.mxu0
      %v2041 = vadd.f32 %v1968, %v2040
      %2042 = vdwg.mxu0
      %2043 = vmatprep.subr.bf16.mxu0 %v1531
      %2044 = vmatpush1.bf16.msra.mxu0 %v1530
      %2045 = vmatprep.subr.bf16.mxu0 %v1529
      %2046 = vmatpush1.bf16.msra.mxu0 %v1528
      %2047 = vmatprep.subr.bf16.mxu0 %v1527
      %2048 = vmatpush1.bf16.msra.mxu0 %v1526
      %2049 = vmatprep.subr.bf16.mxu0 %v1525
      %2050 = vmatpush1.bf16.msra.mxu0 %v1524
      %2051 = vmatprep.subr.bf16.mxu0 %v1523
      %2052 = vmatpush1.bf16.msra.mxu0 %v1522
      %2053 = vmatprep.subr.bf16.mxu0 %v1521
      %2054 = vmatpush1.bf16.msra.mxu0 %v1520
      %2055 = vmatprep.subr.bf16.mxu0 %v1519
      %2056 = vmatpush1.bf16.msra.mxu0 %v1518
      %2057 = vmatprep.subr.bf16.mxu0 %v1517
      %2058 = vmatpush1.bf16.msra.mxu0 %v1516
      %2059 = vmatprep.subr.bf16.mxu0 %v1547
      %2060 = vmatpush2.bf16.msra.mxu0 %v1546
      %2061 = vmatprep.subr.bf16.mxu0 %v1545
      %2062 = vmatpush2.bf16.msra.mxu0 %v1544
      %2063 = vmatprep.subr.bf16.mxu0 %v1543
      %2064 = vmatpush2.bf16.msra.mxu0 %v1542
      %2065 = vmatprep.subr.bf16.mxu0 %v1541
      %2066 = vmatpush2.bf16.msra.mxu0 %v1540
      %2067 = vmatprep.subr.bf16.mxu0 %v1539
      %2068 = vmatpush2.bf16.msra.mxu0 %v1538
      %2069 = vmatprep.subr.bf16.mxu0 %v1537
      %2070 = vmatpush2.bf16.msra.mxu0 %v1536
      %2071 = vmatprep.subr.bf16.mxu0 %v1535
      %2072 = vmatpush2.bf16.msra.mxu0 %v1534
      %2073 = vmatprep.subr.bf16.mxu0 %v1533
      %2074 = vmatpush2.bf16.msra.mxu0 %v1532
      %2075 = vmatprep.mubr.bf16.mxu0 %v701
      %2076 = vmatmul.mubr.bf16.gmra.mxu0 %v700
      %v2077 = vpop.f32.mrf.mxu0
      %v2078 = vadd.f32 %v2005, %v2077
      %v2079 = vpop.f32.mrf.mxu0
      %v2080 = vadd.f32 %v2007, %v2079
      %v2081 = vpop.f32.mrf.mxu0
      %v2082 = vadd.f32 %v2009, %v2081
      %v2083 = vpop.f32.mrf.mxu0
      %v2084 = vadd.f32 %v2011, %v2083
      %2085 = vmatprep.mubr.bf16.mxu0 %v715
      %2086 = vmatmul.mubr.bf16.gmra.mxu0 %v714
      %v2087 = vpop.f32.mrf.mxu0
      %v2088 = vadd.f32 %v2015, %v2087
      %v2089 = vpop.f32.mrf.mxu0
      %v2090 = vadd.f32 %v2017, %v2089
      %v2091 = vpop.f32.mrf.mxu0
      %v2092 = vadd.f32 %v2019, %v2091
      %v2093 = vpop.f32.mrf.mxu0
      %v2094 = vadd.f32 %v2021, %v2093
      %2095 = vmatprep.mubr.bf16.mxu0 %v729
      %2096 = vmatmul.mubr.bf16.gmra.mxu0 %v728
      %v2097 = vpop.f32.mrf.mxu0
      %v2098 = vadd.f32 %v2025, %v2097
      %v2099 = vpop.f32.mrf.mxu0
      %v2100 = vadd.f32 %v2027, %v2099
      %v2101 = vpop.f32.mrf.mxu0
      %v2102 = vadd.f32 %v2029, %v2101
      %v2103 = vpop.f32.mrf.mxu0
      %v2104 = vadd.f32 %v2031, %v2103
      %2105 = vmatprep.mubr.bf16.mxu0 %v743
      %2106 = vmatmul.mubr.bf16.gmra.mxu0 %v742
      %v2107 = vpop.f32.mrf.mxu0
      %v2108 = vadd.f32 %v2035, %v2107
      %v2109 = vpop.f32.mrf.mxu0
      %v2110 = vadd.f32 %v2037, %v2109
      %v2111 = vpop.f32.mrf.mxu0
      %v2112 = vadd.f32 %v2039, %v2111
      %v2113 = vpop.f32.mrf.mxu0
      %v2114 = vadd.f32 %v2041, %v2113
      %2115 = vdwg.mxu0
      %2116 = vmatprep.subr.bf16.mxu0 %v1563
      %2117 = vmatpush1.bf16.msra.mxu0 %v1562
      %2118 = vmatprep.subr.bf16.mxu0 %v1561
      %2119 = vmatpush1.bf16.msra.mxu0 %v1560
      %2120 = vmatprep.subr.bf16.mxu0 %v1559
      %2121 = vmatpush1.bf16.msra.mxu0 %v1558
      %2122 = vmatprep.subr.bf16.mxu0 %v1557
      %2123 = vmatpush1.bf16.msra.mxu0 %v1556
      %2124 = vmatprep.subr.bf16.mxu0 %v1555
      %2125 = vmatpush1.bf16.msra.mxu0 %v1554
      %2126 = vmatprep.subr.bf16.mxu0 %v1553
      %2127 = vmatpush1.bf16.msra.mxu0 %v1552
      %2128 = vmatprep.subr.bf16.mxu0 %v1551
      %2129 = vmatpush1.bf16.msra.mxu0 %v1550
      %2130 = vmatprep.subr.bf16.mxu0 %v1549
      %2131 = vmatpush1.bf16.msra.mxu0 %v1548
      %2132 = vmatprep.subr.bf16.mxu0 %v1579
      %2133 = vmatpush2.bf16.msra.mxu0 %v1578
      %2134 = vmatprep.subr.bf16.mxu0 %v1577
      %2135 = vmatpush2.bf16.msra.mxu0 %v1576
      %2136 = vmatprep.subr.bf16.mxu0 %v1575
      %2137 = vmatpush2.bf16.msra.mxu0 %v1574
      %2138 = vmatprep.subr.bf16.mxu0 %v1573
      %2139 = vmatpush2.bf16.msra.mxu0 %v1572
      %2140 = vmatprep.subr.bf16.mxu0 %v1571
      %2141 = vmatpush2.bf16.msra.mxu0 %v1570
      %2142 = vmatprep.subr.bf16.mxu0 %v1569
      %2143 = vmatpush2.bf16.msra.mxu0 %v1568
      %2144 = vmatprep.subr.bf16.mxu0 %v1567
      %2145 = vmatpush2.bf16.msra.mxu0 %v1566
      %2146 = vmatprep.subr.bf16.mxu0 %v1565
      %2147 = vmatpush2.bf16.msra.mxu0 %v1564
      %2148 = vmatprep.mubr.bf16.mxu0 %v703
      %2149 = vmatmul.mubr.bf16.gmra.mxu0 %v702
      %v2150 = vpop.f32.mrf.mxu0
      %v2151 = vadd.f32 %v2078, %v2150
      %v2152 = vpop.f32.mrf.mxu0
      %v2153 = vadd.f32 %v2080, %v2152
      %v2154 = vpop.f32.mrf.mxu0
      %v2155 = vadd.f32 %v2082, %v2154
      %v2156 = vpop.f32.mrf.mxu0
      %v2157 = vadd.f32 %v2084, %v2156
      %2158 = vmatprep.mubr.bf16.mxu0 %v717
      %2159 = vmatmul.mubr.bf16.gmra.mxu0 %v716
      %v2160 = vpop.f32.mrf.mxu0
      %v2161 = vadd.f32 %v2088, %v2160
      %v2162 = vpop.f32.mrf.mxu0
      %v2163 = vadd.f32 %v2090, %v2162
      %v2164 = vpop.f32.mrf.mxu0
      %v2165 = vadd.f32 %v2092, %v2164
      %v2166 = vpop.f32.mrf.mxu0
      %v2167 = vadd.f32 %v2094, %v2166
      %2168 = vmatprep.mubr.bf16.mxu0 %v731
      %2169 = vmatmul.mubr.bf16.gmra.mxu0 %v730
      %v2170 = vpop.f32.mrf.mxu0
      %v2171 = vadd.f32 %v2098, %v2170
      %v2172 = vpop.f32.mrf.mxu0
      %v2173 = vadd.f32 %v2100, %v2172
      %v2174 = vpop.f32.mrf.mxu0
      %v2175 = vadd.f32 %v2102, %v2174
      %v2176 = vpop.f32.mrf.mxu0
      %v2177 = vadd.f32 %v2104, %v2176
      %2178 = vmatprep.mubr.bf16.mxu0 %v745
      %2179 = vmatmul.mubr.bf16.gmra.mxu0 %v744
      %v2180 = vpop.f32.mrf.mxu0
      %v2181 = vadd.f32 %v2108, %v2180
      %v2182 = vpop.f32.mrf.mxu0
      %v2183 = vadd.f32 %v2110, %v2182
      %v2184 = vpop.f32.mrf.mxu0
      %v2185 = vadd.f32 %v2112, %v2184
      %v2186 = vpop.f32.mrf.mxu0
      %v2187 = vadd.f32 %v2114, %v2186
      %2188 = vdwg.mxu0
      %2189 = vmatprep.subr.bf16.mxu0 %v1595
      %2190 = vmatpush1.bf16.msra.mxu0 %v1594
      %2191 = vmatprep.subr.bf16.mxu0 %v1593
      %2192 = vmatpush1.bf16.msra.mxu0 %v1592
      %2193 = vmatprep.subr.bf16.mxu0 %v1591
      %2194 = vmatpush1.bf16.msra.mxu0 %v1590
      %2195 = vmatprep.subr.bf16.mxu0 %v1589
      %2196 = vmatpush1.bf16.msra.mxu0 %v1588
      %2197 = vmatprep.subr.bf16.mxu0 %v1587
      %2198 = vmatpush1.bf16.msra.mxu0 %v1586
      %2199 = vmatprep.subr.bf16.mxu0 %v1585
      %2200 = vmatpush1.bf16.msra.mxu0 %v1584
      %2201 = vmatprep.subr.bf16.mxu0 %v1583
      %2202 = vmatpush1.bf16.msra.mxu0 %v1582
      %2203 = vmatprep.subr.bf16.mxu0 %v1581
      %2204 = vmatpush1.bf16.msra.mxu0 %v1580
      %2205 = vmatprep.subr.bf16.mxu0 %v1611
      %2206 = vmatpush2.bf16.msra.mxu0 %v1610
      %2207 = vmatprep.subr.bf16.mxu0 %v1609
      %2208 = vmatpush2.bf16.msra.mxu0 %v1608
      %2209 = vmatprep.subr.bf16.mxu0 %v1607
      %2210 = vmatpush2.bf16.msra.mxu0 %v1606
      %2211 = vmatprep.subr.bf16.mxu0 %v1605
      %2212 = vmatpush2.bf16.msra.mxu0 %v1604
      %2213 = vmatprep.subr.bf16.mxu0 %v1603
      %2214 = vmatpush2.bf16.msra.mxu0 %v1602
      %2215 = vmatprep.subr.bf16.mxu0 %v1601
      %2216 = vmatpush2.bf16.msra.mxu0 %v1600
      %2217 = vmatprep.subr.bf16.mxu0 %v1599
      %2218 = vmatpush2.bf16.msra.mxu0 %v1598
      %2219 = vmatprep.subr.bf16.mxu0 %v1597
      %2220 = vmatpush2.bf16.msra.mxu0 %v1596
      %2221 = vmatprep.mubr.bf16.mxu0 %v705
      %2222 = vmatmul.mubr.bf16.gmra.mxu0 %v704
      %v2223 = vpop.f32.mrf.mxu0
      %v2224 = vadd.f32 %v2151, %v2223
      %v2225 = vpop.f32.mrf.mxu0
      %v2226 = vadd.f32 %v2153, %v2225
      %v2227 = vpop.f32.mrf.mxu0
      %v2228 = vadd.f32 %v2155, %v2227
      %v2229 = vpop.f32.mrf.mxu0
      %v2230 = vadd.f32 %v2157, %v2229
      %2231 = vmatprep.mubr.bf16.mxu0 %v719
      %2232 = vmatmul.mubr.bf16.gmra.mxu0 %v718
      %v2233 = vpop.f32.mrf.mxu0
      %v2234 = vadd.f32 %v2161, %v2233
      %v2235 = vpop.f32.mrf.mxu0
      %v2236 = vadd.f32 %v2163, %v2235
      %v2237 = vpop.f32.mrf.mxu0
      %v2238 = vadd.f32 %v2165, %v2237
      %v2239 = vpop.f32.mrf.mxu0
      %v2240 = vadd.f32 %v2167, %v2239
      %2241 = vmatprep.mubr.bf16.mxu0 %v733
      %2242 = vmatmul.mubr.bf16.gmra.mxu0 %v732
      %v2243 = vpop.f32.mrf.mxu0
      %v2244 = vadd.f32 %v2171, %v2243
      %v2245 = vpop.f32.mrf.mxu0
      %v2246 = vadd.f32 %v2173, %v2245
      %v2247 = vpop.f32.mrf.mxu0
      %v2248 = vadd.f32 %v2175, %v2247
      %v2249 = vpop.f32.mrf.mxu0
      %v2250 = vadd.f32 %v2177, %v2249
      %2251 = vmatprep.mubr.bf16.mxu0 %v747
      %2252 = vmatmul.mubr.bf16.gmra.mxu0 %v746
      %v2253 = vpop.f32.mrf.mxu0
      %v2254 = vadd.f32 %v2181, %v2253
      %v2255 = vpop.f32.mrf.mxu0
      %v2256 = vadd.f32 %v2183, %v2255
      %v2257 = vpop.f32.mrf.mxu0
      %v2258 = vadd.f32 %v2185, %v2257
      %v2259 = vpop.f32.mrf.mxu0
      %v2260 = vadd.f32 %v2187, %v2259
      %2261 = vdwg.mxu0
      %2262 = vmatprep.subr.bf16.mxu0 %v1627
      %2263 = vmatpush1.bf16.msra.mxu0 %v1626
      %2264 = vmatprep.subr.bf16.mxu0 %v1625
      %2265 = vmatpush1.bf16.msra.mxu0 %v1624
      %2266 = vmatprep.subr.bf16.mxu0 %v1623
      %2267 = vmatpush1.bf16.msra.mxu0 %v1622
      %2268 = vmatprep.subr.bf16.mxu0 %v1621
      %2269 = vmatpush1.bf16.msra.mxu0 %v1620
      %2270 = vmatprep.subr.bf16.mxu0 %v1619
      %2271 = vmatpush1.bf16.msra.mxu0 %v1618
      %2272 = vmatprep.subr.bf16.mxu0 %v1617
      %2273 = vmatpush1.bf16.msra.mxu0 %v1616
      %2274 = vmatprep.subr.bf16.mxu0 %v1615
      %2275 = vmatpush1.bf16.msra.mxu0 %v1614
      %2276 = vmatprep.subr.bf16.mxu0 %v1613
      %2277 = vmatpush1.bf16.msra.mxu0 %v1612
      %2278 = vmatprep.subr.bf16.mxu0 %v1643
      %2279 = vmatpush2.bf16.msra.mxu0 %v1642
      %2280 = vmatprep.subr.bf16.mxu0 %v1641
      %2281 = vmatpush2.bf16.msra.mxu0 %v1640
      %2282 = vmatprep.subr.bf16.mxu0 %v1639
      %2283 = vmatpush2.bf16.msra.mxu0 %v1638
      %2284 = vmatprep.subr.bf16.mxu0 %v1637
      %2285 = vmatpush2.bf16.msra.mxu0 %v1636
      %2286 = vmatprep.subr.bf16.mxu0 %v1635
      %2287 = vmatpush2.bf16.msra.mxu0 %v1634
      %2288 = vmatprep.subr.bf16.mxu0 %v1633
      %2289 = vmatpush2.bf16.msra.mxu0 %v1632
      %2290 = vmatprep.subr.bf16.mxu0 %v1631
      %2291 = vmatpush2.bf16.msra.mxu0 %v1630
      %2292 = vmatprep.subr.bf16.mxu0 %v1629
      %2293 = vmatpush2.bf16.msra.mxu0 %v1628
      %2294 = vmatprep.mubr.bf16.mxu0 %v707
      %2295 = vmatmul.mubr.bf16.gmra.mxu0 %v706
      %v2296 = vpop.f32.mrf.mxu0
      %v2297 = vadd.f32 %v2224, %v2296
      %v2298 = vpop.f32.mrf.mxu0
      %v2299 = vadd.f32 %v2226, %v2298
      %v2300 = vpop.f32.mrf.mxu0
      %v2301 = vadd.f32 %v2228, %v2300
      %v2302 = vpop.f32.mrf.mxu0
      %v2303 = vadd.f32 %v2230, %v2302
      %2304 = vmatprep.mubr.bf16.mxu0 %v721
      %2305 = vmatmul.mubr.bf16.gmra.mxu0 %v720
      %v2306 = vpop.f32.mrf.mxu0
      %v2307 = vadd.f32 %v2234, %v2306
      %v2308 = vpop.f32.mrf.mxu0
      %v2309 = vadd.f32 %v2236, %v2308
      %v2310 = vpop.f32.mrf.mxu0
      %v2311 = vadd.f32 %v2238, %v2310
      %v2312 = vpop.f32.mrf.mxu0
      %v2313 = vadd.f32 %v2240, %v2312
      %2314 = vmatprep.mubr.bf16.mxu0 %v735
      %2315 = vmatmul.mubr.bf16.gmra.mxu0 %v734
      %v2316 = vpop.f32.mrf.mxu0
      %v2317 = vadd.f32 %v2244, %v2316
      %v2318 = vpop.f32.mrf.mxu0
      %v2319 = vadd.f32 %v2246, %v2318
      %v2320 = vpop.f32.mrf.mxu0
      %v2321 = vadd.f32 %v2248, %v2320
      %v2322 = vpop.f32.mrf.mxu0
      %v2323 = vadd.f32 %v2250, %v2322
      %2324 = vmatprep.mubr.bf16.mxu0 %v749
      %2325 = vmatmul.mubr.bf16.gmra.mxu0 %v748
      %v2326 = vpop.f32.mrf.mxu0
      %v2327 = vadd.f32 %v2254, %v2326
      %v2328 = vpop.f32.mrf.mxu0
      %v2329 = vadd.f32 %v2256, %v2328
      %v2330 = vpop.f32.mrf.mxu0
      %v2331 = vadd.f32 %v2258, %v2330
      %v2332 = vpop.f32.mrf.mxu0
      %v2333 = vadd.f32 %v2260, %v2332
      %2334 = vdwg.mxu0
      %2335 = vmatprep.subr.bf16.mxu0 %v1659
      %2336 = vmatpush1.bf16.msra.mxu0 %v1658
      %2337 = vmatprep.subr.bf16.mxu0 %v1657
      %2338 = vmatpush1.bf16.msra.mxu0 %v1656
      %2339 = vmatprep.subr.bf16.mxu0 %v1655
      %2340 = vmatpush1.bf16.msra.mxu0 %v1654
      %2341 = vmatprep.subr.bf16.mxu0 %v1653
      %2342 = vmatpush1.bf16.msra.mxu0 %v1652
      %2343 = vmatprep.subr.bf16.mxu0 %v1651
      %2344 = vmatpush1.bf16.msra.mxu0 %v1650
      %2345 = vmatprep.subr.bf16.mxu0 %v1649
      %2346 = vmatpush1.bf16.msra.mxu0 %v1648
      %2347 = vmatprep.subr.bf16.mxu0 %v1647
      %2348 = vmatpush1.bf16.msra.mxu0 %v1646
      %2349 = vmatprep.subr.bf16.mxu0 %v1645
      %2350 = vmatpush1.bf16.msra.mxu0 %v1644
      %2351 = vmatprep.subr.bf16.mxu0 0
      %2352 = vmatpush2.bf16.msra.mxu0 0
      %2353 = vmatprep.subr.bf16.mxu0 0
      %2354 = vmatpush2.bf16.msra.mxu0 0
      %2355 = vmatprep.subr.bf16.mxu0 0
      %2356 = vmatpush2.bf16.msra.mxu0 0
      %2357 = vmatprep.subr.bf16.mxu0 0
      %2358 = vmatpush2.bf16.msra.mxu0 0
      %2359 = vmatprep.subr.bf16.mxu0 %v1667
      %2360 = vmatpush2.bf16.msra.mxu0 %v1666
      %2361 = vmatprep.subr.bf16.mxu0 %v1665
      %2362 = vmatpush2.bf16.msra.mxu0 %v1664
      %2363 = vmatprep.subr.bf16.mxu0 %v1663
      %2364 = vmatpush2.bf16.msra.mxu0 %v1662
      %2365 = vmatprep.subr.bf16.mxu0 %v1661
      %2366 = vmatpush2.bf16.msra.mxu0 %v1660
      %2367 = vmatprep.mubr.bf16.mxu0 %v1886
      %2368 = vmatmul.mubr.bf16.gmra.mxu0 %v708
      %v2369 = vpop.f32.mrf.mxu0
      %v2370 = vadd.f32 %v2297, %v2369
      %v2371 = vpop.f32.mrf.mxu0
      %v2372 = vadd.f32 %v2299, %v2371
      %v2373 = vpop.f32.mrf.mxu0
      %v2374 = vadd.f32 %v2301, %v2373
      %v2375 = vpop.f32.mrf.mxu0
      %v2376 = vadd.f32 %v2303, %v2375
      %2377 = vmatprep.mubr.bf16.mxu0 %v1889
      %2378 = vmatmul.mubr.bf16.gmra.mxu0 %v722
      %v2379 = vpop.f32.mrf.mxu0
      %v2380 = vadd.f32 %v2307, %v2379
      %v2381 = vpop.f32.mrf.mxu0
      %v2382 = vadd.f32 %v2309, %v2381
      %v2383 = vpop.f32.mrf.mxu0
      %v2384 = vadd.f32 %v2311, %v2383
      %v2385 = vpop.f32.mrf.mxu0
      %v2386 = vadd.f32 %v2313, %v2385
      %2387 = vmatprep.mubr.bf16.mxu0 %v1892
      %2388 = vmatmul.mubr.bf16.gmra.mxu0 %v736
      %v2389 = vpop.f32.mrf.mxu0
      %v2390 = vadd.f32 %v2317, %v2389
      %v2391 = vpop.f32.mrf.mxu0
      %v2392 = vadd.f32 %v2319, %v2391
      %v2393 = vpop.f32.mrf.mxu0
      %v2394 = vadd.f32 %v2321, %v2393
      %v2395 = vpop.f32.mrf.mxu0
      %v2396 = vadd.f32 %v2323, %v2395
      %2397 = vmatprep.mubr.bf16.mxu0 %v1895
      %2398 = vmatmul.mubr.bf16.gmra.mxu0 %v750
      %v2399 = vpop.f32.mrf.mxu0
      %v2400 = vadd.f32 %v2327, %v2399
      %v2401 = vpop.f32.mrf.mxu0
      %v2402 = vadd.f32 %v2329, %v2401
      %v2403 = vpop.f32.mrf.mxu0
      %v2404 = vadd.f32 %v2331, %v2403
      %v2405 = vpop.f32.mrf.mxu0
      %v2406 = vadd.f32 %v2333, %v2405
      %2407 = vdwg.mxu0
      %v2408 = vmax.f32 %v2370, 0.0
      %v2409 = vmax.f32 %v2372, 0.0
      %v2410 = vmax.f32 %v2374, 0.0
      %v2411 = vmax.f32 %v2376, 0.0
      %v2412 = vmax.f32 %v2380, 0.0
      %v2413 = vmax.f32 %v2382, 0.0
      %v2414 = vmax.f32 %v2384, 0.0
      %v2415 = vmax.f32 %v2386, 0.0
      %v2416 = vmax.f32 %v2390, 0.0
      %v2417 = vmax.f32 %v2392, 0.0
      %v2418 = vmax.f32 %v2394, 0.0
      %v2419 = vmax.f32 %v2396, 0.0
      %v2420 = vmax.f32 %v2400, 0.0
      %v2421 = vmax.f32 %v2402, 0.0
      %v2422 = vmax.f32 %v2404, 0.0
      %v2423 = vmax.f32 %v2406, 0.0
      %2424 = vst [vmem:[%s240] sm:$0xff] %v2408
      %2425 = vst [vmem:[%s240 + $0x8] sm:$0xff] %v2409
      %2426 = vst [vmem:[%s240 + $0x10] sm:$0xff] %v2410
      %2427 = vst [vmem:[%s240 + $0x18] sm:$0xff] %v2411
      %2428 = vst [vmem:[%s240 + $0x20] sm:$0xff] %v2412
      %2429 = vst [vmem:[%s240 + $0x28] sm:$0xff] %v2413
      %2430 = vst [vmem:[%s240 + $0x30] sm:$0xff] %v2414
      %2431 = vst [vmem:[%s240 + $0x38] sm:$0xff] %v2415
      %2432 = vst [vmem:[%s240 + $0x40] sm:$0xff] %v2416
      %2433 = vst [vmem:[%s240 + $0x48] sm:$0xff] %v2417
      %2434 = vst [vmem:[%s240 + $0x50] sm:$0xff] %v2418
      %2435 = vst [vmem:[%s240 + $0x58] sm:$0xff] %v2419
      %2436 = vst [vmem:[%s240 + $0x60] sm:$0xff] %v2420
      %2437 = vst [vmem:[%s240 + $0x68] sm:$0xff] %v2421
      %2438 = vst [vmem:[%s240 + $0x70] sm:$0xff] %v2422
      %2439 = vst [vmem:[%s240 + $0x78] sm:$0xff] %v2423
      %s2440 = smul.u32 8, %s18
      %s2441 = smul.u32 2, %s19
      %p2442 = scmp.lt.s32.totalorder %s2440, 15
      %s2443 = scalar_select %p2442, %s2440, 15
      %p2444 = scmp.lt.s32.totalorder %s2441, 1
      %s2445 = scalar_select %p2444, %s2441, 1
      %s2446 = smul.addr %s2443, 2
      %s2447 = sadd.s32 %s2445, %s2446
      %s2448 = smul.addr %s2447, 8
      %s2449 = scalar_lea.vmem %s3, %s2448
      // Predicated region
      $region33: #{inception_block_d.10} parent=31 // pred_check
        %p2450 = pneg %p124
      $region34: #{inception_block_d.10} parent=31 // pred_check_branch
        %2452 = sbr.rel (%p2450) target = $region36
      $region35: #{inception_block_d.10} parent=31 // pred_region
        %s2453 = smul.u32 8, %s18
        %s2454 = smul.u32 2, %s19
      $region36: #{inception_block_d.10} parent=31 // pred_fallthru
        _
    $region32: #{inception_block_d.10} parent=5 // pred_fallthru
      _
    %p2455 = scmp.le.s32.totalorder 2, %s9
    // Predicated region
    $region37: #{inception_block_d.10} parent=5 // pred_check
      %p2456 = pneg %p2455
    $region38: #{inception_block_d.10} parent=5 // pred_check_branch
      %2458 = sbr.rel (%p2456) target = $region40
    $region39: #{inception_block_d.10} parent=5 // pred_region
      %s2459 = ssub.s32 %s9, 2
      // Predicated region
      $region41: #{inception_block_d.10} parent=39 // pred_check
        %p2460 = pneg %p130
      $region42: #{inception_block_d.10} parent=39 // pred_check_branch
        %2462 = sbr.rel (%p2460) target = $region44
      $region43: #{inception_block_d.10} parent=39 // pred_region
        %s2463 = smul.u32 8, %s20
        %s2464 = smul.u32 2, %s21
        %p2465 = scmp.lt.s32.totalorder %s2463, 15
        %s2466 = scalar_select %p2465, %s2463, 15
        %p2467 = scmp.lt.s32.totalorder %s2464, 1
        %s2468 = scalar_select %p2467, %s2464, 1
        %s2469 = smul.addr %s2466, 2
        %s2470 = sadd.s32 %s2468, %s2469
        %s2471 = smul.addr %s2470, 8
        %s2472 = scalar_lea.vmem %s3, %s2471
      $region44: #{inception_block_d.10} parent=39 // pred_fallthru
        _
    $region40: #{inception_block_d.10} parent=5 // pred_fallthru
      _
  $region6: #{inception_block_d.10} parent=0 // loop_footer
    %s13 = sadd.s32 1, %s9
  $region7: #{inception_block_d.10} parent=0 // loop_footer_branch
    %8 = sbr.rel target = $region3
  $region8: #{inception_block_d.10} parent=0 // loop_exit
    _

// kernel: inception_block_d.7
$region0: #{inception_block_d.7}
  #allocation0 [shape = 'u32[]', space=smem, size = 0x4, offset = 0x4, fixed_abs, tag = 'smem constant byte address 0x4 - core index']
  #allocation1 [shape = 'u32[144,128]{1,0:T(1,128)}', space=vmem, size = 0x12000, scoped, tag = 'internal scratch']
  %s0 = inlined_call_operand.vmem [shape: bf16[128,1728], index: 0, kind: input, shape index: {}]
  %s1 = inlined_call_operand.vmem [shape: bf16[1728,384], index: 1, kind: input, shape index: {}]
  %s2 = inlined_call_operand.vmem [shape: f32[1,384], index: 2, kind: input, shape index: {}]
  %s3 = inlined_call_operand.vmem [shape: f32[128,384], index: 3, kind: output, shape index: {}]
  %s4 = sld [smem:[#allocation0]]
  $region120: #{inception_block_d.7} parent=0
    _
  %s6 = ssub.s32 1, %s4
  %s7 = scalar_select 0, %s6, %s4
  $region1: #{inception_block_d.7} parent=0
    #allocation2 [shape = 'u8[884736]{0}', space=vmem, size = 0xd8000, scoped, tag = 'input window, operand 1']
    #allocation3 [shape = 'u8[65536]{0}', space=vmem, size = 0x10000, scoped, tag = 'output window, operand 0']
    loop: start=0, step=1, limit=8
    $region2: #{inception_block_d.7} parent=1 // loop_pre_header
      _
    $region3: #{inception_block_d.7} parent=1 // loop_header
      %s9 = sphi 0, %s13
      %p10 = scmp.ge.s32.totalorder %s9, 8
      %s16 = sphi 0, %s28
      %s17 = sphi 0, %s24
      %s18 = sphi 0, %s16
      %s19 = sphi 0, %s17
      %s20 = sphi 0, %s18
      %s21 = sphi 0, %s19
      %s31 = sphi 0, %s33
      %s34 = sphi 0, %s31
      %s35 = sphi 0, %s34
      %s51 = sphi 0, %s35
      %s57 = sphi 0, %s59
      %s60 = sphi 0, %s57
      %s61 = sphi 0, %s60
      %s77 = sphi 0, %s61
      %s83 = sphi 0, %s85
      %s86 = sphi 0, %s83
      %s87 = sphi 0, %s86
      %s103 = sphi 0, %s87
      %s111 = sphi 0, %s113
      %s114 = sphi 0, %s111
      %s115 = sphi 0, %s114
      %s131 = sphi 0, %s115
    $region4: #{inception_block_d.7} parent=1 // loop_header_branch
      %12 = sbr.rel (%p10) target = $region8
    $region5: #{inception_block_d.7} parent=1 // loop_body
      %s14 = ssub.s32 %s9, 1
      %s15 = ssub.s32 %s9, 2
      %s22 = sadd.s32 1, %s17
      %p23 = scmp.ge.s32.totalorder %s22, 3
      %s24 = scalar_select %p23, 0, %s22
      %s25 = sadd.s32 1, %s16
      %s26 = scalar_select %p23, %s25, %s16
      %p27 = scmp.ge.s32.totalorder %s26, 2
      %s28 = scalar_select %p27, 0, %s26
      %s29 = ssub.s32 %s16, %s28
      %p30 = scmp.eq.s32.totalorder %s29, 0
      %s32 = sadd.s32 %s31, 1
      %s33 = scalar_select %p30, %s31, %s32
      %p36 = pneg %p30
      %p37 = scmp.eq.s32.totalorder %s9, 5
      %p38 = por %p36, %p37
      %p39 = scmp.ne.s32.totalorder %s31, %s34
      %p40 = scmp.eq.s32.totalorder %s9, 0
      %p41 = por %p39, %p40
      %p42 = scmp.ne.s32.totalorder %s31, %s34
      %p43 = scmp.eq.s32.totalorder %s14, 5
      %p44 = por %p42, %p43
      %p45 = scmp.ne.s32.totalorder %s34, %s35
      %p46 = scmp.eq.s32.totalorder %s14, 0
      %p47 = por %p45, %p46
      %p48 = scmp.ne.s32.totalorder %s34, %s35
      %p49 = scmp.eq.s32.totalorder %s15, 5
      %p50 = por %p48, %p49
      %p52 = scmp.ne.s32.totalorder %s35, %s51
      %p53 = scmp.eq.s32.totalorder %s15, 0
      %p54 = por %p52, %p53
      %s55 = ssub.s32 %s17, %s24
      %p56 = scmp.eq.s32.totalorder %s55, 0
      %s58 = sadd.s32 %s57, 1
      %s59 = scalar_select %p56, %s57, %s58
      %p62 = pneg %p56
      %p63 = scmp.eq.s32.totalorder %s9, 5
      %p64 = por %p62, %p63
      %p65 = scmp.ne.s32.totalorder %s57, %s60
      %p66 = scmp.eq.s32.totalorder %s9, 0
      %p67 = por %p65, %p66
      %p68 = scmp.ne.s32.totalorder %s57, %s60
      %p69 = scmp.eq.s32.totalorder %s14, 5
      %p70 = por %p68, %p69
      %p71 = scmp.ne.s32.totalorder %s60, %s61
      %p72 = scmp.eq.s32.totalorder %s14, 0
      %p73 = por %p71, %p72
      %p74 = scmp.ne.s32.totalorder %s60, %s61
      %p75 = scmp.eq.s32.totalorder %s15, 5
      %p76 = por %p74, %p75
      %p78 = scmp.ne.s32.totalorder %s61, %s77
      %p79 = scmp.eq.s32.totalorder %s15, 0
      %p80 = por %p78, %p79
      %s81 = ssub.s32 %s17, %s24
      %p82 = scmp.eq.s32.totalorder %s81, 0
      %s84 = sadd.s32 %s83, 1
      %s85 = scalar_select %p82, %s83, %s84
      %p88 = pneg %p82
      %p89 = scmp.eq.s32.totalorder %s9, 5
      %p90 = por %p88, %p89
      %p91 = scmp.ne.s32.totalorder %s83, %s86
      %p92 = scmp.eq.s32.totalorder %s9, 0
      %p93 = por %p91, %p92
      %p94 = scmp.ne.s32.totalorder %s83, %s86
      %p95 = scmp.eq.s32.totalorder %s14, 5
      %p96 = por %p94, %p95
      %p97 = scmp.ne.s32.totalorder %s86, %s87
      %p98 = scmp.eq.s32.totalorder %s14, 0
      %p99 = por %p97, %p98
      %p100 = scmp.ne.s32.totalorder %s86, %s87
      %p101 = scmp.eq.s32.totalorder %s15, 5
      %p102 = por %p100, %p101
      %p104 = scmp.ne.s32.totalorder %s87, %s103
      %p105 = scmp.eq.s32.totalorder %s15, 0
      %p106 = por %p104, %p105
      %s107 = ssub.s32 %s16, %s28
      %s108 = ssub.s32 %s17, %s24
      %s109 = sor.u32 %s107, %s108
      %p110 = scmp.eq.s32.totalorder %s109, 0
      %s112 = sadd.s32 %s111, 1
      %s113 = scalar_select %p110, %s111, %s112
      %p116 = pneg %p110
      %p117 = scmp.eq.s32.totalorder %s9, 5
      %p118 = por %p116, %p117
      %p119 = scmp.ne.s32.totalorder %s111, %s114
      %p120 = scmp.eq.s32.totalorder %s9, 0
      %p121 = por %p119, %p120
      %p122 = scmp.ne.s32.totalorder %s111, %s114
      %p123 = scmp.eq.s32.totalorder %s14, 5
      %p124 = por %p122, %p123
      %p125 = scmp.ne.s32.totalorder %s114, %s115
      %p126 = scmp.eq.s32.totalorder %s14, 0
      %p127 = por %p125, %p126
      %p128 = scmp.ne.s32.totalorder %s114, %s115
      %p129 = scmp.eq.s32.totalorder %s15, 5
      %p130 = por %p128, %p129
      %p132 = scmp.ne.s32.totalorder %s115, %s131
      %p133 = scmp.eq.s32.totalorder %s15, 0
      %p134 = por %p132, %p133
      %p135 = scmp.le.s32.totalorder 1, %s9
      %p136 = scmp.lt.s32.totalorder %s9, 7
      %p137 = pnand %p135, %p136
      %p138 = pneg %p137
      // Predicated region
      $region9: #{inception_block_d.7} parent=5 // pred_check
        _
      $region10: #{inception_block_d.7} parent=5 // pred_check_branch
        %140 = sbr.rel (%p137) target = $region12
      $region11: #{inception_block_d.7} parent=5 // pred_region
        %s141 = ssub.s32 %s9, 1
      $region12: #{inception_block_d.7} parent=5 // pred_fallthru
        _
      %p142 = scmp.lt.s32.totalorder %s9, 6
      // Predicated region
      $region13: #{inception_block_d.7} parent=5 // pred_check
        %p143 = pneg %p142
      $region14: #{inception_block_d.7} parent=5 // pred_check_branch
        %145 = sbr.rel (%p143) target = $region16
      $region15: #{inception_block_d.7} parent=5 // pred_region
        // Predicated region
        $region17: #{inception_block_d.7} parent=15 // pred_check
          %p146 = pneg %p41
        $region18: #{inception_block_d.7} parent=15 // pred_check_branch
          %148 = sbr.rel (%p146) target = $region20
        $region19: #{inception_block_d.7} parent=15 // pred_region
          %s149 = smul.u32 8, %s16
          %p150 = scmp.lt.s32.totalorder %s149, 15
          %s151 = scalar_select %p150, %s149, 15
          %s152 = smul.addr %s151, 14
          %s153 = smul.addr %s152, 4
          %s154 = scalar_lea.vmem %s0, %s153
          %s155 = smul.u32 8, %s16
        $region20: #{inception_block_d.7} parent=15 // pred_fallthru
          _
        // Predicated region
        $region21: #{inception_block_d.7} parent=15 // pred_check
          %p156 = pneg %p67
        $region22: #{inception_block_d.7} parent=15 // pred_check_branch
          %158 = sbr.rel (%p156) target = $region24
        $region23: #{inception_block_d.7} parent=15 // pred_region
          %s159 = sand.u32 %s57, 1
          %s160 = sand.u32 %s57, 1
          %s161 = smul.addr %s160, 864
          %s162 = scalar_lea.vmem [#allocation2], %s161
          %s163 = smul.addr %s17, 4
          %s164 = scalar_lea.vmem %s1, %s163
          // Predicated region
          $region25: #{inception_block_d.7} parent=23 // pred_check
            _
          $region26: #{inception_block_d.7} parent=23 // pred_check_branch
            %166 = sbr.rel (0) target = $region28
          $region27: #{inception_block_d.7} parent=23 // pred_region
            // Predicated region
            $region29: #{inception_block_d.7} parent=27 // pred_check
              _
            $region30: #{inception_block_d.7} parent=27 // pred_check_branch
              %168 = sbr.rel target = $region32
            $region31: #{inception_block_d.7} parent=27 // pred_region
              // Predicated region
              $region44: #{inception_block_d.7} parent=31 // pred_check
                _
              $region45: #{inception_block_d.7} parent=31 // pred_check_branch
                %614 = sbr.rel (0) target = $region47
              $region46: #{inception_block_d.7} parent=31 // pred_region
                loop: start=0, step=1, limit=1
                $region48: #{inception_block_d.7} parent=46 // loop_pre_header
                  _
                $region49: #{inception_block_d.7} parent=46 // loop_header
                  %s616 = sphi 0, %s620
                  %p617 = scmp.ge.s32.totalorder %s616, 1
                  %s621 = sphi %s164, %s164
                  %s622 = sphi %s162, %s162
                $region50: #{inception_block_d.7} parent=46 // loop_header_branch
                  %619 = sbr.rel (%p617) target = $region54
                $region51: #{inception_block_d.7} parent=46 // loop_body
                  _
                $region52: #{inception_block_d.7} parent=46 // loop_footer
                  %s620 = sadd.s32 1, %s616
                $region53: #{inception_block_d.7} parent=46 // loop_footer_branch
                  %615 = sbr.rel target = $region49
                $region54: #{inception_block_d.7} parent=46 // loop_exit
                  _
                %s624 = ssub.s32 16, 1
                loop: start=0, step=1, limit=1
                $region55: #{inception_block_d.7} parent=46 // loop_pre_header
                  _
                $region56: #{inception_block_d.7} parent=46 // loop_header
                  %s626 = sphi 0, %s630
                  %p627 = scmp.ge.s32.totalorder %s626, 1
                  %s631 = sphi %s164, %s164
                  %s632 = sphi %s162, %s162
                $region57: #{inception_block_d.7} parent=46 // loop_header_branch
                  %629 = sbr.rel (%p627) target = $region61
                $region58: #{inception_block_d.7} parent=46 // loop_body
                  %v633 = vld [vmem:[%s631] sm:%s624]
                  %634 = vst [vmem:[%s632] sm:%s624] %v633
                  %v635 = vld [vmem:[%s631 + $0xc] sm:%s624]
                  %636 = vst [vmem:[%s632 + $0x4] sm:%s624] %v635
                  %v637 = vld [vmem:[%s631 + $0x18] sm:%s624]
                  %638 = vst [vmem:[%s632 + $0x8] sm:%s624] %v637
                  %v639 = vld [vmem:[%s631 + $0x24] sm:%s624]
                  %640 = vst [vmem:[%s632 + $0xc] sm:%s624] %v639
                  %v641 = vld [vmem:[%s631 + $0x30] sm:%s624]
                  %642 = vst [vmem:[%s632 + $0x10] sm:%s624] %v641
                  %v643 = vld [vmem:[%s631 + $0x3c] sm:%s624]
                  %644 = vst [vmem:[%s632 + $0x14] sm:%s624] %v643
                  %v645 = vld [vmem:[%s631 + $0x48] sm:%s624]
                  %646 = vst [vmem:[%s632 + $0x18] sm:%s624] %v645
                  %v647 = vld [vmem:[%s631 + $0x54] sm:%s624]
                  %648 = vst [vmem:[%s632 + $0x1c] sm:%s624] %v647
                  %v649 = vld [vmem:[%s631 + $0x60] sm:%s624]
                  %650 = vst [vmem:[%s632 + $0x20] sm:%s624] %v649
                  %v651 = vld [vmem:[%s631 + $0x6c] sm:%s624]
                  %652 = vst [vmem:[%s632 + $0x24] sm:%s624] %v651
                  %v653 = vld [vmem:[%s631 + $0x78] sm:%s624]
                  %654 = vst [vmem:[%s632 + $0x28] sm:%s624] %v653
                  %v655 = vld [vmem:[%s631 + $0x84] sm:%s624]
                  %656 = vst [vmem:[%s632 + $0x2c] sm:%s624] %v655
                  %v657 = vld [vmem:[%s631 + $0x90] sm:%s624]
                  %658 = vst [vmem:[%s632 + $0x30] sm:%s624] %v657
                  %v659 = vld [vmem:[%s631 + $0x9c] sm:%s624]
                  %660 = vst [vmem:[%s632 + $0x34] sm:%s624] %v659
                  %v661 = vld [vmem:[%s631 + $0xa8] sm:%s624]
                  %662 = vst [vmem:[%s632 + $0x38] sm:%s624] %v661
                  %v663 = vld [vmem:[%s631 + $0xb4] sm:%s624]
                  %664 = vst [vmem:[%s632 + $0x3c] sm:%s624] %v663
                  %v665 = vld [vmem:[%s631 + $0xc0] sm:%s624]
                  %666 = vst [vmem:[%s632 + $0x40] sm:%s624] %v665
                  %v667 = vld [vmem:[%s631 + $0xcc] sm:%s624]
                  %668 = vst [vmem:[%s632 + $0x44] sm:%s624] %v667
                  %v669 = vld [vmem:[%s631 + $0xd8] sm:%s624]
                  %670 = vst [vmem:[%s632 + $0x48] sm:%s624] %v669
                  %v671 = vld [vmem:[%s631 + $0xe4] sm:%s624]
                  %672 = vst [vmem:[%s632 + $0x4c] sm:%s624] %v671
                  %v673 = vld [vmem:[%s631 + $0xf0] sm:%s624]
                  %674 = vst [vmem:[%s632 + $0x50] sm:%s624] %v673
                  %v675 = vld [vmem:[%s631 + $0xfc] sm:%s624]
                  %676 = vst [vmem:[%s632 + $0x54] sm:%s624] %v675
                  %v677 = vld [vmem:[%s631 + $0x108] sm:%s624]
                  %678 = vst [vmem:[%s632 + $0x58] sm:%s624] %v677
                  %v679 = vld [vmem:[%s631 + $0x114] sm:%s624]
                  %680 = vst [vmem:[%s632 + $0x5c] sm:%s624] %v679
                  %v681 = vld [vmem:[%s631 + $0x120] sm:%s624]
                  %682 = vst [vmem:[%s632 + $0x60] sm:%s624] %v681
                  %v683 = vld [vmem:[%s631 + $0x12c] sm:%s624]
                  %684 = vst [vmem:[%s632 + $0x64] sm:%s624] %v683
                  %v685 = vld [vmem:[%s631 + $0x138] sm:%s624]
                  %686 = vst [vmem:[%s632 + $0x68] sm:%s624] %v685
                  %v687 = vld [vmem:[%s631 + $0x144] sm:%s624]
                  %688 = vst [vmem:[%s632 + $0x6c] sm:%s624] %v687
                  %v689 = vld [vmem:[%s631 + $0x150] sm:%s624]
                  %690 = vst [vmem:[%s632 + $0x70] sm:%s624] %v689
                  %v691 = vld [vmem:[%s631 + $0x15c] sm:%s624]
                  %692 = vst [vmem:[%s632 + $0x74] sm:%s624] %v691
                  %v693 = vld [vmem:[%s631 + $0x168] sm:%s624]
                  %694 = vst [vmem:[%s632 + $0x78] sm:%s624] %v693
                  %v695 = vld [vmem:[%s631 + $0x174] sm:%s624]
                  %696 = vst [vmem:[%s632 + $0x7c] sm:%s624] %v695
                  %v697 = vld [vmem:[%s631 + $0x180] sm:%s624]
                  %698 = vst [vmem:[%s632 + $0x80] sm:%s624] %v697
                  %v699 = vld [vmem:[%s631 + $0x18c] sm:%s624]
                  %700 = vst [vmem:[%s632 + $0x84] sm:%s624] %v699
                  %v701 = vld [vmem:[%s631 + $0x198] sm:%s624]
                  %702 = vst [vmem:[%s632 + $0x88] sm:%s624] %v701
                  %v703 = vld [vmem:[%s631 + $0x1a4] sm:%s624]
                  %704 = vst [vmem:[%s632 + $0x8c] sm:%s624] %v703
                  %v705 = vld [vmem:[%s631 + $0x1b0] sm:%s624]
                  %706 = vst [vmem:[%s632 + $0x90] sm:%s624] %v705
                  %v707 = vld [vmem:[%s631 + $0x1bc] sm:%s624]
                  %708 = vst [vmem:[%s632 + $0x94] sm:%s624] %v707
                  %v709 = vld [vmem:[%s631 + $0x1c8] sm:%s624]
                  %710 = vst [vmem:[%s632 + $0x98] sm:%s624] %v709
                  %v711 = vld [vmem:[%s631 + $0x1d4] sm:%s624]
                  %712 = vst [vmem:[%s632 + $0x9c] sm:%s624] %v711
                  %v713 = vld [vmem:[%s631 + $0x1e0] sm:%s624]
                  %714 = vst [vmem:[%s632 + $0xa0] sm:%s624] %v713
                  %v715 = vld [vmem:[%s631 + $0x1ec] sm:%s624]
                  %716 = vst [vmem:[%s632 + $0xa4] sm:%s624] %v715
                  %v717 = vld [vmem:[%s631 + $0x1f8] sm:%s624]
                  %718 = vst [vmem:[%s632 + $0xa8] sm:%s624] %v717
                  %v719 = vld [vmem:[%s631 + $0x204] sm:%s624]
                  %720 = vst [vmem:[%s632 + $0xac] sm:%s624] %v719
                  %v721 = vld [vmem:[%s631 + $0x210] sm:%s624]
                  %722 = vst [vmem:[%s632 + $0xb0] sm:%s624] %v721
                  %v723 = vld [vmem:[%s631 + $0x21c] sm:%s624]
                  %724 = vst [vmem:[%s632 + $0xb4] sm:%s624] %v723
                  %v725 = vld [vmem:[%s631 + $0x228] sm:%s624]
                  %726 = vst [vmem:[%s632 + $0xb8] sm:%s624] %v725
                  %v727 = vld [vmem:[%s631 + $0x234] sm:%s624]
                  %728 = vst [vmem:[%s632 + $0xbc] sm:%s624] %v727
                  %v729 = vld [vmem:[%s631 + $0x240] sm:%s624]
                  %730 = vst [vmem:[%s632 + $0xc0] sm:%s624] %v729
                  %v731 = vld [vmem:[%s631 + $0x24c] sm:%s624]
                  %732 = vst [vmem:[%s632 + $0xc4] sm:%s624] %v731
                  %v733 = vld [vmem:[%s631 + $0x258] sm:%s624]
                  %734 = vst [vmem:[%s632 + $0xc8] sm:%s624] %v733
                  %v735 = vld [vmem:[%s631 + $0x264] sm:%s624]
                  %736 = vst [vmem:[%s632 + $0xcc] sm:%s624] %v735
                  %v737 = vld [vmem:[%s631 + $0x270] sm:%s624]
                  %738 = vst [vmem:[%s632 + $0xd0] sm:%s624] %v737
                  %v739 = vld [vmem:[%s631 + $0x27c] sm:%s624]
                  %740 = vst [vmem:[%s632 + $0xd4] sm:%s624] %v739
                  %v741 = vld [vmem:[%s631 + $0x288] sm:%s624]
                  %742 = vst [vmem:[%s632 + $0xd8] sm:%s624] %v741
                  %v743 = vld [vmem:[%s631 + $0x294] sm:%s624]
                  %744 = vst [vmem:[%s632 + $0xdc] sm:%s624] %v743
                  %v745 = vld [vmem:[%s631 + $0x2a0] sm:%s624]
                  %746 = vst [vmem:[%s632 + $0xe0] sm:%s624] %v745
                  %v747 = vld [vmem:[%s631 + $0x2ac] sm:%s624]
                  %748 = vst [vmem:[%s632 + $0xe4] sm:%s624] %v747
                  %v749 = vld [vmem:[%s631 + $0x2b8] sm:%s624]
                  %750 = vst [vmem:[%s632 + $0xe8] sm:%s624] %v749
                  %v751 = vld [vmem:[%s631 + $0x2c4] sm:%s624]
                  %752 = vst [vmem:[%s632 + $0xec] sm:%s624] %v751
                  %v753 = vld [vmem:[%s631 + $0x2d0] sm:%s624]
                  %754 = vst [vmem:[%s632 + $0xf0] sm:%s624] %v753
                  %v755 = vld [vmem:[%s631 + $0x2dc] sm:%s624]
                  %756 = vst [vmem:[%s632 + $0xf4] sm:%s624] %v755
                  %v757 = vld [vmem:[%s631 + $0x2e8] sm:%s624]
                  %758 = vst [vmem:[%s632 + $0xf8] sm:%s624] %v757
                  %v759 = vld [vmem:[%s631 + $0x2f4] sm:%s624]
                  %760 = vst [vmem:[%s632 + $0xfc] sm:%s624] %v759
                  %v761 = vld [vmem:[%s631 + $0x300] sm:%s624]
                  %762 = vst [vmem:[%s632 + $0x100] sm:%s624] %v761
                  %v763 = vld [vmem:[%s631 + $0x30c] sm:%s624]
                  %764 = vst [vmem:[%s632 + $0x104] sm:%s624] %v763
                  %v765 = vld [vmem:[%s631 + $0x318] sm:%s624]
                  %766 = vst [vmem:[%s632 + $0x108] sm:%s624] %v765
                  %v767 = vld [vmem:[%s631 + $0x324] sm:%s624]
                  %768 = vst [vmem:[%s632 + $0x10c] sm:%s624] %v767
                  %v769 = vld [vmem:[%s631 + $0x330] sm:%s624]
                  %770 = vst [vmem:[%s632 + $0x110] sm:%s624] %v769
                  %v771 = vld [vmem:[%s631 + $0x33c] sm:%s624]
                  %772 = vst [vmem:[%s632 + $0x114] sm:%s624] %v771
                  %v773 = vld [vmem:[%s631 + $0x348] sm:%s624]
                  %774 = vst [vmem:[%s632 + $0x118] sm:%s624] %v773
                  %v775 = vld [vmem:[%s631 + $0x354] sm:%s624]
                  %776 = vst [vmem:[%s632 + $0x11c] sm:%s624] %v775
                  %v777 = vld [vmem:[%s631 + $0x360] sm:%s624]
                  %778 = vst [vmem:[%s632 + $0x120] sm:%s624] %v777
                  %v779 = vld [vmem:[%s631 + $0x36c] sm:%s624]
                  %780 = vst [vmem:[%s632 + $0x124] sm:%s624] %v779
                  %v781 = vld [vmem:[%s631 + $0x378] sm:%s624]
                  %782 = vst [vmem:[%s632 + $0x128] sm:%s624] %v781
                  %v783 = vld [vmem:[%s631 + $0x384] sm:%s624]
                  %784 = vst [vmem:[%s632 + $0x12c] sm:%s624] %v783
                  %v785 = vld [vmem:[%s631 + $0x390] sm:%s624]
                  %786 = vst [vmem:[%s632 + $0x130] sm:%s624] %v785
                  %v787 = vld [vmem:[%s631 + $0x39c] sm:%s624]
                  %788 = vst [vmem:[%s632 + $0x134] sm:%s624] %v787
                  %v789 = vld [vmem:[%s631 + $0x3a8] sm:%s624]
                  %790 = vst [vmem:[%s632 + $0x138] sm:%s624] %v789
                  %v791 = vld [vmem:[%s631 + $0x3b4] sm:%s624]
                  %792 = vst [vmem:[%s632 + $0x13c] sm:%s624] %v791
                  %v793 = vld [vmem:[%s631 + $0x3c0] sm:%s624]
                  %794 = vst [vmem:[%s632 + $0x140] sm:%s624] %v793
                  %v795 = vld [vmem:[%s631 + $0x3cc] sm:%s624]
                  %796 = vst [vmem:[%s632 + $0x144] sm:%s624] %v795
                  %v797 = vld [vmem:[%s631 + $0x3d8] sm:%s624]
                  %798 = vst [vmem:[%s632 + $0x148] sm:%s624] %v797
                  %v799 = vld [vmem:[%s631 + $0x3e4] sm:%s624]
                  %800 = vst [vmem:[%s632 + $0x14c] sm:%s624] %v799
                  %v801 = vld [vmem:[%s631 + $0x3f0] sm:%s624]
                  %802 = vst [vmem:[%s632 + $0x150] sm:%s624] %v801
                  %v803 = vld [vmem:[%s631 + $0x3fc] sm:%s624]
                  %804 = vst [vmem:[%s632 + $0x154] sm:%s624] %v803
                  %v805 = vld [vmem:[%s631 + $0x408] sm:%s624]
                  %806 = vst [vmem:[%s632 + $0x158] sm:%s624] %v805
                  %v807 = vld [vmem:[%s631 + $0x414] sm:%s624]
                  %808 = vst [vmem:[%s632 + $0x15c] sm:%s624] %v807
                  %v809 = vld [vmem:[%s631 + $0x420] sm:%s624]
                  %810 = vst [vmem:[%s632 + $0x160] sm:%s624] %v809
                  %v811 = vld [vmem:[%s631 + $0x42c] sm:%s624]
                  %812 = vst [vmem:[%s632 + $0x164] sm:%s624] %v811
                  %v813 = vld [vmem:[%s631 + $0x438] sm:%s624]
                  %814 = vst [vmem:[%s632 + $0x168] sm:%s624] %v813
                  %v815 = vld [vmem:[%s631 + $0x444] sm:%s624]
                  %816 = vst [vmem:[%s632 + $0x16c] sm:%s624] %v815
                  %v817 = vld [vmem:[%s631 + $0x450] sm:%s624]
                  %818 = vst [vmem:[%s632 + $0x170] sm:%s624] %v817
                  %v819 = vld [vmem:[%s631 + $0x45c] sm:%s624]
                  %820 = vst [vmem:[%s632 + $0x174] sm:%s624] %v819
                  %v821 = vld [vmem:[%s631 + $0x468] sm:%s624]
                  %822 = vst [vmem:[%s632 + $0x178] sm:%s624] %v821
                  %v823 = vld [vmem:[%s631 + $0x474] sm:%s624]
                  %824 = vst [vmem:[%s632 + $0x17c] sm:%s624] %v823
                  %v825 = vld [vmem:[%s631 + $0x480] sm:%s624]
                  %826 = vst [vmem:[%s632 + $0x180] sm:%s624] %v825
                  %v827 = vld [vmem:[%s631 + $0x48c] sm:%s624]
                  %828 = vst [vmem:[%s632 + $0x184] sm:%s624] %v827
                  %v829 = vld [vmem:[%s631 + $0x498] sm:%s624]
                  %830 = vst [vmem:[%s632 + $0x188] sm:%s624] %v829
                  %v831 = vld [vmem:[%s631 + $0x4a4] sm:%s624]
                  %832 = vst [vmem:[%s632 + $0x18c] sm:%s624] %v831
                  %v833 = vld [vmem:[%s631 + $0x4b0] sm:%s624]
                  %834 = vst [vmem:[%s632 + $0x190] sm:%s624] %v833
                  %v835 = vld [vmem:[%s631 + $0x4bc] sm:%s624]
                  %836 = vst [vmem:[%s632 + $0x194] sm:%s624] %v835
                  %v837 = vld [vmem:[%s631 + $0x4c8] sm:%s624]
                  %838 = vst [vmem:[%s632 + $0x198] sm:%s624] %v837
                  %v839 = vld [vmem:[%s631 + $0x4d4] sm:%s624]
                  %840 = vst [vmem:[%s632 + $0x19c] sm:%s624] %v839
                  %v841 = vld [vmem:[%s631 + $0x4e0] sm:%s624]
                  %842 = vst [vmem:[%s632 + $0x1a0] sm:%s624] %v841
                  %v843 = vld [vmem:[%s631 + $0x4ec] sm:%s624]
                  %844 = vst [vmem:[%s632 + $0x1a4] sm:%s624] %v843
                  %v845 = vld [vmem:[%s631 + $0x4f8] sm:%s624]
                  %846 = vst [vmem:[%s632 + $0x1a8] sm:%s624] %v845
                  %v847 = vld [vmem:[%s631 + $0x504] sm:%s624]
                  %848 = vst [vmem:[%s632 + $0x1ac] sm:%s624] %v847
                  %v849 = vld [vmem:[%s631 + $0x510] sm:%s624]
                  %850 = vst [vmem:[%s632 + $0x1b0] sm:%s624] %v849
                  %v851 = vld [vmem:[%s631 + $0x51c] sm:%s624]
                  %852 = vst [vmem:[%s632 + $0x1b4] sm:%s624] %v851
                  %v853 = vld [vmem:[%s631 + $0x528] sm:%s624]
                  %854 = vst [vmem:[%s632 + $0x1b8] sm:%s624] %v853
                  %v855 = vld [vmem:[%s631 + $0x534] sm:%s624]
                  %856 = vst [vmem:[%s632 + $0x1bc] sm:%s624] %v855
                  %v857 = vld [vmem:[%s631 + $0x540] sm:%s624]
                  %858 = vst [vmem:[%s632 + $0x1c0] sm:%s624] %v857
                  %v859 = vld [vmem:[%s631 + $0x54c] sm:%s624]
                  %860 = vst [vmem:[%s632 + $0x1c4] sm:%s624] %v859
                  %v861 = vld [vmem:[%s631 + $0x558] sm:%s624]
                  %862 = vst [vmem:[%s632 + $0x1c8] sm:%s624] %v861
                  %v863 = vld [vmem:[%s631 + $0x564] sm:%s624]
                  %864 = vst [vmem:[%s632 + $0x1cc] sm:%s624] %v863
                  %v865 = vld [vmem:[%s631 + $0x570] sm:%s624]
                  %866 = vst [vmem:[%s632 + $0x1d0] sm:%s624] %v865
                  %v867 = vld [vmem:[%s631 + $0x57c] sm:%s624]
                  %868 = vst [vmem:[%s632 + $0x1d4] sm:%s624] %v867
                  %v869 = vld [vmem:[%s631 + $0x588] sm:%s624]
                  %870 = vst [vmem:[%s632 + $0x1d8] sm:%s624] %v869
                  %v871 = vld [vmem:[%s631 + $0x594] sm:%s624]
                  %872 = vst [vmem:[%s632 + $0x1dc] sm:%s624] %v871
                  %v873 = vld [vmem:[%s631 + $0x5a0] sm:%s624]
                  %874 = vst [vmem:[%s632 + $0x1e0] sm:%s624] %v873
                  %v875 = vld [vmem:[%s631 + $0x5ac] sm:%s624]
                  %876 = vst [vmem:[%s632 + $0x1e4] sm:%s624] %v875
                  %v877 = vld [vmem:[%s631 + $0x5b8] sm:%s624]
                  %878 = vst [vmem:[%s632 + $0x1e8] sm:%s624] %v877
                  %v879 = vld [vmem:[%s631 + $0x5c4] sm:%s624]
                  %880 = vst [vmem:[%s632 + $0x1ec] sm:%s624] %v879
                  %v881 = vld [vmem:[%s631 + $0x5d0] sm:%s624]
                  %882 = vst [vmem:[%s632 + $0x1f0] sm:%s624] %v881
                  %v883 = vld [vmem:[%s631 + $0x5dc] sm:%s624]
                  %884 = vst [vmem:[%s632 + $0x1f4] sm:%s624] %v883
                  %v885 = vld [vmem:[%s631 + $0x5e8] sm:%s624]
                  %886 = vst [vmem:[%s632 + $0x1f8] sm:%s624] %v885
                  %v887 = vld [vmem:[%s631 + $0x5f4] sm:%s624]
                  %888 = vst [vmem:[%s632 + $0x1fc] sm:%s624] %v887
                  %v889 = vld [vmem:[%s631 + $0x600] sm:%s624]
                  %890 = vst [vmem:[%s632 + $0x200] sm:%s624] %v889
                  %v891 = vld [vmem:[%s631 + $0x60c] sm:%s624]
                  %892 = vst [vmem:[%s632 + $0x204] sm:%s624] %v891
                  %v893 = vld [vmem:[%s631 + $0x618] sm:%s624]
                  %894 = vst [vmem:[%s632 + $0x208] sm:%s624] %v893
                  %v895 = vld [vmem:[%s631 + $0x624] sm:%s624]
                  %896 = vst [vmem:[%s632 + $0x20c] sm:%s624] %v895
                  %v897 = vld [vmem:[%s631 + $0x630] sm:%s624]
                  %898 = vst [vmem:[%s632 + $0x210] sm:%s624] %v897
                  %v899 = vld [vmem:[%s631 + $0x63c] sm:%s624]
                  %900 = vst [vmem:[%s632 + $0x214] sm:%s624] %v899
                  %v901 = vld [vmem:[%s631 + $0x648] sm:%s624]
                  %902 = vst [vmem:[%s632 + $0x218] sm:%s624] %v901
                  %v903 = vld [vmem:[%s631 + $0x654] sm:%s624]
                  %904 = vst [vmem:[%s632 + $0x21c] sm:%s624] %v903
                  %v905 = vld [vmem:[%s631 + $0x660] sm:%s624]
                  %906 = vst [vmem:[%s632 + $0x220] sm:%s624] %v905
                  %v907 = vld [vmem:[%s631 + $0x66c] sm:%s624]
                  %908 = vst [vmem:[%s632 + $0x224] sm:%s624] %v907
                  %v909 = vld [vmem:[%s631 + $0x678] sm:%s624]
                  %910 = vst [vmem:[%s632 + $0x228] sm:%s624] %v909
                  %v911 = vld [vmem:[%s631 + $0x684] sm:%s624]
                  %912 = vst [vmem:[%s632 + $0x22c] sm:%s624] %v911
                  %v913 = vld [vmem:[%s631 + $0x690] sm:%s624]
                  %914 = vst [vmem:[%s632 + $0x230] sm:%s624] %v913
                  %v915 = vld [vmem:[%s631 + $0x69c] sm:%s624]
                  %916 = vst [vmem:[%s632 + $0x234] sm:%s624] %v915
                  %v917 = vld [vmem:[%s631 + $0x6a8] sm:%s624]
                  %918 = vst [vmem:[%s632 + $0x238] sm:%s624] %v917
                  %v919 = vld [vmem:[%s631 + $0x6b4] sm:%s624]
                  %920 = vst [vmem:[%s632 + $0x23c] sm:%s624] %v919
                  %v921 = vld [vmem:[%s631 + $0x6c0] sm:%s624]
                  %922 = vst [vmem:[%s632 + $0x240] sm:%s624] %v921
                  %v923 = vld [vmem:[%s631 + $0x6cc] sm:%s624]
                  %924 = vst [vmem:[%s632 + $0x244] sm:%s624] %v923
                  %v925 = vld [vmem:[%s631 + $0x6d8] sm:%s624]
                  %926 = vst [vmem:[%s632 + $0x248] sm:%s624] %v925
                  %v927 = vld [vmem:[%s631 + $0x6e4] sm:%s624]
                  %928 = vst [vmem:[%s632 + $0x24c] sm:%s624] %v927
                  %v929 = vld [vmem:[%s631 + $0x6f0] sm:%s624]
                  %930 = vst [vmem:[%s632 + $0x250] sm:%s624] %v929
                  %v931 = vld [vmem:[%s631 + $0x6fc] sm:%s624]
                  %932 = vst [vmem:[%s632 + $0x254] sm:%s624] %v931
                  %v933 = vld [vmem:[%s631 + $0x708] sm:%s624]
                  %934 = vst [vmem:[%s632 + $0x258] sm:%s624] %v933
                  %v935 = vld [vmem:[%s631 + $0x714] sm:%s624]
                  %936 = vst [vmem:[%s632 + $0x25c] sm:%s624] %v935
                  %v937 = vld [vmem:[%s631 + $0x720] sm:%s624]
                  %938 = vst [vmem:[%s632 + $0x260] sm:%s624] %v937
                  %v939 = vld [vmem:[%s631 + $0x72c] sm:%s624]
                  %940 = vst [vmem:[%s632 + $0x264] sm:%s624] %v939
                  %v941 = vld [vmem:[%s631 + $0x738] sm:%s624]
                  %942 = vst [vmem:[%s632 + $0x268] sm:%s624] %v941
                  %v943 = vld [vmem:[%s631 + $0x744] sm:%s624]
                  %944 = vst [vmem:[%s632 + $0x26c] sm:%s624] %v943
                  %v945 = vld [vmem:[%s631 + $0x750] sm:%s624]
                  %946 = vst [vmem:[%s632 + $0x270] sm:%s624] %v945
                  %v947 = vld [vmem:[%s631 + $0x75c] sm:%s624]
                  %948 = vst [vmem:[%s632 + $0x274] sm:%s624] %v947
                  %v949 = vld [vmem:[%s631 + $0x768] sm:%s624]
                  %950 = vst [vmem:[%s632 + $0x278] sm:%s624] %v949
                  %v951 = vld [vmem:[%s631 + $0x774] sm:%s624]
                  %952 = vst [vmem:[%s632 + $0x27c] sm:%s624] %v951
                  %v953 = vld [vmem:[%s631 + $0x780] sm:%s624]
                  %954 = vst [vmem:[%s632 + $0x280] sm:%s624] %v953
                  %v955 = vld [vmem:[%s631 + $0x78c] sm:%s624]
                  %956 = vst [vmem:[%s632 + $0x284] sm:%s624] %v955
                  %v957 = vld [vmem:[%s631 + $0x798] sm:%s624]
                  %958 = vst [vmem:[%s632 + $0x288] sm:%s624] %v957
                  %v959 = vld [vmem:[%s631 + $0x7a4] sm:%s624]
                  %960 = vst [vmem:[%s632 + $0x28c] sm:%s624] %v959
                  %v961 = vld [vmem:[%s631 + $0x7b0] sm:%s624]
                  %962 = vst [vmem:[%s632 + $0x290] sm:%s624] %v961
                  %v963 = vld [vmem:[%s631 + $0x7bc] sm:%s624]
                  %964 = vst [vmem:[%s632 + $0x294] sm:%s624] %v963
                  %v965 = vld [vmem:[%s631 + $0x7c8] sm:%s624]
                  %966 = vst [vmem:[%s632 + $0x298] sm:%s624] %v965
                  %v967 = vld [vmem:[%s631 + $0x7d4] sm:%s624]
                  %968 = vst [vmem:[%s632 + $0x29c] sm:%s624] %v967
                  %v969 = vld [vmem:[%s631 + $0x7e0] sm:%s624]
                  %970 = vst [vmem:[%s632 + $0x2a0] sm:%s624] %v969
                  %v971 = vld [vmem:[%s631 + $0x7ec] sm:%s624]
                  %972 = vst [vmem:[%s632 + $0x2a4] sm:%s624] %v971
                  %v973 = vld [vmem:[%s631 + $0x7f8] sm:%s624]
                  %974 = vst [vmem:[%s632 + $0x2a8] sm:%s624] %v973
                  %v975 = vld [vmem:[%s631 + $0x804] sm:%s624]
                  %976 = vst [vmem:[%s632 + $0x2ac] sm:%s624] %v975
                  %v977 = vld [vmem:[%s631 + $0x810] sm:%s624]
                  %978 = vst [vmem:[%s632 + $0x2b0] sm:%s624] %v977
                  %v979 = vld [vmem:[%s631 + $0x81c] sm:%s624]
                  %980 = vst [vmem:[%s632 + $0x2b4] sm:%s624] %v979
                  %v981 = vld [vmem:[%s631 + $0x828] sm:%s624]
                  %982 = vst [vmem:[%s632 + $0x2b8] sm:%s624] %v981
                  %v983 = vld [vmem:[%s631 + $0x834] sm:%s624]
                  %984 = vst [vmem:[%s632 + $0x2bc] sm:%s624] %v983
                  %v985 = vld [vmem:[%s631 + $0x840] sm:%s624]
                  %986 = vst [vmem:[%s632 + $0x2c0] sm:%s624] %v985
                  %v987 = vld [vmem:[%s631 + $0x84c] sm:%s624]
                  %988 = vst [vmem:[%s632 + $0x2c4] sm:%s624] %v987
                  %v989 = vld [vmem:[%s631 + $0x858] sm:%s624]
                  %990 = vst [vmem:[%s632 + $0x2c8] sm:%s624] %v989
                  %v991 = vld [vmem:[%s631 + $0x864] sm:%s624]
                  %992 = vst [vmem:[%s632 + $0x2cc] sm:%s624] %v991
                  %v993 = vld [vmem:[%s631 + $0x870] sm:%s624]
                  %994 = vst [vmem:[%s632 + $0x2d0] sm:%s624] %v993
                  %v995 = vld [vmem:[%s631 + $0x87c] sm:%s624]
                  %996 = vst [vmem:[%s632 + $0x2d4] sm:%s624] %v995
                  %v997 = vld [vmem:[%s631 + $0x888] sm:%s624]
                  %998 = vst [vmem:[%s632 + $0x2d8] sm:%s624] %v997
                  %v999 = vld [vmem:[%s631 + $0x894] sm:%s624]
                  %1000 = vst [vmem:[%s632 + $0x2dc] sm:%s624] %v999
                  %v1001 = vld [vmem:[%s631 + $0x8a0] sm:%s624]
                  %1002 = vst [vmem:[%s632 + $0x2e0] sm:%s624] %v1001
                  %v1003 = vld [vmem:[%s631 + $0x8ac] sm:%s624]
                  %1004 = vst [vmem:[%s632 + $0x2e4] sm:%s624] %v1003
                  %v1005 = vld [vmem:[%s631 + $0x8b8] sm:%s624]
                  %1006 = vst [vmem:[%s632 + $0x2e8] sm:%s624] %v1005
                  %v1007 = vld [vmem:[%s631 + $0x8c4] sm:%s624]
                  %1008 = vst [vmem:[%s632 + $0x2ec] sm:%s624] %v1007
                  %v1009 = vld [vmem:[%s631 + $0x8d0] sm:%s624]
                  %1010 = vst [vmem:[%s632 + $0x2f0] sm:%s624] %v1009
                  %v1011 = vld [vmem:[%s631 + $0x8dc] sm:%s624]
                  %1012 = vst [vmem:[%s632 + $0x2f4] sm:%s624] %v1011
                  %v1013 = vld [vmem:[%s631 + $0x8e8] sm:%s624]
                  %1014 = vst [vmem:[%s632 + $0x2f8] sm:%s624] %v1013
                  %v1015 = vld [vmem:[%s631 + $0x8f4] sm:%s624]
                  %1016 = vst [vmem:[%s632 + $0x2fc] sm:%s624] %v1015
                  %v1017 = vld [vmem:[%s631 + $0x900] sm:%s624]
                  %1018 = vst [vmem:[%s632 + $0x300] sm:%s624] %v1017
                  %v1019 = vld [vmem:[%s631 + $0x90c] sm:%s624]
                  %1020 = vst [vmem:[%s632 + $0x304] sm:%s624] %v1019
                  %v1021 = vld [vmem:[%s631 + $0x918] sm:%s624]
                  %1022 = vst [vmem:[%s632 + $0x308] sm:%s624] %v1021
                  %v1023 = vld [vmem:[%s631 + $0x924] sm:%s624]
                  %1024 = vst [vmem:[%s632 + $0x30c] sm:%s624] %v1023
                  %v1025 = vld [vmem:[%s631 + $0x930] sm:%s624]
                  %1026 = vst [vmem:[%s632 + $0x310] sm:%s624] %v1025
                  %v1027 = vld [vmem:[%s631 + $0x93c] sm:%s624]
                  %1028 = vst [vmem:[%s632 + $0x314] sm:%s624] %v1027
                  %v1029 = vld [vmem:[%s631 + $0x948] sm:%s624]
                  %1030 = vst [vmem:[%s632 + $0x318] sm:%s624] %v1029
                  %v1031 = vld [vmem:[%s631 + $0x954] sm:%s624]
                  %1032 = vst [vmem:[%s632 + $0x31c] sm:%s624] %v1031
                  %v1033 = vld [vmem:[%s631 + $0x960] sm:%s624]
                  %1034 = vst [vmem:[%s632 + $0x320] sm:%s624] %v1033
                  %v1035 = vld [vmem:[%s631 + $0x96c] sm:%s624]
                  %1036 = vst [vmem:[%s632 + $0x324] sm:%s624] %v1035
                  %v1037 = vld [vmem:[%s631 + $0x978] sm:%s624]
                  %1038 = vst [vmem:[%s632 + $0x328] sm:%s624] %v1037
                  %v1039 = vld [vmem:[%s631 + $0x984] sm:%s624]
                  %1040 = vst [vmem:[%s632 + $0x32c] sm:%s624] %v1039
                  %v1041 = vld [vmem:[%s631 + $0x990] sm:%s624]
                  %1042 = vst [vmem:[%s632 + $0x330] sm:%s624] %v1041
                  %v1043 = vld [vmem:[%s631 + $0x99c] sm:%s624]
                  %1044 = vst [vmem:[%s632 + $0x334] sm:%s624] %v1043
                  %v1045 = vld [vmem:[%s631 + $0x9a8] sm:%s624]
                  %1046 = vst [vmem:[%s632 + $0x338] sm:%s624] %v1045
                  %v1047 = vld [vmem:[%s631 + $0x9b4] sm:%s624]
                  %1048 = vst [vmem:[%s632 + $0x33c] sm:%s624] %v1047
                  %v1049 = vld [vmem:[%s631 + $0x9c0] sm:%s624]
                  %1050 = vst [vmem:[%s632 + $0x340] sm:%s624] %v1049
                  %v1051 = vld [vmem:[%s631 + $0x9cc] sm:%s624]
                  %1052 = vst [vmem:[%s632 + $0x344] sm:%s624] %v1051
                  %v1053 = vld [vmem:[%s631 + $0x9d8] sm:%s624]
                  %1054 = vst [vmem:[%s632 + $0x348] sm:%s624] %v1053
                  %v1055 = vld [vmem:[%s631 + $0x9e4] sm:%s624]
                  %1056 = vst [vmem:[%s632 + $0x34c] sm:%s624] %v1055
                  %v1057 = vld [vmem:[%s631 + $0x9f0] sm:%s624]
                  %1058 = vst [vmem:[%s632 + $0x350] sm:%s624] %v1057
                  %v1059 = vld [vmem:[%s631 + $0x9fc] sm:%s624]
                  %1060 = vst [vmem:[%s632 + $0x354] sm:%s624] %v1059
                  %v1061 = vld [vmem:[%s631 + $0xa08] sm:%s624]
                  %1062 = vst [vmem:[%s632 + $0x358] sm:%s624] %v1061
                  %v1063 = vld [vmem:[%s631 + $0xa14] sm:%s624]
                  %1064 = vst [vmem:[%s632 + $0x35c] sm:%s624] %v1063
                $region59: #{inception_block_d.7} parent=46 // loop_footer
                  %s630 = sadd.s32 1, %s626
                $region60: #{inception_block_d.7} parent=46 // loop_footer_branch
                  %625 = sbr.rel target = $region56
                $region61: #{inception_block_d.7} parent=46 // loop_exit
                  _
              $region47: #{inception_block_d.7} parent=31 // pred_fallthru
                _
            $region32: #{inception_block_d.7} parent=27 // pred_fallthru
              _
            // Predicated region
            $region33: #{inception_block_d.7} parent=27 // pred_check
              _
            $region34: #{inception_block_d.7} parent=27 // pred_check_branch
              %170 = sbr.rel (0) target = $region36
            $region35: #{inception_block_d.7} parent=27 // pred_region
              %s172 = ssub.s32 16, 1
              loop: start=0, step=1, limit=1
              $region37: #{inception_block_d.7} parent=35 // loop_pre_header
                _
              $region38: #{inception_block_d.7} parent=35 // loop_header
                %s174 = sphi 0, %s178
                %p175 = scmp.ge.s32.totalorder %s174, 1
                %s179 = sphi %s164, %s164
                %s180 = sphi %s162, %s162
              $region39: #{inception_block_d.7} parent=35 // loop_header_branch
                %177 = sbr.rel (%p175) target = $region43
              $region40: #{inception_block_d.7} parent=35 // loop_body
                %v181 = vld [vmem:[%s179] sm:%s172]
                %182 = vst [vmem:[%s180] sm:%s172] %v181
                %v183 = vld [vmem:[%s179 + $0xc] sm:%s172]
                %184 = vst [vmem:[%s180 + $0x4] sm:%s172] %v183
                %v185 = vld [vmem:[%s179 + $0x18] sm:%s172]
                %186 = vst [vmem:[%s180 + $0x8] sm:%s172] %v185
                %v187 = vld [vmem:[%s179 + $0x24] sm:%s172]
                %188 = vst [vmem:[%s180 + $0xc] sm:%s172] %v187
                %v189 = vld [vmem:[%s179 + $0x30] sm:%s172]
                %190 = vst [vmem:[%s180 + $0x10] sm:%s172] %v189
                %v191 = vld [vmem:[%s179 + $0x3c] sm:%s172]
                %192 = vst [vmem:[%s180 + $0x14] sm:%s172] %v191
                %v193 = vld [vmem:[%s179 + $0x48] sm:%s172]
                %194 = vst [vmem:[%s180 + $0x18] sm:%s172] %v193
                %v195 = vld [vmem:[%s179 + $0x54] sm:%s172]
                %196 = vst [vmem:[%s180 + $0x1c] sm:%s172] %v195
                %v197 = vld [vmem:[%s179 + $0x60] sm:%s172]
                %198 = vst [vmem:[%s180 + $0x20] sm:%s172] %v197
                %v199 = vld [vmem:[%s179 + $0x6c] sm:%s172]
                %200 = vst [vmem:[%s180 + $0x24] sm:%s172] %v199
                %v201 = vld [vmem:[%s179 + $0x78] sm:%s172]
                %202 = vst [vmem:[%s180 + $0x28] sm:%s172] %v201
                %v203 = vld [vmem:[%s179 + $0x84] sm:%s172]
                %204 = vst [vmem:[%s180 + $0x2c] sm:%s172] %v203
                %v205 = vld [vmem:[%s179 + $0x90] sm:%s172]
                %206 = vst [vmem:[%s180 + $0x30] sm:%s172] %v205
                %v207 = vld [vmem:[%s179 + $0x9c] sm:%s172]
                %208 = vst [vmem:[%s180 + $0x34] sm:%s172] %v207
                %v209 = vld [vmem:[%s179 + $0xa8] sm:%s172]
                %210 = vst [vmem:[%s180 + $0x38] sm:%s172] %v209
                %v211 = vld [vmem:[%s179 + $0xb4] sm:%s172]
                %212 = vst [vmem:[%s180 + $0x3c] sm:%s172] %v211
                %v213 = vld [vmem:[%s179 + $0xc0] sm:%s172]
                %214 = vst [vmem:[%s180 + $0x40] sm:%s172] %v213
                %v215 = vld [vmem:[%s179 + $0xcc] sm:%s172]
                %216 = vst [vmem:[%s180 + $0x44] sm:%s172] %v215
                %v217 = vld [vmem:[%s179 + $0xd8] sm:%s172]
                %218 = vst [vmem:[%s180 + $0x48] sm:%s172] %v217
                %v219 = vld [vmem:[%s179 + $0xe4] sm:%s172]
                %220 = vst [vmem:[%s180 + $0x4c] sm:%s172] %v219
                %v221 = vld [vmem:[%s179 + $0xf0] sm:%s172]
                %222 = vst [vmem:[%s180 + $0x50] sm:%s172] %v221
                %v223 = vld [vmem:[%s179 + $0xfc] sm:%s172]
                %224 = vst [vmem:[%s180 + $0x54] sm:%s172] %v223
                %v225 = vld [vmem:[%s179 + $0x108] sm:%s172]
                %226 = vst [vmem:[%s180 + $0x58] sm:%s172] %v225
                %v227 = vld [vmem:[%s179 + $0x114] sm:%s172]
                %228 = vst [vmem:[%s180 + $0x5c] sm:%s172] %v227
                %v229 = vld [vmem:[%s179 + $0x120] sm:%s172]
                %230 = vst [vmem:[%s180 + $0x60] sm:%s172] %v229
                %v231 = vld [vmem:[%s179 + $0x12c] sm:%s172]
                %232 = vst [vmem:[%s180 + $0x64] sm:%s172] %v231
                %v233 = vld [vmem:[%s179 + $0x138] sm:%s172]
                %234 = vst [vmem:[%s180 + $0x68] sm:%s172] %v233
                %v235 = vld [vmem:[%s179 + $0x144] sm:%s172]
                %236 = vst [vmem:[%s180 + $0x6c] sm:%s172] %v235
                %v237 = vld [vmem:[%s179 + $0x150] sm:%s172]
                %238 = vst [vmem:[%s180 + $0x70] sm:%s172] %v237
                %v239 = vld [vmem:[%s179 + $0x15c] sm:%s172]
                %240 = vst [vmem:[%s180 + $0x74] sm:%s172] %v239
                %v241 = vld [vmem:[%s179 + $0x168] sm:%s172]
                %242 = vst [vmem:[%s180 + $0x78] sm:%s172] %v241
                %v243 = vld [vmem:[%s179 + $0x174] sm:%s172]
                %244 = vst [vmem:[%s180 + $0x7c] sm:%s172] %v243
                %v245 = vld [vmem:[%s179 + $0x180] sm:%s172]
                %246 = vst [vmem:[%s180 + $0x80] sm:%s172] %v245
                %v247 = vld [vmem:[%s179 + $0x18c] sm:%s172]
                %248 = vst [vmem:[%s180 + $0x84] sm:%s172] %v247
                %v249 = vld [vmem:[%s179 + $0x198] sm:%s172]
                %250 = vst [vmem:[%s180 + $0x88] sm:%s172] %v249
                %v251 = vld [vmem:[%s179 + $0x1a4] sm:%s172]
                %252 = vst [vmem:[%s180 + $0x8c] sm:%s172] %v251
                %v253 = vld [vmem:[%s179 + $0x1b0] sm:%s172]
                %254 = vst [vmem:[%s180 + $0x90] sm:%s172] %v253
                %v255 = vld [vmem:[%s179 + $0x1bc] sm:%s172]
                %256 = vst [vmem:[%s180 + $0x94] sm:%s172] %v255
                %v257 = vld [vmem:[%s179 + $0x1c8] sm:%s172]
                %258 = vst [vmem:[%s180 + $0x98] sm:%s172] %v257
                %v259 = vld [vmem:[%s179 + $0x1d4] sm:%s172]
                %260 = vst [vmem:[%s180 + $0x9c] sm:%s172] %v259
                %v261 = vld [vmem:[%s179 + $0x1e0] sm:%s172]
                %262 = vst [vmem:[%s180 + $0xa0] sm:%s172] %v261
                %v263 = vld [vmem:[%s179 + $0x1ec] sm:%s172]
                %264 = vst [vmem:[%s180 + $0xa4] sm:%s172] %v263
                %v265 = vld [vmem:[%s179 + $0x1f8] sm:%s172]
                %266 = vst [vmem:[%s180 + $0xa8] sm:%s172] %v265
                %v267 = vld [vmem:[%s179 + $0x204] sm:%s172]
                %268 = vst [vmem:[%s180 + $0xac] sm:%s172] %v267
                %v269 = vld [vmem:[%s179 + $0x210] sm:%s172]
                %270 = vst [vmem:[%s180 + $0xb0] sm:%s172] %v269
                %v271 = vld [vmem:[%s179 + $0x21c] sm:%s172]
                %272 = vst [vmem:[%s180 + $0xb4] sm:%s172] %v271
                %v273 = vld [vmem:[%s179 + $0x228] sm:%s172]
                %274 = vst [vmem:[%s180 + $0xb8] sm:%s172] %v273
                %v275 = vld [vmem:[%s179 + $0x234] sm:%s172]
                %276 = vst [vmem:[%s180 + $0xbc] sm:%s172] %v275
                %v277 = vld [vmem:[%s179 + $0x240] sm:%s172]
                %278 = vst [vmem:[%s180 + $0xc0] sm:%s172] %v277
                %v279 = vld [vmem:[%s179 + $0x24c] sm:%s172]
                %280 = vst [vmem:[%s180 + $0xc4] sm:%s172] %v279
                %v281 = vld [vmem:[%s179 + $0x258] sm:%s172]
                %282 = vst [vmem:[%s180 + $0xc8] sm:%s172] %v281
                %v283 = vld [vmem:[%s179 + $0x264] sm:%s172]
                %284 = vst [vmem:[%s180 + $0xcc] sm:%s172] %v283
                %v285 = vld [vmem:[%s179 + $0x270] sm:%s172]
                %286 = vst [vmem:[%s180 + $0xd0] sm:%s172] %v285
                %v287 = vld [vmem:[%s179 + $0x27c] sm:%s172]
                %288 = vst [vmem:[%s180 + $0xd4] sm:%s172] %v287
                %v289 = vld [vmem:[%s179 + $0x288] sm:%s172]
                %290 = vst [vmem:[%s180 + $0xd8] sm:%s172] %v289
                %v291 = vld [vmem:[%s179 + $0x294] sm:%s172]
                %292 = vst [vmem:[%s180 + $0xdc] sm:%s172] %v291
                %v293 = vld [vmem:[%s179 + $0x2a0] sm:%s172]
                %294 = vst [vmem:[%s180 + $0xe0] sm:%s172] %v293
                %v295 = vld [vmem:[%s179 + $0x2ac] sm:%s172]
                %296 = vst [vmem:[%s180 + $0xe4] sm:%s172] %v295
                %v297 = vld [vmem:[%s179 + $0x2b8] sm:%s172]
                %298 = vst [vmem:[%s180 + $0xe8] sm:%s172] %v297
                %v299 = vld [vmem:[%s179 + $0x2c4] sm:%s172]
                %300 = vst [vmem:[%s180 + $0xec] sm:%s172] %v299
                %v301 = vld [vmem:[%s179 + $0x2d0] sm:%s172]
                %302 = vst [vmem:[%s180 + $0xf0] sm:%s172] %v301
                %v303 = vld [vmem:[%s179 + $0x2dc] sm:%s172]
                %304 = vst [vmem:[%s180 + $0xf4] sm:%s172] %v303
                %v305 = vld [vmem:[%s179 + $0x2e8] sm:%s172]
                %306 = vst [vmem:[%s180 + $0xf8] sm:%s172] %v305
                %v307 = vld [vmem:[%s179 + $0x2f4] sm:%s172]
                %308 = vst [vmem:[%s180 + $0xfc] sm:%s172] %v307
                %v309 = vld [vmem:[%s179 + $0x300] sm:%s172]
                %310 = vst [vmem:[%s180 + $0x100] sm:%s172] %v309
                %v311 = vld [vmem:[%s179 + $0x30c] sm:%s172]
                %312 = vst [vmem:[%s180 + $0x104] sm:%s172] %v311
                %v313 = vld [vmem:[%s179 + $0x318] sm:%s172]
                %314 = vst [vmem:[%s180 + $0x108] sm:%s172] %v313
                %v315 = vld [vmem:[%s179 + $0x324] sm:%s172]
                %316 = vst [vmem:[%s180 + $0x10c] sm:%s172] %v315
                %v317 = vld [vmem:[%s179 + $0x330] sm:%s172]
                %318 = vst [vmem:[%s180 + $0x110] sm:%s172] %v317
                %v319 = vld [vmem:[%s179 + $0x33c] sm:%s172]
                %320 = vst [vmem:[%s180 + $0x114] sm:%s172] %v319
                %v321 = vld [vmem:[%s179 + $0x348] sm:%s172]
                %322 = vst [vmem:[%s180 + $0x118] sm:%s172] %v321
                %v323 = vld [vmem:[%s179 + $0x354] sm:%s172]
                %324 = vst [vmem:[%s180 + $0x11c] sm:%s172] %v323
                %v325 = vld [vmem:[%s179 + $0x360] sm:%s172]
                %326 = vst [vmem:[%s180 + $0x120] sm:%s172] %v325
                %v327 = vld [vmem:[%s179 + $0x36c] sm:%s172]
                %328 = vst [vmem:[%s180 + $0x124] sm:%s172] %v327
                %v329 = vld [vmem:[%s179 + $0x378] sm:%s172]
                %330 = vst [vmem:[%s180 + $0x128] sm:%s172] %v329
                %v331 = vld [vmem:[%s179 + $0x384] sm:%s172]
                %332 = vst [vmem:[%s180 + $0x12c] sm:%s172] %v331
                %v333 = vld [vmem:[%s179 + $0x390] sm:%s172]
                %334 = vst [vmem:[%s180 + $0x130] sm:%s172] %v333
                %v335 = vld [vmem:[%s179 + $0x39c] sm:%s172]
                %336 = vst [vmem:[%s180 + $0x134] sm:%s172] %v335
                %v337 = vld [vmem:[%s179 + $0x3a8] sm:%s172]
                %338 = vst [vmem:[%s180 + $0x138] sm:%s172] %v337
                %v339 = vld [vmem:[%s179 + $0x3b4] sm:%s172]
                %340 = vst [vmem:[%s180 + $0x13c] sm:%s172] %v339
                %v341 = vld [vmem:[%s179 + $0x3c0] sm:%s172]
                %342 = vst [vmem:[%s180 + $0x140] sm:%s172] %v341
                %v343 = vld [vmem:[%s179 + $0x3cc] sm:%s172]
                %344 = vst [vmem:[%s180 + $0x144] sm:%s172] %v343
                %v345 = vld [vmem:[%s179 + $0x3d8] sm:%s172]
                %346 = vst [vmem:[%s180 + $0x148] sm:%s172] %v345
                %v347 = vld [vmem:[%s179 + $0x3e4] sm:%s172]
                %348 = vst [vmem:[%s180 + $0x14c] sm:%s172] %v347
                %v349 = vld [vmem:[%s179 + $0x3f0] sm:%s172]
                %350 = vst [vmem:[%s180 + $0x150] sm:%s172] %v349
                %v351 = vld [vmem:[%s179 + $0x3fc] sm:%s172]
                %352 = vst [vmem:[%s180 + $0x154] sm:%s172] %v351
                %v353 = vld [vmem:[%s179 + $0x408] sm:%s172]
                %354 = vst [vmem:[%s180 + $0x158] sm:%s172] %v353
                %v355 = vld [vmem:[%s179 + $0x414] sm:%s172]
                %356 = vst [vmem:[%s180 + $0x15c] sm:%s172] %v355
                %v357 = vld [vmem:[%s179 + $0x420] sm:%s172]
                %358 = vst [vmem:[%s180 + $0x160] sm:%s172] %v357
                %v359 = vld [vmem:[%s179 + $0x42c] sm:%s172]
                %360 = vst [vmem:[%s180 + $0x164] sm:%s172] %v359
                %v361 = vld [vmem:[%s179 + $0x438] sm:%s172]
                %362 = vst [vmem:[%s180 + $0x168] sm:%s172] %v361
                %v363 = vld [vmem:[%s179 + $0x444] sm:%s172]
                %364 = vst [vmem:[%s180 + $0x16c] sm:%s172] %v363
                %v365 = vld [vmem:[%s179 + $0x450] sm:%s172]
                %366 = vst [vmem:[%s180 + $0x170] sm:%s172] %v365
                %v367 = vld [vmem:[%s179 + $0x45c] sm:%s172]
                %368 = vst [vmem:[%s180 + $0x174] sm:%s172] %v367
                %v369 = vld [vmem:[%s179 + $0x468] sm:%s172]
                %370 = vst [vmem:[%s180 + $0x178] sm:%s172] %v369
                %v371 = vld [vmem:[%s179 + $0x474] sm:%s172]
                %372 = vst [vmem:[%s180 + $0x17c] sm:%s172] %v371
                %v373 = vld [vmem:[%s179 + $0x480] sm:%s172]
                %374 = vst [vmem:[%s180 + $0x180] sm:%s172] %v373
                %v375 = vld [vmem:[%s179 + $0x48c] sm:%s172]
                %376 = vst [vmem:[%s180 + $0x184] sm:%s172] %v375
                %v377 = vld [vmem:[%s179 + $0x498] sm:%s172]
                %378 = vst [vmem:[%s180 + $0x188] sm:%s172] %v377
                %v379 = vld [vmem:[%s179 + $0x4a4] sm:%s172]
                %380 = vst [vmem:[%s180 + $0x18c] sm:%s172] %v379
                %v381 = vld [vmem:[%s179 + $0x4b0] sm:%s172]
                %382 = vst [vmem:[%s180 + $0x190] sm:%s172] %v381
                %v383 = vld [vmem:[%s179 + $0x4bc] sm:%s172]
                %384 = vst [vmem:[%s180 + $0x194] sm:%s172] %v383
                %v385 = vld [vmem:[%s179 + $0x4c8] sm:%s172]
                %386 = vst [vmem:[%s180 + $0x198] sm:%s172] %v385
                %v387 = vld [vmem:[%s179 + $0x4d4] sm:%s172]
                %388 = vst [vmem:[%s180 + $0x19c] sm:%s172] %v387
                %v389 = vld [vmem:[%s179 + $0x4e0] sm:%s172]
                %390 = vst [vmem:[%s180 + $0x1a0] sm:%s172] %v389
                %v391 = vld [vmem:[%s179 + $0x4ec] sm:%s172]
                %392 = vst [vmem:[%s180 + $0x1a4] sm:%s172] %v391
                %v393 = vld [vmem:[%s179 + $0x4f8] sm:%s172]
                %394 = vst [vmem:[%s180 + $0x1a8] sm:%s172] %v393
                %v395 = vld [vmem:[%s179 + $0x504] sm:%s172]
                %396 = vst [vmem:[%s180 + $0x1ac] sm:%s172] %v395
                %v397 = vld [vmem:[%s179 + $0x510] sm:%s172]
                %398 = vst [vmem:[%s180 + $0x1b0] sm:%s172] %v397
                %v399 = vld [vmem:[%s179 + $0x51c] sm:%s172]
                %400 = vst [vmem:[%s180 + $0x1b4] sm:%s172] %v399
                %v401 = vld [vmem:[%s179 + $0x528] sm:%s172]
                %402 = vst [vmem:[%s180 + $0x1b8] sm:%s172] %v401
                %v403 = vld [vmem:[%s179 + $0x534] sm:%s172]
                %404 = vst [vmem:[%s180 + $0x1bc] sm:%s172] %v403
                %v405 = vld [vmem:[%s179 + $0x540] sm:%s172]
                %406 = vst [vmem:[%s180 + $0x1c0] sm:%s172] %v405
                %v407 = vld [vmem:[%s179 + $0x54c] sm:%s172]
                %408 = vst [vmem:[%s180 + $0x1c4] sm:%s172] %v407
                %v409 = vld [vmem:[%s179 + $0x558] sm:%s172]
                %410 = vst [vmem:[%s180 + $0x1c8] sm:%s172] %v409
                %v411 = vld [vmem:[%s179 + $0x564] sm:%s172]
                %412 = vst [vmem:[%s180 + $0x1cc] sm:%s172] %v411
                %v413 = vld [vmem:[%s179 + $0x570] sm:%s172]
                %414 = vst [vmem:[%s180 + $0x1d0] sm:%s172] %v413
                %v415 = vld [vmem:[%s179 + $0x57c] sm:%s172]
                %416 = vst [vmem:[%s180 + $0x1d4] sm:%s172] %v415
                %v417 = vld [vmem:[%s179 + $0x588] sm:%s172]
                %418 = vst [vmem:[%s180 + $0x1d8] sm:%s172] %v417
                %v419 = vld [vmem:[%s179 + $0x594] sm:%s172]
                %420 = vst [vmem:[%s180 + $0x1dc] sm:%s172] %v419
                %v421 = vld [vmem:[%s179 + $0x5a0] sm:%s172]
                %422 = vst [vmem:[%s180 + $0x1e0] sm:%s172] %v421
                %v423 = vld [vmem:[%s179 + $0x5ac] sm:%s172]
                %424 = vst [vmem:[%s180 + $0x1e4] sm:%s172] %v423
                %v425 = vld [vmem:[%s179 + $0x5b8] sm:%s172]
                %426 = vst [vmem:[%s180 + $0x1e8] sm:%s172] %v425
                %v427 = vld [vmem:[%s179 + $0x5c4] sm:%s172]
                %428 = vst [vmem:[%s180 + $0x1ec] sm:%s172] %v427
                %v429 = vld [vmem:[%s179 + $0x5d0] sm:%s172]
                %430 = vst [vmem:[%s180 + $0x1f0] sm:%s172] %v429
                %v431 = vld [vmem:[%s179 + $0x5dc] sm:%s172]
                %432 = vst [vmem:[%s180 + $0x1f4] sm:%s172] %v431
                %v433 = vld [vmem:[%s179 + $0x5e8] sm:%s172]
                %434 = vst [vmem:[%s180 + $0x1f8] sm:%s172] %v433
                %v435 = vld [vmem:[%s179 + $0x5f4] sm:%s172]
                %436 = vst [vmem:[%s180 + $0x1fc] sm:%s172] %v435
                %v437 = vld [vmem:[%s179 + $0x600] sm:%s172]
                %438 = vst [vmem:[%s180 + $0x200] sm:%s172] %v437
                %v439 = vld [vmem:[%s179 + $0x60c] sm:%s172]
                %440 = vst [vmem:[%s180 + $0x204] sm:%s172] %v439
                %v441 = vld [vmem:[%s179 + $0x618] sm:%s172]
                %442 = vst [vmem:[%s180 + $0x208] sm:%s172] %v441
                %v443 = vld [vmem:[%s179 + $0x624] sm:%s172]
                %444 = vst [vmem:[%s180 + $0x20c] sm:%s172] %v443
                %v445 = vld [vmem:[%s179 + $0x630] sm:%s172]
                %446 = vst [vmem:[%s180 + $0x210] sm:%s172] %v445
                %v447 = vld [vmem:[%s179 + $0x63c] sm:%s172]
                %448 = vst [vmem:[%s180 + $0x214] sm:%s172] %v447
                %v449 = vld [vmem:[%s179 + $0x648] sm:%s172]
                %450 = vst [vmem:[%s180 + $0x218] sm:%s172] %v449
                %v451 = vld [vmem:[%s179 + $0x654] sm:%s172]
                %452 = vst [vmem:[%s180 + $0x21c] sm:%s172] %v451
                %v453 = vld [vmem:[%s179 + $0x660] sm:%s172]
                %454 = vst [vmem:[%s180 + $0x220] sm:%s172] %v453
                %v455 = vld [vmem:[%s179 + $0x66c] sm:%s172]
                %456 = vst [vmem:[%s180 + $0x224] sm:%s172] %v455
                %v457 = vld [vmem:[%s179 + $0x678] sm:%s172]
                %458 = vst [vmem:[%s180 + $0x228] sm:%s172] %v457
                %v459 = vld [vmem:[%s179 + $0x684] sm:%s172]
                %460 = vst [vmem:[%s180 + $0x22c] sm:%s172] %v459
                %v461 = vld [vmem:[%s179 + $0x690] sm:%s172]
                %462 = vst [vmem:[%s180 + $0x230] sm:%s172] %v461
                %v463 = vld [vmem:[%s179 + $0x69c] sm:%s172]
                %464 = vst [vmem:[%s180 + $0x234] sm:%s172] %v463
                %v465 = vld [vmem:[%s179 + $0x6a8] sm:%s172]
                %466 = vst [vmem:[%s180 + $0x238] sm:%s172] %v465
                %v467 = vld [vmem:[%s179 + $0x6b4] sm:%s172]
                %468 = vst [vmem:[%s180 + $0x23c] sm:%s172] %v467
                %v469 = vld [vmem:[%s179 + $0x6c0] sm:%s172]
                %470 = vst [vmem:[%s180 + $0x240] sm:%s172] %v469
                %v471 = vld [vmem:[%s179 + $0x6cc] sm:%s172]
                %472 = vst [vmem:[%s180 + $0x244] sm:%s172] %v471
                %v473 = vld [vmem:[%s179 + $0x6d8] sm:%s172]
                %474 = vst [vmem:[%s180 + $0x248] sm:%s172] %v473
                %v475 = vld [vmem:[%s179 + $0x6e4] sm:%s172]
                %476 = vst [vmem:[%s180 + $0x24c] sm:%s172] %v475
                %v477 = vld [vmem:[%s179 + $0x6f0] sm:%s172]
                %478 = vst [vmem:[%s180 + $0x250] sm:%s172] %v477
                %v479 = vld [vmem:[%s179 + $0x6fc] sm:%s172]
                %480 = vst [vmem:[%s180 + $0x254] sm:%s172] %v479
                %v481 = vld [vmem:[%s179 + $0x708] sm:%s172]
                %482 = vst [vmem:[%s180 + $0x258] sm:%s172] %v481
                %v483 = vld [vmem:[%s179 + $0x714] sm:%s172]
                %484 = vst [vmem:[%s180 + $0x25c] sm:%s172] %v483
                %v485 = vld [vmem:[%s179 + $0x720] sm:%s172]
                %486 = vst [vmem:[%s180 + $0x260] sm:%s172] %v485
                %v487 = vld [vmem:[%s179 + $0x72c] sm:%s172]
                %488 = vst [vmem:[%s180 + $0x264] sm:%s172] %v487
                %v489 = vld [vmem:[%s179 + $0x738] sm:%s172]
                %490 = vst [vmem:[%s180 + $0x268] sm:%s172] %v489
                %v491 = vld [vmem:[%s179 + $0x744] sm:%s172]
                %492 = vst [vmem:[%s180 + $0x26c] sm:%s172] %v491
                %v493 = vld [vmem:[%s179 + $0x750] sm:%s172]
                %494 = vst [vmem:[%s180 + $0x270] sm:%s172] %v493
                %v495 = vld [vmem:[%s179 + $0x75c] sm:%s172]
                %496 = vst [vmem:[%s180 + $0x274] sm:%s172] %v495
                %v497 = vld [vmem:[%s179 + $0x768] sm:%s172]
                %498 = vst [vmem:[%s180 + $0x278] sm:%s172] %v497
                %v499 = vld [vmem:[%s179 + $0x774] sm:%s172]
                %500 = vst [vmem:[%s180 + $0x27c] sm:%s172] %v499
                %v501 = vld [vmem:[%s179 + $0x780] sm:%s172]
                %502 = vst [vmem:[%s180 + $0x280] sm:%s172] %v501
                %v503 = vld [vmem:[%s179 + $0x78c] sm:%s172]
                %504 = vst [vmem:[%s180 + $0x284] sm:%s172] %v503
                %v505 = vld [vmem:[%s179 + $0x798] sm:%s172]
                %506 = vst [vmem:[%s180 + $0x288] sm:%s172] %v505
                %v507 = vld [vmem:[%s179 + $0x7a4] sm:%s172]
                %508 = vst [vmem:[%s180 + $0x28c] sm:%s172] %v507
                %v509 = vld [vmem:[%s179 + $0x7b0] sm:%s172]
                %510 = vst [vmem:[%s180 + $0x290] sm:%s172] %v509
                %v511 = vld [vmem:[%s179 + $0x7bc] sm:%s172]
                %512 = vst [vmem:[%s180 + $0x294] sm:%s172] %v511
                %v513 = vld [vmem:[%s179 + $0x7c8] sm:%s172]
                %514 = vst [vmem:[%s180 + $0x298] sm:%s172] %v513
                %v515 = vld [vmem:[%s179 + $0x7d4] sm:%s172]
                %516 = vst [vmem:[%s180 + $0x29c] sm:%s172] %v515
                %v517 = vld [vmem:[%s179 + $0x7e0] sm:%s172]
                %518 = vst [vmem:[%s180 + $0x2a0] sm:%s172] %v517
                %v519 = vld [vmem:[%s179 + $0x7ec] sm:%s172]
                %520 = vst [vmem:[%s180 + $0x2a4] sm:%s172] %v519
                %v521 = vld [vmem:[%s179 + $0x7f8] sm:%s172]
                %522 = vst [vmem:[%s180 + $0x2a8] sm:%s172] %v521
                %v523 = vld [vmem:[%s179 + $0x804] sm:%s172]
                %524 = vst [vmem:[%s180 + $0x2ac] sm:%s172] %v523
                %v525 = vld [vmem:[%s179 + $0x810] sm:%s172]
                %526 = vst [vmem:[%s180 + $0x2b0] sm:%s172] %v525
                %v527 = vld [vmem:[%s179 + $0x81c] sm:%s172]
                %528 = vst [vmem:[%s180 + $0x2b4] sm:%s172] %v527
                %v529 = vld [vmem:[%s179 + $0x828] sm:%s172]
                %530 = vst [vmem:[%s180 + $0x2b8] sm:%s172] %v529
                %v531 = vld [vmem:[%s179 + $0x834] sm:%s172]
                %532 = vst [vmem:[%s180 + $0x2bc] sm:%s172] %v531
                %v533 = vld [vmem:[%s179 + $0x840] sm:%s172]
                %534 = vst [vmem:[%s180 + $0x2c0] sm:%s172] %v533
                %v535 = vld [vmem:[%s179 + $0x84c] sm:%s172]
                %536 = vst [vmem:[%s180 + $0x2c4] sm:%s172] %v535
                %v537 = vld [vmem:[%s179 + $0x858] sm:%s172]
                %538 = vst [vmem:[%s180 + $0x2c8] sm:%s172] %v537
                %v539 = vld [vmem:[%s179 + $0x864] sm:%s172]
                %540 = vst [vmem:[%s180 + $0x2cc] sm:%s172] %v539
                %v541 = vld [vmem:[%s179 + $0x870] sm:%s172]
                %542 = vst [vmem:[%s180 + $0x2d0] sm:%s172] %v541
                %v543 = vld [vmem:[%s179 + $0x87c] sm:%s172]
                %544 = vst [vmem:[%s180 + $0x2d4] sm:%s172] %v543
                %v545 = vld [vmem:[%s179 + $0x888] sm:%s172]
                %546 = vst [vmem:[%s180 + $0x2d8] sm:%s172] %v545
                %v547 = vld [vmem:[%s179 + $0x894] sm:%s172]
                %548 = vst [vmem:[%s180 + $0x2dc] sm:%s172] %v547
                %v549 = vld [vmem:[%s179 + $0x8a0] sm:%s172]
                %550 = vst [vmem:[%s180 + $0x2e0] sm:%s172] %v549
                %v551 = vld [vmem:[%s179 + $0x8ac] sm:%s172]
                %552 = vst [vmem:[%s180 + $0x2e4] sm:%s172] %v551
                %v553 = vld [vmem:[%s179 + $0x8b8] sm:%s172]
                %554 = vst [vmem:[%s180 + $0x2e8] sm:%s172] %v553
                %v555 = vld [vmem:[%s179 + $0x8c4] sm:%s172]
                %556 = vst [vmem:[%s180 + $0x2ec] sm:%s172] %v555
                %v557 = vld [vmem:[%s179 + $0x8d0] sm:%s172]
                %558 = vst [vmem:[%s180 + $0x2f0] sm:%s172] %v557
                %v559 = vld [vmem:[%s179 + $0x8dc] sm:%s172]
                %560 = vst [vmem:[%s180 + $0x2f4] sm:%s172] %v559
                %v561 = vld [vmem:[%s179 + $0x8e8] sm:%s172]
                %562 = vst [vmem:[%s180 + $0x2f8] sm:%s172] %v561
                %v563 = vld [vmem:[%s179 + $0x8f4] sm:%s172]
                %564 = vst [vmem:[%s180 + $0x2fc] sm:%s172] %v563
                %v565 = vld [vmem:[%s179 + $0x900] sm:%s172]
                %566 = vst [vmem:[%s180 + $0x300] sm:%s172] %v565
                %v567 = vld [vmem:[%s179 + $0x90c] sm:%s172]
                %568 = vst [vmem:[%s180 + $0x304] sm:%s172] %v567
                %v569 = vld [vmem:[%s179 + $0x918] sm:%s172]
                %570 = vst [vmem:[%s180 + $0x308] sm:%s172] %v569
                %v571 = vld [vmem:[%s179 + $0x924] sm:%s172]
                %572 = vst [vmem:[%s180 + $0x30c] sm:%s172] %v571
                %v573 = vld [vmem:[%s179 + $0x930] sm:%s172]
                %574 = vst [vmem:[%s180 + $0x310] sm:%s172] %v573
                %v575 = vld [vmem:[%s179 + $0x93c] sm:%s172]
                %576 = vst [vmem:[%s180 + $0x314] sm:%s172] %v575
                %v577 = vld [vmem:[%s179 + $0x948] sm:%s172]
                %578 = vst [vmem:[%s180 + $0x318] sm:%s172] %v577
                %v579 = vld [vmem:[%s179 + $0x954] sm:%s172]
                %580 = vst [vmem:[%s180 + $0x31c] sm:%s172] %v579
                %v581 = vld [vmem:[%s179 + $0x960] sm:%s172]
                %582 = vst [vmem:[%s180 + $0x320] sm:%s172] %v581
                %v583 = vld [vmem:[%s179 + $0x96c] sm:%s172]
                %584 = vst [vmem:[%s180 + $0x324] sm:%s172] %v583
                %v585 = vld [vmem:[%s179 + $0x978] sm:%s172]
                %586 = vst [vmem:[%s180 + $0x328] sm:%s172] %v585
                %v587 = vld [vmem:[%s179 + $0x984] sm:%s172]
                %588 = vst [vmem:[%s180 + $0x32c] sm:%s172] %v587
                %v589 = vld [vmem:[%s179 + $0x990] sm:%s172]
                %590 = vst [vmem:[%s180 + $0x330] sm:%s172] %v589
                %v591 = vld [vmem:[%s179 + $0x99c] sm:%s172]
                %592 = vst [vmem:[%s180 + $0x334] sm:%s172] %v591
                %v593 = vld [vmem:[%s179 + $0x9a8] sm:%s172]
                %594 = vst [vmem:[%s180 + $0x338] sm:%s172] %v593
                %v595 = vld [vmem:[%s179 + $0x9b4] sm:%s172]
                %596 = vst [vmem:[%s180 + $0x33c] sm:%s172] %v595
                %v597 = vld [vmem:[%s179 + $0x9c0] sm:%s172]
                %598 = vst [vmem:[%s180 + $0x340] sm:%s172] %v597
                %v599 = vld [vmem:[%s179 + $0x9cc] sm:%s172]
                %600 = vst [vmem:[%s180 + $0x344] sm:%s172] %v599
                %v601 = vld [vmem:[%s179 + $0x9d8] sm:%s172]
                %602 = vst [vmem:[%s180 + $0x348] sm:%s172] %v601
                %v603 = vld [vmem:[%s179 + $0x9e4] sm:%s172]
                %604 = vst [vmem:[%s180 + $0x34c] sm:%s172] %v603
                %v605 = vld [vmem:[%s179 + $0x9f0] sm:%s172]
                %606 = vst [vmem:[%s180 + $0x350] sm:%s172] %v605
                %v607 = vld [vmem:[%s179 + $0x9fc] sm:%s172]
                %608 = vst [vmem:[%s180 + $0x354] sm:%s172] %v607
                %v609 = vld [vmem:[%s179 + $0xa08] sm:%s172]
                %610 = vst [vmem:[%s180 + $0x358] sm:%s172] %v609
                %v611 = vld [vmem:[%s179 + $0xa14] sm:%s172]
                %612 = vst [vmem:[%s180 + $0x35c] sm:%s172] %v611
              $region41: #{inception_block_d.7} parent=35 // loop_footer
                %s178 = sadd.s32 1, %s174
              $region42: #{inception_block_d.7} parent=35 // loop_footer_branch
                %173 = sbr.rel target = $region38
              $region43: #{inception_block_d.7} parent=35 // loop_exit
                _
            $region36: #{inception_block_d.7} parent=27 // pred_fallthru
              _
          $region28: #{inception_block_d.7} parent=23 // pred_fallthru
            _
          %1065 = vnop
        $region24: #{inception_block_d.7} parent=15 // pred_fallthru
          _
        // Predicated region
        $region62: #{inception_block_d.7} parent=15 // pred_check
          %p1066 = pneg %p93
        $region63: #{inception_block_d.7} parent=15 // pred_check_branch
          %1068 = sbr.rel (%p1066) target = $region65
        $region64: #{inception_block_d.7} parent=15 // pred_region
          %p1069 = scmp.lt.s32.totalorder %s17, 2
          %s1070 = scalar_select %p1069, %s17, 2
          %s1071 = scalar_lea.vmem %s2, %s1070
        $region65: #{inception_block_d.7} parent=15 // pred_fallthru
          _
      $region16: #{inception_block_d.7} parent=5 // pred_fallthru
        _
      %p1072 = scmp.le.s32.totalorder 1, %s9
      %p1073 = scmp.lt.s32.totalorder %s9, 7
      %p1074 = pnand %p1072, %p1073
      %p1075 = pneg %p1074
      // Predicated region
      $region66: #{inception_block_d.7} parent=5 // pred_check
        _
      $region67: #{inception_block_d.7} parent=5 // pred_check_branch
        %1077 = sbr.rel (%p1074) target = $region69
      $region68: #{inception_block_d.7} parent=5 // pred_region
        %s1078 = ssub.s32 %s9, 1
        %s1079 = sand.u32 %s60, 1
        %s1080 = sand.u32 %s60, 1
        %s1081 = smul.addr %s1080, 864
        %s1082 = scalar_lea.vmem [#allocation2], %s1081
        // Predicated region
        $region70: #{inception_block_d.7} parent=68 // pred_check
          %p1083 = pneg %p73
        $region71: #{inception_block_d.7} parent=68 // pred_check_branch
          %1085 = sbr.rel (%p1083) target = $region73
        $region72: #{inception_block_d.7} parent=68 // pred_region
          _
        $region73: #{inception_block_d.7} parent=68 // pred_fallthru
          _
        %s1086 = smul.u32 8, %s18
        %p1087 = scmp.lt.s32.totalorder %s1086, 15
        %s1088 = scalar_select %p1087, %s1086, 15
        %s1089 = smul.addr %s1088, 14
        %s1090 = smul.addr %s1089, 4
        %s1091 = scalar_lea.vmem %s0, %s1090
        %p1092 = pneg %p47
        %p1093 = pneg %p44
        %s1094 = sand.u32 %s60, 1
        %s1095 = sand.u32 %s60, 1
        %s1096 = smul.addr %s1095, 864
        %s1097 = scalar_lea.vmem [#allocation2], %s1096
        %p1098 = pneg %p73
        %p1099 = pneg %p70
        %p1100 = scmp.lt.s32.totalorder %s19, 2
        %s1101 = scalar_select %p1100, %s19, 2
        %s1102 = scalar_lea.vmem %s2, %s1101
        %p1103 = pneg %p99
        %p1104 = pneg %p96
        %p1105 = pneg %p127
        %p1106 = pneg %p124
        %s1107 = sand.u32 %s114, 1
        %s1108 = sand.u32 %s114, 1
        %s1109 = smul.addr %s1108, 64
        %s1110 = scalar_lea.vmem [#allocation3], %s1109
        %s1111 = smul.u32 8, %s18
        %p1112 = scmp.lt.s32.totalorder %s1111, 15
        %s1113 = scalar_select %p1112, %s1111, 15
        %s1114 = smul.addr %s1113, 14
        %s1115 = smul.addr %s1114, 4
        %s1116 = scalar_lea.vmem %s0, %s1115
        %s1117 = smul.u32 8, %s18
        %p1118 = scmp.lt.s32.totalorder %s19, 2
        %s1119 = scalar_select %p1118, %s19, 2
        %s1120 = scalar_lea.vmem %s2, %s1119
        %s1121 = smul.u32 8, %s18
        %v1123 = vld [vmem:[%s1116] sm:$0xff]
        %v1124 = vld [vmem:[%s1116 + $0x8] sm:$0xff]
        %v1125 = vld [vmem:[%s1116 + $0x10] sm:$0xff]
        %v1126 = vld [vmem:[%s1116 + $0x18] sm:$0xff]
        %v1127 = vld [vmem:[%s1116 + $0x20] sm:$0xff]
        %v1128 = vld [vmem:[%s1116 + $0x28] sm:$0xff]
        %v1129 = vld [vmem:[%s1116 + $0x30] sm:$0xff]
        %v1130 = vld [vmem:[%s1116 + $0x38] sm:$0xff]
        %v1131 = vld [vmem:[%s1116 + $0x40] sm:$0xff]
        %v1132 = vld [vmem:[%s1116 + $0x48] sm:$0xff]
        %v1133 = vld [vmem:[%s1116 + $0x50] sm:$0xff]
        %v1134 = vld [vmem:[%s1116 + $0x58] sm:$0xff]
        %v1135 = vld [vmem:[%s1116 + $0x60] sm:$0xff]
        %v1136 = vld [vmem:[%s1116 + $0x68] sm:$0xff]
        %v1137 = vld [vmem:[%s1116 + $0x70] sm:$0xff]
        %v1138 = vld [vmem:[%s1116 + $0x78] sm:$0xff]
        %v1139 = vld [vmem:[%s1116 + $0x80] sm:$0xff]
        %v1140 = vld [vmem:[%s1116 + $0x88] sm:$0xff]
        %v1141 = vld [vmem:[%s1116 + $0x90] sm:$0xff]
        %v1142 = vld [vmem:[%s1116 + $0x98] sm:$0xff]
        %v1143 = vld [vmem:[%s1116 + $0xa0] sm:$0xff]
        %v1144 = vld [vmem:[%s1116 + $0xa8] sm:$0xff]
        %v1145 = vld [vmem:[%s1116 + $0xb0] sm:$0xff]
        %v1146 = vld [vmem:[%s1116 + $0xb8] sm:$0xff]
        %v1147 = vld [vmem:[%s1116 + $0xc0] sm:$0xff]
        %v1148 = vld [vmem:[%s1116 + $0xc8] sm:$0xff]
        %v1149 = vld [vmem:[%s1116 + $0xd0] sm:$0xff]
        %v1150 = vld [vmem:[%s1116 + $0xd8] sm:$0xff]
        %v1151 = vld [vmem:[%s1116 + $0xe0] sm:$0xff]
        %v1152 = vld [vmem:[%s1116 + $0xe8] sm:$0xff]
        %v1153 = vld [vmem:[%s1116 + $0xf0] sm:$0xff]
        %v1154 = vld [vmem:[%s1116 + $0xf8] sm:$0xff]
        %v1155 = vld [vmem:[%s1116 + $0x100] sm:$0xff]
        %v1156 = vld [vmem:[%s1116 + $0x108] sm:$0xff]
        %v1157 = vld [vmem:[%s1116 + $0x110] sm:$0xff]
        %v1158 = vld [vmem:[%s1116 + $0x118] sm:$0xff]
        %v1159 = vld [vmem:[%s1116 + $0x120] sm:$0xff]
        %v1160 = vld [vmem:[%s1116 + $0x128] sm:$0xff]
        %v1161 = vld [vmem:[%s1116 + $0x130] sm:$0xff]
        %v1162 = vld [vmem:[%s1116 + $0x138] sm:$0xff]
        %v1163 = vld [vmem:[%s1116 + $0x140] sm:$0xff]
        %v1164 = vld [vmem:[%s1116 + $0x148] sm:$0xff]
        %v1165 = vld [vmem:[%s1116 + $0x150] sm:$0xff]
        %v1166 = vld [vmem:[%s1116 + $0x158] sm:$0xff]
        %v1167 = vld [vmem:[%s1116 + $0x160] sm:$0xff]
        %v1168 = vld [vmem:[%s1116 + $0x168] sm:$0xff]
        %v1169 = vld [vmem:[%s1116 + $0x170] sm:$0xff]
        %v1170 = vld [vmem:[%s1116 + $0x178] sm:$0xff]
        %v1171 = vld [vmem:[%s1116 + $0x180] sm:$0xff]
        %v1172 = vld [vmem:[%s1116 + $0x188] sm:$0xff]
        %v1173 = vld [vmem:[%s1116 + $0x190] sm:$0xff]
        %v1174 = vld [vmem:[%s1116 + $0x198] sm:$0xff]
        %v1175 = vld [vmem:[%s1116 + $0x1a0] sm:$0xff]
        %v1176 = vld [vmem:[%s1116 + $0x1a8] sm:$0xff]
        %v1177 = vld [vmem:[%s1116 + $0x1b0] sm:$0xff]
        %v1178 = vld [vmem:[%s1116 + $0x1b8] sm:$0xff]
        %v1179 = vld [vmem:[%s1082] sm:$0xf]
        %v1180 = vld [vmem:[%s1082 + $0x4] sm:$0xf]
        %v1181 = vld [vmem:[%s1082 + $0x8] sm:$0xf]
        %v1182 = vld [vmem:[%s1082 + $0xc] sm:$0xf]
        %v1183 = vld [vmem:[%s1082 + $0x10] sm:$0xf]
        %v1184 = vld [vmem:[%s1082 + $0x14] sm:$0xf]
        %v1185 = vld [vmem:[%s1082 + $0x18] sm:$0xf]
        %v1186 = vld [vmem:[%s1082 + $0x1c] sm:$0xf]
        %v1187 = vld [vmem:[%s1082 + $0x20] sm:$0xf]
        %v1188 = vld [vmem:[%s1082 + $0x24] sm:$0xf]
        %v1189 = vld [vmem:[%s1082 + $0x28] sm:$0xf]
        %v1190 = vld [vmem:[%s1082 + $0x2c] sm:$0xf]
        %v1191 = vld [vmem:[%s1082 + $0x30] sm:$0xf]
        %v1192 = vld [vmem:[%s1082 + $0x34] sm:$0xf]
        %v1193 = vld [vmem:[%s1082 + $0x38] sm:$0xf]
        %v1194 = vld [vmem:[%s1082 + $0x3c] sm:$0xf]
        %v1195 = vld [vmem:[%s1082 + $0x40] sm:$0xf]
        %v1196 = vld [vmem:[%s1082 + $0x44] sm:$0xf]
        %v1197 = vld [vmem:[%s1082 + $0x48] sm:$0xf]
        %v1198 = vld [vmem:[%s1082 + $0x4c] sm:$0xf]
        %v1199 = vld [vmem:[%s1082 + $0x50] sm:$0xf]
        %v1200 = vld [vmem:[%s1082 + $0x54] sm:$0xf]
        %v1201 = vld [vmem:[%s1082 + $0x58] sm:$0xf]
        %v1202 = vld [vmem:[%s1082 + $0x5c] sm:$0xf]
        %v1203 = vld [vmem:[%s1082 + $0x60] sm:$0xf]
        %v1204 = vld [vmem:[%s1082 + $0x64] sm:$0xf]
        %v1205 = vld [vmem:[%s1082 + $0x68] sm:$0xf]
        %v1206 = vld [vmem:[%s1082 + $0x6c] sm:$0xf]
        %v1207 = vld [vmem:[%s1082 + $0x70] sm:$0xf]
        %v1208 = vld [vmem:[%s1082 + $0x74] sm:$0xf]
        %v1209 = vld [vmem:[%s1082 + $0x78] sm:$0xf]
        %v1210 = vld [vmem:[%s1082 + $0x7c] sm:$0xf]
        %v1211 = vld [vmem:[%s1082 + $0x80] sm:$0xf]
        %v1212 = vld [vmem:[%s1082 + $0x84] sm:$0xf]
        %v1213 = vld [vmem:[%s1082 + $0x88] sm:$0xf]
        %v1214 = vld [vmem:[%s1082 + $0x8c] sm:$0xf]
        %v1215 = vld [vmem:[%s1082 + $0x90] sm:$0xf]
        %v1216 = vld [vmem:[%s1082 + $0x94] sm:$0xf]
        %v1217 = vld [vmem:[%s1082 + $0x98] sm:$0xf]
        %v1218 = vld [vmem:[%s1082 + $0x9c] sm:$0xf]
        %v1219 = vld [vmem:[%s1082 + $0xa0] sm:$0xf]
        %v1220 = vld [vmem:[%s1082 + $0xa4] sm:$0xf]
        %v1221 = vld [vmem:[%s1082 + $0xa8] sm:$0xf]
        %v1222 = vld [vmem:[%s1082 + $0xac] sm:$0xf]
        %v1223 = vld [vmem:[%s1082 + $0xb0] sm:$0xf]
        %v1224 = vld [vmem:[%s1082 + $0xb4] sm:$0xf]
        %v1225 = vld [vmem:[%s1082 + $0xb8] sm:$0xf]
        %v1226 = vld [vmem:[%s1082 + $0xbc] sm:$0xf]
        %v1227 = vld [vmem:[%s1082 + $0xc0] sm:$0xf]
        %v1228 = vld [vmem:[%s1082 + $0xc4] sm:$0xf]
        %v1229 = vld [vmem:[%s1082 + $0xc8] sm:$0xf]
        %v1230 = vld [vmem:[%s1082 + $0xcc] sm:$0xf]
        %v1231 = vld [vmem:[%s1082 + $0xd0] sm:$0xf]
        %v1232 = vld [vmem:[%s1082 + $0xd4] sm:$0xf]
        %v1233 = vld [vmem:[%s1082 + $0xd8] sm:$0xf]
        %v1234 = vld [vmem:[%s1082 + $0xdc] sm:$0xf]
        %v1235 = vld [vmem:[%s1082 + $0xe0] sm:$0xf]
        %v1236 = vld [vmem:[%s1082 + $0xe4] sm:$0xf]
        %v1237 = vld [vmem:[%s1082 + $0xe8] sm:$0xf]
        %v1238 = vld [vmem:[%s1082 + $0xec] sm:$0xf]
        %v1239 = vld [vmem:[%s1082 + $0xf0] sm:$0xf]
        %v1240 = vld [vmem:[%s1082 + $0xf4] sm:$0xf]
        %v1241 = vld [vmem:[%s1082 + $0xf8] sm:$0xf]
        %v1242 = vld [vmem:[%s1082 + $0xfc] sm:$0xf]
        %v1243 = vld [vmem:[%s1082 + $0x100] sm:$0xf]
        %v1244 = vld [vmem:[%s1082 + $0x104] sm:$0xf]
        %v1245 = vld [vmem:[%s1082 + $0x108] sm:$0xf]
        %v1246 = vld [vmem:[%s1082 + $0x10c] sm:$0xf]
        %v1247 = vld [vmem:[%s1082 + $0x110] sm:$0xf]
        %v1248 = vld [vmem:[%s1082 + $0x114] sm:$0xf]
        %v1249 = vld [vmem:[%s1082 + $0x118] sm:$0xf]
        %v1250 = vld [vmem:[%s1082 + $0x11c] sm:$0xf]
        %v1251 = vld [vmem:[%s1082 + $0x120] sm:$0xf]
        %v1252 = vld [vmem:[%s1082 + $0x124] sm:$0xf]
        %v1253 = vld [vmem:[%s1082 + $0x128] sm:$0xf]
        %v1254 = vld [vmem:[%s1082 + $0x12c] sm:$0xf]
        %v1255 = vld [vmem:[%s1082 + $0x130] sm:$0xf]
        %v1256 = vld [vmem:[%s1082 + $0x134] sm:$0xf]
        %v1257 = vld [vmem:[%s1082 + $0x138] sm:$0xf]
        %v1258 = vld [vmem:[%s1082 + $0x13c] sm:$0xf]
        %v1259 = vld [vmem:[%s1082 + $0x140] sm:$0xf]
        %v1260 = vld [vmem:[%s1082 + $0x144] sm:$0xf]
        %v1261 = vld [vmem:[%s1082 + $0x148] sm:$0xf]
        %v1262 = vld [vmem:[%s1082 + $0x14c] sm:$0xf]
        %v1263 = vld [vmem:[%s1082 + $0x150] sm:$0xf]
        %v1264 = vld [vmem:[%s1082 + $0x154] sm:$0xf]
        %v1265 = vld [vmem:[%s1082 + $0x158] sm:$0xf]
        %v1266 = vld [vmem:[%s1082 + $0x15c] sm:$0xf]
        %v1267 = vld [vmem:[%s1082 + $0x160] sm:$0xf]
        %v1268 = vld [vmem:[%s1082 + $0x164] sm:$0xf]
        %v1269 = vld [vmem:[%s1082 + $0x168] sm:$0xf]
        %v1270 = vld [vmem:[%s1082 + $0x16c] sm:$0xf]
        %v1271 = vld [vmem:[%s1082 + $0x170] sm:$0xf]
        %v1272 = vld [vmem:[%s1082 + $0x174] sm:$0xf]
        %v1273 = vld [vmem:[%s1082 + $0x178] sm:$0xf]
        %v1274 = vld [vmem:[%s1082 + $0x17c] sm:$0xf]
        %v1275 = vld [vmem:[%s1082 + $0x180] sm:$0xf]
        %v1276 = vld [vmem:[%s1082 + $0x184] sm:$0xf]
        %v1277 = vld [vmem:[%s1082 + $0x188] sm:$0xf]
        %v1278 = vld [vmem:[%s1082 + $0x18c] sm:$0xf]
        %v1279 = vld [vmem:[%s1082 + $0x190] sm:$0xf]
        %v1280 = vld [vmem:[%s1082 + $0x194] sm:$0xf]
        %v1281 = vld [vmem:[%s1082 + $0x198] sm:$0xf]
        %v1282 = vld [vmem:[%s1082 + $0x19c] sm:$0xf]
        %v1283 = vld [vmem:[%s1082 + $0x1a0] sm:$0xf]
        %v1284 = vld [vmem:[%s1082 + $0x1a4] sm:$0xf]
        %v1285 = vld [vmem:[%s1082 + $0x1a8] sm:$0xf]
        %v1286 = vld [vmem:[%s1082 + $0x1ac] sm:$0xf]
        %v1287 = vld [vmem:[%s1082 + $0x1b0] sm:$0xf]
        %v1288 = vld [vmem:[%s1082 + $0x1b4] sm:$0xf]
        %v1289 = vld [vmem:[%s1082 + $0x1b8] sm:$0xf]
        %v1290 = vld [vmem:[%s1082 + $0x1bc] sm:$0xf]
        %v1291 = vld [vmem:[%s1082 + $0x1c0] sm:$0xf]
        %v1292 = vld [vmem:[%s1082 + $0x1c4] sm:$0xf]
        %v1293 = vld [vmem:[%s1082 + $0x1c8] sm:$0xf]
        %v1294 = vld [vmem:[%s1082 + $0x1cc] sm:$0xf]
        %v1295 = vld [vmem:[%s1082 + $0x1d0] sm:$0xf]
        %v1296 = vld [vmem:[%s1082 + $0x1d4] sm:$0xf]
        %v1297 = vld [vmem:[%s1082 + $0x1d8] sm:$0xf]
        %v1298 = vld [vmem:[%s1082 + $0x1dc] sm:$0xf]
        %v1299 = vld [vmem:[%s1082 + $0x1e0] sm:$0xf]
        %v1300 = vld [vmem:[%s1082 + $0x1e4] sm:$0xf]
        %v1301 = vld [vmem:[%s1082 + $0x1e8] sm:$0xf]
        %v1302 = vld [vmem:[%s1082 + $0x1ec] sm:$0xf]
        %v1303 = vld [vmem:[%s1082 + $0x1f0] sm:$0xf]
        %v1304 = vld [vmem:[%s1082 + $0x1f4] sm:$0xf]
        %v1305 = vld [vmem:[%s1082 + $0x1f8] sm:$0xf]
        %v1306 = vld [vmem:[%s1082 + $0x1fc] sm:$0xf]
        %v1307 = vld [vmem:[%s1082 + $0x200] sm:$0xf]
        %v1308 = vld [vmem:[%s1082 + $0x204] sm:$0xf]
        %v1309 = vld [vmem:[%s1082 + $0x208] sm:$0xf]
        %v1310 = vld [vmem:[%s1082 + $0x20c] sm:$0xf]
        %v1311 = vld [vmem:[%s1082 + $0x210] sm:$0xf]
        %v1312 = vld [vmem:[%s1082 + $0x214] sm:$0xf]
        %v1313 = vld [vmem:[%s1082 + $0x218] sm:$0xf]
        %v1314 = vld [vmem:[%s1082 + $0x21c] sm:$0xf]
        %v1315 = vld [vmem:[%s1082 + $0x220] sm:$0xf]
        %v1316 = vld [vmem:[%s1082 + $0x224] sm:$0xf]
        %v1317 = vld [vmem:[%s1082 + $0x228] sm:$0xf]
        %v1318 = vld [vmem:[%s1082 + $0x22c] sm:$0xf]
        %v1319 = vld [vmem:[%s1082 + $0x230] sm:$0xf]
        %v1320 = vld [vmem:[%s1082 + $0x234] sm:$0xf]
        %v1321 = vld [vmem:[%s1082 + $0x238] sm:$0xf]
        %v1322 = vld [vmem:[%s1082 + $0x23c] sm:$0xf]
        %v1323 = vld [vmem:[%s1082 + $0x240] sm:$0xf]
        %v1324 = vld [vmem:[%s1082 + $0x244] sm:$0xf]
        %v1325 = vld [vmem:[%s1082 + $0x248] sm:$0xf]
        %v1326 = vld [vmem:[%s1082 + $0x24c] sm:$0xf]
        %v1327 = vld [vmem:[%s1082 + $0x250] sm:$0xf]
        %v1328 = vld [vmem:[%s1082 + $0x254] sm:$0xf]
        %v1329 = vld [vmem:[%s1082 + $0x258] sm:$0xf]
        %v1330 = vld [vmem:[%s1082 + $0x25c] sm:$0xf]
        %v1331 = vld [vmem:[%s1082 + $0x260] sm:$0xf]
        %v1332 = vld [vmem:[%s1082 + $0x264] sm:$0xf]
        %v1333 = vld [vmem:[%s1082 + $0x268] sm:$0xf]
        %v1334 = vld [vmem:[%s1082 + $0x26c] sm:$0xf]
        %v1335 = vld [vmem:[%s1082 + $0x270] sm:$0xf]
        %v1336 = vld [vmem:[%s1082 + $0x274] sm:$0xf]
        %v1337 = vld [vmem:[%s1082 + $0x278] sm:$0xf]
        %v1338 = vld [vmem:[%s1082 + $0x27c] sm:$0xf]
        %v1339 = vld [vmem:[%s1082 + $0x280] sm:$0xf]
        %v1340 = vld [vmem:[%s1082 + $0x284] sm:$0xf]
        %v1341 = vld [vmem:[%s1082 + $0x288] sm:$0xf]
        %v1342 = vld [vmem:[%s1082 + $0x28c] sm:$0xf]
        %v1343 = vld [vmem:[%s1082 + $0x290] sm:$0xf]
        %v1344 = vld [vmem:[%s1082 + $0x294] sm:$0xf]
        %v1345 = vld [vmem:[%s1082 + $0x298] sm:$0xf]
        %v1346 = vld [vmem:[%s1082 + $0x29c] sm:$0xf]
        %v1347 = vld [vmem:[%s1082 + $0x2a0] sm:$0xf]
        %v1348 = vld [vmem:[%s1082 + $0x2a4] sm:$0xf]
        %v1349 = vld [vmem:[%s1082 + $0x2a8] sm:$0xf]
        %v1350 = vld [vmem:[%s1082 + $0x2ac] sm:$0xf]
        %v1351 = vld [vmem:[%s1082 + $0x2b0] sm:$0xf]
        %v1352 = vld [vmem:[%s1082 + $0x2b4] sm:$0xf]
        %v1353 = vld [vmem:[%s1082 + $0x2b8] sm:$0xf]
        %v1354 = vld [vmem:[%s1082 + $0x2bc] sm:$0xf]
        %v1355 = vld [vmem:[%s1082 + $0x2c0] sm:$0xf]
        %v1356 = vld [vmem:[%s1082 + $0x2c4] sm:$0xf]
        %v1357 = vld [vmem:[%s1082 + $0x2c8] sm:$0xf]
        %v1358 = vld [vmem:[%s1082 + $0x2cc] sm:$0xf]
        %v1359 = vld [vmem:[%s1082 + $0x2d0] sm:$0xf]
        %v1360 = vld [vmem:[%s1082 + $0x2d4] sm:$0xf]
        %v1361 = vld [vmem:[%s1082 + $0x2d8] sm:$0xf]
        %v1362 = vld [vmem:[%s1082 + $0x2dc] sm:$0xf]
        %v1363 = vld [vmem:[%s1082 + $0x2e0] sm:$0xf]
        %v1364 = vld [vmem:[%s1082 + $0x2e4] sm:$0xf]
        %v1365 = vld [vmem:[%s1082 + $0x2e8] sm:$0xf]
        %v1366 = vld [vmem:[%s1082 + $0x2ec] sm:$0xf]
        %v1367 = vld [vmem:[%s1082 + $0x2f0] sm:$0xf]
        %v1368 = vld [vmem:[%s1082 + $0x2f4] sm:$0xf]
        %v1369 = vld [vmem:[%s1082 + $0x2f8] sm:$0xf]
        %v1370 = vld [vmem:[%s1082 + $0x2fc] sm:$0xf]
        %v1371 = vld [vmem:[%s1082 + $0x300] sm:$0xf]
        %v1372 = vld [vmem:[%s1082 + $0x304] sm:$0xf]
        %v1373 = vld [vmem:[%s1082 + $0x308] sm:$0xf]
        %v1374 = vld [vmem:[%s1082 + $0x30c] sm:$0xf]
        %v1375 = vld [vmem:[%s1082 + $0x310] sm:$0xf]
        %v1376 = vld [vmem:[%s1082 + $0x314] sm:$0xf]
        %v1377 = vld [vmem:[%s1082 + $0x318] sm:$0xf]
        %v1378 = vld [vmem:[%s1082 + $0x31c] sm:$0xf]
        %v1379 = vld [vmem:[%s1082 + $0x320] sm:$0xf]
        %v1380 = vld [vmem:[%s1082 + $0x324] sm:$0xf]
        %v1381 = vld [vmem:[%s1082 + $0x328] sm:$0xf]
        %v1382 = vld [vmem:[%s1082 + $0x32c] sm:$0xf]
        %v1383 = vld [vmem:[%s1082 + $0x330] sm:$0xf]
        %v1384 = vld [vmem:[%s1082 + $0x334] sm:$0xf]
        %v1385 = vld [vmem:[%s1082 + $0x338] sm:$0xf]
        %v1386 = vld [vmem:[%s1082 + $0x33c] sm:$0xf]
        %v1387 = vld [vmem:[%s1082 + $0x340] sm:$0xf]
        %v1388 = vld [vmem:[%s1082 + $0x344] sm:$0xf]
        %v1389 = vld [vmem:[%s1082 + $0x348] sm:$0xf]
        %v1390 = vld [vmem:[%s1082 + $0x34c] sm:$0xf]
        %v1391 = vld [vmem:[%s1082 + $0x350] sm:$0xf]
        %v1392 = vld [vmem:[%s1082 + $0x354] sm:$0xf]
        %v1393 = vld [vmem:[%s1082 + $0x358] sm:$0xf]
        %v1394 = vld [vmem:[%s1082 + $0x35c] sm:$0xf]
        %v1395 = vld [vmem:[%s1120] sm:$0x1]
        %v1397 = vlaneseq
        %v1398 = vshrl.u32 %v1397, 7
        %v1399 = vsub.s32 0, %v1398
        %v1400 = vrot.slane %v1395, %v1399
        %v1458 = vunpack.c.l.b16 %v1123
        %v1459 = vunpack.c.h.b16 %v1123
        %v1460 = vunpack.c.l.b16 %v1124
        %v1461 = vunpack.c.h.b16 %v1124
        %v1462 = vunpack.c.l.b16 %v1125
        %v1463 = vunpack.c.h.b16 %v1125
        %v1464 = vunpack.c.l.b16 %v1126
        %v1465 = vunpack.c.h.b16 %v1126
        %v1466 = vunpack.c.l.b16 %v1127
        %v1467 = vunpack.c.h.b16 %v1127
        %v1468 = vunpack.c.l.b16 %v1128
        %v1469 = vunpack.c.h.b16 %v1128
        %v1470 = vunpack.c.l.b16 %v1129
        %v1471 = vunpack.c.h.b16 %v1129
        %v1472 = vunpack.c.l.b16 %v1130
        %v1473 = vunpack.c.h.b16 %v1130
        %v1474 = vunpack.c.l.b16 %v1131
        %v1475 = vunpack.c.h.b16 %v1131
        %v1476 = vunpack.c.l.b16 %v1132
        %v1477 = vunpack.c.h.b16 %v1132
        %v1478 = vunpack.c.l.b16 %v1133
        %v1479 = vunpack.c.h.b16 %v1133
        %v1480 = vunpack.c.l.b16 %v1134
        %v1481 = vunpack.c.h.b16 %v1134
        %v1482 = vunpack.c.l.b16 %v1135
        %v1483 = vunpack.c.h.b16 %v1135
        %v1484 = vunpack.c.l.b16 %v1136
        %v1485 = vunpack.c.h.b16 %v1136
        %v1486 = vunpack.c.l.b16 %v1137
        %v1487 = vunpack.c.h.b16 %v1137
        %v1488 = vunpack.c.l.b16 %v1138
        %v1489 = vunpack.c.h.b16 %v1138
        %v1490 = vunpack.c.l.b16 %v1139
        %v1491 = vunpack.c.h.b16 %v1139
        %v1492 = vunpack.c.l.b16 %v1140
        %v1493 = vunpack.c.h.b16 %v1140
        %v1494 = vunpack.c.l.b16 %v1141
        %v1495 = vunpack.c.h.b16 %v1141
        %v1496 = vunpack.c.l.b16 %v1142
        %v1497 = vunpack.c.h.b16 %v1142
        %v1498 = vunpack.c.l.b16 %v1143
        %v1499 = vunpack.c.h.b16 %v1143
        %v1500 = vunpack.c.l.b16 %v1144
        %v1501 = vunpack.c.h.b16 %v1144
        %v1502 = vunpack.c.l.b16 %v1145
        %v1503 = vunpack.c.h.b16 %v1145
        %v1504 = vunpack.c.l.b16 %v1146
        %v1505 = vunpack.c.h.b16 %v1146
        %v1506 = vunpack.c.l.b16 %v1147
        %v1507 = vunpack.c.h.b16 %v1147
        %v1508 = vunpack.c.l.b16 %v1148
        %v1509 = vunpack.c.h.b16 %v1148
        %v1510 = vunpack.c.l.b16 %v1149
        %v1511 = vunpack.c.h.b16 %v1149
        %v1512 = vunpack.c.l.b16 %v1150
        %v1513 = vunpack.c.h.b16 %v1150
        %v1514 = vunpack.c.l.b16 %v1151
        %v1515 = vunpack.c.h.b16 %v1151
        %v1516 = vunpack.c.l.b16 %v1152
        %v1517 = vunpack.c.h.b16 %v1152
        %v1518 = vunpack.c.l.b16 %v1153
        %v1519 = vunpack.c.h.b16 %v1153
        %v1520 = vunpack.c.l.b16 %v1154
        %v1521 = vunpack.c.h.b16 %v1154
        %v1522 = vunpack.c.l.b16 %v1155
        %v1523 = vunpack.c.h.b16 %v1155
        %v1524 = vunpack.c.l.b16 %v1156
        %v1525 = vunpack.c.h.b16 %v1156
        %v1526 = vunpack.c.l.b16 %v1157
        %v1527 = vunpack.c.h.b16 %v1157
        %v1528 = vunpack.c.l.b16 %v1158
        %v1529 = vunpack.c.h.b16 %v1158
        %v1530 = vunpack.c.l.b16 %v1159
        %v1531 = vunpack.c.h.b16 %v1159
        %v1532 = vunpack.c.l.b16 %v1160
        %v1533 = vunpack.c.h.b16 %v1160
        %v1534 = vunpack.c.l.b16 %v1161
        %v1535 = vunpack.c.h.b16 %v1161
        %v1536 = vunpack.c.l.b16 %v1162
        %v1537 = vunpack.c.h.b16 %v1162
        %v1538 = vunpack.c.l.b16 %v1163
        %v1539 = vunpack.c.h.b16 %v1163
        %v1540 = vunpack.c.l.b16 %v1164
        %v1541 = vunpack.c.h.b16 %v1164
        %v1542 = vunpack.c.l.b16 %v1165
        %v1543 = vunpack.c.h.b16 %v1165
        %v1544 = vunpack.c.l.b16 %v1166
        %v1545 = vunpack.c.h.b16 %v1166
        %v1546 = vunpack.c.l.b16 %v1167
        %v1547 = vunpack.c.h.b16 %v1167
        %v1548 = vunpack.c.l.b16 %v1168
        %v1549 = vunpack.c.h.b16 %v1168
        %v1550 = vunpack.c.l.b16 %v1169
        %v1551 = vunpack.c.h.b16 %v1169
        %v1552 = vunpack.c.l.b16 %v1170
        %v1553 = vunpack.c.h.b16 %v1170
        %v1554 = vunpack.c.l.b16 %v1171
        %v1555 = vunpack.c.h.b16 %v1171
        %v1556 = vunpack.c.l.b16 %v1172
        %v1557 = vunpack.c.h.b16 %v1172
        %v1558 = vunpack.c.l.b16 %v1173
        %v1559 = vunpack.c.h.b16 %v1173
        %v1560 = vunpack.c.l.b16 %v1174
        %v1561 = vunpack.c.h.b16 %v1174
        %v1562 = vunpack.c.l.b16 %v1175
        %v1563 = vunpack.c.h.b16 %v1175
        %v1564 = vunpack.c.l.b16 %v1176
        %v1565 = vunpack.c.h.b16 %v1176
        %v1566 = vunpack.c.l.b16 %v1177
        %v1567 = vunpack.c.h.b16 %v1177
        %v1568 = vunpack.c.l.b16 %v1178
        %v1569 = vunpack.c.h.b16 %v1178
        %v1570 = vpack.c.b16 %v1472, %v1458
        %v1571 = vpack.c.b16 %v1473, %v1459
        %v1572 = vpack.c.b16 %v1474, %v1460
        %v1573 = vpack.c.b16 %v1475, %v1461
        %v1574 = vpack.c.b16 %v1476, %v1462
        %v1575 = vpack.c.b16 %v1477, %v1463
        %v1576 = vpack.c.b16 %v1478, %v1464
        %v1577 = vpack.c.b16 %v1479, %v1465
        %v1578 = vpack.c.b16 %v1480, %v1466
        %v1579 = vpack.c.b16 %v1481, %v1467
        %v1580 = vpack.c.b16 %v1482, %v1468
        %v1581 = vpack.c.b16 %v1483, %v1469
        %v1582 = vpack.c.b16 %v1484, %v1470
        %v1583 = vpack.c.b16 %v1485, %v1471
        %v1584 = vpack.c.b16 %v1500, %v1486
        %v1585 = vpack.c.b16 %v1501, %v1487
        %v1586 = vpack.c.b16 %v1502, %v1488
        %v1587 = vpack.c.b16 %v1503, %v1489
        %v1588 = vpack.c.b16 %v1504, %v1490
        %v1589 = vpack.c.b16 %v1505, %v1491
        %v1590 = vpack.c.b16 %v1506, %v1492
        %v1591 = vpack.c.b16 %v1507, %v1493
        %v1592 = vpack.c.b16 %v1508, %v1494
        %v1593 = vpack.c.b16 %v1509, %v1495
        %v1594 = vpack.c.b16 %v1510, %v1496
        %v1595 = vpack.c.b16 %v1511, %v1497
        %v1596 = vpack.c.b16 %v1512, %v1498
        %v1597 = vpack.c.b16 %v1513, %v1499
        %v1598 = vpack.c.b16 %v1528, %v1514
        %v1599 = vpack.c.b16 %v1529, %v1515
        %v1600 = vpack.c.b16 %v1530, %v1516
        %v1601 = vpack.c.b16 %v1531, %v1517
        %v1602 = vpack.c.b16 %v1532, %v1518
        %v1603 = vpack.c.b16 %v1533, %v1519
        %v1604 = vpack.c.b16 %v1534, %v1520
        %v1605 = vpack.c.b16 %v1535, %v1521
        %v1606 = vpack.c.b16 %v1536, %v1522
        %v1607 = vpack.c.b16 %v1537, %v1523
        %v1608 = vpack.c.b16 %v1538, %v1524
        %v1609 = vpack.c.b16 %v1539, %v1525
        %v1610 = vpack.c.b16 %v1540, %v1526
        %v1611 = vpack.c.b16 %v1541, %v1527
        %v1612 = vpack.c.b16 %v1556, %v1542
        %v1613 = vpack.c.b16 %v1557, %v1543
        %v1614 = vpack.c.b16 %v1558, %v1544
        %v1615 = vpack.c.b16 %v1559, %v1545
        %v1616 = vpack.c.b16 %v1560, %v1546
        %v1617 = vpack.c.b16 %v1561, %v1547
        %v1618 = vpack.c.b16 %v1562, %v1548
        %v1619 = vpack.c.b16 %v1563, %v1549
        %v1620 = vpack.c.b16 %v1564, %v1550
        %v1621 = vpack.c.b16 %v1565, %v1551
        %v1622 = vpack.c.b16 %v1566, %v1552
        %v1623 = vpack.c.b16 %v1567, %v1553
        %v1624 = vpack.c.b16 %v1568, %v1554
        %v1625 = vpack.c.b16 %v1569, %v1555
        %v1894 = vunpack.c.l.b16 %v1179
        %v1895 = vunpack.c.l.b16 %v1180
        %v1896 = vunpack.c.l.b16 %v1181
        %v1897 = vunpack.c.l.b16 %v1182
        %v1898 = vunpack.c.l.b16 %v1183
        %v1899 = vunpack.c.l.b16 %v1184
        %v1900 = vunpack.c.l.b16 %v1185
        %v1901 = vunpack.c.l.b16 %v1186
        %v1902 = vunpack.c.l.b16 %v1187
        %v1903 = vunpack.c.l.b16 %v1188
        %v1904 = vunpack.c.l.b16 %v1189
        %v1905 = vunpack.c.l.b16 %v1190
        %v1906 = vunpack.c.l.b16 %v1191
        %v1907 = vunpack.c.l.b16 %v1192
        %v1908 = vunpack.c.l.b16 %v1193
        %v1909 = vunpack.c.l.b16 %v1194
        %v1910 = vunpack.c.l.b16 %v1195
        %v1911 = vunpack.c.l.b16 %v1196
        %v1912 = vunpack.c.l.b16 %v1197
        %v1913 = vunpack.c.l.b16 %v1198
        %v1914 = vunpack.c.l.b16 %v1199
        %v1915 = vunpack.c.l.b16 %v1200
        %v1916 = vunpack.c.l.b16 %v1201
        %v1917 = vunpack.c.l.b16 %v1202
        %v1918 = vunpack.c.l.b16 %v1203
        %v1919 = vunpack.c.l.b16 %v1204
        %v1920 = vunpack.c.l.b16 %v1205
        %v1921 = vunpack.c.l.b16 %v1206
        %v1922 = vunpack.c.l.b16 %v1207
        %v1923 = vunpack.c.l.b16 %v1208
        %v1924 = vunpack.c.l.b16 %v1209
        %v1925 = vunpack.c.l.b16 %v1210
        %v1926 = vunpack.c.l.b16 %v1211
        %v1927 = vunpack.c.l.b16 %v1212
        %v1928 = vunpack.c.l.b16 %v1213
        %v1929 = vunpack.c.l.b16 %v1214
        %v1930 = vunpack.c.l.b16 %v1215
        %v1931 = vunpack.c.l.b16 %v1216
        %v1932 = vunpack.c.l.b16 %v1217
        %v1933 = vunpack.c.l.b16 %v1218
        %v1934 = vunpack.c.l.b16 %v1219
        %v1935 = vunpack.c.l.b16 %v1220
        %v1936 = vunpack.c.l.b16 %v1221
        %v1937 = vunpack.c.l.b16 %v1222
        %v1938 = vunpack.c.l.b16 %v1223
        %v1939 = vunpack.c.l.b16 %v1224
        %v1940 = vunpack.c.l.b16 %v1225
        %v1941 = vunpack.c.l.b16 %v1226
        %v1942 = vunpack.c.l.b16 %v1227
        %v1943 = vunpack.c.l.b16 %v1228
        %v1944 = vunpack.c.l.b16 %v1229
        %v1945 = vunpack.c.l.b16 %v1230
        %v1946 = vunpack.c.l.b16 %v1231
        %v1947 = vunpack.c.l.b16 %v1232
        %v1948 = vunpack.c.l.b16 %v1233
        %v1949 = vunpack.c.l.b16 %v1234
        %v1950 = vunpack.c.l.b16 %v1235
        %v1951 = vunpack.c.l.b16 %v1236
        %v1952 = vunpack.c.l.b16 %v1237
        %v1953 = vunpack.c.l.b16 %v1238
        %v1954 = vunpack.c.l.b16 %v1239
        %v1955 = vunpack.c.l.b16 %v1240
        %v1956 = vunpack.c.l.b16 %v1241
        %v1957 = vunpack.c.l.b16 %v1242
        %v1958 = vunpack.c.l.b16 %v1243
        %v1959 = vunpack.c.l.b16 %v1244
        %v1960 = vunpack.c.l.b16 %v1245
        %v1961 = vunpack.c.l.b16 %v1246
        %v1962 = vunpack.c.l.b16 %v1247
        %v1963 = vunpack.c.l.b16 %v1248
        %v1964 = vunpack.c.l.b16 %v1249
        %v1965 = vunpack.c.l.b16 %v1250
        %v1966 = vunpack.c.l.b16 %v1251
        %v1967 = vunpack.c.l.b16 %v1252
        %v1968 = vunpack.c.l.b16 %v1253
        %v1969 = vunpack.c.l.b16 %v1254
        %v1970 = vunpack.c.l.b16 %v1255
        %v1971 = vunpack.c.l.b16 %v1256
        %v1972 = vunpack.c.l.b16 %v1257
        %v1973 = vunpack.c.l.b16 %v1258
        %v1974 = vunpack.c.l.b16 %v1259
        %v1975 = vunpack.c.l.b16 %v1260
        %v1976 = vunpack.c.l.b16 %v1261
        %v1977 = vunpack.c.l.b16 %v1262
        %v1978 = vunpack.c.l.b16 %v1263
        %v1979 = vunpack.c.l.b16 %v1264
        %v1980 = vunpack.c.l.b16 %v1265
        %v1981 = vunpack.c.l.b16 %v1266
        %v1982 = vunpack.c.l.b16 %v1267
        %v1983 = vunpack.c.l.b16 %v1268
        %v1984 = vunpack.c.l.b16 %v1269
        %v1985 = vunpack.c.l.b16 %v1270
        %v1986 = vunpack.c.l.b16 %v1271
        %v1987 = vunpack.c.l.b16 %v1272
        %v1988 = vunpack.c.l.b16 %v1273
        %v1989 = vunpack.c.l.b16 %v1274
        %v1990 = vunpack.c.l.b16 %v1275
        %v1991 = vunpack.c.l.b16 %v1276
        %v1992 = vunpack.c.l.b16 %v1277
        %v1993 = vunpack.c.l.b16 %v1278
        %v1994 = vunpack.c.l.b16 %v1279
        %v1995 = vunpack.c.l.b16 %v1280
        %v1996 = vunpack.c.l.b16 %v1281
        %v1997 = vunpack.c.l.b16 %v1282
        %v1998 = vunpack.c.l.b16 %v1283
        %v1999 = vunpack.c.l.b16 %v1284
        %v2000 = vunpack.c.l.b16 %v1285
        %v2001 = vunpack.c.l.b16 %v1286
        %v2002 = vunpack.c.l.b16 %v1287
        %v2003 = vunpack.c.l.b16 %v1288
        %v2004 = vunpack.c.l.b16 %v1289
        %v2005 = vunpack.c.l.b16 %v1290
        %v2006 = vunpack.c.l.b16 %v1291
        %v2007 = vunpack.c.l.b16 %v1292
        %v2008 = vunpack.c.l.b16 %v1293
        %v2009 = vunpack.c.l.b16 %v1294
        %v2010 = vunpack.c.l.b16 %v1295
        %v2011 = vunpack.c.l.b16 %v1296
        %v2012 = vunpack.c.l.b16 %v1297
        %v2013 = vunpack.c.l.b16 %v1298
        %v2014 = vunpack.c.l.b16 %v1299
        %v2015 = vunpack.c.l.b16 %v1300
        %v2016 = vunpack.c.l.b16 %v1301
        %v2017 = vunpack.c.l.b16 %v1302
        %v2018 = vunpack.c.l.b16 %v1303
        %v2019 = vunpack.c.l.b16 %v1304
        %v2020 = vunpack.c.l.b16 %v1305
        %v2021 = vunpack.c.l.b16 %v1306
        %v2022 = vunpack.c.l.b16 %v1307
        %v2023 = vunpack.c.l.b16 %v1308
        %v2024 = vunpack.c.l.b16 %v1309
        %v2025 = vunpack.c.l.b16 %v1310
        %v2026 = vunpack.c.l.b16 %v1311
        %v2027 = vunpack.c.l.b16 %v1312
        %v2028 = vunpack.c.l.b16 %v1313
        %v2029 = vunpack.c.l.b16 %v1314
        %v2030 = vunpack.c.l.b16 %v1315
        %v2031 = vunpack.c.l.b16 %v1316
        %v2032 = vunpack.c.l.b16 %v1317
        %v2033 = vunpack.c.l.b16 %v1318
        %v2034 = vunpack.c.l.b16 %v1319
        %v2035 = vunpack.c.l.b16 %v1320
        %v2036 = vunpack.c.l.b16 %v1321
        %v2037 = vunpack.c.l.b16 %v1322
        %v2038 = vunpack.c.l.b16 %v1323
        %v2039 = vunpack.c.l.b16 %v1324
        %v2040 = vunpack.c.l.b16 %v1325
        %v2041 = vunpack.c.l.b16 %v1326
        %v2042 = vunpack.c.l.b16 %v1327
        %v2043 = vunpack.c.l.b16 %v1328
        %v2044 = vunpack.c.l.b16 %v1329
        %v2045 = vunpack.c.l.b16 %v1330
        %v2046 = vunpack.c.l.b16 %v1331
        %v2047 = vunpack.c.l.b16 %v1332
        %v2048 = vunpack.c.l.b16 %v1333
        %v2049 = vunpack.c.l.b16 %v1334
        %v2050 = vunpack.c.l.b16 %v1335
        %v2051 = vunpack.c.l.b16 %v1336
        %v2052 = vunpack.c.l.b16 %v1337
        %v2053 = vunpack.c.l.b16 %v1338
        %v2054 = vunpack.c.l.b16 %v1339
        %v2055 = vunpack.c.l.b16 %v1340
        %v2056 = vunpack.c.l.b16 %v1341
        %v2057 = vunpack.c.l.b16 %v1342
        %v2058 = vunpack.c.l.b16 %v1343
        %v2059 = vunpack.c.l.b16 %v1344
        %v2060 = vunpack.c.l.b16 %v1345
        %v2061 = vunpack.c.l.b16 %v1346
        %v2062 = vunpack.c.l.b16 %v1347
        %v2063 = vunpack.c.l.b16 %v1348
        %v2064 = vunpack.c.l.b16 %v1349
        %v2065 = vunpack.c.l.b16 %v1350
        %v2066 = vunpack.c.l.b16 %v1351
        %v2067 = vunpack.c.l.b16 %v1352
        %v2068 = vunpack.c.l.b16 %v1353
        %v2069 = vunpack.c.l.b16 %v1354
        %v2070 = vunpack.c.l.b16 %v1355
        %v2071 = vunpack.c.l.b16 %v1356
        %v2072 = vunpack.c.l.b16 %v1357
        %v2073 = vunpack.c.l.b16 %v1358
        %v2074 = vunpack.c.l.b16 %v1359
        %v2075 = vunpack.c.l.b16 %v1360
        %v2076 = vunpack.c.l.b16 %v1361
        %v2077 = vunpack.c.l.b16 %v1362
        %v2078 = vunpack.c.l.b16 %v1363
        %v2079 = vunpack.c.l.b16 %v1364
        %v2080 = vunpack.c.l.b16 %v1365
        %v2081 = vunpack.c.l.b16 %v1366
        %v2082 = vunpack.c.l.b16 %v1367
        %v2083 = vunpack.c.l.b16 %v1368
        %v2084 = vunpack.c.l.b16 %v1369
        %v2085 = vunpack.c.l.b16 %v1370
        %v2086 = vunpack.c.l.b16 %v1371
        %v2087 = vunpack.c.l.b16 %v1372
        %v2088 = vunpack.c.l.b16 %v1373
        %v2089 = vunpack.c.l.b16 %v1374
        %v2090 = vunpack.c.l.b16 %v1375
        %v2091 = vunpack.c.l.b16 %v1376
        %v2092 = vunpack.c.l.b16 %v1377
        %v2093 = vunpack.c.l.b16 %v1378
        %v2094 = vunpack.c.l.b16 %v1379
        %v2095 = vunpack.c.l.b16 %v1380
        %v2096 = vunpack.c.l.b16 %v1381
        %v2097 = vunpack.c.l.b16 %v1382
        %v2098 = vunpack.c.l.b16 %v1383
        %v2099 = vunpack.c.l.b16 %v1384
        %v2100 = vunpack.c.l.b16 %v1385
        %v2101 = vunpack.c.l.b16 %v1386
        %v2102 = vunpack.c.l.b16 %v1387
        %v2103 = vunpack.c.l.b16 %v1388
        %v2104 = vunpack.c.l.b16 %v1389
        %v2105 = vunpack.c.l.b16 %v1390
        %v2106 = vunpack.c.l.b16 %v1391
        %v2107 = vunpack.c.l.b16 %v1392
        %v2108 = vunpack.c.l.b16 %v1393
        %v2109 = vunpack.c.l.b16 %v1394
        %v2110 = vpack.c.b16 %v1895, %v1894
        %v2111 = vpack.c.b16 %v1897, %v1896
        %v2112 = vpack.c.b16 %v1899, %v1898
        %v2113 = vpack.c.b16 %v1901, %v1900
        %v2114 = vpack.c.b16 %v1903, %v1902
        %v2115 = vpack.c.b16 %v1905, %v1904
        %v2116 = vpack.c.b16 %v1907, %v1906
        %v2117 = vpack.c.b16 %v1909, %v1908
        %v2118 = vpack.c.b16 %v1911, %v1910
        %v2119 = vpack.c.b16 %v1913, %v1912
        %v2120 = vpack.c.b16 %v1915, %v1914
        %v2121 = vpack.c.b16 %v1917, %v1916
        %v2122 = vpack.c.b16 %v1919, %v1918
        %v2123 = vpack.c.b16 %v1921, %v1920
        %v2124 = vpack.c.b16 %v1923, %v1922
        %v2125 = vpack.c.b16 %v1925, %v1924
        %v2126 = vpack.c.b16 %v1927, %v1926
        %v2127 = vpack.c.b16 %v1929, %v1928
        %v2128 = vpack.c.b16 %v1931, %v1930
        %v2129 = vpack.c.b16 %v1933, %v1932
        %v2130 = vpack.c.b16 %v1935, %v1934
        %v2131 = vpack.c.b16 %v1937, %v1936
        %v2132 = vpack.c.b16 %v1939, %v1938
        %v2133 = vpack.c.b16 %v1941, %v1940
        %v2134 = vpack.c.b16 %v1943, %v1942
        %v2135 = vpack.c.b16 %v1945, %v1944
        %v2136 = vpack.c.b16 %v1947, %v1946
        %v2137 = vpack.c.b16 %v1949, %v1948
        %v2138 = vpack.c.b16 %v1951, %v1950
        %v2139 = vpack.c.b16 %v1953, %v1952
        %v2140 = vpack.c.b16 %v1955, %v1954
        %v2141 = vpack.c.b16 %v1957, %v1956
        %v2142 = vpack.c.b16 %v1959, %v1958
        %v2143 = vpack.c.b16 %v1961, %v1960
        %v2144 = vpack.c.b16 %v1963, %v1962
        %v2145 = vpack.c.b16 %v1965, %v1964
        %v2146 = vpack.c.b16 %v1967, %v1966
        %v2147 = vpack.c.b16 %v1969, %v1968
        %v2148 = vpack.c.b16 %v1971, %v1970
        %v2149 = vpack.c.b16 %v1973, %v1972
        %v2150 = vpack.c.b16 %v1975, %v1974
        %v2151 = vpack.c.b16 %v1977, %v1976
        %v2152 = vpack.c.b16 %v1979, %v1978
        %v2153 = vpack.c.b16 %v1981, %v1980
        %v2154 = vpack.c.b16 %v1983, %v1982
        %v2155 = vpack.c.b16 %v1985, %v1984
        %v2156 = vpack.c.b16 %v1987, %v1986
        %v2157 = vpack.c.b16 %v1989, %v1988
        %v2158 = vpack.c.b16 %v1991, %v1990
        %v2159 = vpack.c.b16 %v1993, %v1992
        %v2160 = vpack.c.b16 %v1995, %v1994
        %v2161 = vpack.c.b16 %v1997, %v1996
        %v2162 = vpack.c.b16 %v1999, %v1998
        %v2163 = vpack.c.b16 %v2001, %v2000
        %v2164 = vpack.c.b16 %v2003, %v2002
        %v2165 = vpack.c.b16 %v2005, %v2004
        %v2166 = vpack.c.b16 %v2007, %v2006
        %v2167 = vpack.c.b16 %v2009, %v2008
        %v2168 = vpack.c.b16 %v2011, %v2010
        %v2169 = vpack.c.b16 %v2013, %v2012
        %v2170 = vpack.c.b16 %v2015, %v2014
        %v2171 = vpack.c.b16 %v2017, %v2016
        %v2172 = vpack.c.b16 %v2019, %v2018
        %v2173 = vpack.c.b16 %v2021, %v2020
        %v2174 = vpack.c.b16 %v2023, %v2022
        %v2175 = vpack.c.b16 %v2025, %v2024
        %v2176 = vpack.c.b16 %v2027, %v2026
        %v2177 = vpack.c.b16 %v2029, %v2028
        %v2178 = vpack.c.b16 %v2031, %v2030
        %v2179 = vpack.c.b16 %v2033, %v2032
        %v2180 = vpack.c.b16 %v2035, %v2034
        %v2181 = vpack.c.b16 %v2037, %v2036
        %v2182 = vpack.c.b16 %v2039, %v2038
        %v2183 = vpack.c.b16 %v2041, %v2040
        %v2184 = vpack.c.b16 %v2043, %v2042
        %v2185 = vpack.c.b16 %v2045, %v2044
        %v2186 = vpack.c.b16 %v2047, %v2046
        %v2187 = vpack.c.b16 %v2049, %v2048
        %v2188 = vpack.c.b16 %v2051, %v2050
        %v2189 = vpack.c.b16 %v2053, %v2052
        %v2190 = vpack.c.b16 %v2055, %v2054
        %v2191 = vpack.c.b16 %v2057, %v2056
        %v2192 = vpack.c.b16 %v2059, %v2058
        %v2193 = vpack.c.b16 %v2061, %v2060
        %v2194 = vpack.c.b16 %v2063, %v2062
        %v2195 = vpack.c.b16 %v2065, %v2064
        %v2196 = vpack.c.b16 %v2067, %v2066
        %v2197 = vpack.c.b16 %v2069, %v2068
        %v2198 = vpack.c.b16 %v2071, %v2070
        %v2199 = vpack.c.b16 %v2073, %v2072
        %v2200 = vpack.c.b16 %v2075, %v2074
        %v2201 = vpack.c.b16 %v2077, %v2076
        %v2202 = vpack.c.b16 %v2079, %v2078
        %v2203 = vpack.c.b16 %v2081, %v2080
        %v2204 = vpack.c.b16 %v2083, %v2082
        %v2205 = vpack.c.b16 %v2085, %v2084
        %v2206 = vpack.c.b16 %v2087, %v2086
        %v2207 = vpack.c.b16 %v2089, %v2088
        %v2208 = vpack.c.b16 %v2091, %v2090
        %v2209 = vpack.c.b16 %v2093, %v2092
        %v2210 = vpack.c.b16 %v2095, %v2094
        %v2211 = vpack.c.b16 %v2097, %v2096
        %v2212 = vpack.c.b16 %v2099, %v2098
        %v2213 = vpack.c.b16 %v2101, %v2100
        %v2214 = vpack.c.b16 %v2103, %v2102
        %v2215 = vpack.c.b16 %v2105, %v2104
        %v2216 = vpack.c.b16 %v2107, %v2106
        %v2217 = vpack.c.b16 %v2109, %v2108
        %vm2326 = vcmask 523264
        %v2328 = vsel %vm2326, %v1583, 0
        %v2331 = vsel %vm2326, %v1597, 0
        %v2334 = vsel %vm2326, %v1611, 0
        %v2337 = vsel %vm2326, %v1625, 0
        %2339 = vmatprep.subr.bf16.mxu0 0
        %2340 = vmatpush1.bf16.msra.mxu0 %v2117
        %2341 = vmatprep.subr.bf16.mxu0 0
        %2342 = vmatpush1.bf16.msra.mxu0 %v2116
        %2343 = vmatprep.subr.bf16.mxu0 0
        %2344 = vmatpush1.bf16.msra.mxu0 %v2115
        %2345 = vmatprep.subr.bf16.mxu0 0
        %2346 = vmatpush1.bf16.msra.mxu0 %v2114
        %2347 = vmatprep.subr.bf16.mxu0 0
        %2348 = vmatpush1.bf16.msra.mxu0 %v2113
        %2349 = vmatprep.subr.bf16.mxu0 0
        %2350 = vmatpush1.bf16.msra.mxu0 %v2112
        %2351 = vmatprep.subr.bf16.mxu0 0
        %2352 = vmatpush1.bf16.msra.mxu0 %v2111
        %2353 = vmatprep.subr.bf16.mxu0 0
        %2354 = vmatpush1.bf16.msra.mxu0 %v2110
        %2355 = vmatprep.subr.bf16.mxu0 0
        %2356 = vmatpush2.bf16.msra.mxu0 %v2125
        %2357 = vmatprep.subr.bf16.mxu0 0
        %2358 = vmatpush2.bf16.msra.mxu0 %v2124
        %2359 = vmatprep.subr.bf16.mxu0 0
        %2360 = vmatpush2.bf16.msra.mxu0 %v2123
        %2361 = vmatprep.subr.bf16.mxu0 0
        %2362 = vmatpush2.bf16.msra.mxu0 %v2122
        %2363 = vmatprep.subr.bf16.mxu0 0
        %2364 = vmatpush2.bf16.msra.mxu0 %v2121
        %2365 = vmatprep.subr.bf16.mxu0 0
        %2366 = vmatpush2.bf16.msra.mxu0 %v2120
        %2367 = vmatprep.subr.bf16.mxu0 0
        %2368 = vmatpush2.bf16.msra.mxu0 %v2119
        %2369 = vmatprep.subr.bf16.mxu0 0
        %2370 = vmatpush2.bf16.msra.mxu0 %v2118
        %2371 = vmatprep.mubr.bf16.mxu0 %v1571
        %2372 = vmatmul.mubr.bf16.gmra.mxu0 %v1570
        %v2373 = vpop.f32.mrf.mxu0
        %v2374 = vadd.f32 %v1400, %v2373
        %v2375 = vpop.f32.mrf.mxu0
        %v2376 = vpop.f32.mrf.mxu0
        %v2377 = vadd.f32 %v1400, %v2376
        %v2378 = vpop.f32.mrf.mxu0
        %2379 = vmatprep.mubr.bf16.mxu0 %v1585
        %2380 = vmatmul.mubr.bf16.gmra.mxu0 %v1584
        %v2381 = vpop.f32.mrf.mxu0
        %v2382 = vadd.f32 %v1400, %v2381
        %v2383 = vpop.f32.mrf.mxu0
        %v2384 = vpop.f32.mrf.mxu0
        %v2385 = vadd.f32 %v1400, %v2384
        %v2386 = vpop.f32.mrf.mxu0
        %2387 = vmatprep.mubr.bf16.mxu0 %v1599
        %2388 = vmatmul.mubr.bf16.gmra.mxu0 %v1598
        %v2389 = vpop.f32.mrf.mxu0
        %v2390 = vadd.f32 %v1400, %v2389
        %v2391 = vpop.f32.mrf.mxu0
        %v2392 = vpop.f32.mrf.mxu0
        %v2393 = vadd.f32 %v1400, %v2392
        %v2394 = vpop.f32.mrf.mxu0
        %2395 = vmatprep.mubr.bf16.mxu0 %v1613
        %2396 = vmatmul.mubr.bf16.gmra.mxu0 %v1612
        %v2397 = vpop.f32.mrf.mxu0
        %v2398 = vadd.f32 %v1400, %v2397
        %v2399 = vpop.f32.mrf.mxu0
        %v2400 = vpop.f32.mrf.mxu0
        %v2401 = vadd.f32 %v1400, %v2400
        %v2402 = vpop.f32.mrf.mxu0
        %2403 = vdwg.mxu0
        %2404 = vmatprep.subr.bf16.mxu0 0
        %2405 = vmatpush1.bf16.msra.mxu0 %v2133
        %2406 = vmatprep.subr.bf16.mxu0 0
        %2407 = vmatpush1.bf16.msra.mxu0 %v2132
        %2408 = vmatprep.subr.bf16.mxu0 0
        %2409 = vmatpush1.bf16.msra.mxu0 %v2131
        %2410 = vmatprep.subr.bf16.mxu0 0
        %2411 = vmatpush1.bf16.msra.mxu0 %v2130
        %2412 = vmatprep.subr.bf16.mxu0 0
        %2413 = vmatpush1.bf16.msra.mxu0 %v2129
        %2414 = vmatprep.subr.bf16.mxu0 0
        %2415 = vmatpush1.bf16.msra.mxu0 %v2128
        %2416 = vmatprep.subr.bf16.mxu0 0
        %2417 = vmatpush1.bf16.msra.mxu0 %v2127
        %2418 = vmatprep.subr.bf16.mxu0 0
        %2419 = vmatpush1.bf16.msra.mxu0 %v2126
        %2420 = vmatprep.subr.bf16.mxu0 0
        %2421 = vmatpush2.bf16.msra.mxu0 %v2141
        %2422 = vmatprep.subr.bf16.mxu0 0
        %2423 = vmatpush2.bf16.msra.mxu0 %v2140
        %2424 = vmatprep.subr.bf16.mxu0 0
        %2425 = vmatpush2.bf16.msra.mxu0 %v2139
        %2426 = vmatprep.subr.bf16.mxu0 0
        %2427 = vmatpush2.bf16.msra.mxu0 %v2138
        %2428 = vmatprep.subr.bf16.mxu0 0
        %2429 = vmatpush2.bf16.msra.mxu0 %v2137
        %2430 = vmatprep.subr.bf16.mxu0 0
        %2431 = vmatpush2.bf16.msra.mxu0 %v2136
        %2432 = vmatprep.subr.bf16.mxu0 0
        %2433 = vmatpush2.bf16.msra.mxu0 %v2135
        %2434 = vmatprep.subr.bf16.mxu0 0
        %2435 = vmatpush2.bf16.msra.mxu0 %v2134
        %2436 = vmatprep.mubr.bf16.mxu0 %v1573
        %2437 = vmatmul.mubr.bf16.gmra.mxu0 %v1572
        %v2438 = vpop.f32.mrf.mxu0
        %v2439 = vadd.f32 %v2374, %v2438
        %v2440 = vpop.f32.mrf.mxu0
        %v2441 = vpop.f32.mrf.mxu0
        %v2442 = vadd.f32 %v2377, %v2441
        %v2443 = vpop.f32.mrf.mxu0
        %2444 = vmatprep.mubr.bf16.mxu0 %v1587
        %2445 = vmatmul.mubr.bf16.gmra.mxu0 %v1586
        %v2446 = vpop.f32.mrf.mxu0
        %v2447 = vadd.f32 %v2382, %v2446
        %v2448 = vpop.f32.mrf.mxu0
        %v2449 = vpop.f32.mrf.mxu0
        %v2450 = vadd.f32 %v2385, %v2449
        %v2451 = vpop.f32.mrf.mxu0
        %2452 = vmatprep.mubr.bf16.mxu0 %v1601
        %2453 = vmatmul.mubr.bf16.gmra.mxu0 %v1600
        %v2454 = vpop.f32.mrf.mxu0
        %v2455 = vadd.f32 %v2390, %v2454
        %v2456 = vpop.f32.mrf.mxu0
        %v2457 = vpop.f32.mrf.mxu0
        %v2458 = vadd.f32 %v2393, %v2457
        %v2459 = vpop.f32.mrf.mxu0
        %2460 = vmatprep.mubr.bf16.mxu0 %v1615
        %2461 = vmatmul.mubr.bf16.gmra.mxu0 %v1614
        %v2462 = vpop.f32.mrf.mxu0
        %v2463 = vadd.f32 %v2398, %v2462
        %v2464 = vpop.f32.mrf.mxu0
        %v2465 = vpop.f32.mrf.mxu0
        %v2466 = vadd.f32 %v2401, %v2465
        %v2467 = vpop.f32.mrf.mxu0
        %2468 = vdwg.mxu0
        %2469 = vmatprep.subr.bf16.mxu0 0
        %2470 = vmatpush1.bf16.msra.mxu0 %v2149
        %2471 = vmatprep.subr.bf16.mxu0 0
        %2472 = vmatpush1.bf16.msra.mxu0 %v2148
        %2473 = vmatprep.subr.bf16.mxu0 0
        %2474 = vmatpush1.bf16.msra.mxu0 %v2147
        %2475 = vmatprep.subr.bf16.mxu0 0
        %2476 = vmatpush1.bf16.msra.mxu0 %v2146
        %2477 = vmatprep.subr.bf16.mxu0 0
        %2478 = vmatpush1.bf16.msra.mxu0 %v2145
        %2479 = vmatprep.subr.bf16.mxu0 0
        %2480 = vmatpush1.bf16.msra.mxu0 %v2144
        %2481 = vmatprep.subr.bf16.mxu0 0
        %2482 = vmatpush1.bf16.msra.mxu0 %v2143
        %2483 = vmatprep.subr.bf16.mxu0 0
        %2484 = vmatpush1.bf16.msra.mxu0 %v2142
        %2485 = vmatprep.subr.bf16.mxu0 0
        %2486 = vmatpush2.bf16.msra.mxu0 %v2157
        %2487 = vmatprep.subr.bf16.mxu0 0
        %2488 = vmatpush2.bf16.msra.mxu0 %v2156
        %2489 = vmatprep.subr.bf16.mxu0 0
        %2490 = vmatpush2.bf16.msra.mxu0 %v2155
        %2491 = vmatprep.subr.bf16.mxu0 0
        %2492 = vmatpush2.bf16.msra.mxu0 %v2154
        %2493 = vmatprep.subr.bf16.mxu0 0
        %2494 = vmatpush2.bf16.msra.mxu0 %v2153
        %2495 = vmatprep.subr.bf16.mxu0 0
        %2496 = vmatpush2.bf16.msra.mxu0 %v2152
        %2497 = vmatprep.subr.bf16.mxu0 0
        %2498 = vmatpush2.bf16.msra.mxu0 %v2151
        %2499 = vmatprep.subr.bf16.mxu0 0
        %2500 = vmatpush2.bf16.msra.mxu0 %v2150
        %2501 = vmatprep.mubr.bf16.mxu0 %v1575
        %2502 = vmatmul.mubr.bf16.gmra.mxu0 %v1574
        %v2503 = vpop.f32.mrf.mxu0
        %v2504 = vadd.f32 %v2439, %v2503
        %v2505 = vpop.f32.mrf.mxu0
        %v2506 = vpop.f32.mrf.mxu0
        %v2507 = vadd.f32 %v2442, %v2506
        %v2508 = vpop.f32.mrf.mxu0
        %2509 = vmatprep.mubr.bf16.mxu0 %v1589
        %2510 = vmatmul.mubr.bf16.gmra.mxu0 %v1588
        %v2511 = vpop.f32.mrf.mxu0
        %v2512 = vadd.f32 %v2447, %v2511
        %v2513 = vpop.f32.mrf.mxu0
        %v2514 = vpop.f32.mrf.mxu0
        %v2515 = vadd.f32 %v2450, %v2514
        %v2516 = vpop.f32.mrf.mxu0
        %2517 = vmatprep.mubr.bf16.mxu0 %v1603
        %2518 = vmatmul.mubr.bf16.gmra.mxu0 %v1602
        %v2519 = vpop.f32.mrf.mxu0
        %v2520 = vadd.f32 %v2455, %v2519
        %v2521 = vpop.f32.mrf.mxu0
        %v2522 = vpop.f32.mrf.mxu0
        %v2523 = vadd.f32 %v2458, %v2522
        %v2524 = vpop.f32.mrf.mxu0
        %2525 = vmatprep.mubr.bf16.mxu0 %v1617
        %2526 = vmatmul.mubr.bf16.gmra.mxu0 %v1616
        %v2527 = vpop.f32.mrf.mxu0
        %v2528 = vadd.f32 %v2463, %v2527
        %v2529 = vpop.f32.mrf.mxu0
        %v2530 = vpop.f32.mrf.mxu0
        %v2531 = vadd.f32 %v2466, %v2530
        %v2532 = vpop.f32.mrf.mxu0
        %2533 = vdwg.mxu0
        %2534 = vmatprep.subr.bf16.mxu0 0
        %2535 = vmatpush1.bf16.msra.mxu0 %v2165
        %2536 = vmatprep.subr.bf16.mxu0 0
        %2537 = vmatpush1.bf16.msra.mxu0 %v2164
        %2538 = vmatprep.subr.bf16.mxu0 0
        %2539 = vmatpush1.bf16.msra.mxu0 %v2163
        %2540 = vmatprep.subr.bf16.mxu0 0
        %2541 = vmatpush1.bf16.msra.mxu0 %v2162
        %2542 = vmatprep.subr.bf16.mxu0 0
        %2543 = vmatpush1.bf16.msra.mxu0 %v2161
        %2544 = vmatprep.subr.bf16.mxu0 0
        %2545 = vmatpush1.bf16.msra.mxu0 %v2160
        %2546 = vmatprep.subr.bf16.mxu0 0
        %2547 = vmatpush1.bf16.msra.mxu0 %v2159
        %2548 = vmatprep.subr.bf16.mxu0 0
        %2549 = vmatpush1.bf16.msra.mxu0 %v2158
        %2550 = vmatprep.subr.bf16.mxu0 0
        %2551 = vmatpush2.bf16.msra.mxu0 %v2173
        %2552 = vmatprep.subr.bf16.mxu0 0
        %2553 = vmatpush2.bf16.msra.mxu0 %v2172
        %2554 = vmatprep.subr.bf16.mxu0 0
        %2555 = vmatpush2.bf16.msra.mxu0 %v2171
        %2556 = vmatprep.subr.bf16.mxu0 0
        %2557 = vmatpush2.bf16.msra.mxu0 %v2170
        %2558 = vmatprep.subr.bf16.mxu0 0
        %2559 = vmatpush2.bf16.msra.mxu0 %v2169
        %2560 = vmatprep.subr.bf16.mxu0 0
        %2561 = vmatpush2.bf16.msra.mxu0 %v2168
        %2562 = vmatprep.subr.bf16.mxu0 0
        %2563 = vmatpush2.bf16.msra.mxu0 %v2167
        %2564 = vmatprep.subr.bf16.mxu0 0
        %2565 = vmatpush2.bf16.msra.mxu0 %v2166
        %2566 = vmatprep.mubr.bf16.mxu0 %v1577
        %2567 = vmatmul.mubr.bf16.gmra.mxu0 %v1576
        %v2568 = vpop.f32.mrf.mxu0
        %v2569 = vadd.f32 %v2504, %v2568
        %v2570 = vpop.f32.mrf.mxu0
        %v2571 = vpop.f32.mrf.mxu0
        %v2572 = vadd.f32 %v2507, %v2571
        %v2573 = vpop.f32.mrf.mxu0
        %2574 = vmatprep.mubr.bf16.mxu0 %v1591
        %2575 = vmatmul.mubr.bf16.gmra.mxu0 %v1590
        %v2576 = vpop.f32.mrf.mxu0
        %v2577 = vadd.f32 %v2512, %v2576
        %v2578 = vpop.f32.mrf.mxu0
        %v2579 = vpop.f32.mrf.mxu0
        %v2580 = vadd.f32 %v2515, %v2579
        %v2581 = vpop.f32.mrf.mxu0
        %2582 = vmatprep.mubr.bf16.mxu0 %v1605
        %2583 = vmatmul.mubr.bf16.gmra.mxu0 %v1604
        %v2584 = vpop.f32.mrf.mxu0
        %v2585 = vadd.f32 %v2520, %v2584
        %v2586 = vpop.f32.mrf.mxu0
        %v2587 = vpop.f32.mrf.mxu0
        %v2588 = vadd.f32 %v2523, %v2587
        %v2589 = vpop.f32.mrf.mxu0
        %2590 = vmatprep.mubr.bf16.mxu0 %v1619
        %2591 = vmatmul.mubr.bf16.gmra.mxu0 %v1618
        %v2592 = vpop.f32.mrf.mxu0
        %v2593 = vadd.f32 %v2528, %v2592
        %v2594 = vpop.f32.mrf.mxu0
        %v2595 = vpop.f32.mrf.mxu0
        %v2596 = vadd.f32 %v2531, %v2595
        %v2597 = vpop.f32.mrf.mxu0
        %2598 = vdwg.mxu0
        %2599 = vmatprep.subr.bf16.mxu0 0
        %2600 = vmatpush1.bf16.msra.mxu0 %v2181
        %2601 = vmatprep.subr.bf16.mxu0 0
        %2602 = vmatpush1.bf16.msra.mxu0 %v2180
        %2603 = vmatprep.subr.bf16.mxu0 0
        %2604 = vmatpush1.bf16.msra.mxu0 %v2179
        %2605 = vmatprep.subr.bf16.mxu0 0
        %2606 = vmatpush1.bf16.msra.mxu0 %v2178
        %2607 = vmatprep.subr.bf16.mxu0 0
        %2608 = vmatpush1.bf16.msra.mxu0 %v2177
        %2609 = vmatprep.subr.bf16.mxu0 0
        %2610 = vmatpush1.bf16.msra.mxu0 %v2176
        %2611 = vmatprep.subr.bf16.mxu0 0
        %2612 = vmatpush1.bf16.msra.mxu0 %v2175
        %2613 = vmatprep.subr.bf16.mxu0 0
        %2614 = vmatpush1.bf16.msra.mxu0 %v2174
        %2615 = vmatprep.subr.bf16.mxu0 0
        %2616 = vmatpush2.bf16.msra.mxu0 %v2189
        %2617 = vmatprep.subr.bf16.mxu0 0
        %2618 = vmatpush2.bf16.msra.mxu0 %v2188
        %2619 = vmatprep.subr.bf16.mxu0 0
        %2620 = vmatpush2.bf16.msra.mxu0 %v2187
        %2621 = vmatprep.subr.bf16.mxu0 0
        %2622 = vmatpush2.bf16.msra.mxu0 %v2186
        %2623 = vmatprep.subr.bf16.mxu0 0
        %2624 = vmatpush2.bf16.msra.mxu0 %v2185
        %2625 = vmatprep.subr.bf16.mxu0 0
        %2626 = vmatpush2.bf16.msra.mxu0 %v2184
        %2627 = vmatprep.subr.bf16.mxu0 0
        %2628 = vmatpush2.bf16.msra.mxu0 %v2183
        %2629 = vmatprep.subr.bf16.mxu0 0
        %2630 = vmatpush2.bf16.msra.mxu0 %v2182
        %2631 = vmatprep.mubr.bf16.mxu0 %v1579
        %2632 = vmatmul.mubr.bf16.gmra.mxu0 %v1578
        %v2633 = vpop.f32.mrf.mxu0
        %v2634 = vadd.f32 %v2569, %v2633
        %v2635 = vpop.f32.mrf.mxu0
        %v2636 = vpop.f32.mrf.mxu0
        %v2637 = vadd.f32 %v2572, %v2636
        %v2638 = vpop.f32.mrf.mxu0
        %2639 = vmatprep.mubr.bf16.mxu0 %v1593
        %2640 = vmatmul.mubr.bf16.gmra.mxu0 %v1592
        %v2641 = vpop.f32.mrf.mxu0
        %v2642 = vadd.f32 %v2577, %v2641
        %v2643 = vpop.f32.mrf.mxu0
        %v2644 = vpop.f32.mrf.mxu0
        %v2645 = vadd.f32 %v2580, %v2644
        %v2646 = vpop.f32.mrf.mxu0
        %2647 = vmatprep.mubr.bf16.mxu0 %v1607
        %2648 = vmatmul.mubr.bf16.gmra.mxu0 %v1606
        %v2649 = vpop.f32.mrf.mxu0
        %v2650 = vadd.f32 %v2585, %v2649
        %v2651 = vpop.f32.mrf.mxu0
        %v2652 = vpop.f32.mrf.mxu0
        %v2653 = vadd.f32 %v2588, %v2652
        %v2654 = vpop.f32.mrf.mxu0
        %2655 = vmatprep.mubr.bf16.mxu0 %v1621
        %2656 = vmatmul.mubr.bf16.gmra.mxu0 %v1620
        %v2657 = vpop.f32.mrf.mxu0
        %v2658 = vadd.f32 %v2593, %v2657
        %v2659 = vpop.f32.mrf.mxu0
        %v2660 = vpop.f32.mrf.mxu0
        %v2661 = vadd.f32 %v2596, %v2660
        %v2662 = vpop.f32.mrf.mxu0
        %2663 = vdwg.mxu0
        %2664 = vmatprep.subr.bf16.mxu0 0
        %2665 = vmatpush1.bf16.msra.mxu0 %v2197
        %2666 = vmatprep.subr.bf16.mxu0 0
        %2667 = vmatpush1.bf16.msra.mxu0 %v2196
        %2668 = vmatprep.subr.bf16.mxu0 0
        %2669 = vmatpush1.bf16.msra.mxu0 %v2195
        %2670 = vmatprep.subr.bf16.mxu0 0
        %2671 = vmatpush1.bf16.msra.mxu0 %v2194
        %2672 = vmatprep.subr.bf16.mxu0 0
        %2673 = vmatpush1.bf16.msra.mxu0 %v2193
        %2674 = vmatprep.subr.bf16.mxu0 0
        %2675 = vmatpush1.bf16.msra.mxu0 %v2192
        %2676 = vmatprep.subr.bf16.mxu0 0
        %2677 = vmatpush1.bf16.msra.mxu0 %v2191
        %2678 = vmatprep.subr.bf16.mxu0 0
        %2679 = vmatpush1.bf16.msra.mxu0 %v2190
        %2680 = vmatprep.subr.bf16.mxu0 0
        %2681 = vmatpush2.bf16.msra.mxu0 %v2205
        %2682 = vmatprep.subr.bf16.mxu0 0
        %2683 = vmatpush2.bf16.msra.mxu0 %v2204
        %2684 = vmatprep.subr.bf16.mxu0 0
        %2685 = vmatpush2.bf16.msra.mxu0 %v2203
        %2686 = vmatprep.subr.bf16.mxu0 0
        %2687 = vmatpush2.bf16.msra.mxu0 %v2202
        %2688 = vmatprep.subr.bf16.mxu0 0
        %2689 = vmatpush2.bf16.msra.mxu0 %v2201
        %2690 = vmatprep.subr.bf16.mxu0 0
        %2691 = vmatpush2.bf16.msra.mxu0 %v2200
        %2692 = vmatprep.subr.bf16.mxu0 0
        %2693 = vmatpush2.bf16.msra.mxu0 %v2199
        %2694 = vmatprep.subr.bf16.mxu0 0
        %2695 = vmatpush2.bf16.msra.mxu0 %v2198
        %2696 = vmatprep.mubr.bf16.mxu0 %v1581
        %2697 = vmatmul.mubr.bf16.gmra.mxu0 %v1580
        %v2698 = vpop.f32.mrf.mxu0
        %v2699 = vadd.f32 %v2634, %v2698
        %v2700 = vpop.f32.mrf.mxu0
        %v2701 = vpop.f32.mrf.mxu0
        %v2702 = vadd.f32 %v2637, %v2701
        %v2703 = vpop.f32.mrf.mxu0
        %2704 = vmatprep.mubr.bf16.mxu0 %v1595
        %2705 = vmatmul.mubr.bf16.gmra.mxu0 %v1594
        %v2706 = vpop.f32.mrf.mxu0
        %v2707 = vadd.f32 %v2642, %v2706
        %v2708 = vpop.f32.mrf.mxu0
        %v2709 = vpop.f32.mrf.mxu0
        %v2710 = vadd.f32 %v2645, %v2709
        %v2711 = vpop.f32.mrf.mxu0
        %2712 = vmatprep.mubr.bf16.mxu0 %v1609
        %2713 = vmatmul.mubr.bf16.gmra.mxu0 %v1608
        %v2714 = vpop.f32.mrf.mxu0
        %v2715 = vadd.f32 %v2650, %v2714
        %v2716 = vpop.f32.mrf.mxu0
        %v2717 = vpop.f32.mrf.mxu0
        %v2718 = vadd.f32 %v2653, %v2717
        %v2719 = vpop.f32.mrf.mxu0
        %2720 = vmatprep.mubr.bf16.mxu0 %v1623
        %2721 = vmatmul.mubr.bf16.gmra.mxu0 %v1622
        %v2722 = vpop.f32.mrf.mxu0
        %v2723 = vadd.f32 %v2658, %v2722
        %v2724 = vpop.f32.mrf.mxu0
        %v2725 = vpop.f32.mrf.mxu0
        %v2726 = vadd.f32 %v2661, %v2725
        %v2727 = vpop.f32.mrf.mxu0
        %2728 = vdwg.mxu0
        %2729 = vmatprep.subr.bf16.mxu0 0
        %2730 = vmatpush1.bf16.msra.mxu0 %v2213
        %2731 = vmatprep.subr.bf16.mxu0 0
        %2732 = vmatpush1.bf16.msra.mxu0 %v2212
        %2733 = vmatprep.subr.bf16.mxu0 0
        %2734 = vmatpush1.bf16.msra.mxu0 %v2211
        %2735 = vmatprep.subr.bf16.mxu0 0
        %2736 = vmatpush1.bf16.msra.mxu0 %v2210
        %2737 = vmatprep.subr.bf16.mxu0 0
        %2738 = vmatpush1.bf16.msra.mxu0 %v2209
        %2739 = vmatprep.subr.bf16.mxu0 0
        %2740 = vmatpush1.bf16.msra.mxu0 %v2208
        %2741 = vmatprep.subr.bf16.mxu0 0
        %2742 = vmatpush1.bf16.msra.mxu0 %v2207
        %2743 = vmatprep.subr.bf16.mxu0 0
        %2744 = vmatpush1.bf16.msra.mxu0 %v2206
        %2745 = vmatprep.subr.bf16.mxu0 0
        %2746 = vmatpush2.bf16.msra.mxu0 0
        %2747 = vmatprep.subr.bf16.mxu0 0
        %2748 = vmatpush2.bf16.msra.mxu0 0
        %2749 = vmatprep.subr.bf16.mxu0 0
        %2750 = vmatpush2.bf16.msra.mxu0 0
        %2751 = vmatprep.subr.bf16.mxu0 0
        %2752 = vmatpush2.bf16.msra.mxu0 0
        %2753 = vmatprep.subr.bf16.mxu0 0
        %2754 = vmatpush2.bf16.msra.mxu0 %v2217
        %2755 = vmatprep.subr.bf16.mxu0 0
        %2756 = vmatpush2.bf16.msra.mxu0 %v2216
        %2757 = vmatprep.subr.bf16.mxu0 0
        %2758 = vmatpush2.bf16.msra.mxu0 %v2215
        %2759 = vmatprep.subr.bf16.mxu0 0
        %2760 = vmatpush2.bf16.msra.mxu0 %v2214
        %2761 = vmatprep.mubr.bf16.mxu0 %v2328
        %2762 = vmatmul.mubr.bf16.gmra.mxu0 %v1582
        %v2763 = vpop.f32.mrf.mxu0
        %v2764 = vadd.f32 %v2699, %v2763
        %v2765 = vpop.f32.mrf.mxu0
        %v2766 = vpop.f32.mrf.mxu0
        %v2767 = vadd.f32 %v2702, %v2766
        %v2768 = vpop.f32.mrf.mxu0
        %2769 = vmatprep.mubr.bf16.mxu0 %v2331
        %2770 = vmatmul.mubr.bf16.gmra.mxu0 %v1596
        %v2771 = vpop.f32.mrf.mxu0
        %v2772 = vadd.f32 %v2707, %v2771
        %v2773 = vpop.f32.mrf.mxu0
        %v2774 = vpop.f32.mrf.mxu0
        %v2775 = vadd.f32 %v2710, %v2774
        %v2776 = vpop.f32.mrf.mxu0
        %2777 = vmatprep.mubr.bf16.mxu0 %v2334
        %2778 = vmatmul.mubr.bf16.gmra.mxu0 %v1610
        %v2779 = vpop.f32.mrf.mxu0
        %v2780 = vadd.f32 %v2715, %v2779
        %v2781 = vpop.f32.mrf.mxu0
        %v2782 = vpop.f32.mrf.mxu0
        %v2783 = vadd.f32 %v2718, %v2782
        %v2784 = vpop.f32.mrf.mxu0
        %2785 = vmatprep.mubr.bf16.mxu0 %v2337
        %2786 = vmatmul.mubr.bf16.gmra.mxu0 %v1624
        %v2787 = vpop.f32.mrf.mxu0
        %v2788 = vadd.f32 %v2723, %v2787
        %v2789 = vpop.f32.mrf.mxu0
        %v2790 = vpop.f32.mrf.mxu0
        %v2791 = vadd.f32 %v2726, %v2790
        %v2792 = vpop.f32.mrf.mxu0
        %2793 = vdwg.mxu0
        %v2794 = vmax.f32 %v2764, 0.0
        %v2795 = vmax.f32 %v2767, 0.0
        %v2796 = vmax.f32 %v2772, 0.0
        %v2797 = vmax.f32 %v2775, 0.0
        %v2798 = vmax.f32 %v2780, 0.0
        %v2799 = vmax.f32 %v2783, 0.0
        %v2800 = vmax.f32 %v2788, 0.0
        %v2801 = vmax.f32 %v2791, 0.0
        %2802 = vst [vmem:[%s1110] sm:$0xff] %v2794
        %2803 = vst [vmem:[%s1110 + $0x8] sm:$0xff] %v2795
        %2804 = vst [vmem:[%s1110 + $0x10] sm:$0xff] %v2796
        %2805 = vst [vmem:[%s1110 + $0x18] sm:$0xff] %v2797
        %2806 = vst [vmem:[%s1110 + $0x20] sm:$0xff] %v2798
        %2807 = vst [vmem:[%s1110 + $0x28] sm:$0xff] %v2799
        %2808 = vst [vmem:[%s1110 + $0x30] sm:$0xff] %v2800
        %2809 = vst [vmem:[%s1110 + $0x38] sm:$0xff] %v2801
        %s2810 = sand.u32 %s114, 1
        %s2811 = sand.u32 %s114, 1
        %s2812 = smul.addr %s2811, 64
        %s2813 = scalar_lea.vmem [#allocation3], %s2812
        // Predicated region
        $region74: #{inception_block_d.7} parent=68 // pred_check
          %p2814 = pneg %p124
        $region75: #{inception_block_d.7} parent=68 // pred_check_branch
          %2816 = sbr.rel (%p2814) target = $region77
        $region76: #{inception_block_d.7} parent=68 // pred_region
          %s2817 = smul.u32 8, %s18
          %s2818 = smul.addr %s2817, 3
          %s2819 = sadd.s32 %s19, %s2818
          %s2820 = smul.addr %s2819, 8
          %s2821 = scalar_lea.vmem %s3, %s2820
          // Predicated region
          $region78: #{inception_block_d.7} parent=76 // pred_check
            _
          $region79: #{inception_block_d.7} parent=76 // pred_check_branch
            %2823 = sbr.rel (0) target = $region81
          $region80: #{inception_block_d.7} parent=76 // pred_region
            // Predicated region
            $region82: #{inception_block_d.7} parent=80 // pred_check
              _
            $region83: #{inception_block_d.7} parent=80 // pred_check_branch
              %2825 = sbr.rel (0) target = $region85
            $region84: #{inception_block_d.7} parent=80 // pred_region
              // Predicated region
              $region97: #{inception_block_d.7} parent=84 // pred_check
                _
              $region98: #{inception_block_d.7} parent=84 // pred_check_branch
                %2855 = sbr.rel (0) target = $region100
              $region99: #{inception_block_d.7} parent=84 // pred_region
                loop: start=0, step=1, limit=1
                $region101: #{inception_block_d.7} parent=99 // loop_pre_header
                  _
                $region102: #{inception_block_d.7} parent=99 // loop_header
                  %s2857 = sphi 0, %s2861
                  %p2858 = scmp.ge.s32.totalorder %s2857, 1
                  %s2862 = sphi %s2813, %s2813
                  %s2863 = sphi %s2821, %s2821
                $region103: #{inception_block_d.7} parent=99 // loop_header_branch
                  %2860 = sbr.rel (%p2858) target = $region107
                $region104: #{inception_block_d.7} parent=99 // loop_body
                  %v2864 = vld [vmem:[%s2862] sm:$0xff]
                  %2865 = vst [vmem:[%s2863] sm:$0xff] %v2864
                  %v2866 = vld [vmem:[%s2862 + $0x8] sm:$0xff]
                  %2867 = vst [vmem:[%s2863 + $0x18] sm:$0xff] %v2866
                  %v2868 = vld [vmem:[%s2862 + $0x10] sm:$0xff]
                  %2869 = vst [vmem:[%s2863 + $0x30] sm:$0xff] %v2868
                  %v2870 = vld [vmem:[%s2862 + $0x18] sm:$0xff]
                  %2871 = vst [vmem:[%s2863 + $0x48] sm:$0xff] %v2870
                  %v2872 = vld [vmem:[%s2862 + $0x20] sm:$0xff]
                  %2873 = vst [vmem:[%s2863 + $0x60] sm:$0xff] %v2872
                  %v2874 = vld [vmem:[%s2862 + $0x28] sm:$0xff]
                  %2875 = vst [vmem:[%s2863 + $0x78] sm:$0xff] %v2874
                  %v2876 = vld [vmem:[%s2862 + $0x30] sm:$0xff]
                  %2877 = vst [vmem:[%s2863 + $0x90] sm:$0xff] %v2876
                  %v2878 = vld [vmem:[%s2862 + $0x38] sm:$0xff]
                  %2879 = vst [vmem:[%s2863 + $0xa8] sm:$0xff] %v2878
                $region105: #{inception_block_d.7} parent=99 // loop_footer
                  %s2861 = sadd.s32 1, %s2857
                $region106: #{inception_block_d.7} parent=99 // loop_footer_branch
                  %2856 = sbr.rel target = $region102
                $region107: #{inception_block_d.7} parent=99 // loop_exit
                  _
              $region100: #{inception_block_d.7} parent=84 // pred_fallthru
                _
              // Predicated region
              $region108: #{inception_block_d.7} parent=84 // pred_check
                _
              $region109: #{inception_block_d.7} parent=84 // pred_check_branch
                %2881 = sbr.rel target = $region111
              $region110: #{inception_block_d.7} parent=84 // pred_region
                _
              $region111: #{inception_block_d.7} parent=84 // pred_fallthru
                _
            $region85: #{inception_block_d.7} parent=80 // pred_fallthru
              _
            // Predicated region
            $region86: #{inception_block_d.7} parent=80 // pred_check
              _
            $region87: #{inception_block_d.7} parent=80 // pred_check_branch
              %2827 = sbr.rel target = $region89
            $region88: #{inception_block_d.7} parent=80 // pred_region
              %s2829 = ssub.s32 256, 1
              loop: start=0, step=1, limit=1
              $region90: #{inception_block_d.7} parent=88 // loop_pre_header
                _
              $region91: #{inception_block_d.7} parent=88 // loop_header
                %s2831 = sphi 0, %s2835
                %p2832 = scmp.ge.s32.totalorder %s2831, 1
                %s2836 = sphi %s2813, %s2813
                %s2837 = sphi %s2821, %s2821
              $region92: #{inception_block_d.7} parent=88 // loop_header_branch
                %2834 = sbr.rel (%p2832) target = $region96
              $region93: #{inception_block_d.7} parent=88 // loop_body
                %v2838 = vld [vmem:[%s2836] sm:%s2829]
                %2839 = vst [vmem:[%s2837] sm:%s2829] %v2838
                %v2840 = vld [vmem:[%s2836 + $0x8] sm:%s2829]
                %2841 = vst [vmem:[%s2837 + $0x18] sm:%s2829] %v2840
                %v2842 = vld [vmem:[%s2836 + $0x10] sm:%s2829]
                %2843 = vst [vmem:[%s2837 + $0x30] sm:%s2829] %v2842
                %v2844 = vld [vmem:[%s2836 + $0x18] sm:%s2829]
                %2845 = vst [vmem:[%s2837 + $0x48] sm:%s2829] %v2844
                %v2846 = vld [vmem:[%s2836 + $0x20] sm:%s2829]
                %2847 = vst [vmem:[%s2837 + $0x60] sm:%s2829] %v2846
                %v2848 = vld [vmem:[%s2836 + $0x28] sm:%s2829]
                %2849 = vst [vmem:[%s2837 + $0x78] sm:%s2829] %v2848
                %v2850 = vld [vmem:[%s2836 + $0x30] sm:%s2829]
                %2851 = vst [vmem:[%s2837 + $0x90] sm:%s2829] %v2850
                %v2852 = vld [vmem:[%s2836 + $0x38] sm:%s2829]
                %2853 = vst [vmem:[%s2837 + $0xa8] sm:%s2829] %v2852
              $region94: #{inception_block_d.7} parent=88 // loop_footer
                %s2835 = sadd.s32 1, %s2831
              $region95: #{inception_block_d.7} parent=88 // loop_footer_branch
                %2830 = sbr.rel target = $region91
              $region96: #{inception_block_d.7} parent=88 // loop_exit
                _
            $region89: #{inception_block_d.7} parent=80 // pred_fallthru
              _
          $region81: #{inception_block_d.7} parent=76 // pred_fallthru
            _
          %2882 = vnop
        $region77: #{inception_block_d.7} parent=68 // pred_fallthru
          _
      $region69: #{inception_block_d.7} parent=5 // pred_fallthru
        _
      %p2883 = scmp.le.s32.totalorder 2, %s9
      // Predicated region
      $region112: #{inception_block_d.7} parent=5 // pred_check
        %p2884 = pneg %p2883
      $region113: #{inception_block_d.7} parent=5 // pred_check_branch
        %2886 = sbr.rel (%p2884) target = $region115
      $region114: #{inception_block_d.7} parent=5 // pred_region
        %s2887 = ssub.s32 %s9, 2
        // Predicated region
        $region116: #{inception_block_d.7} parent=114 // pred_check
          %p2888 = pneg %p130
        $region117: #{inception_block_d.7} parent=114 // pred_check_branch
          %2890 = sbr.rel (%p2888) target = $region119
        $region118: #{inception_block_d.7} parent=114 // pred_region
          %s2891 = sand.u32 %s115, 1
          %s2892 = sand.u32 %s115, 1
          %s2893 = smul.addr %s2892, 64
          %s2894 = scalar_lea.vmem [#allocation3], %s2893
        $region119: #{inception_block_d.7} parent=114 // pred_fallthru
          _
      $region115: #{inception_block_d.7} parent=5 // pred_fallthru
        _
    $region6: #{inception_block_d.7} parent=1 // loop_footer
      %s13 = sadd.s32 1, %s9
    $region7: #{inception_block_d.7} parent=1 // loop_footer_branch
      %8 = sbr.rel target = $region3
    $region8: #{inception_block_d.7} parent=1 // loop_exit
      _

// kernel: inception_block_d.11
$region0: #{inception_block_d.11}
  #allocation0 [shape = 'u32[]', space=smem, size = 0x4, offset = 0x4, fixed_abs, tag = 'smem constant byte address 0x4 - core index']
  #allocation1 [shape = 'u32[144,128]{1,0:T(1,128)}', space=vmem, size = 0x12000, scoped, tag = 'internal scratch']
  %s0 = inlined_call_operand.vmem [shape: f32[9,8,128], index: 0, kind: input, shape index: {}]
  %s1 = inlined_call_operand.vmem [shape: f32[8,128], index: 1, kind: output, shape index: {}]
  %s2 = sld [smem:[#allocation0]]
  $region14: #{inception_block_d.11} parent=0
    _
  %s4 = ssub.s32 1, %s2
  %s5 = scalar_select 0, %s4, %s2
  // Predicated region
  $region2: #{inception_block_d.11} parent=0 // pred_check
    _
  $region3: #{inception_block_d.11} parent=0 // pred_check_branch
    %7 = sbr.rel (0) target = $region5
  $region4: #{inception_block_d.11} parent=0 // pred_region
    _
  $region5: #{inception_block_d.11} parent=0 // pred_fallthru
    _
  %v8 = vld [vmem:[%s0] sm:$0xff]
  %v9 = vld [vmem:[%s0 + $0x8] sm:$0xff]
  %v10 = vld [vmem:[%s0 + $0x10] sm:$0xff]
  %v11 = vld [vmem:[%s0 + $0x18] sm:$0xff]
  %v12 = vld [vmem:[%s0 + $0x20] sm:$0xff]
  %v13 = vld [vmem:[%s0 + $0x28] sm:$0xff]
  %v14 = vld [vmem:[%s0 + $0x30] sm:$0xff]
  %v15 = vld [vmem:[%s0 + $0x38] sm:$0xff]
  %v16 = vld [vmem:[%s0 + $0x40] sm:$0xff]
  %v17 = vmax.f32 %v8, %v12
  %v18 = vmax.f32 %v9, %v13
  %v19 = vmax.f32 %v10, %v14
  %v20 = vmax.f32 %v11, %v15
  %v21 = vmax.f32 %v17, %v16
  %v22 = vmax.f32 %v21, %v18
  %v23 = vmax.f32 %v19, %v20
  %v24 = vmax.f32 %v22, %v23
  %25 = vst [vmem:[%s1] sm:$0xff] %v24
  // Predicated region
  $region6: #{inception_block_d.11} parent=0 // pred_check
    _
  $region7: #{inception_block_d.11} parent=0 // pred_check_branch
    %27 = sbr.rel (0) target = $region9
  $region8: #{inception_block_d.11} parent=0 // pred_region
    _
  $region9: #{inception_block_d.11} parent=0 // pred_fallthru
    _
  // Predicated region
  $region10: #{inception_block_d.11} parent=0 // pred_check
    _
  $region11: #{inception_block_d.11} parent=0 // pred_check_branch
    %29 = sbr.rel (0) target = $region13
  $region12: #{inception_block_d.11} parent=0 // pred_region
    _
  $region13: #{inception_block_d.11} parent=0 // pred_fallthru
    _

</llo_original>
